<compile_context>
chip_gen: v6e
topology: v6e:2x2x1
jax: 0.10.0
libtpu: 0.0.40
codegen_flags: <defaults>
</compile_context>

<pallas_src>
import functools

import jax
import jax.numpy as jnp
from jax.experimental import pallas as pl
from jax.experimental.pallas import tpu as pltpu

_LANE = 128
_VMEM_LIMIT_BYTES = 48 * 1024 * 1024   # <= v7x-safe ceiling, plenty on v5e/v6e


def _pair(v):
    if isinstance(v, (tuple, list)):
        return int(v[0]), int(v[1])
    return int(v), int(v)


def _round_up(x, m):
    return (x + m - 1) // m * m


def _fold_bn_into_weight(weight, gamma, beta, mean, var, bn_eps,
                         cin_pad, cout_pad, compute_dtype):
    """weight: (C_out, C_in, Kh, Kw) torch OIHW layout.

    Folds eval-mode BatchNorm scale into the conv weight and returns
      w: (Kh*Kw, cin_pad, cout_pad) in compute_dtype (zero-padded channels)
      b: (1, cout_pad) float32 folded BN bias
    """
    c_out, c_in, kh, kw = weight.shape
    scale = gamma / jnp.sqrt(var + bn_eps)                       # (C_out,)
    bias = beta - mean * scale                                   # (C_out,)
    w = jnp.transpose(weight, (2, 3, 1, 0)).reshape(kh * kw, c_in, c_out)
    w = w * scale[None, None, :]                                 # fold BN scale
    w = jnp.pad(w, ((0, 0), (0, cin_pad - c_in), (0, cout_pad - c_out)))
    b = jnp.pad(bias, (0, cout_pad - c_out)).reshape(1, cout_pad)
    return w.astype(compute_dtype), b.astype(jnp.float32)


def _conv_bn_relu_kernel(x_ref, w_ref, b_ref, o_ref, *, Kh, Kw, Hv, Wv):
    """Stride-1 'valid' conv over one pre-padded image plane + bias + ReLU.

    x_ref: (1, Hp, Wp, Cin_pad)        compute dtype (bf16)
    w_ref: (Kh*Kw, Cin_pad, Cout_pad)  compute dtype, BN scale folded in
    b_ref: (1, Cout_pad)               f32 folded BN bias
    o_ref: (1, Hv, Wv, Cout_pad)
    """
    cin = x_ref.shape[-1]
    cout = o_ref.shape[-1]
    acc = jnp.zeros((Hv * Wv, cout), jnp.float32)
    for kh in range(Kh):                                   # unrolled, Kh*Kw <= 9
        for kw in range(Kw):
            patch = x_ref[0, pl.ds(kh, Hv), pl.ds(kw, Wv), :].reshape(Hv * Wv, cin)
            acc = acc + jnp.dot(patch, w_ref[kh * Kw + kw],
                                preferred_element_type=jnp.float32)
    y = jnp.maximum(acc + b_ref[...], 0.0)                 # f32 epilogue (v5e-safe)
    o_ref[...] = y.reshape(1, Hv, Wv, cout).astype(o_ref.dtype)


def _conv1x3_3x1_concat_kernel(x_ref, w13_ref, b13_ref, w31_ref, b31_ref, o_ref,
                               *, H, W):
    """Fused conv1x3 + conv3x1 heads + channel concat for one image plane.

    x_ref:   (1, H+2, W+2, Cin_pad)   input padded by 1 on each spatial side
    w13_ref: (3, Cin_pad, Cout_pad)   taps along kw   (kernel (1,3), pad (0,1))
    w31_ref: (3, Cin_pad, Cout_pad)   taps along kh   (kernel (3,1), pad (1,0))
    b13_ref, b31_ref: (1, Cout_pad)   f32
    o_ref:   (1, H, W, 2*Cout_pad)    channels = [conv1x3 | conv3x1]
    """
    cin = x_ref.shape[-1]
    cop = w13_ref.shape[-1]

    acc1 = jnp.zeros((H * W, cop), jnp.float32)
    for kw in range(3):
        patch = x_ref[0, pl.ds(1, H), pl.ds(kw, W), :].reshape(H * W, cin)
        acc1 = acc1 + jnp.dot(patch, w13_ref[kw], preferred_element_type=jnp.float32)
    y1 = jnp.maximum(acc1 + b13_ref[...], 0.0).reshape(1, H, W, cop)

    acc2 = jnp.zeros((H * W, cop), jnp.float32)
    for kh in range(3):
        patch = x_ref[0, pl.ds(kh, H), pl.ds(1, W), :].reshape(H * W, cin)
        acc2 = acc2 + jnp.dot(patch, w31_ref[kh], preferred_element_type=jnp.float32)
    y2 = jnp.maximum(acc2 + b31_ref[...], 0.0).reshape(1, H, W, cop)

    o_ref[...] = jnp.concatenate([y1, y2], axis=-1).astype(o_ref.dtype)


def _conv_bn_relu_nhwc(x, weight, gamma, beta, mean, var, *, bn_eps, stride,
                       padding, compute_dtype, out_dtype):
    """One ConvBlock on NHWC/channel-padded activations.

    x: (N, H, W, Cin_pad).  Returns (N, H_out, W_out, Cout_pad)."""
    n, h, w, cin_pad = x.shape
    c_out, _, kh, kw = weight.shape
    sh, sw = _pair(stride)
    ph, pw = _pair(padding)
    cout_pad = _round_up(c_out, _LANE)

    wf, bf = _fold_bn_into_weight(weight, gamma, beta, mean, var, bn_eps,
                                  cin_pad, cout_pad, compute_dtype)
    xp = jnp.pad(x, ((0, 0), (ph, ph), (pw, pw), (0, 0)))      # zero spatial pad
    hp, wp = h + 2 * ph, w + 2 * pw
    hv, wv = hp - kh + 1, wp - kw + 1                          # stride-1 valid dims

    out = pl.pallas_call(
        functools.partial(_conv_bn_relu_kernel, Kh=kh, Kw=kw, Hv=hv, Wv=wv),
        out_shape=jax.ShapeDtypeStruct((n, hv, wv, cout_pad), out_dtype),
        grid_spec=pltpu.PrefetchScalarGridSpec(
            num_scalar_prefetch=0,
            grid=(n,),
            in_specs=[
                pl.BlockSpec((1, hp, wp, cin_pad), lambda i: (i, 0, 0, 0)),
                pl.BlockSpec((kh * kw, cin_pad, cout_pad), lambda i: (0, 0, 0)),
                pl.BlockSpec((1, cout_pad), lambda i: (0, 0)),
            ],
            out_specs=pl.BlockSpec((1, hv, wv, cout_pad), lambda i: (i, 0, 0, 0)),
        ),
        compiler_params=pltpu.CompilerParams(
            dimension_semantics=("parallel",),
            vmem_limit_bytes=_VMEM_LIMIT_BYTES),
    )(xp, wf, bf)

    if sh > 1 or sw > 1:
        # Stride > 1 handled by subsampling the stride-1 result (not used by
        # InceptionV3's ConvSeq3x3Branch, where all strides are 1).
        out = out[:, ::sh, ::sw, :]
    return out


def _conv1x3_3x1_concat_nhwc(x, p13, p31, *, bn_eps, compute_dtype, out_dtype):
    """Fused conv1x3 / conv3x1 heads; returns ((N,H,W,2*Cop), C_real, C_padded)."""
    n, h, w, cin_pad = x.shape
    w13, g13, be13, m13, v13 = p13
    w31, g31, be31, m31, v31 = p31
    c = w13.shape[0]                                            # real per-head channels
    cop = _round_up(c, _LANE)

    w13f, b13f = _fold_bn_into_weight(w13, g13, be13, m13, v13, bn_eps,
                                      cin_pad, cop, compute_dtype)
    w31f, b31f = _fold_bn_into_weight(w31, g31, be31, m31, v31, bn_eps,
                                      cin_pad, cop, compute_dtype)
    xp = jnp.pad(x, ((0, 0), (1, 1), (1, 1), (0, 0)))           # max of both paddings

    out = pl.pallas_call(
        functools.partial(_conv1x3_3x1_concat_kernel, H=h, W=w),
        out_shape=jax.ShapeDtypeStruct((n, h, w, 2 * cop), out_dtype),
        grid_spec=pltpu.PrefetchScalarGridSpec(
            num_scalar_prefetch=0,
            grid=(n,),
            in_specs=[
                pl.BlockSpec((1, h + 2, w + 2, cin_pad), lambda i: (i, 0, 0, 0)),
                pl.BlockSpec((3, cin_pad, cop), lambda i: (0, 0, 0)),
                pl.BlockSpec((1, cop), lambda i: (0, 0)),
                pl.BlockSpec((3, cin_pad, cop), lambda i: (0, 0, 0)),
                pl.BlockSpec((1, cop), lambda i: (0, 0)),
            ],
            out_specs=pl.BlockSpec((1, h, w, 2 * cop), lambda i: (i, 0, 0, 0)),
        ),
        compiler_params=pltpu.CompilerParams(
            dimension_semantics=("parallel",),
            vmem_limit_bytes=_VMEM_LIMIT_BYTES),
    )(xp, w13f, b13f, w31f, b31f)
    return out, c, cop


def conv_seq3x3_branch(x_nchw, conv_params, strides_list, padding_list,
                       conv1x3_params, conv3x1_params, bn_eps,
                       compute_dtype=jnp.bfloat16):
    """Forward of InceptionV3's ConvSeq3x3Branch.

    x_nchw: (N, C_in, H, W).  conv_params: list of
    (weight(OIHW), gamma, beta, running_mean, running_var) for conv_list;
    conv1x3_params / conv3x1_params likewise.  Returns (N, 2*C_last, H', W').
    """
    # TODO(synk): eval-mode BatchNorm only (running stats folded into the conv);
    # training-mode batch statistics are not implemented.
    n, c_in, h, w = x_nchw.shape
    out_dtype = x_nchw.dtype

    # Single NCHW -> NHWC transpose, channel pad to a 128-lane multiple, bf16 cast
    # (one fused XLA op); all intermediates stay NHWC / channel-padded.
    cin_pad = _round_up(c_in, _LANE)
    x = jnp.transpose(x_nchw, (0, 2, 3, 1))
    x = jnp.pad(x, ((0, 0), (0, 0), (0, 0), (0, cin_pad - c_in))).astype(compute_dtype)

    for (cw, cg, cb, cm, cv), s, p in zip(conv_params, strides_list, padding_list):
        x = _conv_bn_relu_nhwc(x, cw, cg, cb, cm, cv, bn_eps=bn_eps, stride=s,
                               padding=p, compute_dtype=compute_dtype,
                               out_dtype=compute_dtype)

    out, c, cop = _conv1x3_3x1_concat_nhwc(x, conv1x3_params, conv3x1_params,
                                           bn_eps=bn_eps,
                                           compute_dtype=compute_dtype,
                                           out_dtype=out_dtype)

    # Drop channel padding (if any) and do the single NHWC -> NCHW transpose.
    if c == cop:
        y = out                                            # already the concat
    else:
        y = jnp.concatenate([out[..., :c], out[..., cop:cop + c]], axis=-1)
    return jnp.transpose(y, (0, 3, 1, 2))


# ----------------------------- pure-JAX reference -----------------------------

def _conv_block_ref(x, weight, gamma, beta, mean, var, bn_eps, stride, padding):
    sh, sw = _pair(stride)
    ph, pw = _pair(padding)
    y = jax.lax.conv_general_dilated(
        x, weight, window_strides=(sh, sw), padding=((ph, ph), (pw, pw)),
        dimension_numbers=("NCHW", "OIHW", "NCHW"))
    scale = gamma / jnp.sqrt(var + bn_eps)
    bias = beta - mean * scale
    y = y * scale[None, :, None, None] + bias[None, :, None, None]
    return jnp.maximum(y, 0.0)


def _reference(x, conv_params, strides_list, padding_list, p13, p31, bn_eps):
    for prm, s, p in zip(conv_params, strides_list, padding_list):
        x = _conv_block_ref(x, *prm, bn_eps, s, p)
    y1 = _conv_block_ref(x, *p13, bn_eps, 1, (0, 1))
    y2 = _conv_block_ref(x, *p31, bn_eps, 1, (1, 0))
    return jnp.concatenate([y1, y2], axis=1)


# ------------------------------------ main ------------------------------------

if __name__ == "__main__":
    key = jax.random.PRNGKey(0)
    n, c_in, h, w = 2, 4, 16, 16
    out_channels_list = (8, 16)       # small stand-in for InceptionC's (448, 384)
    kernel_size_list = (1, 3)
    strides_list = (1, 1)
    padding_list = (0, 1)
    bn_eps = 1e-3

    kit = iter(jax.random.split(key, 32))

    def make_conv_block_params(cin, cout, kh, kw):
        weight = 0.1 * jax.random.normal(next(kit), (cout, cin, kh, kw), jnp.float32)
        gamma = 1.0 + 0.1 * jax.random.normal(next(kit), (cout,), jnp.float32)
        beta = 0.1 * jax.random.normal(next(kit), (cout,), jnp.float32)
        mean = 0.1 * jax.random.normal(next(kit), (cout,), jnp.float32)
        var = jnp.abs(jax.random.normal(next(kit), (cout,), jnp.float32)) + 0.5
        return (weight, gamma, beta, mean, var)

    x = jax.random.normal(next(kit), (n, c_in, h, w), dtype=jnp.float32)

    conv_params = []
    cin = c_in
    for cout, k in zip(out_channels_list, kernel_size_list):
        kh, kw = _pair(k)
        conv_params.append(make_conv_block_params(cin, cout, kh, kw))
        cin = cout
    conv1x3_params = make_conv_block_params(cin, cin, 1, 3)
    conv3x1_params = make_conv_block_params(cin, cin, 3, 1)

    @jax.jit
    def branch(x, conv_params, p13, p31):
        return conv_seq3x3_branch(x, conv_params, strides_list, padding_list,
                                  p13, p31, bn_eps, compute_dtype=jnp.bfloat16)

    out = branch(x, conv_params, conv1x3_params, conv3x1_params)
    out = jax.block_until_ready(out)

    ref = _reference(x, conv_params, strides_list, padding_list,
                     conv1x3_params, conv3x1_params, bn_eps)

    assert out.shape == ref.shape == (n, 2 * cin, h, w), (out.shape, ref.shape)
    err = float(jnp.max(jnp.abs(out.astype(jnp.float32) - ref)))
    # bf16 activations/weights (f32 accumulation) -> loosened tolerance.
    assert jnp.allclose(out, ref, atol=5e-2, rtol=5e-2), f"max abs err {err}"
    print("KERNEL_OK")
</pallas_src>

<mosaic_0001>
module attributes {stable_mosaic.version = 11 : i64} {
  func.func @_conv_bn_relu_kernel(%arg0: i32, %arg1: memref<1x16x16x128xbf16, #tpu.memory_space<vmem>>, %arg2: memref<1x128x128xbf16, #tpu.memory_space<vmem>>, %arg3: memref<1x128xf32, #tpu.memory_space<vmem>>, %arg4: memref<1x16x16x128xbf16, #tpu.memory_space<vmem>>) attributes {dimension_semantics = [#tpu.dimension_semantics<parallel>], iteration_bounds = array<i64: 2>, scalar_prefetch = 0 : i64, scratch_operands = 0 : i64, tpu.core_type = #tpu.core_type<tc>, window_params = [{transform_indices = @transform_0, window_bounds = array<i64: 1, 16, 16, 128>}, {pipeline_mode = #tpu.pipeline_mode<synchronous>, transform_indices = @transform_1, window_bounds = array<i64: 1, 128, 128>}, {pipeline_mode = #tpu.pipeline_mode<synchronous>, transform_indices = @transform_2, window_bounds = array<i64: 1, 128>}, {transform_indices = @transform_3, window_bounds = array<i64: 1, 16, 16, 128>}]} {
    %cst = arith.constant 0.000000e+00 : f32
    %0 = vector.broadcast %cst : f32 to vector<256x128xf32>
    %c0 = arith.constant 0 : index
    %c0_0 = arith.constant 0 : index
    %c0_1 = arith.constant 0 : index
    %c0_2 = arith.constant 0 : index
    %1 = vector.load %arg1[%c0, %c0_0, %c0_1, %c0_2] : memref<1x16x16x128xbf16, #tpu.memory_space<vmem>>, vector<1x16x16x128xbf16>
    %2 = vector.shape_cast %1 : vector<1x16x16x128xbf16> to vector<16x16x128xbf16>
    %3 = vector.shape_cast %2 : vector<16x16x128xbf16> to vector<256x128xbf16>
    %c0_3 = arith.constant 0 : index
    %c0_4 = arith.constant 0 : index
    %c0_5 = arith.constant 0 : index
    %4 = vector.load %arg2[%c0_3, %c0_4, %c0_5] : memref<1x128x128xbf16, #tpu.memory_space<vmem>>, vector<1x128x128xbf16>
    %5 = vector.shape_cast %4 : vector<1x128x128xbf16> to vector<128x128xbf16>
    %cst_6 = arith.constant dense<0.000000e+00> : vector<256x128xf32>
    %6 = tpu.matmul %3, %5, %cst_6 {dimension_numbers = #tpu.dot_dimension_numbers<[1], [0], [0], [1], [0, 0, 1, 1], [], []>} : vector<256x128xbf16>, vector<128x128xbf16>, vector<256x128xf32> -> vector<256x128xf32>
    %7 = arith.addf %0, %6 : vector<256x128xf32>
    %c0_7 = arith.constant 0 : index
    %c0_8 = arith.constant 0 : index
    %8 = vector.load %arg3[%c0_7, %c0_8] : memref<1x128xf32, #tpu.memory_space<vmem>>, vector<1x128xf32>
    %9 = vector.broadcast %8 : vector<1x128xf32> to vector<256x128xf32>
    %10 = arith.addf %7, %9 : vector<256x128xf32>
    %cst_9 = arith.constant 0.000000e+00 : f32
    %11 = vector.broadcast %cst_9 : f32 to vector<256x128xf32>
    %12 = arith.maximumf %10, %11 : vector<256x128xf32>
    %13 = vector.shape_cast %12 : vector<256x128xf32> to vector<1x16x16x128xf32>
    %14 = arith.truncf %13 : vector<1x16x16x128xf32> to vector<1x16x16x128xbf16>
    %c0_10 = arith.constant 0 : index
    %c0_11 = arith.constant 0 : index
    %c0_12 = arith.constant 0 : index
    %c0_13 = arith.constant 0 : index
    %15 = vector.load %arg4[%c0_10, %c0_11, %c0_12, %c0_13] : memref<1x16x16x128xbf16, #tpu.memory_space<vmem>>, vector<1x16x16x128xbf16>
    tpu.vector_store %arg4[%c0_10, %c0_11, %c0_12, %c0_13], %14 {strides = array<i32>} : memref<1x16x16x128xbf16, #tpu.memory_space<vmem>>, vector<1x16x16x128xbf16>,
    return
  }
  func.func @transform_0(%arg0: i32) -> (i32, i32, i32, i32) {
    %c0_i32 = arith.constant 0 : i32
    %c0_i32_0 = arith.constant 0 : i32
    %c0_i32_1 = arith.constant 0 : i32
    %c0_i32_2 = arith.constant 0 : i32
    return %arg0, %c0_i32, %c0_i32_0, %c0_i32_1 : i32, i32, i32, i32
  }
  func.func @transform_1(%arg0: i32) -> (i32, i32, i32) {
    %c0_i32 = arith.constant 0 : i32
    %c0_i32_0 = arith.constant 0 : i32
    %c0_i32_1 = arith.constant 0 : i32
    %c0_i32_2 = arith.constant 0 : i32
    return %c0_i32, %c0_i32_0, %c0_i32_1 : i32, i32, i32
  }
  func.func @transform_2(%arg0: i32) -> (i32, i32) {
    %c0_i32 = arith.constant 0 : i32
    %c0_i32_0 = arith.constant 0 : i32
    %c0_i32_1 = arith.constant 0 : i32
    return %c0_i32, %c0_i32_0 : i32, i32
  }
  func.func @transform_3(%arg0: i32) -> (i32, i32, i32, i32) {
    %c0_i32 = arith.constant 0 : i32
    %c0_i32_0 = arith.constant 0 : i32
    %c0_i32_1 = arith.constant 0 : i32
    %c0_i32_2 = arith.constant 0 : i32
    return %arg0, %c0_i32, %c0_i32_0, %c0_i32_1 : i32, i32, i32, i32
  }
}

module attributes {stable_mosaic.version = 11 : i64} {
  func.func @_conv_bn_relu_kernel(%arg0: i32, %arg1: memref<1x18x18x128xbf16, #tpu.memory_space<vmem>>, %arg2: memref<9x128x128xbf16, #tpu.memory_space<vmem>>, %arg3: memref<1x128xf32, #tpu.memory_space<vmem>>, %arg4: memref<1x16x16x128xbf16, #tpu.memory_space<vmem>>) attributes {dimension_semantics = [#tpu.dimension_semantics<parallel>], iteration_bounds = array<i64: 2>, scalar_prefetch = 0 : i64, scratch_operands = 0 : i64, tpu.core_type = #tpu.core_type<tc>, window_params = [{transform_indices = @transform_0, window_bounds = array<i64: 1, 18, 18, 128>}, {pipeline_mode = #tpu.pipeline_mode<synchronous>, transform_indices = @transform_1, window_bounds = array<i64: 9, 128, 128>}, {pipeline_mode = #tpu.pipeline_mode<synchronous>, transform_indices = @transform_2, window_bounds = array<i64: 1, 128>}, {transform_indices = @transform_3, window_bounds = array<i64: 1, 16, 16, 128>}]} {
    %cst = arith.constant 0.000000e+00 : f32
    %0 = vector.broadcast %cst : f32 to vector<256x128xf32>
    %c0 = arith.constant 0 : index
    %c0_0 = arith.constant 0 : index
    %c0_1 = arith.constant 0 : index
    %c0_2 = arith.constant 0 : index
    %1 = vector.load %arg1[%c0, %c0_0, %c0_1, %c0_2] : memref<1x18x18x128xbf16, #tpu.memory_space<vmem>>, vector<1x16x16x128xbf16>
    %2 = vector.shape_cast %1 : vector<1x16x16x128xbf16> to vector<16x16x128xbf16>
    %3 = vector.shape_cast %2 : vector<16x16x128xbf16> to vector<256x128xbf16>
    %c0_3 = arith.constant 0 : index
    %c0_4 = arith.constant 0 : index
    %c0_5 = arith.constant 0 : index
    %4 = vector.load %arg2[%c0_3, %c0_4, %c0_5] : memref<9x128x128xbf16, #tpu.memory_space<vmem>>, vector<1x128x128xbf16>
    %5 = vector.shape_cast %4 : vector<1x128x128xbf16> to vector<128x128xbf16>
    %cst_6 = arith.constant dense<0.000000e+00> : vector<256x128xf32>
    %6 = tpu.matmul %3, %5, %cst_6 {dimension_numbers = #tpu.dot_dimension_numbers<[1], [0], [0], [1], [0, 0, 1, 1], [], []>} : vector<256x128xbf16>, vector<128x128xbf16>, vector<256x128xf32> -> vector<256x128xf32>
    %7 = arith.addf %0, %6 : vector<256x128xf32>
    %c0_7 = arith.constant 0 : index
    %c0_8 = arith.constant 0 : index
    %c1 = arith.constant 1 : index
    %c0_9 = arith.constant 0 : index
    %8 = vector.load %arg1[%c0_7, %c0_8, %c1, %c0_9] : memref<1x18x18x128xbf16, #tpu.memory_space<vmem>>, vector<1x16x16x128xbf16>
    %9 = vector.shape_cast %8 : vector<1x16x16x128xbf16> to vector<16x16x128xbf16>
    %10 = vector.shape_cast %9 : vector<16x16x128xbf16> to vector<256x128xbf16>
    %c1_10 = arith.constant 1 : index
    %c0_11 = arith.constant 0 : index
    %c0_12 = arith.constant 0 : index
    %11 = vector.load %arg2[%c1_10, %c0_11, %c0_12] : memref<9x128x128xbf16, #tpu.memory_space<vmem>>, vector<1x128x128xbf16>
    %12 = vector.shape_cast %11 : vector<1x128x128xbf16> to vector<128x128xbf16>
    %cst_13 = arith.constant dense<0.000000e+00> : vector<256x128xf32>
    %13 = tpu.matmul %10, %12, %cst_13 {dimension_numbers = #tpu.dot_dimension_numbers<[1], [0], [0], [1], [0, 0, 1, 1], [], []>} : vector<256x128xbf16>, vector<128x128xbf16>, vector<256x128xf32> -> vector<256x128xf32>
    %14 = arith.addf %7, %13 : vector<256x128xf32>
    %c0_14 = arith.constant 0 : index
    %c0_15 = arith.constant 0 : index
    %c2 = arith.constant 2 : index
    %c0_16 = arith.constant 0 : index
    %15 = vector.load %arg1[%c0_14, %c0_15, %c2, %c0_16] : memref<1x18x18x128xbf16, #tpu.memory_space<vmem>>, vector<1x16x16x128xbf16>
    %16 = vector.shape_cast %15 : vector<1x16x16x128xbf16> to vector<16x16x128xbf16>
    %17 = vector.shape_cast %16 : vector<16x16x128xbf16> to vector<256x128xbf16>
    %c2_17 = arith.constant 2 : index
    %c0_18 = arith.constant 0 : index
    %c0_19 = arith.constant 0 : index
    %18 = vector.load %arg2[%c2_17, %c0_18, %c0_19] : memref<9x128x128xbf16, #tpu.memory_space<vmem>>, vector<1x128x128xbf16>
    %19 = vector.shape_cast %18 : vector<1x128x128xbf16> to vector<128x128xbf16>
    %cst_20 = arith.constant dense<0.000000e+00> : vector<256x128xf32>
    %20 = tpu.matmul %17, %19, %cst_20 {dimension_numbers = #tpu.dot_dimension_numbers<[1], [0], [0], [1], [0, 0, 1, 1], [], []>} : vector<256x128xbf16>, vector<128x128xbf16>, vector<256x128xf32> -> vector<256x128xf32>
    %21 = arith.addf %14, %20 : vector<256x128xf32>
    %c0_21 = arith.constant 0 : index
    %c1_22 = arith.constant 1 : index
    %c0_23 = arith.constant 0 : index
    %c0_24 = arith.constant 0 : index
    %22 = vector.load %arg1[%c0_21, %c1_22, %c0_23, %c0_24] : memref<1x18x18x128xbf16, #tpu.memory_space<vmem>>, vector<1x16x16x128xbf16>
    %23 = vector.shape_cast %22 : vector<1x16x16x128xbf16> to vector<16x16x128xbf16>
    %24 = vector.shape_cast %23 : vector<16x16x128xbf16> to vector<256x128xbf16>
    %c3 = arith.constant 3 : index
    %c0_25 = arith.constant 0 : index
    %c0_26 = arith.constant 0 : index
    %25 = vector.load %arg2[%c3, %c0_25, %c0_26] : memref<9x128x128xbf16, #tpu.memory_space<vmem>>, vector<1x128x128xbf16>
    %26 = vector.shape_cast %25 : vector<1x128x128xbf16> to vector<128x128xbf16>
    %cst_27 = arith.constant dense<0.000000e+00> : vector<256x128xf32>
    %27 = tpu.matmul %24, %26, %cst_27 {dimension_numbers = #tpu.dot_dimension_numbers<[1], [0], [0], [1], [0, 0, 1, 1], [], []>} : vector<256x128xbf16>, vector<128x128xbf16>, vector<256x128xf32> -> vector<256x128xf32>
    %28 = arith.addf %21, %27 : vector<256x128xf32>
    %c0_28 = arith.constant 0 : index
    %c1_29 = arith.constant 1 : index
    %c1_30 = arith.constant 1 : index
    %c0_31 = arith.constant 0 : index
    %29 = vector.load %arg1[%c0_28, %c1_29, %c1_30, %c0_31] : memref<1x18x18x128xbf16, #tpu.memory_space<vmem>>, vector<1x16x16x128xbf16>
    %30 = vector.shape_cast %29 : vector<1x16x16x128xbf16> to vector<16x16x128xbf16>
    %31 = vector.shape_cast %30 : vector<16x16x128xbf16> to vector<256x128xbf16>
    %c4 = arith.constant 4 : index
    %c0_32 = arith.constant 0 : index
    %c0_33 = arith.constant 0 : index
    %32 = vector.load %arg2[%c4, %c0_32, %c0_33] : memref<9x128x128xbf16, #tpu.memory_space<vmem>>, vector<1x128x128xbf16>
    %33 = vector.shape_cast %32 : vector<1x128x128xbf16> to vector<128x128xbf16>
    %cst_34 = arith.constant dense<0.000000e+00> : vector<256x128xf32>
    %34 = tpu.matmul %31, %33, %cst_34 {dimension_numbers = #tpu.dot_dimension_numbers<[1], [0], [0], [1], [0, 0, 1, 1], [], []>} : vector<256x128xbf16>, vector<128x128xbf16>, vector<256x128xf32> -> vector<256x128xf32>
    %35 = arith.addf %28, %34 : vector<256x128xf32>
    %c0_35 = arith.constant 0 : index
    %c1_36 = arith.constant 1 : index
    %c2_37 = arith.constant 2 : index
    %c0_38 = arith.constant 0 : index
    %36 = vector.load %arg1[%c0_35, %c1_36, %c2_37, %c0_38] : memref<1x18x18x128xbf16, #tpu.memory_space<vmem>>, vector<1x16x16x128xbf16>
    %37 = vector.shape_cast %36 : vector<1x16x16x128xbf16> to vector<16x16x128xbf16>
    %38 = vector.shape_cast %37 : vector<16x16x128xbf16> to vector<256x128xbf16>
    %c5 = arith.constant 5 : index
    %c0_39 = arith.constant 0 : index
    %c0_40 = arith.constant 0 : index
    %39 = vector.load %arg2[%c5, %c0_39, %c0_40] : memref<9x128x128xbf16, #tpu.memory_space<vmem>>, vector<1x128x128xbf16>
    %40 = vector.shape_cast %39 : vector<1x128x128xbf16> to vector<128x128xbf16>
    %cst_41 = arith.constant dense<0.000000e+00> : vector<256x128xf32>
    %41 = tpu.matmul %38, %40, %cst_41 {dimension_numbers = #tpu.dot_dimension_numbers<[1], [0], [0], [1], [0, 0, 1, 1], [], []>} : vector<256x128xbf16>, vector<128x128xbf16>, vector<256x128xf32> -> vector<256x128xf32>
    %42 = arith.addf %35, %41 : vector<256x128xf32>
    %c0_42 = arith.constant 0 : index
    %c2_43 = arith.constant 2 : index
    %c0_44 = arith.constant 0 : index
    %c0_45 = arith.constant 0 : index
    %43 = vector.load %arg1[%c0_42, %c2_43, %c0_44, %c0_45] : memref<1x18x18x128xbf16, #tpu.memory_space<vmem>>, vector<1x16x16x128xbf16>
    %44 = vector.shape_cast %43 : vector<1x16x16x128xbf16> to vector<16x16x128xbf16>
    %45 = vector.shape_cast %44 : vector<16x16x128xbf16> to vector<256x128xbf16>
    %c6 = arith.constant 6 : index
    %c0_46 = arith.constant 0 : index
    %c0_47 = arith.constant 0 : index
    %46 = vector.load %arg2[%c6, %c0_46, %c0_47] : memref<9x128x128xbf16, #tpu.memory_space<vmem>>, vector<1x128x128xbf16>
    %47 = vector.shape_cast %46 : vector<1x128x128xbf16> to vector<128x128xbf16>
    %cst_48 = arith.constant dense<0.000000e+00> : vector<256x128xf32>
    %48 = tpu.matmul %45, %47, %cst_48 {dimension_numbers = #tpu.dot_dimension_numbers<[1], [0], [0], [1], [0, 0, 1, 1], [], []>} : vector<256x128xbf16>, vector<128x128xbf16>, vector<256x128xf32> -> vector<256x128xf32>
    %49 = arith.addf %42, %48 : vector<256x128xf32>
    %c0_49 = arith.constant 0 : index
    %c2_50 = arith.constant 2 : index
    %c1_51 = arith.constant 1 : index
    %c0_52 = arith.constant 0 : index
    %50 = vector.load %arg1[%c0_49, %c2_50, %c1_51, %c0_52] : memref<1x18x18x128xbf16, #tpu.memory_space<vmem>>, vector<1x16x16x128xbf16>
    %51 = vector.shape_cast %50 : vector<1x16x16x128xbf16> to vector<16x16x128xbf16>
    %52 = vector.shape_cast %51 : vector<16x16x128xbf16> to vector<256x128xbf16>
    %c7 = arith.constant 7 : index
    %c0_53 = arith.constant 0 : index
    %c0_54 = arith.constant 0 : index
    %53 = vector.load %arg2[%c7, %c0_53, %c0_54] : memref<9x128x128xbf16, #tpu.memory_space<vmem>>, vector<1x128x128xbf16>
    %54 = vector.shape_cast %53 : vector<1x128x128xbf16> to vector<128x128xbf16>
    %cst_55 = arith.constant dense<0.000000e+00> : vector<256x128xf32>
    %55 = tpu.matmul %52, %54, %cst_55 {dimension_numbers = #tpu.dot_dimension_numbers<[1], [0], [0], [1], [0, 0, 1, 1], [], []>} : vector<256x128xbf16>, vector<128x128xbf16>, vector<256x128xf32> -> vector<256x128xf32>
    %56 = arith.addf %49, %55 : vector<256x128xf32>
    %c0_56 = arith.constant 0 : index
    %c2_57 = arith.constant 2 : index
    %c2_58 = arith.constant 2 : index
    %c0_59 = arith.constant 0 : index
    %57 = vector.load %arg1[%c0_56, %c2_57, %c2_58, %c0_59] : memref<1x18x18x128xbf16, #tpu.memory_space<vmem>>, vector<1x16x16x128xbf16>
    %58 = vector.shape_cast %57 : vector<1x16x16x128xbf16> to vector<16x16x128xbf16>
    %59 = vector.shape_cast %58 : vector<16x16x128xbf16> to vector<256x128xbf16>
    %c8 = arith.constant 8 : index
    %c0_60 = arith.constant 0 : index
    %c0_61 = arith.constant 0 : index
    %60 = vector.load %arg2[%c8, %c0_60, %c0_61] : memref<9x128x128xbf16, #tpu.memory_space<vmem>>, vector<1x128x128xbf16>
    %61 = vector.shape_cast %60 : vector<1x128x128xbf16> to vector<128x128xbf16>
    %cst_62 = arith.constant dense<0.000000e+00> : vector<256x128xf32>
    %62 = tpu.matmul %59, %61, %cst_62 {dimension_numbers = #tpu.dot_dimension_numbers<[1], [0], [0], [1], [0, 0, 1, 1], [], []>} : vector<256x128xbf16>, vector<128x128xbf16>, vector<256x128xf32> -> vector<256x128xf32>
    %63 = arith.addf %56, %62 : vector<256x128xf32>
    %c0_63 = arith.constant 0 : index
    %c0_64 = arith.constant 0 : index
    %64 = vector.load %arg3[%c0_63, %c0_64] : memref<1x128xf32, #tpu.memory_space<vmem>>, vector<1x128xf32>
    %65 = vector.broadcast %64 : vector<1x128xf32> to vector<256x128xf32>
    %66 = arith.addf %63, %65 : vector<256x128xf32>
    %cst_65 = arith.constant 0.000000e+00 : f32
    %67 = vector.broadcast %cst_65 : f32 to vector<256x128xf32>
    %68 = arith.maximumf %66, %67 : vector<256x128xf32>
    %69 = vector.shape_cast %68 : vector<256x128xf32> to vector<1x16x16x128xf32>
    %70 = arith.truncf %69 : vector<1x16x16x128xf32> to vector<1x16x16x128xbf16>
    %c0_66 = arith.constant 0 : index
    %c0_67 = arith.constant 0 : index
    %c0_68 = arith.constant 0 : index
    %c0_69 = arith.constant 0 : index
    %71 = vector.load %arg4[%c0_66, %c0_67, %c0_68, %c0_69] : memref<1x16x16x128xbf16, #tpu.memory_space<vmem>>, vector<1x16x16x128xbf16>
    tpu.vector_store %arg4[%c0_66, %c0_67, %c0_68, %c0_69], %70 {strides = array<i32>} : memref<1x16x16x128xbf16, #tpu.memory_space<vmem>>, vector<1x16x16x128xbf16>,
    return
  }
  func.func @transform_0(%arg0: i32) -> (i32, i32, i32, i32) {
    %c0_i32 = arith.constant 0 : i32
    %c0_i32_0 = arith.constant 0 : i32
    %c0_i32_1 = arith.constant 0 : i32
    %c0_i32_2 = arith.constant 0 : i32
    return %arg0, %c0_i32, %c0_i32_0, %c0_i32_1 : i32, i32, i32, i32
  }
  func.func @transform_1(%arg0: i32) -> (i32, i32, i32) {
    %c0_i32 = arith.constant 0 : i32
    %c0_i32_0 = arith.constant 0 : i32
    %c0_i32_1 = arith.constant 0 : i32
    %c0_i32_2 = arith.constant 0 : i32
    return %c0_i32, %c0_i32_0, %c0_i32_1 : i32, i32, i32
  }
  func.func @transform_2(%arg0: i32) -> (i32, i32) {
    %c0_i32 = arith.constant 0 : i32
    %c0_i32_0 = arith.constant 0 : i32
    %c0_i32_1 = arith.constant 0 : i32
    return %c0_i32, %c0_i32_0 : i32, i32
  }
  func.func @transform_3(%arg0: i32) -> (i32, i32, i32, i32) {
    %c0_i32 = arith.constant 0 : i32
    %c0_i32_0 = arith.constant 0 : i32
    %c0_i32_1 = arith.constant 0 : i32
    %c0_i32_2 = arith.constant 0 : i32
    return %arg0, %c0_i32, %c0_i32_0, %c0_i32_1 : i32, i32, i32, i32
  }
}

module attributes {stable_mosaic.version = 11 : i64} {
  func.func @_conv1x3_3x1_concat_kernel(%arg0: i32, %arg1: memref<1x18x18x128xbf16, #tpu.memory_space<vmem>>, %arg2: memref<3x128x128xbf16, #tpu.memory_space<vmem>>, %arg3: memref<1x128xf32, #tpu.memory_space<vmem>>, %arg4: memref<3x128x128xbf16, #tpu.memory_space<vmem>>, %arg5: memref<1x128xf32, #tpu.memory_space<vmem>>, %arg6: memref<1x16x16x256xf32, #tpu.memory_space<vmem>>) attributes {dimension_semantics = [#tpu.dimension_semantics<parallel>], iteration_bounds = array<i64: 2>, scalar_prefetch = 0 : i64, scratch_operands = 0 : i64, tpu.core_type = #tpu.core_type<tc>, window_params = [{transform_indices = @transform_0, window_bounds = array<i64: 1, 18, 18, 128>}, {pipeline_mode = #tpu.pipeline_mode<synchronous>, transform_indices = @transform_1, window_bounds = array<i64: 3, 128, 128>}, {pipeline_mode = #tpu.pipeline_mode<synchronous>, transform_indices = @transform_2, window_bounds = array<i64: 1, 128>}, {pipeline_mode = #tpu.pipeline_mode<synchronous>, transform_indices = @transform_3, window_bounds = array<i64: 3, 128, 128>}, {pipeline_mode = #tpu.pipeline_mode<synchronous>, transform_indices = @transform_4, window_bounds = array<i64: 1, 128>}, {transform_indices = @transform_5, window_bounds = array<i64: 1, 16, 16, 256>}]} {
    %cst = arith.constant 0.000000e+00 : f32
    %0 = vector.broadcast %cst : f32 to vector<256x128xf32>
    %c0 = arith.constant 0 : index
    %c1 = arith.constant 1 : index
    %c0_0 = arith.constant 0 : index
    %c0_1 = arith.constant 0 : index
    %1 = vector.load %arg1[%c0, %c1, %c0_0, %c0_1] : memref<1x18x18x128xbf16, #tpu.memory_space<vmem>>, vector<1x16x16x128xbf16>
    %2 = vector.shape_cast %1 : vector<1x16x16x128xbf16> to vector<16x16x128xbf16>
    %3 = vector.shape_cast %2 : vector<16x16x128xbf16> to vector<256x128xbf16>
    %c0_2 = arith.constant 0 : index
    %c0_3 = arith.constant 0 : index
    %c0_4 = arith.constant 0 : index
    %4 = vector.load %arg2[%c0_2, %c0_3, %c0_4] : memref<3x128x128xbf16, #tpu.memory_space<vmem>>, vector<1x128x128xbf16>
    %5 = vector.shape_cast %4 : vector<1x128x128xbf16> to vector<128x128xbf16>
    %cst_5 = arith.constant dense<0.000000e+00> : vector<256x128xf32>
    %6 = tpu.matmul %3, %5, %cst_5 {dimension_numbers = #tpu.dot_dimension_numbers<[1], [0], [0], [1], [0, 0, 1, 1], [], []>} : vector<256x128xbf16>, vector<128x128xbf16>, vector<256x128xf32> -> vector<256x128xf32>
    %7 = arith.addf %0, %6 : vector<256x128xf32>
    %c0_6 = arith.constant 0 : index
    %c1_7 = arith.constant 1 : index
    %c1_8 = arith.constant 1 : index
    %c0_9 = arith.constant 0 : index
    %8 = vector.load %arg1[%c0_6, %c1_7, %c1_8, %c0_9] : memref<1x18x18x128xbf16, #tpu.memory_space<vmem>>, vector<1x16x16x128xbf16>
    %9 = vector.shape_cast %8 : vector<1x16x16x128xbf16> to vector<16x16x128xbf16>
    %10 = vector.shape_cast %9 : vector<16x16x128xbf16> to vector<256x128xbf16>
    %c1_10 = arith.constant 1 : index
    %c0_11 = arith.constant 0 : index
    %c0_12 = arith.constant 0 : index
    %11 = vector.load %arg2[%c1_10, %c0_11, %c0_12] : memref<3x128x128xbf16, #tpu.memory_space<vmem>>, vector<1x128x128xbf16>
    %12 = vector.shape_cast %11 : vector<1x128x128xbf16> to vector<128x128xbf16>
    %cst_13 = arith.constant dense<0.000000e+00> : vector<256x128xf32>
    %13 = tpu.matmul %10, %12, %cst_13 {dimension_numbers = #tpu.dot_dimension_numbers<[1], [0], [0], [1], [0, 0, 1, 1], [], []>} : vector<256x128xbf16>, vector<128x128xbf16>, vector<256x128xf32> -> vector<256x128xf32>
    %14 = arith.addf %7, %13 : vector<256x128xf32>
    %c0_14 = arith.constant 0 : index
    %c1_15 = arith.constant 1 : index
    %c2 = arith.constant 2 : index
    %c0_16 = arith.constant 0 : index
    %15 = vector.load %arg1[%c0_14, %c1_15, %c2, %c0_16] : memref<1x18x18x128xbf16, #tpu.memory_space<vmem>>, vector<1x16x16x128xbf16>
    %16 = vector.shape_cast %15 : vector<1x16x16x128xbf16> to vector<16x16x128xbf16>
    %17 = vector.shape_cast %16 : vector<16x16x128xbf16> to vector<256x128xbf16>
    %c2_17 = arith.constant 2 : index
    %c0_18 = arith.constant 0 : index
    %c0_19 = arith.constant 0 : index
    %18 = vector.load %arg2[%c2_17, %c0_18, %c0_19] : memref<3x128x128xbf16, #tpu.memory_space<vmem>>, vector<1x128x128xbf16>
    %19 = vector.shape_cast %18 : vector<1x128x128xbf16> to vector<128x128xbf16>
    %cst_20 = arith.constant dense<0.000000e+00> : vector<256x128xf32>
    %20 = tpu.matmul %17, %19, %cst_20 {dimension_numbers = #tpu.dot_dimension_numbers<[1], [0], [0], [1], [0, 0, 1, 1], [], []>} : vector<256x128xbf16>, vector<128x128xbf16>, vector<256x128xf32> -> vector<256x128xf32>
    %21 = arith.addf %14, %20 : vector<256x128xf32>
    %c0_21 = arith.constant 0 : index
    %c0_22 = arith.constant 0 : index
    %22 = vector.load %arg3[%c0_21, %c0_22] : memref<1x128xf32, #tpu.memory_space<vmem>>, vector<1x128xf32>
    %23 = vector.broadcast %22 : vector<1x128xf32> to vector<256x128xf32>
    %24 = arith.addf %21, %23 : vector<256x128xf32>
    %cst_23 = arith.constant 0.000000e+00 : f32
    %25 = vector.broadcast %cst_23 : f32 to vector<256x128xf32>
    %26 = arith.maximumf %24, %25 : vector<256x128xf32>
    %27 = vector.shape_cast %26 : vector<256x128xf32> to vector<1x16x16x128xf32>
    %cst_24 = arith.constant 0.000000e+00 : f32
    %28 = vector.broadcast %cst_24 : f32 to vector<256x128xf32>
    %c0_25 = arith.constant 0 : index
    %c0_26 = arith.constant 0 : index
    %c1_27 = arith.constant 1 : index
    %c0_28 = arith.constant 0 : index
    %29 = vector.load %arg1[%c0_25, %c0_26, %c1_27, %c0_28] : memref<1x18x18x128xbf16, #tpu.memory_space<vmem>>, vector<1x16x16x128xbf16>
    %30 = vector.shape_cast %29 : vector<1x16x16x128xbf16> to vector<16x16x128xbf16>
    %31 = vector.shape_cast %30 : vector<16x16x128xbf16> to vector<256x128xbf16>
    %c0_29 = arith.constant 0 : index
    %c0_30 = arith.constant 0 : index
    %c0_31 = arith.constant 0 : index
    %32 = vector.load %arg4[%c0_29, %c0_30, %c0_31] : memref<3x128x128xbf16, #tpu.memory_space<vmem>>, vector<1x128x128xbf16>
    %33 = vector.shape_cast %32 : vector<1x128x128xbf16> to vector<128x128xbf16>
    %cst_32 = arith.constant dense<0.000000e+00> : vector<256x128xf32>
    %34 = tpu.matmul %31, %33, %cst_32 {dimension_numbers = #tpu.dot_dimension_numbers<[1], [0], [0], [1], [0, 0, 1, 1], [], []>} : vector<256x128xbf16>, vector<128x128xbf16>, vector<256x128xf32> -> vector<256x128xf32>
    %35 = arith.addf %28, %34 : vector<256x128xf32>
    %c0_33 = arith.constant 0 : index
    %c1_34 = arith.constant 1 : index
    %c1_35 = arith.constant 1 : index
    %c0_36 = arith.constant 0 : index
    %36 = vector.load %arg1[%c0_33, %c1_34, %c1_35, %c0_36] : memref<1x18x18x128xbf16, #tpu.memory_space<vmem>>, vector<1x16x16x128xbf16>
    %37 = vector.shape_cast %36 : vector<1x16x16x128xbf16> to vector<16x16x128xbf16>
    %38 = vector.shape_cast %37 : vector<16x16x128xbf16> to vector<256x128xbf16>
    %c1_37 = arith.constant 1 : index
    %c0_38 = arith.constant 0 : index
    %c0_39 = arith.constant 0 : index
    %39 = vector.load %arg4[%c1_37, %c0_38, %c0_39] : memref<3x128x128xbf16, #tpu.memory_space<vmem>>, vector<1x128x128xbf16>
    %40 = vector.shape_cast %39 : vector<1x128x128xbf16> to vector<128x128xbf16>
    %cst_40 = arith.constant dense<0.000000e+00> : vector<256x128xf32>
    %41 = tpu.matmul %38, %40, %cst_40 {dimension_numbers = #tpu.dot_dimension_numbers<[1], [0], [0], [1], [0, 0, 1, 1], [], []>} : vector<256x128xbf16>, vector<128x128xbf16>, vector<256x128xf32> -> vector<256x128xf32>
    %42 = arith.addf %35, %41 : vector<256x128xf32>
    %c0_41 = arith.constant 0 : index
    %c2_42 = arith.constant 2 : index
    %c1_43 = arith.constant 1 : index
    %c0_44 = arith.constant 0 : index
    %43 = vector.load %arg1[%c0_41, %c2_42, %c1_43, %c0_44] : memref<1x18x18x128xbf16, #tpu.memory_space<vmem>>, vector<1x16x16x128xbf16>
    %44 = vector.shape_cast %43 : vector<1x16x16x128xbf16> to vector<16x16x128xbf16>
    %45 = vector.shape_cast %44 : vector<16x16x128xbf16> to vector<256x128xbf16>
    %c2_45 = arith.constant 2 : index
    %c0_46 = arith.constant 0 : index
    %c0_47 = arith.constant 0 : index
    %46 = vector.load %arg4[%c2_45, %c0_46, %c0_47] : memref<3x128x128xbf16, #tpu.memory_space<vmem>>, vector<1x128x128xbf16>
    %47 = vector.shape_cast %46 : vector<1x128x128xbf16> to vector<128x128xbf16>
    %cst_48 = arith.constant dense<0.000000e+00> : vector<256x128xf32>
    %48 = tpu.matmul %45, %47, %cst_48 {dimension_numbers = #tpu.dot_dimension_numbers<[1], [0], [0], [1], [0, 0, 1, 1], [], []>} : vector<256x128xbf16>, vector<128x128xbf16>, vector<256x128xf32> -> vector<256x128xf32>
    %49 = arith.addf %42, %48 : vector<256x128xf32>
    %c0_49 = arith.constant 0 : index
    %c0_50 = arith.constant 0 : index
    %50 = vector.load %arg5[%c0_49, %c0_50] : memref<1x128xf32, #tpu.memory_space<vmem>>, vector<1x128xf32>
    %51 = vector.broadcast %50 : vector<1x128xf32> to vector<256x128xf32>
    %52 = arith.addf %49, %51 : vector<256x128xf32>
    %cst_51 = arith.constant 0.000000e+00 : f32
    %53 = vector.broadcast %cst_51 : f32 to vector<256x128xf32>
    %54 = arith.maximumf %52, %53 : vector<256x128xf32>
    %55 = vector.shape_cast %54 : vector<256x128xf32> to vector<1x16x16x128xf32>
    %56 = tpu.concatenate %27, %55 in 3 : vector<1x16x16x128xf32>, vector<1x16x16x128xf32> -> vector<1x16x16x256xf32>
    %c0_52 = arith.constant 0 : index
    %c0_53 = arith.constant 0 : index
    %c0_54 = arith.constant 0 : index
    %c0_55 = arith.constant 0 : index
    %57 = vector.load %arg6[%c0_52, %c0_53, %c0_54, %c0_55] : memref<1x16x16x256xf32, #tpu.memory_space<vmem>>, vector<1x16x16x256xf32>
    tpu.vector_store %arg6[%c0_52, %c0_53, %c0_54, %c0_55], %56 {strides = array<i32>} : memref<1x16x16x256xf32, #tpu.memory_space<vmem>>, vector<1x16x16x256xf32>,
    return
  }
  func.func @transform_0(%arg0: i32) -> (i32, i32, i32, i32) {
    %c0_i32 = arith.constant 0 : i32
    %c0_i32_0 = arith.constant 0 : i32
    %c0_i32_1 = arith.constant 0 : i32
    %c0_i32_2 = arith.constant 0 : i32
    return %arg0, %c0_i32, %c0_i32_0, %c0_i32_1 : i32, i32, i32, i32
  }
  func.func @transform_1(%arg0: i32) -> (i32, i32, i32) {
    %c0_i32 = arith.constant 0 : i32
    %c0_i32_0 = arith.constant 0 : i32
    %c0_i32_1 = arith.constant 0 : i32
    %c0_i32_2 = arith.constant 0 : i32
    return %c0_i32, %c0_i32_0, %c0_i32_1 : i32, i32, i32
  }
  func.func @transform_2(%arg0: i32) -> (i32, i32) {
    %c0_i32 = arith.constant 0 : i32
    %c0_i32_0 = arith.constant 0 : i32
    %c0_i32_1 = arith.constant 0 : i32
    return %c0_i32, %c0_i32_0 : i32, i32
  }
  func.func @transform_3(%arg0: i32) -> (i32, i32, i32) {
    %c0_i32 = arith.constant 0 : i32
    %c0_i32_0 = arith.constant 0 : i32
    %c0_i32_1 = arith.constant 0 : i32
    %c0_i32_2 = arith.constant 0 : i32
    return %c0_i32, %c0_i32_0, %c0_i32_1 : i32, i32, i32
  }
  func.func @transform_4(%arg0: i32) -> (i32, i32) {
    %c0_i32 = arith.constant 0 : i32
    %c0_i32_0 = arith.constant 0 : i32
    %c0_i32_1 = arith.constant 0 : i32
    return %c0_i32, %c0_i32_0 : i32, i32
  }
  func.func @transform_5(%arg0: i32) -> (i32, i32, i32, i32) {
    %c0_i32 = arith.constant 0 : i32
    %c0_i32_0 = arith.constant 0 : i32
    %c0_i32_1 = arith.constant 0 : i32
    %c0_i32_2 = arith.constant 0 : i32
    return %arg0, %c0_i32, %c0_i32_0, %c0_i32_1 : i32, i32, i32, i32
  }
}

</mosaic_0001>

<llo_original>
// kernel: branch.3
$region0: #{branch.3}
  #allocation0 [shape = 'u32[]', space=smem, size = 0x4, offset = 0x4, fixed_abs, tag = 'smem constant byte address 0x4 - core index']
  #allocation1 [shape = 'u32[144,128]{1,0:T(1,128)}', space=vmem, size = 0x12000, scoped, tag = 'internal scratch']
  %s0 = inlined_call_operand.vmem [shape: bf16[2,16,16,128], index: 0, kind: input, shape index: {}]
  %s1 = inlined_call_operand.vmem [shape: bf16[1,128,128], index: 1, kind: input, shape index: {}]
  %s2 = inlined_call_operand.vmem [shape: f32[1,128], index: 2, kind: input, shape index: {}]
  %s3 = inlined_call_operand.vmem [shape: bf16[2,16,16,128], index: 3, kind: output, shape index: {}]
  %s4 = sld [smem:[#allocation0]]
  $region45: #{branch.3} parent=0
    _
  %s6 = ssub.s32 1, %s4
  %s7 = scalar_select 0, %s6, %s4
  loop: start=0, step=1, limit=4
  $region2: #{branch.3} parent=0 // loop_pre_header
    _
  $region3: #{branch.3} parent=0 // loop_header
    %s9 = sphi 0, %s13
    %p10 = scmp.ge.s32.totalorder %s9, 4
    %s19 = sphi 0, %s21
    %s22 = sphi 0, %s19
    %s23 = sphi 0, %s22
    %s39 = sphi 0, %s23
    %s43 = sphi 0, %s43
    %s45 = sphi 0, %s43
    %s46 = sphi 0, %s45
    %s60 = sphi 0, %s46
    %s64 = sphi 0, %s64
    %s66 = sphi 0, %s64
    %s67 = sphi 0, %s66
    %s81 = sphi 0, %s67
    %s87 = sphi 0, %s89
    %s90 = sphi 0, %s87
    %s91 = sphi 0, %s90
    %s107 = sphi 0, %s91
  $region4: #{branch.3} parent=0 // loop_header_branch
    %12 = sbr.rel (%p10) target = $region8
  $region5: #{branch.3} parent=0 // loop_body
    %s14 = ssub.s32 %s9, 1
    %s15 = ssub.s32 %s9, 2
    %s16 = sadd.s32 %s9, 1
    %s17 = ssub.s32 %s9, %s16
    %p18 = scmp.eq.s32.totalorder %s17, 0
    %s20 = sadd.s32 %s19, 1
    %s21 = scalar_select %p18, %s19, %s20
    %p24 = pneg %p18
    %p25 = scmp.eq.s32.totalorder %s9, 1
    %p26 = por %p24, %p25
    %p27 = scmp.ne.s32.totalorder %s19, %s22
    %p28 = scmp.eq.s32.totalorder %s9, 0
    %p29 = por %p27, %p28
    %p30 = scmp.ne.s32.totalorder %s19, %s22
    %p31 = scmp.eq.s32.totalorder %s14, 1
    %p32 = por %p30, %p31
    %p33 = scmp.ne.s32.totalorder %s22, %s23
    %p34 = scmp.eq.s32.totalorder %s14, 0
    %p35 = por %p33, %p34
    %p36 = scmp.ne.s32.totalorder %s22, %s23
    %p37 = scmp.eq.s32.totalorder %s15, 1
    %p38 = por %p36, %p37
    %p40 = scmp.ne.s32.totalorder %s23, %s39
    %p41 = scmp.eq.s32.totalorder %s15, 0
    %p42 = por %p40, %p41
    %s44 = sadd.s32 %s43, 1
    %p47 = scmp.eq.s32.totalorder %s9, 1
    %p48 = scmp.ne.s32.totalorder %s43, %s45
    %p49 = scmp.eq.s32.totalorder %s9, 0
    %p50 = por %p48, %p49
    %p51 = scmp.ne.s32.totalorder %s43, %s45
    %p52 = scmp.eq.s32.totalorder %s14, 1
    %p53 = por %p51, %p52
    %p54 = scmp.ne.s32.totalorder %s45, %s46
    %p55 = scmp.eq.s32.totalorder %s14, 0
    %p56 = por %p54, %p55
    %p57 = scmp.ne.s32.totalorder %s45, %s46
    %p58 = scmp.eq.s32.totalorder %s15, 1
    %p59 = por %p57, %p58
    %p61 = scmp.ne.s32.totalorder %s46, %s60
    %p62 = scmp.eq.s32.totalorder %s15, 0
    %p63 = por %p61, %p62
    %s65 = sadd.s32 %s64, 1
    %p68 = scmp.eq.s32.totalorder %s9, 1
    %p69 = scmp.ne.s32.totalorder %s64, %s66
    %p70 = scmp.eq.s32.totalorder %s9, 0
    %p71 = por %p69, %p70
    %p72 = scmp.ne.s32.totalorder %s64, %s66
    %p73 = scmp.eq.s32.totalorder %s14, 1
    %p74 = por %p72, %p73
    %p75 = scmp.ne.s32.totalorder %s66, %s67
    %p76 = scmp.eq.s32.totalorder %s14, 0
    %p77 = por %p75, %p76
    %p78 = scmp.ne.s32.totalorder %s66, %s67
    %p79 = scmp.eq.s32.totalorder %s15, 1
    %p80 = por %p78, %p79
    %p82 = scmp.ne.s32.totalorder %s67, %s81
    %p83 = scmp.eq.s32.totalorder %s15, 0
    %p84 = por %p82, %p83
    %s85 = ssub.s32 %s9, %s16
    %p86 = scmp.eq.s32.totalorder %s85, 0
    %s88 = sadd.s32 %s87, 1
    %s89 = scalar_select %p86, %s87, %s88
    %p92 = pneg %p86
    %p93 = scmp.eq.s32.totalorder %s9, 1
    %p94 = por %p92, %p93
    %p95 = scmp.ne.s32.totalorder %s87, %s90
    %p96 = scmp.eq.s32.totalorder %s9, 0
    %p97 = por %p95, %p96
    %p98 = scmp.ne.s32.totalorder %s87, %s90
    %p99 = scmp.eq.s32.totalorder %s14, 1
    %p100 = por %p98, %p99
    %p101 = scmp.ne.s32.totalorder %s90, %s91
    %p102 = scmp.eq.s32.totalorder %s14, 0
    %p103 = por %p101, %p102
    %p104 = scmp.ne.s32.totalorder %s90, %s91
    %p105 = scmp.eq.s32.totalorder %s15, 1
    %p106 = por %p104, %p105
    %p108 = scmp.ne.s32.totalorder %s91, %s107
    %p109 = scmp.eq.s32.totalorder %s15, 0
    %p110 = por %p108, %p109
    %p111 = scmp.le.s32.totalorder 1, %s9
    %p112 = scmp.lt.s32.totalorder %s9, 3
    %p113 = pnand %p111, %p112
    %p114 = pneg %p113
    // Predicated region
    $region9: #{branch.3} parent=5 // pred_check
      _
    $region10: #{branch.3} parent=5 // pred_check_branch
      %116 = sbr.rel (%p113) target = $region12
    $region11: #{branch.3} parent=5 // pred_region
      %s117 = ssub.s32 %s9, 1
      // Predicated region
      $region13: #{branch.3} parent=11 // pred_check
        %p118 = pneg %p56
      $region14: #{branch.3} parent=11 // pred_check_branch
        %120 = sbr.rel (%p118) target = $region16
      $region15: #{branch.3} parent=11 // pred_region
        _
      $region16: #{branch.3} parent=11 // pred_fallthru
        _
      // Predicated region
      $region17: #{branch.3} parent=11 // pred_check
        %p121 = pneg %p77
      $region18: #{branch.3} parent=11 // pred_check_branch
        %123 = sbr.rel (%p121) target = $region20
      $region19: #{branch.3} parent=11 // pred_region
        _
      $region20: #{branch.3} parent=11 // pred_fallthru
        _
    $region12: #{branch.3} parent=5 // pred_fallthru
      _
    %p124 = scmp.lt.s32.totalorder %s9, 2
    // Predicated region
    $region21: #{branch.3} parent=5 // pred_check
      %p125 = pneg %p124
    $region22: #{branch.3} parent=5 // pred_check_branch
      %127 = sbr.rel (%p125) target = $region24
    $region23: #{branch.3} parent=5 // pred_region
      // Predicated region
      $region25: #{branch.3} parent=23 // pred_check
        %p128 = pneg %p29
      $region26: #{branch.3} parent=23 // pred_check_branch
        %130 = sbr.rel (%p128) target = $region28
      $region27: #{branch.3} parent=23 // pred_region
        %p131 = scmp.lt.s32.totalorder %s9, 1
        %s132 = scalar_select %p131, %s9, 1
        %s133 = smul.addr %s132, 32
        %s134 = smul.addr %s133, 4
        %s135 = scalar_lea.vmem %s0, %s134
      $region28: #{branch.3} parent=23 // pred_fallthru
        _
    $region24: #{branch.3} parent=5 // pred_fallthru
      _
    %p136 = scmp.le.s32.totalorder 1, %s9
    %p137 = scmp.lt.s32.totalorder %s9, 3
    %p138 = pnand %p136, %p137
    %p139 = pneg %p138
    // Predicated region
    $region29: #{branch.3} parent=5 // pred_check
      _
    $region30: #{branch.3} parent=5 // pred_check_branch
      %141 = sbr.rel (%p138) target = $region32
    $region31: #{branch.3} parent=5 // pred_region
      %s142 = ssub.s32 %s9, 1
      %p143 = scmp.lt.s32.totalorder %s14, 1
      %s144 = scalar_select %p143, %s14, 1
      %s145 = smul.addr %s144, 32
      %s146 = smul.addr %s145, 4
      %s147 = scalar_lea.vmem %s0, %s146
      %p148 = pneg %p35
      %p149 = pneg %p32
      %p150 = pneg %p56
      %p151 = pneg %p53
      %p152 = pneg %p77
      %p153 = pneg %p74
      %p154 = pneg %p103
      %p155 = pneg %p100
      %p156 = scmp.lt.s32.totalorder %s14, 1
      %s157 = scalar_select %p156, %s14, 1
      %s158 = smul.addr %s157, 32
      %s159 = smul.addr %s158, 4
      %s160 = scalar_lea.vmem %s3, %s159
      %p161 = scmp.lt.s32.totalorder %s14, 1
      %s162 = scalar_select %p161, %s14, 1
      %s163 = smul.addr %s162, 32
      %s164 = smul.addr %s163, 4
      %s165 = scalar_lea.vmem %s0, %s164
      %p166 = scmp.lt.s32.totalorder %s14, 1
      %s167 = scalar_select %p166, %s14, 1
      %s168 = smul.addr %s167, 32
      %s169 = smul.addr %s168, 4
      %s170 = scalar_lea.vmem %s3, %s169
      %v172 = vld [vmem:[%s165] sm:$0xf]
      %v173 = vld [vmem:[%s165 + $0x4] sm:$0xf]
      %v174 = vld [vmem:[%s165 + $0x8] sm:$0xf]
      %v175 = vld [vmem:[%s165 + $0xc] sm:$0xf]
      %v176 = vld [vmem:[%s165 + $0x10] sm:$0xf]
      %v177 = vld [vmem:[%s165 + $0x14] sm:$0xf]
      %v178 = vld [vmem:[%s165 + $0x18] sm:$0xf]
      %v179 = vld [vmem:[%s165 + $0x1c] sm:$0xf]
      %v180 = vld [vmem:[%s165 + $0x20] sm:$0xf]
      %v181 = vld [vmem:[%s165 + $0x24] sm:$0xf]
      %v182 = vld [vmem:[%s165 + $0x28] sm:$0xf]
      %v183 = vld [vmem:[%s165 + $0x2c] sm:$0xf]
      %v184 = vld [vmem:[%s165 + $0x30] sm:$0xf]
      %v185 = vld [vmem:[%s165 + $0x34] sm:$0xf]
      %v186 = vld [vmem:[%s165 + $0x38] sm:$0xf]
      %v187 = vld [vmem:[%s165 + $0x3c] sm:$0xf]
      %v188 = vld [vmem:[%s165 + $0x40] sm:$0xf]
      %v189 = vld [vmem:[%s165 + $0x44] sm:$0xf]
      %v190 = vld [vmem:[%s165 + $0x48] sm:$0xf]
      %v191 = vld [vmem:[%s165 + $0x4c] sm:$0xf]
      %v192 = vld [vmem:[%s165 + $0x50] sm:$0xf]
      %v193 = vld [vmem:[%s165 + $0x54] sm:$0xf]
      %v194 = vld [vmem:[%s165 + $0x58] sm:$0xf]
      %v195 = vld [vmem:[%s165 + $0x5c] sm:$0xf]
      %v196 = vld [vmem:[%s165 + $0x60] sm:$0xf]
      %v197 = vld [vmem:[%s165 + $0x64] sm:$0xf]
      %v198 = vld [vmem:[%s165 + $0x68] sm:$0xf]
      %v199 = vld [vmem:[%s165 + $0x6c] sm:$0xf]
      %v200 = vld [vmem:[%s165 + $0x70] sm:$0xf]
      %v201 = vld [vmem:[%s165 + $0x74] sm:$0xf]
      %v202 = vld [vmem:[%s165 + $0x78] sm:$0xf]
      %v203 = vld [vmem:[%s165 + $0x7c] sm:$0xf]
      %v204 = vld [vmem:[%s1] sm:$0xf]
      %v205 = vld [vmem:[%s1 + $0x4] sm:$0xf]
      %v206 = vld [vmem:[%s1 + $0x8] sm:$0xf]
      %v207 = vld [vmem:[%s1 + $0xc] sm:$0xf]
      %v208 = vld [vmem:[%s1 + $0x10] sm:$0xf]
      %v209 = vld [vmem:[%s1 + $0x14] sm:$0xf]
      %v210 = vld [vmem:[%s1 + $0x18] sm:$0xf]
      %v211 = vld [vmem:[%s1 + $0x1c] sm:$0xf]
      %v212 = vld [vmem:[%s1 + $0x20] sm:$0xf]
      %v213 = vld [vmem:[%s1 + $0x24] sm:$0xf]
      %v214 = vld [vmem:[%s1 + $0x28] sm:$0xf]
      %v215 = vld [vmem:[%s1 + $0x2c] sm:$0xf]
      %v216 = vld [vmem:[%s1 + $0x30] sm:$0xf]
      %v217 = vld [vmem:[%s1 + $0x34] sm:$0xf]
      %v218 = vld [vmem:[%s1 + $0x38] sm:$0xf]
      %v219 = vld [vmem:[%s1 + $0x3c] sm:$0xf]
      %v220 = vld [vmem:[%s2] sm:$0x1]
      %v222 = vlaneseq
      %v223 = vshrl.u32 %v222, 7
      %v224 = vsub.s32 0, %v223
      %v225 = vrot.slane %v220, %v224
      %v259 = vunpack.c.l.b16 %v172
      %v260 = vunpack.c.l.b16 %v173
      %v261 = vunpack.c.l.b16 %v174
      %v262 = vunpack.c.l.b16 %v175
      %v263 = vunpack.c.l.b16 %v176
      %v264 = vunpack.c.l.b16 %v177
      %v265 = vunpack.c.l.b16 %v178
      %v266 = vunpack.c.l.b16 %v179
      %v267 = vunpack.c.l.b16 %v180
      %v268 = vunpack.c.l.b16 %v181
      %v269 = vunpack.c.l.b16 %v182
      %v270 = vunpack.c.l.b16 %v183
      %v271 = vunpack.c.l.b16 %v184
      %v272 = vunpack.c.l.b16 %v185
      %v273 = vunpack.c.l.b16 %v186
      %v274 = vunpack.c.l.b16 %v187
      %v275 = vunpack.c.l.b16 %v188
      %v276 = vunpack.c.l.b16 %v189
      %v277 = vunpack.c.l.b16 %v190
      %v278 = vunpack.c.l.b16 %v191
      %v279 = vunpack.c.l.b16 %v192
      %v280 = vunpack.c.l.b16 %v193
      %v281 = vunpack.c.l.b16 %v194
      %v282 = vunpack.c.l.b16 %v195
      %v283 = vunpack.c.l.b16 %v196
      %v284 = vunpack.c.l.b16 %v197
      %v285 = vunpack.c.l.b16 %v198
      %v286 = vunpack.c.l.b16 %v199
      %v287 = vunpack.c.l.b16 %v200
      %v288 = vunpack.c.l.b16 %v201
      %v289 = vunpack.c.l.b16 %v202
      %v290 = vunpack.c.l.b16 %v203
      %v291 = vpack.c.b16 %v260, %v259
      %v292 = vpack.c.b16 %v262, %v261
      %v293 = vpack.c.b16 %v264, %v263
      %v294 = vpack.c.b16 %v266, %v265
      %v295 = vpack.c.b16 %v268, %v267
      %v296 = vpack.c.b16 %v270, %v269
      %v297 = vpack.c.b16 %v272, %v271
      %v298 = vpack.c.b16 %v274, %v273
      %v299 = vpack.c.b16 %v276, %v275
      %v300 = vpack.c.b16 %v278, %v277
      %v301 = vpack.c.b16 %v280, %v279
      %v302 = vpack.c.b16 %v282, %v281
      %v303 = vpack.c.b16 %v284, %v283
      %v304 = vpack.c.b16 %v286, %v285
      %v305 = vpack.c.b16 %v288, %v287
      %v306 = vpack.c.b16 %v290, %v289
      %v339 = vunpack.c.l.b16 %v204
      %v340 = vunpack.c.l.b16 %v205
      %v341 = vunpack.c.l.b16 %v206
      %v342 = vunpack.c.l.b16 %v207
      %v343 = vunpack.c.l.b16 %v208
      %v344 = vunpack.c.l.b16 %v209
      %v345 = vunpack.c.l.b16 %v210
      %v346 = vunpack.c.l.b16 %v211
      %v347 = vunpack.c.l.b16 %v212
      %v348 = vunpack.c.l.b16 %v213
      %v349 = vunpack.c.l.b16 %v214
      %v350 = vunpack.c.l.b16 %v215
      %v351 = vunpack.c.l.b16 %v216
      %v352 = vunpack.c.l.b16 %v217
      %v353 = vunpack.c.l.b16 %v218
      %v354 = vunpack.c.l.b16 %v219
      %v355 = vpack.c.b16 %v340, %v339
      %v356 = vpack.c.b16 %v342, %v341
      %v357 = vpack.c.b16 %v344, %v343
      %v358 = vpack.c.b16 %v346, %v345
      %v359 = vpack.c.b16 %v348, %v347
      %v360 = vpack.c.b16 %v350, %v349
      %v361 = vpack.c.b16 %v352, %v351
      %v362 = vpack.c.b16 %v354, %v353
      %371 = vmatprep.subr.bf16.mxu0 0
      %372 = vmatpush1.bf16.msra.mxu0 %v362
      %373 = vmatprep.subr.bf16.mxu0 0
      %374 = vmatpush1.bf16.msra.mxu0 %v361
      %375 = vmatprep.subr.bf16.mxu0 0
      %376 = vmatpush1.bf16.msra.mxu0 %v360
      %377 = vmatprep.subr.bf16.mxu0 0
      %378 = vmatpush1.bf16.msra.mxu0 %v359
      %379 = vmatprep.subr.bf16.mxu0 0
      %380 = vmatpush1.bf16.msra.mxu0 %v358
      %381 = vmatprep.subr.bf16.mxu0 0
      %382 = vmatpush1.bf16.msra.mxu0 %v357
      %383 = vmatprep.subr.bf16.mxu0 0
      %384 = vmatpush1.bf16.msra.mxu0 %v356
      %385 = vmatprep.subr.bf16.mxu0 0
      %386 = vmatpush1.bf16.msra.mxu0 %v355
      %387 = vmatprep.subr.bf16.mxu0 0
      %388 = vmatpush2.bf16.msra.mxu0 0
      %389 = vmatprep.subr.bf16.mxu0 0
      %390 = vmatpush2.bf16.msra.mxu0 0
      %391 = vmatprep.subr.bf16.mxu0 0
      %392 = vmatpush2.bf16.msra.mxu0 0
      %393 = vmatprep.subr.bf16.mxu0 0
      %394 = vmatpush2.bf16.msra.mxu0 0
      %395 = vmatprep.subr.bf16.mxu0 0
      %396 = vmatpush2.bf16.msra.mxu0 0
      %397 = vmatprep.subr.bf16.mxu0 0
      %398 = vmatpush2.bf16.msra.mxu0 0
      %399 = vmatprep.subr.bf16.mxu0 0
      %400 = vmatpush2.bf16.msra.mxu0 0
      %401 = vmatprep.subr.bf16.mxu0 0
      %402 = vmatpush2.bf16.msra.mxu0 0
      %403 = vmatprep.mubr.bf16.mxu0 0
      %404 = vmatmul.mubr.bf16.gmra.mxu0 %v291
      %v405 = vpop.f32.mrf.mxu0
      %v406 = vadd.f32 %v225, %v405
      %v407 = vpop.f32.mrf.mxu0
      %v408 = vpop.f32.mrf.mxu0
      %v409 = vadd.f32 %v225, %v408
      %v410 = vpop.f32.mrf.mxu0
      %411 = vmatprep.mubr.bf16.mxu0 0
      %412 = vmatmul.mubr.bf16.gmra.mxu0 %v292
      %v413 = vpop.f32.mrf.mxu0
      %v414 = vadd.f32 %v225, %v413
      %v415 = vpop.f32.mrf.mxu0
      %v416 = vpop.f32.mrf.mxu0
      %v417 = vadd.f32 %v225, %v416
      %v418 = vpop.f32.mrf.mxu0
      %419 = vmatprep.mubr.bf16.mxu0 0
      %420 = vmatmul.mubr.bf16.gmra.mxu0 %v293
      %v421 = vpop.f32.mrf.mxu0
      %v422 = vadd.f32 %v225, %v421
      %v423 = vpop.f32.mrf.mxu0
      %v424 = vpop.f32.mrf.mxu0
      %v425 = vadd.f32 %v225, %v424
      %v426 = vpop.f32.mrf.mxu0
      %427 = vmatprep.mubr.bf16.mxu0 0
      %428 = vmatmul.mubr.bf16.gmra.mxu0 %v294
      %v429 = vpop.f32.mrf.mxu0
      %v430 = vadd.f32 %v225, %v429
      %v431 = vpop.f32.mrf.mxu0
      %v432 = vpop.f32.mrf.mxu0
      %v433 = vadd.f32 %v225, %v432
      %v434 = vpop.f32.mrf.mxu0
      %435 = vmatprep.mubr.bf16.mxu0 0
      %436 = vmatmul.mubr.bf16.gmra.mxu0 %v295
      %v437 = vpop.f32.mrf.mxu0
      %v438 = vadd.f32 %v225, %v437
      %v439 = vpop.f32.mrf.mxu0
      %v440 = vpop.f32.mrf.mxu0
      %v441 = vadd.f32 %v225, %v440
      %v442 = vpop.f32.mrf.mxu0
      %443 = vmatprep.mubr.bf16.mxu0 0
      %444 = vmatmul.mubr.bf16.gmra.mxu0 %v296
      %v445 = vpop.f32.mrf.mxu0
      %v446 = vadd.f32 %v225, %v445
      %v447 = vpop.f32.mrf.mxu0
      %v448 = vpop.f32.mrf.mxu0
      %v449 = vadd.f32 %v225, %v448
      %v450 = vpop.f32.mrf.mxu0
      %451 = vmatprep.mubr.bf16.mxu0 0
      %452 = vmatmul.mubr.bf16.gmra.mxu0 %v297
      %v453 = vpop.f32.mrf.mxu0
      %v454 = vadd.f32 %v225, %v453
      %v455 = vpop.f32.mrf.mxu0
      %v456 = vpop.f32.mrf.mxu0
      %v457 = vadd.f32 %v225, %v456
      %v458 = vpop.f32.mrf.mxu0
      %459 = vmatprep.mubr.bf16.mxu0 0
      %460 = vmatmul.mubr.bf16.gmra.mxu0 %v298
      %v461 = vpop.f32.mrf.mxu0
      %v462 = vadd.f32 %v225, %v461
      %v463 = vpop.f32.mrf.mxu0
      %v464 = vpop.f32.mrf.mxu0
      %v465 = vadd.f32 %v225, %v464
      %v466 = vpop.f32.mrf.mxu0
      %467 = vmatprep.mubr.bf16.mxu0 0
      %468 = vmatmul.mubr.bf16.gmra.mxu0 %v299
      %v469 = vpop.f32.mrf.mxu0
      %v470 = vadd.f32 %v225, %v469
      %v471 = vpop.f32.mrf.mxu0
      %v472 = vpop.f32.mrf.mxu0
      %v473 = vadd.f32 %v225, %v472
      %v474 = vpop.f32.mrf.mxu0
      %475 = vmatprep.mubr.bf16.mxu0 0
      %476 = vmatmul.mubr.bf16.gmra.mxu0 %v300
      %v477 = vpop.f32.mrf.mxu0
      %v478 = vadd.f32 %v225, %v477
      %v479 = vpop.f32.mrf.mxu0
      %v480 = vpop.f32.mrf.mxu0
      %v481 = vadd.f32 %v225, %v480
      %v482 = vpop.f32.mrf.mxu0
      %483 = vmatprep.mubr.bf16.mxu0 0
      %484 = vmatmul.mubr.bf16.gmra.mxu0 %v301
      %v485 = vpop.f32.mrf.mxu0
      %v486 = vadd.f32 %v225, %v485
      %v487 = vpop.f32.mrf.mxu0
      %v488 = vpop.f32.mrf.mxu0
      %v489 = vadd.f32 %v225, %v488
      %v490 = vpop.f32.mrf.mxu0
      %491 = vmatprep.mubr.bf16.mxu0 0
      %492 = vmatmul.mubr.bf16.gmra.mxu0 %v302
      %v493 = vpop.f32.mrf.mxu0
      %v494 = vadd.f32 %v225, %v493
      %v495 = vpop.f32.mrf.mxu0
      %v496 = vpop.f32.mrf.mxu0
      %v497 = vadd.f32 %v225, %v496
      %v498 = vpop.f32.mrf.mxu0
      %499 = vmatprep.mubr.bf16.mxu0 0
      %500 = vmatmul.mubr.bf16.gmra.mxu0 %v303
      %v501 = vpop.f32.mrf.mxu0
      %v502 = vadd.f32 %v225, %v501
      %v503 = vpop.f32.mrf.mxu0
      %v504 = vpop.f32.mrf.mxu0
      %v505 = vadd.f32 %v225, %v504
      %v506 = vpop.f32.mrf.mxu0
      %507 = vmatprep.mubr.bf16.mxu0 0
      %508 = vmatmul.mubr.bf16.gmra.mxu0 %v304
      %v509 = vpop.f32.mrf.mxu0
      %v510 = vadd.f32 %v225, %v509
      %v511 = vpop.f32.mrf.mxu0
      %v512 = vpop.f32.mrf.mxu0
      %v513 = vadd.f32 %v225, %v512
      %v514 = vpop.f32.mrf.mxu0
      %515 = vmatprep.mubr.bf16.mxu0 0
      %516 = vmatmul.mubr.bf16.gmra.mxu0 %v305
      %v517 = vpop.f32.mrf.mxu0
      %v518 = vadd.f32 %v225, %v517
      %v519 = vpop.f32.mrf.mxu0
      %v520 = vpop.f32.mrf.mxu0
      %v521 = vadd.f32 %v225, %v520
      %v522 = vpop.f32.mrf.mxu0
      %523 = vmatprep.mubr.bf16.mxu0 0
      %524 = vmatmul.mubr.bf16.gmra.mxu0 %v306
      %v525 = vpop.f32.mrf.mxu0
      %v526 = vadd.f32 %v225, %v525
      %v527 = vpop.f32.mrf.mxu0
      %v528 = vpop.f32.mrf.mxu0
      %v529 = vadd.f32 %v225, %v528
      %v530 = vpop.f32.mrf.mxu0
      %531 = vdwg.mxu0
      %v532 = vmax.f32 %v406, 0.0
      %v533 = vmax.f32 %v409, 0.0
      %v534 = vmax.f32 %v414, 0.0
      %v535 = vmax.f32 %v417, 0.0
      %v536 = vmax.f32 %v422, 0.0
      %v537 = vmax.f32 %v425, 0.0
      %v538 = vmax.f32 %v430, 0.0
      %v539 = vmax.f32 %v433, 0.0
      %v540 = vmax.f32 %v438, 0.0
      %v541 = vmax.f32 %v441, 0.0
      %v542 = vmax.f32 %v446, 0.0
      %v543 = vmax.f32 %v449, 0.0
      %v544 = vmax.f32 %v454, 0.0
      %v545 = vmax.f32 %v457, 0.0
      %v546 = vmax.f32 %v462, 0.0
      %v547 = vmax.f32 %v465, 0.0
      %v548 = vmax.f32 %v470, 0.0
      %v549 = vmax.f32 %v473, 0.0
      %v550 = vmax.f32 %v478, 0.0
      %v551 = vmax.f32 %v481, 0.0
      %v552 = vmax.f32 %v486, 0.0
      %v553 = vmax.f32 %v489, 0.0
      %v554 = vmax.f32 %v494, 0.0
      %v555 = vmax.f32 %v497, 0.0
      %v556 = vmax.f32 %v502, 0.0
      %v557 = vmax.f32 %v505, 0.0
      %v558 = vmax.f32 %v510, 0.0
      %v559 = vmax.f32 %v513, 0.0
      %v560 = vmax.f32 %v518, 0.0
      %v561 = vmax.f32 %v521, 0.0
      %v562 = vmax.f32 %v526, 0.0
      %v563 = vmax.f32 %v529, 0.0
      %v564 = vpack.c.bf16 %v533, %v532
      %v565 = vpack.c.bf16 %v535, %v534
      %v566 = vpack.c.bf16 %v537, %v536
      %v567 = vpack.c.bf16 %v539, %v538
      %v568 = vpack.c.bf16 %v541, %v540
      %v569 = vpack.c.bf16 %v543, %v542
      %v570 = vpack.c.bf16 %v545, %v544
      %v571 = vpack.c.bf16 %v547, %v546
      %v572 = vpack.c.bf16 %v549, %v548
      %v573 = vpack.c.bf16 %v551, %v550
      %v574 = vpack.c.bf16 %v553, %v552
      %v575 = vpack.c.bf16 %v555, %v554
      %v576 = vpack.c.bf16 %v557, %v556
      %v577 = vpack.c.bf16 %v559, %v558
      %v578 = vpack.c.bf16 %v561, %v560
      %v579 = vpack.c.bf16 %v563, %v562
      %v596 = vunpack.c.l.b16 %v564
      %v597 = vunpack.c.h.b16 %v564
      %v598 = vunpack.c.l.b16 %v565
      %v599 = vunpack.c.h.b16 %v565
      %v600 = vunpack.c.l.b16 %v566
      %v601 = vunpack.c.h.b16 %v566
      %v602 = vunpack.c.l.b16 %v567
      %v603 = vunpack.c.h.b16 %v567
      %v604 = vunpack.c.l.b16 %v568
      %v605 = vunpack.c.h.b16 %v568
      %v606 = vunpack.c.l.b16 %v569
      %v607 = vunpack.c.h.b16 %v569
      %v608 = vunpack.c.l.b16 %v570
      %v609 = vunpack.c.h.b16 %v570
      %v610 = vunpack.c.l.b16 %v571
      %v611 = vunpack.c.h.b16 %v571
      %v612 = vunpack.c.l.b16 %v572
      %v613 = vunpack.c.h.b16 %v572
      %v614 = vunpack.c.l.b16 %v573
      %v615 = vunpack.c.h.b16 %v573
      %v616 = vunpack.c.l.b16 %v574
      %v617 = vunpack.c.h.b16 %v574
      %v618 = vunpack.c.l.b16 %v575
      %v619 = vunpack.c.h.b16 %v575
      %v620 = vunpack.c.l.b16 %v576
      %v621 = vunpack.c.h.b16 %v576
      %v622 = vunpack.c.l.b16 %v577
      %v623 = vunpack.c.h.b16 %v577
      %v624 = vunpack.c.l.b16 %v578
      %v625 = vunpack.c.h.b16 %v578
      %v626 = vunpack.c.l.b16 %v579
      %v627 = vunpack.c.h.b16 %v579
      %v628 = vpack.c.b16 %v596, %v596
      %v629 = vpack.c.b16 %v597, %v597
      %v630 = vpack.c.b16 %v598, %v598
      %v631 = vpack.c.b16 %v599, %v599
      %v632 = vpack.c.b16 %v600, %v600
      %v633 = vpack.c.b16 %v601, %v601
      %v634 = vpack.c.b16 %v602, %v602
      %v635 = vpack.c.b16 %v603, %v603
      %v636 = vpack.c.b16 %v604, %v604
      %v637 = vpack.c.b16 %v605, %v605
      %v638 = vpack.c.b16 %v606, %v606
      %v639 = vpack.c.b16 %v607, %v607
      %v640 = vpack.c.b16 %v608, %v608
      %v641 = vpack.c.b16 %v609, %v609
      %v642 = vpack.c.b16 %v610, %v610
      %v643 = vpack.c.b16 %v611, %v611
      %v644 = vpack.c.b16 %v612, %v612
      %v645 = vpack.c.b16 %v613, %v613
      %v646 = vpack.c.b16 %v614, %v614
      %v647 = vpack.c.b16 %v615, %v615
      %v648 = vpack.c.b16 %v616, %v616
      %v649 = vpack.c.b16 %v617, %v617
      %v650 = vpack.c.b16 %v618, %v618
      %v651 = vpack.c.b16 %v619, %v619
      %v652 = vpack.c.b16 %v620, %v620
      %v653 = vpack.c.b16 %v621, %v621
      %v654 = vpack.c.b16 %v622, %v622
      %v655 = vpack.c.b16 %v623, %v623
      %v656 = vpack.c.b16 %v624, %v624
      %v657 = vpack.c.b16 %v625, %v625
      %v658 = vpack.c.b16 %v626, %v626
      %v659 = vpack.c.b16 %v627, %v627
      %692 = vst [vmem:[%s170] sm:$0xf] %v628
      %693 = vst [vmem:[%s170 + $0x4] sm:$0xf] %v629
      %694 = vst [vmem:[%s170 + $0x8] sm:$0xf] %v630
      %695 = vst [vmem:[%s170 + $0xc] sm:$0xf] %v631
      %696 = vst [vmem:[%s170 + $0x10] sm:$0xf] %v632
      %697 = vst [vmem:[%s170 + $0x14] sm:$0xf] %v633
      %698 = vst [vmem:[%s170 + $0x18] sm:$0xf] %v634
      %699 = vst [vmem:[%s170 + $0x1c] sm:$0xf] %v635
      %700 = vst [vmem:[%s170 + $0x20] sm:$0xf] %v636
      %701 = vst [vmem:[%s170 + $0x24] sm:$0xf] %v637
      %702 = vst [vmem:[%s170 + $0x28] sm:$0xf] %v638
      %703 = vst [vmem:[%s170 + $0x2c] sm:$0xf] %v639
      %704 = vst [vmem:[%s170 + $0x30] sm:$0xf] %v640
      %705 = vst [vmem:[%s170 + $0x34] sm:$0xf] %v641
      %706 = vst [vmem:[%s170 + $0x38] sm:$0xf] %v642
      %707 = vst [vmem:[%s170 + $0x3c] sm:$0xf] %v643
      %708 = vst [vmem:[%s170 + $0x40] sm:$0xf] %v644
      %709 = vst [vmem:[%s170 + $0x44] sm:$0xf] %v645
      %710 = vst [vmem:[%s170 + $0x48] sm:$0xf] %v646
      %711 = vst [vmem:[%s170 + $0x4c] sm:$0xf] %v647
      %712 = vst [vmem:[%s170 + $0x50] sm:$0xf] %v648
      %713 = vst [vmem:[%s170 + $0x54] sm:$0xf] %v649
      %714 = vst [vmem:[%s170 + $0x58] sm:$0xf] %v650
      %715 = vst [vmem:[%s170 + $0x5c] sm:$0xf] %v651
      %716 = vst [vmem:[%s170 + $0x60] sm:$0xf] %v652
      %717 = vst [vmem:[%s170 + $0x64] sm:$0xf] %v653
      %718 = vst [vmem:[%s170 + $0x68] sm:$0xf] %v654
      %719 = vst [vmem:[%s170 + $0x6c] sm:$0xf] %v655
      %720 = vst [vmem:[%s170 + $0x70] sm:$0xf] %v656
      %721 = vst [vmem:[%s170 + $0x74] sm:$0xf] %v657
      %722 = vst [vmem:[%s170 + $0x78] sm:$0xf] %v658
      %723 = vst [vmem:[%s170 + $0x7c] sm:$0xf] %v659
      %p724 = scmp.lt.s32.totalorder %s14, 1
      %s725 = scalar_select %p724, %s14, 1
      %s726 = smul.addr %s725, 32
      %s727 = smul.addr %s726, 4
      %s728 = scalar_lea.vmem %s3, %s727
      // Predicated region
      $region33: #{branch.3} parent=31 // pred_check
        %p729 = pneg %p100
      $region34: #{branch.3} parent=31 // pred_check_branch
        %731 = sbr.rel (%p729) target = $region36
      $region35: #{branch.3} parent=31 // pred_region
        _
      $region36: #{branch.3} parent=31 // pred_fallthru
        _
    $region32: #{branch.3} parent=5 // pred_fallthru
      _
    %p732 = scmp.le.s32.totalorder 2, %s9
    // Predicated region
    $region37: #{branch.3} parent=5 // pred_check
      %p733 = pneg %p732
    $region38: #{branch.3} parent=5 // pred_check_branch
      %735 = sbr.rel (%p733) target = $region40
    $region39: #{branch.3} parent=5 // pred_region
      %s736 = ssub.s32 %s9, 2
      // Predicated region
      $region41: #{branch.3} parent=39 // pred_check
        %p737 = pneg %p106
      $region42: #{branch.3} parent=39 // pred_check_branch
        %739 = sbr.rel (%p737) target = $region44
      $region43: #{branch.3} parent=39 // pred_region
        %p740 = scmp.lt.s32.totalorder %s15, 1
        %s741 = scalar_select %p740, %s15, 1
        %s742 = smul.addr %s741, 32
        %s743 = smul.addr %s742, 4
        %s744 = scalar_lea.vmem %s3, %s743
      $region44: #{branch.3} parent=39 // pred_fallthru
        _
    $region40: #{branch.3} parent=5 // pred_fallthru
      _
  $region6: #{branch.3} parent=0 // loop_footer
    %s13 = sadd.s32 1, %s9
  $region7: #{branch.3} parent=0 // loop_footer_branch
    %8 = sbr.rel target = $region3
  $region8: #{branch.3} parent=0 // loop_exit
    _

// kernel: branch.5
$region0: #{branch.5}
  #allocation0 [shape = 'u32[]', space=smem, size = 0x4, offset = 0x4, fixed_abs, tag = 'smem constant byte address 0x4 - core index']
  #allocation1 [shape = 'u32[144,128]{1,0:T(1,128)}', space=vmem, size = 0x12000, scoped, tag = 'internal scratch']
  %s0 = inlined_call_operand.vmem [shape: bf16[2,18,18,128], index: 0, kind: input, shape index: {}]
  %s1 = inlined_call_operand.vmem [shape: bf16[3,128,128], index: 1, kind: input, shape index: {}]
  %s2 = inlined_call_operand.vmem [shape: f32[1,128], index: 2, kind: input, shape index: {}]
  %s3 = inlined_call_operand.vmem [shape: bf16[3,128,128], index: 3, kind: input, shape index: {}]
  %s4 = inlined_call_operand.vmem [shape: f32[1,128], index: 4, kind: input, shape index: {}]
  %s5 = inlined_call_operand.vmem [shape: f32[2,16,16,256], index: 5, kind: output, shape index: {}]
  %s6 = sld [smem:[#allocation0]]
  $region53: #{branch.5} parent=0
    _
  %s8 = ssub.s32 1, %s6
  %s9 = scalar_select 0, %s8, %s6
  loop: start=0, step=1, limit=4
  $region2: #{branch.5} parent=0 // loop_pre_header
    _
  $region3: #{branch.5} parent=0 // loop_header
    %s11 = sphi 0, %s15
    %p12 = scmp.ge.s32.totalorder %s11, 4
    %s21 = sphi 0, %s23
    %s24 = sphi 0, %s21
    %s25 = sphi 0, %s24
    %s41 = sphi 0, %s25
    %s45 = sphi 0, %s45
    %s47 = sphi 0, %s45
    %s48 = sphi 0, %s47
    %s62 = sphi 0, %s48
    %s66 = sphi 0, %s66
    %s68 = sphi 0, %s66
    %s69 = sphi 0, %s68
    %s83 = sphi 0, %s69
    %s87 = sphi 0, %s87
    %s89 = sphi 0, %s87
    %s90 = sphi 0, %s89
    %s104 = sphi 0, %s90
    %s108 = sphi 0, %s108
    %s110 = sphi 0, %s108
    %s111 = sphi 0, %s110
    %s125 = sphi 0, %s111
    %s131 = sphi 0, %s133
    %s134 = sphi 0, %s131
    %s135 = sphi 0, %s134
    %s151 = sphi 0, %s135
  $region4: #{branch.5} parent=0 // loop_header_branch
    %14 = sbr.rel (%p12) target = $region8
  $region5: #{branch.5} parent=0 // loop_body
    %s16 = ssub.s32 %s11, 1
    %s17 = ssub.s32 %s11, 2
    %s18 = sadd.s32 %s11, 1
    %s19 = ssub.s32 %s11, %s18
    %p20 = scmp.eq.s32.totalorder %s19, 0
    %s22 = sadd.s32 %s21, 1
    %s23 = scalar_select %p20, %s21, %s22
    %p26 = pneg %p20
    %p27 = scmp.eq.s32.totalorder %s11, 1
    %p28 = por %p26, %p27
    %p29 = scmp.ne.s32.totalorder %s21, %s24
    %p30 = scmp.eq.s32.totalorder %s11, 0
    %p31 = por %p29, %p30
    %p32 = scmp.ne.s32.totalorder %s21, %s24
    %p33 = scmp.eq.s32.totalorder %s16, 1
    %p34 = por %p32, %p33
    %p35 = scmp.ne.s32.totalorder %s24, %s25
    %p36 = scmp.eq.s32.totalorder %s16, 0
    %p37 = por %p35, %p36
    %p38 = scmp.ne.s32.totalorder %s24, %s25
    %p39 = scmp.eq.s32.totalorder %s17, 1
    %p40 = por %p38, %p39
    %p42 = scmp.ne.s32.totalorder %s25, %s41
    %p43 = scmp.eq.s32.totalorder %s17, 0
    %p44 = por %p42, %p43
    %s46 = sadd.s32 %s45, 1
    %p49 = scmp.eq.s32.totalorder %s11, 1
    %p50 = scmp.ne.s32.totalorder %s45, %s47
    %p51 = scmp.eq.s32.totalorder %s11, 0
    %p52 = por %p50, %p51
    %p53 = scmp.ne.s32.totalorder %s45, %s47
    %p54 = scmp.eq.s32.totalorder %s16, 1
    %p55 = por %p53, %p54
    %p56 = scmp.ne.s32.totalorder %s47, %s48
    %p57 = scmp.eq.s32.totalorder %s16, 0
    %p58 = por %p56, %p57
    %p59 = scmp.ne.s32.totalorder %s47, %s48
    %p60 = scmp.eq.s32.totalorder %s17, 1
    %p61 = por %p59, %p60
    %p63 = scmp.ne.s32.totalorder %s48, %s62
    %p64 = scmp.eq.s32.totalorder %s17, 0
    %p65 = por %p63, %p64
    %s67 = sadd.s32 %s66, 1
    %p70 = scmp.eq.s32.totalorder %s11, 1
    %p71 = scmp.ne.s32.totalorder %s66, %s68
    %p72 = scmp.eq.s32.totalorder %s11, 0
    %p73 = por %p71, %p72
    %p74 = scmp.ne.s32.totalorder %s66, %s68
    %p75 = scmp.eq.s32.totalorder %s16, 1
    %p76 = por %p74, %p75
    %p77 = scmp.ne.s32.totalorder %s68, %s69
    %p78 = scmp.eq.s32.totalorder %s16, 0
    %p79 = por %p77, %p78
    %p80 = scmp.ne.s32.totalorder %s68, %s69
    %p81 = scmp.eq.s32.totalorder %s17, 1
    %p82 = por %p80, %p81
    %p84 = scmp.ne.s32.totalorder %s69, %s83
    %p85 = scmp.eq.s32.totalorder %s17, 0
    %p86 = por %p84, %p85
    %s88 = sadd.s32 %s87, 1
    %p91 = scmp.eq.s32.totalorder %s11, 1
    %p92 = scmp.ne.s32.totalorder %s87, %s89
    %p93 = scmp.eq.s32.totalorder %s11, 0
    %p94 = por %p92, %p93
    %p95 = scmp.ne.s32.totalorder %s87, %s89
    %p96 = scmp.eq.s32.totalorder %s16, 1
    %p97 = por %p95, %p96
    %p98 = scmp.ne.s32.totalorder %s89, %s90
    %p99 = scmp.eq.s32.totalorder %s16, 0
    %p100 = por %p98, %p99
    %p101 = scmp.ne.s32.totalorder %s89, %s90
    %p102 = scmp.eq.s32.totalorder %s17, 1
    %p103 = por %p101, %p102
    %p105 = scmp.ne.s32.totalorder %s90, %s104
    %p106 = scmp.eq.s32.totalorder %s17, 0
    %p107 = por %p105, %p106
    %s109 = sadd.s32 %s108, 1
    %p112 = scmp.eq.s32.totalorder %s11, 1
    %p113 = scmp.ne.s32.totalorder %s108, %s110
    %p114 = scmp.eq.s32.totalorder %s11, 0
    %p115 = por %p113, %p114
    %p116 = scmp.ne.s32.totalorder %s108, %s110
    %p117 = scmp.eq.s32.totalorder %s16, 1
    %p118 = por %p116, %p117
    %p119 = scmp.ne.s32.totalorder %s110, %s111
    %p120 = scmp.eq.s32.totalorder %s16, 0
    %p121 = por %p119, %p120
    %p122 = scmp.ne.s32.totalorder %s110, %s111
    %p123 = scmp.eq.s32.totalorder %s17, 1
    %p124 = por %p122, %p123
    %p126 = scmp.ne.s32.totalorder %s111, %s125
    %p127 = scmp.eq.s32.totalorder %s17, 0
    %p128 = por %p126, %p127
    %s129 = ssub.s32 %s11, %s18
    %p130 = scmp.eq.s32.totalorder %s129, 0
    %s132 = sadd.s32 %s131, 1
    %s133 = scalar_select %p130, %s131, %s132
    %p136 = pneg %p130
    %p137 = scmp.eq.s32.totalorder %s11, 1
    %p138 = por %p136, %p137
    %p139 = scmp.ne.s32.totalorder %s131, %s134
    %p140 = scmp.eq.s32.totalorder %s11, 0
    %p141 = por %p139, %p140
    %p142 = scmp.ne.s32.totalorder %s131, %s134
    %p143 = scmp.eq.s32.totalorder %s16, 1
    %p144 = por %p142, %p143
    %p145 = scmp.ne.s32.totalorder %s134, %s135
    %p146 = scmp.eq.s32.totalorder %s16, 0
    %p147 = por %p145, %p146
    %p148 = scmp.ne.s32.totalorder %s134, %s135
    %p149 = scmp.eq.s32.totalorder %s17, 1
    %p150 = por %p148, %p149
    %p152 = scmp.ne.s32.totalorder %s135, %s151
    %p153 = scmp.eq.s32.totalorder %s17, 0
    %p154 = por %p152, %p153
    %p155 = scmp.le.s32.totalorder 1, %s11
    %p156 = scmp.lt.s32.totalorder %s11, 3
    %p157 = pnand %p155, %p156
    %p158 = pneg %p157
    // Predicated region
    $region9: #{branch.5} parent=5 // pred_check
      _
    $region10: #{branch.5} parent=5 // pred_check_branch
      %160 = sbr.rel (%p157) target = $region12
    $region11: #{branch.5} parent=5 // pred_region
      %s161 = ssub.s32 %s11, 1
      // Predicated region
      $region13: #{branch.5} parent=11 // pred_check
        %p162 = pneg %p58
      $region14: #{branch.5} parent=11 // pred_check_branch
        %164 = sbr.rel (%p162) target = $region16
      $region15: #{branch.5} parent=11 // pred_region
        _
      $region16: #{branch.5} parent=11 // pred_fallthru
        _
      // Predicated region
      $region17: #{branch.5} parent=11 // pred_check
        %p165 = pneg %p79
      $region18: #{branch.5} parent=11 // pred_check_branch
        %167 = sbr.rel (%p165) target = $region20
      $region19: #{branch.5} parent=11 // pred_region
        _
      $region20: #{branch.5} parent=11 // pred_fallthru
        _
      // Predicated region
      $region21: #{branch.5} parent=11 // pred_check
        %p168 = pneg %p100
      $region22: #{branch.5} parent=11 // pred_check_branch
        %170 = sbr.rel (%p168) target = $region24
      $region23: #{branch.5} parent=11 // pred_region
        _
      $region24: #{branch.5} parent=11 // pred_fallthru
        _
      // Predicated region
      $region25: #{branch.5} parent=11 // pred_check
        %p171 = pneg %p121
      $region26: #{branch.5} parent=11 // pred_check_branch
        %173 = sbr.rel (%p171) target = $region28
      $region27: #{branch.5} parent=11 // pred_region
        _
      $region28: #{branch.5} parent=11 // pred_fallthru
        _
    $region12: #{branch.5} parent=5 // pred_fallthru
      _
    %p174 = scmp.lt.s32.totalorder %s11, 2
    // Predicated region
    $region29: #{branch.5} parent=5 // pred_check
      %p175 = pneg %p174
    $region30: #{branch.5} parent=5 // pred_check_branch
      %177 = sbr.rel (%p175) target = $region32
    $region31: #{branch.5} parent=5 // pred_region
      // Predicated region
      $region33: #{branch.5} parent=31 // pred_check
        %p178 = pneg %p31
      $region34: #{branch.5} parent=31 // pred_check_branch
        %180 = sbr.rel (%p178) target = $region36
      $region35: #{branch.5} parent=31 // pred_region
        %p181 = scmp.lt.s32.totalorder %s11, 1
        %s182 = scalar_select %p181, %s11, 1
        %s183 = smul.addr %s182, 54
        %s184 = smul.addr %s183, 4
        %s185 = scalar_lea.vmem %s0, %s184
      $region36: #{branch.5} parent=31 // pred_fallthru
        _
    $region32: #{branch.5} parent=5 // pred_fallthru
      _
    %p186 = scmp.le.s32.totalorder 1, %s11
    %p187 = scmp.lt.s32.totalorder %s11, 3
    %p188 = pnand %p186, %p187
    %p189 = pneg %p188
    // Predicated region
    $region37: #{branch.5} parent=5 // pred_check
      _
    $region38: #{branch.5} parent=5 // pred_check_branch
      %191 = sbr.rel (%p188) target = $region40
    $region39: #{branch.5} parent=5 // pred_region
      %s192 = ssub.s32 %s11, 1
      %p193 = scmp.lt.s32.totalorder %s16, 1
      %s194 = scalar_select %p193, %s16, 1
      %s195 = smul.addr %s194, 54
      %s196 = smul.addr %s195, 4
      %s197 = scalar_lea.vmem %s0, %s196
      %p198 = pneg %p37
      %p199 = pneg %p34
      %p200 = pneg %p58
      %p201 = pneg %p55
      %p202 = pneg %p79
      %p203 = pneg %p76
      %p204 = pneg %p100
      %p205 = pneg %p97
      %p206 = pneg %p121
      %p207 = pneg %p118
      %p208 = pneg %p147
      %p209 = pneg %p144
      %p210 = scmp.lt.s32.totalorder %s16, 1
      %s211 = scalar_select %p210, %s16, 1
      %s212 = smul.addr %s211, 64
      %s213 = smul.addr %s212, 8
      %s214 = scalar_lea.vmem %s5, %s213
      %p215 = scmp.lt.s32.totalorder %s16, 1
      %s216 = scalar_select %p215, %s16, 1
      %s217 = smul.addr %s216, 54
      %s218 = smul.addr %s217, 4
      %s219 = scalar_lea.vmem %s0, %s218
      %p220 = scmp.lt.s32.totalorder %s16, 1
      %s221 = scalar_select %p220, %s16, 1
      %s222 = smul.addr %s221, 64
      %s223 = smul.addr %s222, 8
      %s224 = scalar_lea.vmem %s5, %s223
      %s226 = scalar_lea.vmem %s219, 12
      %v227 = vld [vmem:[%s226] sm:$0xf]
      %v228 = vld [vmem:[%s226 + $0x4] sm:$0xf]
      %v229 = vld [vmem:[%s226 + $0xc] sm:$0xf]
      %v230 = vld [vmem:[%s226 + $0x10] sm:$0xf]
      %v231 = vld [vmem:[%s226 + $0x18] sm:$0xf]
      %v232 = vld [vmem:[%s226 + $0x1c] sm:$0xf]
      %v233 = vld [vmem:[%s226 + $0x24] sm:$0xf]
      %v234 = vld [vmem:[%s226 + $0x28] sm:$0xf]
      %v235 = vld [vmem:[%s226 + $0x30] sm:$0xf]
      %v236 = vld [vmem:[%s226 + $0x34] sm:$0xf]
      %v237 = vld [vmem:[%s226 + $0x3c] sm:$0xf]
      %v238 = vld [vmem:[%s226 + $0x40] sm:$0xf]
      %v239 = vld [vmem:[%s226 + $0x48] sm:$0xf]
      %v240 = vld [vmem:[%s226 + $0x4c] sm:$0xf]
      %v241 = vld [vmem:[%s226 + $0x54] sm:$0xf]
      %v242 = vld [vmem:[%s226 + $0x58] sm:$0xf]
      %v243 = vld [vmem:[%s226 + $0x60] sm:$0xf]
      %v244 = vld [vmem:[%s226 + $0x64] sm:$0xf]
      %v245 = vld [vmem:[%s226 + $0x6c] sm:$0xf]
      %v246 = vld [vmem:[%s226 + $0x70] sm:$0xf]
      %v247 = vld [vmem:[%s226 + $0x78] sm:$0xf]
      %v248 = vld [vmem:[%s226 + $0x7c] sm:$0xf]
      %v249 = vld [vmem:[%s226 + $0x84] sm:$0xf]
      %v250 = vld [vmem:[%s226 + $0x88] sm:$0xf]
      %v251 = vld [vmem:[%s226 + $0x90] sm:$0xf]
      %v252 = vld [vmem:[%s226 + $0x94] sm:$0xf]
      %v253 = vld [vmem:[%s226 + $0x9c] sm:$0xf]
      %v254 = vld [vmem:[%s226 + $0xa0] sm:$0xf]
      %v255 = vld [vmem:[%s226 + $0xa8] sm:$0xf]
      %v256 = vld [vmem:[%s226 + $0xac] sm:$0xf]
      %v257 = vld [vmem:[%s226 + $0xb4] sm:$0xf]
      %v258 = vld [vmem:[%s226 + $0xb8] sm:$0xf]
      %v259 = vld [vmem:[%s1] sm:$0xf]
      %v260 = vld [vmem:[%s1 + $0x4] sm:$0xf]
      %v261 = vld [vmem:[%s1 + $0x8] sm:$0xf]
      %v262 = vld [vmem:[%s1 + $0xc] sm:$0xf]
      %v263 = vld [vmem:[%s1 + $0x10] sm:$0xf]
      %v264 = vld [vmem:[%s1 + $0x14] sm:$0xf]
      %v265 = vld [vmem:[%s1 + $0x18] sm:$0xf]
      %v266 = vld [vmem:[%s1 + $0x1c] sm:$0xf]
      %v267 = vld [vmem:[%s1 + $0x20] sm:$0xf]
      %v268 = vld [vmem:[%s1 + $0x24] sm:$0xf]
      %v269 = vld [vmem:[%s1 + $0x28] sm:$0xf]
      %v270 = vld [vmem:[%s1 + $0x2c] sm:$0xf]
      %v271 = vld [vmem:[%s1 + $0x30] sm:$0xf]
      %v272 = vld [vmem:[%s1 + $0x34] sm:$0xf]
      %v273 = vld [vmem:[%s1 + $0x38] sm:$0xf]
      %v274 = vld [vmem:[%s1 + $0x3c] sm:$0xf]
      %v275 = vld [vmem:[%s226 + $0x8] sm:$0x1]
      %v276 = vld [vmem:[%s226 + $0x14] sm:$0x1]
      %v277 = vld [vmem:[%s226 + $0x20] sm:$0x1]
      %v278 = vld [vmem:[%s226 + $0x2c] sm:$0x1]
      %v279 = vld [vmem:[%s226 + $0x38] sm:$0x1]
      %v280 = vld [vmem:[%s226 + $0x44] sm:$0x1]
      %v281 = vld [vmem:[%s226 + $0x50] sm:$0x1]
      %v282 = vld [vmem:[%s226 + $0x5c] sm:$0x1]
      %v283 = vld [vmem:[%s226 + $0x68] sm:$0x1]
      %v284 = vld [vmem:[%s226 + $0x74] sm:$0x1]
      %v285 = vld [vmem:[%s226 + $0x80] sm:$0x1]
      %v286 = vld [vmem:[%s226 + $0x8c] sm:$0x1]
      %v287 = vld [vmem:[%s226 + $0x98] sm:$0x1]
      %v288 = vld [vmem:[%s226 + $0xa4] sm:$0x1]
      %v289 = vld [vmem:[%s226 + $0xb0] sm:$0x1]
      %v290 = vld [vmem:[%s226 + $0xbc] sm:$0x1]
      %vm291 = vsmask.f32 3328
      %vm292 = vsmask.f32 7440
      %vm293 = vmor %vm291, %vm292
      %v295 = vshrl.u32 %v227, 16
      %v297 = vrot.slane %v295, 4
      %v298 = vshll.u32 %v227, 16
      %v300 = vrot.slane %v298, 5
      %v301 = vor.u32 %v297, %v300
      %v302 = vrot.slane %v301, 4
      %v304 = vshll.u32 %v228, 16
      %v306 = vrot.slane %v304, 5
      %v307 = vsel %vm293, %v302, %v306
      %v308 = vshrl.u32 %v228, 16
      %v310 = vrot.slane %v308, 4
      %v311 = vor.u32 %v310, %v306
      %v312 = vrot.slane %v311, 4
      %v314 = vshll.u32 %v275, 16
      %v316 = vrot.slane %v314, 5
      %v317 = vsel %vm293, %v312, %v316
      %v319 = vshrl.u32 %v229, 16
      %v321 = vrot.slane %v319, 4
      %v322 = vshll.u32 %v229, 16
      %v324 = vrot.slane %v322, 5
      %v325 = vor.u32 %v321, %v324
      %v326 = vrot.slane %v325, 4
      %v328 = vshll.u32 %v230, 16
      %v330 = vrot.slane %v328, 5
      %v331 = vsel %vm293, %v326, %v330
      %v332 = vshrl.u32 %v230, 16
      %v334 = vrot.slane %v332, 4
      %v335 = vor.u32 %v334, %v330
      %v336 = vrot.slane %v335, 4
      %v338 = vshll.u32 %v276, 16
      %v340 = vrot.slane %v338, 5
      %v341 = vsel %vm293, %v336, %v340
      %v343 = vshrl.u32 %v231, 16
      %v345 = vrot.slane %v343, 4
      %v346 = vshll.u32 %v231, 16
      %v348 = vrot.slane %v346, 5
      %v349 = vor.u32 %v345, %v348
      %v350 = vrot.slane %v349, 4
      %v352 = vshll.u32 %v232, 16
      %v354 = vrot.slane %v352, 5
      %v355 = vsel %vm293, %v350, %v354
      %v356 = vshrl.u32 %v232, 16
      %v358 = vrot.slane %v356, 4
      %v359 = vor.u32 %v358, %v354
      %v360 = vrot.slane %v359, 4
      %v362 = vshll.u32 %v277, 16
      %v364 = vrot.slane %v362, 5
      %v365 = vsel %vm293, %v360, %v364
      %v367 = vshrl.u32 %v233, 16
      %v369 = vrot.slane %v367, 4
      %v370 = vshll.u32 %v233, 16
      %v372 = vrot.slane %v370, 5
      %v373 = vor.u32 %v369, %v372
      %v374 = vrot.slane %v373, 4
      %v376 = vshll.u32 %v234, 16
      %v378 = vrot.slane %v376, 5
      %v379 = vsel %vm293, %v374, %v378
      %v380 = vshrl.u32 %v234, 16
      %v382 = vrot.slane %v380, 4
      %v383 = vor.u32 %v382, %v378
      %v384 = vrot.slane %v383, 4
      %v386 = vshll.u32 %v278, 16
      %v388 = vrot.slane %v386, 5
      %v389 = vsel %vm293, %v384, %v388
      %v391 = vshrl.u32 %v235, 16
      %v393 = vrot.slane %v391, 4
      %v394 = vshll.u32 %v235, 16
      %v396 = vrot.slane %v394, 5
      %v397 = vor.u32 %v393, %v396
      %v398 = vrot.slane %v397, 4
      %v400 = vshll.u32 %v236, 16
      %v402 = vrot.slane %v400, 5
      %v403 = vsel %vm293, %v398, %v402
      %v404 = vshrl.u32 %v236, 16
      %v406 = vrot.slane %v404, 4
      %v407 = vor.u32 %v406, %v402
      %v408 = vrot.slane %v407, 4
      %v410 = vshll.u32 %v279, 16
      %v412 = vrot.slane %v410, 5
      %v413 = vsel %vm293, %v408, %v412
      %v415 = vshrl.u32 %v237, 16
      %v417 = vrot.slane %v415, 4
      %v418 = vshll.u32 %v237, 16
      %v420 = vrot.slane %v418, 5
      %v421 = vor.u32 %v417, %v420
      %v422 = vrot.slane %v421, 4
      %v424 = vshll.u32 %v238, 16
      %v426 = vrot.slane %v424, 5
      %v427 = vsel %vm293, %v422, %v426
      %v428 = vshrl.u32 %v238, 16
      %v430 = vrot.slane %v428, 4
      %v431 = vor.u32 %v430, %v426
      %v432 = vrot.slane %v431, 4
      %v434 = vshll.u32 %v280, 16
      %v436 = vrot.slane %v434, 5
      %v437 = vsel %vm293, %v432, %v436
      %v439 = vshrl.u32 %v239, 16
      %v441 = vrot.slane %v439, 4
      %v442 = vshll.u32 %v239, 16
      %v444 = vrot.slane %v442, 5
      %v445 = vor.u32 %v441, %v444
      %v446 = vrot.slane %v445, 4
      %v448 = vshll.u32 %v240, 16
      %v450 = vrot.slane %v448, 5
      %v451 = vsel %vm293, %v446, %v450
      %v452 = vshrl.u32 %v240, 16
      %v454 = vrot.slane %v452, 4
      %v455 = vor.u32 %v454, %v450
      %v456 = vrot.slane %v455, 4
      %v458 = vshll.u32 %v281, 16
      %v460 = vrot.slane %v458, 5
      %v461 = vsel %vm293, %v456, %v460
      %v463 = vshrl.u32 %v241, 16
      %v465 = vrot.slane %v463, 4
      %v466 = vshll.u32 %v241, 16
      %v468 = vrot.slane %v466, 5
      %v469 = vor.u32 %v465, %v468
      %v470 = vrot.slane %v469, 4
      %v472 = vshll.u32 %v242, 16
      %v474 = vrot.slane %v472, 5
      %v475 = vsel %vm293, %v470, %v474
      %v476 = vshrl.u32 %v242, 16
      %v478 = vrot.slane %v476, 4
      %v479 = vor.u32 %v478, %v474
      %v480 = vrot.slane %v479, 4
      %v482 = vshll.u32 %v282, 16
      %v484 = vrot.slane %v482, 5
      %v485 = vsel %vm293, %v480, %v484
      %v487 = vshrl.u32 %v243, 16
      %v489 = vrot.slane %v487, 4
      %v490 = vshll.u32 %v243, 16
      %v492 = vrot.slane %v490, 5
      %v493 = vor.u32 %v489, %v492
      %v494 = vrot.slane %v493, 4
      %v496 = vshll.u32 %v244, 16
      %v498 = vrot.slane %v496, 5
      %v499 = vsel %vm293, %v494, %v498
      %v500 = vshrl.u32 %v244, 16
      %v502 = vrot.slane %v500, 4
      %v503 = vor.u32 %v502, %v498
      %v504 = vrot.slane %v503, 4
      %v506 = vshll.u32 %v283, 16
      %v508 = vrot.slane %v506, 5
      %v509 = vsel %vm293, %v504, %v508
      %v511 = vshrl.u32 %v245, 16
      %v513 = vrot.slane %v511, 4
      %v514 = vshll.u32 %v245, 16
      %v516 = vrot.slane %v514, 5
      %v517 = vor.u32 %v513, %v516
      %v518 = vrot.slane %v517, 4
      %v520 = vshll.u32 %v246, 16
      %v522 = vrot.slane %v520, 5
      %v523 = vsel %vm293, %v518, %v522
      %v524 = vshrl.u32 %v246, 16
      %v526 = vrot.slane %v524, 4
      %v527 = vor.u32 %v526, %v522
      %v528 = vrot.slane %v527, 4
      %v530 = vshll.u32 %v284, 16
      %v532 = vrot.slane %v530, 5
      %v533 = vsel %vm293, %v528, %v532
      %v535 = vshrl.u32 %v247, 16
      %v537 = vrot.slane %v535, 4
      %v538 = vshll.u32 %v247, 16
      %v540 = vrot.slane %v538, 5
      %v541 = vor.u32 %v537, %v540
      %v542 = vrot.slane %v541, 4
      %v544 = vshll.u32 %v248, 16
      %v546 = vrot.slane %v544, 5
      %v547 = vsel %vm293, %v542, %v546
      %v548 = vshrl.u32 %v248, 16
      %v550 = vrot.slane %v548, 4
      %v551 = vor.u32 %v550, %v546
      %v552 = vrot.slane %v551, 4
      %v554 = vshll.u32 %v285, 16
      %v556 = vrot.slane %v554, 5
      %v557 = vsel %vm293, %v552, %v556
      %v559 = vshrl.u32 %v249, 16
      %v561 = vrot.slane %v559, 4
      %v562 = vshll.u32 %v249, 16
      %v564 = vrot.slane %v562, 5
      %v565 = vor.u32 %v561, %v564
      %v566 = vrot.slane %v565, 4
      %v568 = vshll.u32 %v250, 16
      %v570 = vrot.slane %v568, 5
      %v571 = vsel %vm293, %v566, %v570
      %v572 = vshrl.u32 %v250, 16
      %v574 = vrot.slane %v572, 4
      %v575 = vor.u32 %v574, %v570
      %v576 = vrot.slane %v575, 4
      %v578 = vshll.u32 %v286, 16
      %v580 = vrot.slane %v578, 5
      %v581 = vsel %vm293, %v576, %v580
      %v583 = vshrl.u32 %v251, 16
      %v585 = vrot.slane %v583, 4
      %v586 = vshll.u32 %v251, 16
      %v588 = vrot.slane %v586, 5
      %v589 = vor.u32 %v585, %v588
      %v590 = vrot.slane %v589, 4
      %v592 = vshll.u32 %v252, 16
      %v594 = vrot.slane %v592, 5
      %v595 = vsel %vm293, %v590, %v594
      %v596 = vshrl.u32 %v252, 16
      %v598 = vrot.slane %v596, 4
      %v599 = vor.u32 %v598, %v594
      %v600 = vrot.slane %v599, 4
      %v602 = vshll.u32 %v287, 16
      %v604 = vrot.slane %v602, 5
      %v605 = vsel %vm293, %v600, %v604
      %v607 = vshrl.u32 %v253, 16
      %v609 = vrot.slane %v607, 4
      %v610 = vshll.u32 %v253, 16
      %v612 = vrot.slane %v610, 5
      %v613 = vor.u32 %v609, %v612
      %v614 = vrot.slane %v613, 4
      %v616 = vshll.u32 %v254, 16
      %v618 = vrot.slane %v616, 5
      %v619 = vsel %vm293, %v614, %v618
      %v620 = vshrl.u32 %v254, 16
      %v622 = vrot.slane %v620, 4
      %v623 = vor.u32 %v622, %v618
      %v624 = vrot.slane %v623, 4
      %v626 = vshll.u32 %v288, 16
      %v628 = vrot.slane %v626, 5
      %v629 = vsel %vm293, %v624, %v628
      %v631 = vshrl.u32 %v255, 16
      %v633 = vrot.slane %v631, 4
      %v634 = vshll.u32 %v255, 16
      %v636 = vrot.slane %v634, 5
      %v637 = vor.u32 %v633, %v636
      %v638 = vrot.slane %v637, 4
      %v640 = vshll.u32 %v256, 16
      %v642 = vrot.slane %v640, 5
      %v643 = vsel %vm293, %v638, %v642
      %v644 = vshrl.u32 %v256, 16
      %v646 = vrot.slane %v644, 4
      %v647 = vor.u32 %v646, %v642
      %v648 = vrot.slane %v647, 4
      %v650 = vshll.u32 %v289, 16
      %v652 = vrot.slane %v650, 5
      %v653 = vsel %vm293, %v648, %v652
      %v655 = vshrl.u32 %v257, 16
      %v657 = vrot.slane %v655, 4
      %v658 = vshll.u32 %v257, 16
      %v660 = vrot.slane %v658, 5
      %v661 = vor.u32 %v657, %v660
      %v662 = vrot.slane %v661, 4
      %v664 = vshll.u32 %v258, 16
      %v666 = vrot.slane %v664, 5
      %v667 = vsel %vm293, %v662, %v666
      %v668 = vshrl.u32 %v258, 16
      %v670 = vrot.slane %v668, 4
      %v671 = vor.u32 %v670, %v666
      %v672 = vrot.slane %v671, 4
      %v674 = vshll.u32 %v290, 16
      %v676 = vrot.slane %v674, 5
      %v677 = vsel %vm293, %v672, %v676
      %s678 = scalar_lea.vmem %s1, 64
      %v679 = vld [vmem:[%s678] sm:$0xf]
      %v680 = vld [vmem:[%s678 + $0x4] sm:$0xf]
      %v681 = vld [vmem:[%s678 + $0x8] sm:$0xf]
      %v682 = vld [vmem:[%s678 + $0xc] sm:$0xf]
      %v683 = vld [vmem:[%s678 + $0x10] sm:$0xf]
      %v684 = vld [vmem:[%s678 + $0x14] sm:$0xf]
      %v685 = vld [vmem:[%s678 + $0x18] sm:$0xf]
      %v686 = vld [vmem:[%s678 + $0x1c] sm:$0xf]
      %v687 = vld [vmem:[%s678 + $0x20] sm:$0xf]
      %v688 = vld [vmem:[%s678 + $0x24] sm:$0xf]
      %v689 = vld [vmem:[%s678 + $0x28] sm:$0xf]
      %v690 = vld [vmem:[%s678 + $0x2c] sm:$0xf]
      %v691 = vld [vmem:[%s678 + $0x30] sm:$0xf]
      %v692 = vld [vmem:[%s678 + $0x34] sm:$0xf]
      %v693 = vld [vmem:[%s678 + $0x38] sm:$0xf]
      %v694 = vld [vmem:[%s678 + $0x3c] sm:$0xf]
      %v695 = vunpack.c.l.b16 %v307
      %v696 = vunpack.c.l.b16 %v317
      %v697 = vunpack.c.l.b16 %v331
      %v698 = vunpack.c.l.b16 %v341
      %v699 = vunpack.c.l.b16 %v355
      %v700 = vunpack.c.l.b16 %v365
      %v701 = vunpack.c.l.b16 %v379
      %v702 = vunpack.c.l.b16 %v389
      %v703 = vunpack.c.l.b16 %v403
      %v704 = vunpack.c.l.b16 %v413
      %v705 = vunpack.c.l.b16 %v427
      %v706 = vunpack.c.l.b16 %v437
      %v707 = vunpack.c.l.b16 %v451
      %v708 = vunpack.c.l.b16 %v461
      %v709 = vunpack.c.l.b16 %v475
      %v710 = vunpack.c.l.b16 %v485
      %v711 = vunpack.c.l.b16 %v499
      %v712 = vunpack.c.l.b16 %v509
      %v713 = vunpack.c.l.b16 %v523
      %v714 = vunpack.c.l.b16 %v533
      %v715 = vunpack.c.l.b16 %v547
      %v716 = vunpack.c.l.b16 %v557
      %v717 = vunpack.c.l.b16 %v571
      %v718 = vunpack.c.l.b16 %v581
      %v719 = vunpack.c.l.b16 %v595
      %v720 = vunpack.c.l.b16 %v605
      %v721 = vunpack.c.l.b16 %v619
      %v722 = vunpack.c.l.b16 %v629
      %v723 = vunpack.c.l.b16 %v643
      %v724 = vunpack.c.l.b16 %v653
      %v725 = vunpack.c.l.b16 %v667
      %v726 = vunpack.c.l.b16 %v677
      %v727 = vpack.c.b16 %v696, %v695
      %v728 = vpack.c.b16 %v698, %v697
      %v729 = vpack.c.b16 %v700, %v699
      %v730 = vpack.c.b16 %v702, %v701
      %v731 = vpack.c.b16 %v704, %v703
      %v732 = vpack.c.b16 %v706, %v705
      %v733 = vpack.c.b16 %v708, %v707
      %v734 = vpack.c.b16 %v710, %v709
      %v735 = vpack.c.b16 %v712, %v711
      %v736 = vpack.c.b16 %v714, %v713
      %v737 = vpack.c.b16 %v716, %v715
      %v738 = vpack.c.b16 %v718, %v717
      %v739 = vpack.c.b16 %v720, %v719
      %v740 = vpack.c.b16 %v722, %v721
      %v741 = vpack.c.b16 %v724, %v723
      %v742 = vpack.c.b16 %v726, %v725
      %v775 = vunpack.c.l.b16 %v679
      %v776 = vunpack.c.l.b16 %v680
      %v777 = vunpack.c.l.b16 %v681
      %v778 = vunpack.c.l.b16 %v682
      %v779 = vunpack.c.l.b16 %v683
      %v780 = vunpack.c.l.b16 %v684
      %v781 = vunpack.c.l.b16 %v685
      %v782 = vunpack.c.l.b16 %v686
      %v783 = vunpack.c.l.b16 %v687
      %v784 = vunpack.c.l.b16 %v688
      %v785 = vunpack.c.l.b16 %v689
      %v786 = vunpack.c.l.b16 %v690
      %v787 = vunpack.c.l.b16 %v691
      %v788 = vunpack.c.l.b16 %v692
      %v789 = vunpack.c.l.b16 %v693
      %v790 = vunpack.c.l.b16 %v694
      %v791 = vpack.c.b16 %v776, %v775
      %v792 = vpack.c.b16 %v778, %v777
      %v793 = vpack.c.b16 %v780, %v779
      %v794 = vpack.c.b16 %v782, %v781
      %v795 = vpack.c.b16 %v784, %v783
      %v796 = vpack.c.b16 %v786, %v785
      %v797 = vpack.c.b16 %v788, %v787
      %v798 = vpack.c.b16 %v790, %v789
      %807 = vmatprep.subr.bf16.mxu0 0
      %808 = vmatpush1.bf16.msra.mxu0 %v798
      %809 = vmatprep.subr.bf16.mxu0 0
      %810 = vmatpush1.bf16.msra.mxu0 %v797
      %811 = vmatprep.subr.bf16.mxu0 0
      %812 = vmatpush1.bf16.msra.mxu0 %v796
      %813 = vmatprep.subr.bf16.mxu0 0
      %814 = vmatpush1.bf16.msra.mxu0 %v795
      %815 = vmatprep.subr.bf16.mxu0 0
      %816 = vmatpush1.bf16.msra.mxu0 %v794
      %817 = vmatprep.subr.bf16.mxu0 0
      %818 = vmatpush1.bf16.msra.mxu0 %v793
      %819 = vmatprep.subr.bf16.mxu0 0
      %820 = vmatpush1.bf16.msra.mxu0 %v792
      %821 = vmatprep.subr.bf16.mxu0 0
      %822 = vmatpush1.bf16.msra.mxu0 %v791
      %823 = vmatprep.subr.bf16.mxu0 0
      %824 = vmatpush2.bf16.msra.mxu0 0
      %825 = vmatprep.subr.bf16.mxu0 0
      %826 = vmatpush2.bf16.msra.mxu0 0
      %827 = vmatprep.subr.bf16.mxu0 0
      %828 = vmatpush2.bf16.msra.mxu0 0
      %829 = vmatprep.subr.bf16.mxu0 0
      %830 = vmatpush2.bf16.msra.mxu0 0
      %831 = vmatprep.subr.bf16.mxu0 0
      %832 = vmatpush2.bf16.msra.mxu0 0
      %833 = vmatprep.subr.bf16.mxu0 0
      %834 = vmatpush2.bf16.msra.mxu0 0
      %835 = vmatprep.subr.bf16.mxu0 0
      %836 = vmatpush2.bf16.msra.mxu0 0
      %837 = vmatprep.subr.bf16.mxu0 0
      %838 = vmatpush2.bf16.msra.mxu0 0
      %839 = vmatprep.mubr.bf16.mxu0 0
      %840 = vmatmul.mubr.bf16.gmra.mxu0 %v727
      %v841 = vpop.f32.mrf.mxu0
      %v842 = vadd.f32 0.0, %v841
      %v843 = vpop.f32.mrf.mxu0
      %v844 = vpop.f32.mrf.mxu0
      %v845 = vadd.f32 0.0, %v844
      %v846 = vpop.f32.mrf.mxu0
      %847 = vmatprep.mubr.bf16.mxu0 0
      %848 = vmatmul.mubr.bf16.gmra.mxu0 %v728
      %v849 = vpop.f32.mrf.mxu0
      %v850 = vadd.f32 0.0, %v849
      %v851 = vpop.f32.mrf.mxu0
      %v852 = vpop.f32.mrf.mxu0
      %v853 = vadd.f32 0.0, %v852
      %v854 = vpop.f32.mrf.mxu0
      %855 = vmatprep.mubr.bf16.mxu0 0
      %856 = vmatmul.mubr.bf16.gmra.mxu0 %v729
      %v857 = vpop.f32.mrf.mxu0
      %v858 = vadd.f32 0.0, %v857
      %v859 = vpop.f32.mrf.mxu0
      %v860 = vpop.f32.mrf.mxu0
      %v861 = vadd.f32 0.0, %v860
      %v862 = vpop.f32.mrf.mxu0
      %863 = vmatprep.mubr.bf16.mxu0 0
      %864 = vmatmul.mubr.bf16.gmra.mxu0 %v730
      %v865 = vpop.f32.mrf.mxu0
      %v866 = vadd.f32 0.0, %v865
      %v867 = vpop.f32.mrf.mxu0
      %v868 = vpop.f32.mrf.mxu0
      %v869 = vadd.f32 0.0, %v868
      %v870 = vpop.f32.mrf.mxu0
      %871 = vmatprep.mubr.bf16.mxu0 0
      %872 = vmatmul.mubr.bf16.gmra.mxu0 %v731
      %v873 = vpop.f32.mrf.mxu0
      %v874 = vadd.f32 0.0, %v873
      %v875 = vpop.f32.mrf.mxu0
      %v876 = vpop.f32.mrf.mxu0
      %v877 = vadd.f32 0.0, %v876
      %v878 = vpop.f32.mrf.mxu0
      %879 = vmatprep.mubr.bf16.mxu0 0
      %880 = vmatmul.mubr.bf16.gmra.mxu0 %v732
      %v881 = vpop.f32.mrf.mxu0
      %v882 = vadd.f32 0.0, %v881
      %v883 = vpop.f32.mrf.mxu0
      %v884 = vpop.f32.mrf.mxu0
      %v885 = vadd.f32 0.0, %v884
      %v886 = vpop.f32.mrf.mxu0
      %887 = vmatprep.mubr.bf16.mxu0 0
      %888 = vmatmul.mubr.bf16.gmra.mxu0 %v733
      %v889 = vpop.f32.mrf.mxu0
      %v890 = vadd.f32 0.0, %v889
      %v891 = vpop.f32.mrf.mxu0
      %v892 = vpop.f32.mrf.mxu0
      %v893 = vadd.f32 0.0, %v892
      %v894 = vpop.f32.mrf.mxu0
      %895 = vmatprep.mubr.bf16.mxu0 0
      %896 = vmatmul.mubr.bf16.gmra.mxu0 %v734
      %v897 = vpop.f32.mrf.mxu0
      %v898 = vadd.f32 0.0, %v897
      %v899 = vpop.f32.mrf.mxu0
      %v900 = vpop.f32.mrf.mxu0
      %v901 = vadd.f32 0.0, %v900
      %v902 = vpop.f32.mrf.mxu0
      %903 = vmatprep.mubr.bf16.mxu0 0
      %904 = vmatmul.mubr.bf16.gmra.mxu0 %v735
      %v905 = vpop.f32.mrf.mxu0
      %v906 = vadd.f32 0.0, %v905
      %v907 = vpop.f32.mrf.mxu0
      %v908 = vpop.f32.mrf.mxu0
      %v909 = vadd.f32 0.0, %v908
      %v910 = vpop.f32.mrf.mxu0
      %911 = vmatprep.mubr.bf16.mxu0 0
      %912 = vmatmul.mubr.bf16.gmra.mxu0 %v736
      %v913 = vpop.f32.mrf.mxu0
      %v914 = vadd.f32 0.0, %v913
      %v915 = vpop.f32.mrf.mxu0
      %v916 = vpop.f32.mrf.mxu0
      %v917 = vadd.f32 0.0, %v916
      %v918 = vpop.f32.mrf.mxu0
      %919 = vmatprep.mubr.bf16.mxu0 0
      %920 = vmatmul.mubr.bf16.gmra.mxu0 %v737
      %v921 = vpop.f32.mrf.mxu0
      %v922 = vadd.f32 0.0, %v921
      %v923 = vpop.f32.mrf.mxu0
      %v924 = vpop.f32.mrf.mxu0
      %v925 = vadd.f32 0.0, %v924
      %v926 = vpop.f32.mrf.mxu0
      %927 = vmatprep.mubr.bf16.mxu0 0
      %928 = vmatmul.mubr.bf16.gmra.mxu0 %v738
      %v929 = vpop.f32.mrf.mxu0
      %v930 = vadd.f32 0.0, %v929
      %v931 = vpop.f32.mrf.mxu0
      %v932 = vpop.f32.mrf.mxu0
      %v933 = vadd.f32 0.0, %v932
      %v934 = vpop.f32.mrf.mxu0
      %935 = vmatprep.mubr.bf16.mxu0 0
      %936 = vmatmul.mubr.bf16.gmra.mxu0 %v739
      %v937 = vpop.f32.mrf.mxu0
      %v938 = vadd.f32 0.0, %v937
      %v939 = vpop.f32.mrf.mxu0
      %v940 = vpop.f32.mrf.mxu0
      %v941 = vadd.f32 0.0, %v940
      %v942 = vpop.f32.mrf.mxu0
      %943 = vmatprep.mubr.bf16.mxu0 0
      %944 = vmatmul.mubr.bf16.gmra.mxu0 %v740
      %v945 = vpop.f32.mrf.mxu0
      %v946 = vadd.f32 0.0, %v945
      %v947 = vpop.f32.mrf.mxu0
      %v948 = vpop.f32.mrf.mxu0
      %v949 = vadd.f32 0.0, %v948
      %v950 = vpop.f32.mrf.mxu0
      %951 = vmatprep.mubr.bf16.mxu0 0
      %952 = vmatmul.mubr.bf16.gmra.mxu0 %v741
      %v953 = vpop.f32.mrf.mxu0
      %v954 = vadd.f32 0.0, %v953
      %v955 = vpop.f32.mrf.mxu0
      %v956 = vpop.f32.mrf.mxu0
      %v957 = vadd.f32 0.0, %v956
      %v958 = vpop.f32.mrf.mxu0
      %959 = vmatprep.mubr.bf16.mxu0 0
      %960 = vmatmul.mubr.bf16.gmra.mxu0 %v742
      %v961 = vpop.f32.mrf.mxu0
      %v962 = vadd.f32 0.0, %v961
      %v963 = vpop.f32.mrf.mxu0
      %v964 = vpop.f32.mrf.mxu0
      %v965 = vadd.f32 0.0, %v964
      %v966 = vpop.f32.mrf.mxu0
      %967 = vdwg.mxu0
      %v1000 = vunpack.c.l.b16 %v227
      %v1001 = vunpack.c.l.b16 %v228
      %v1002 = vunpack.c.l.b16 %v229
      %v1003 = vunpack.c.l.b16 %v230
      %v1004 = vunpack.c.l.b16 %v231
      %v1005 = vunpack.c.l.b16 %v232
      %v1006 = vunpack.c.l.b16 %v233
      %v1007 = vunpack.c.l.b16 %v234
      %v1008 = vunpack.c.l.b16 %v235
      %v1009 = vunpack.c.l.b16 %v236
      %v1010 = vunpack.c.l.b16 %v237
      %v1011 = vunpack.c.l.b16 %v238
      %v1012 = vunpack.c.l.b16 %v239
      %v1013 = vunpack.c.l.b16 %v240
      %v1014 = vunpack.c.l.b16 %v241
      %v1015 = vunpack.c.l.b16 %v242
      %v1016 = vunpack.c.l.b16 %v243
      %v1017 = vunpack.c.l.b16 %v244
      %v1018 = vunpack.c.l.b16 %v245
      %v1019 = vunpack.c.l.b16 %v246
      %v1020 = vunpack.c.l.b16 %v247
      %v1021 = vunpack.c.l.b16 %v248
      %v1022 = vunpack.c.l.b16 %v249
      %v1023 = vunpack.c.l.b16 %v250
      %v1024 = vunpack.c.l.b16 %v251
      %v1025 = vunpack.c.l.b16 %v252
      %v1026 = vunpack.c.l.b16 %v253
      %v1027 = vunpack.c.l.b16 %v254
      %v1028 = vunpack.c.l.b16 %v255
      %v1029 = vunpack.c.l.b16 %v256
      %v1030 = vunpack.c.l.b16 %v257
      %v1031 = vunpack.c.l.b16 %v258
      %v1032 = vpack.c.b16 %v1001, %v1000
      %v1033 = vpack.c.b16 %v1003, %v1002
      %v1034 = vpack.c.b16 %v1005, %v1004
      %v1035 = vpack.c.b16 %v1007, %v1006
      %v1036 = vpack.c.b16 %v1009, %v1008
      %v1037 = vpack.c.b16 %v1011, %v1010
      %v1038 = vpack.c.b16 %v1013, %v1012
      %v1039 = vpack.c.b16 %v1015, %v1014
      %v1040 = vpack.c.b16 %v1017, %v1016
      %v1041 = vpack.c.b16 %v1019, %v1018
      %v1042 = vpack.c.b16 %v1021, %v1020
      %v1043 = vpack.c.b16 %v1023, %v1022
      %v1044 = vpack.c.b16 %v1025, %v1024
      %v1045 = vpack.c.b16 %v1027, %v1026
      %v1046 = vpack.c.b16 %v1029, %v1028
      %v1047 = vpack.c.b16 %v1031, %v1030
      %v1080 = vunpack.c.l.b16 %v259
      %v1081 = vunpack.c.l.b16 %v260
      %v1082 = vunpack.c.l.b16 %v261
      %v1083 = vunpack.c.l.b16 %v262
      %v1084 = vunpack.c.l.b16 %v263
      %v1085 = vunpack.c.l.b16 %v264
      %v1086 = vunpack.c.l.b16 %v265
      %v1087 = vunpack.c.l.b16 %v266
      %v1088 = vunpack.c.l.b16 %v267
      %v1089 = vunpack.c.l.b16 %v268
      %v1090 = vunpack.c.l.b16 %v269
      %v1091 = vunpack.c.l.b16 %v270
      %v1092 = vunpack.c.l.b16 %v271
      %v1093 = vunpack.c.l.b16 %v272
      %v1094 = vunpack.c.l.b16 %v273
      %v1095 = vunpack.c.l.b16 %v274
      %v1096 = vpack.c.b16 %v1081, %v1080
      %v1097 = vpack.c.b16 %v1083, %v1082
      %v1098 = vpack.c.b16 %v1085, %v1084
      %v1099 = vpack.c.b16 %v1087, %v1086
      %v1100 = vpack.c.b16 %v1089, %v1088
      %v1101 = vpack.c.b16 %v1091, %v1090
      %v1102 = vpack.c.b16 %v1093, %v1092
      %v1103 = vpack.c.b16 %v1095, %v1094
      %1112 = vmatprep.subr.bf16.mxu0 0
      %1113 = vmatpush1.bf16.msra.mxu0 %v1103
      %1114 = vmatprep.subr.bf16.mxu0 0
      %1115 = vmatpush1.bf16.msra.mxu0 %v1102
      %1116 = vmatprep.subr.bf16.mxu0 0
      %1117 = vmatpush1.bf16.msra.mxu0 %v1101
      %1118 = vmatprep.subr.bf16.mxu0 0
      %1119 = vmatpush1.bf16.msra.mxu0 %v1100
      %1120 = vmatprep.subr.bf16.mxu0 0
      %1121 = vmatpush1.bf16.msra.mxu0 %v1099
      %1122 = vmatprep.subr.bf16.mxu0 0
      %1123 = vmatpush1.bf16.msra.mxu0 %v1098
      %1124 = vmatprep.subr.bf16.mxu0 0
      %1125 = vmatpush1.bf16.msra.mxu0 %v1097
      %1126 = vmatprep.subr.bf16.mxu0 0
      %1127 = vmatpush1.bf16.msra.mxu0 %v1096
      %1128 = vmatprep.subr.bf16.mxu0 0
      %1129 = vmatpush2.bf16.msra.mxu0 0
      %1130 = vmatprep.subr.bf16.mxu0 0
      %1131 = vmatpush2.bf16.msra.mxu0 0
      %1132 = vmatprep.subr.bf16.mxu0 0
      %1133 = vmatpush2.bf16.msra.mxu0 0
      %1134 = vmatprep.subr.bf16.mxu0 0
      %1135 = vmatpush2.bf16.msra.mxu0 0
      %1136 = vmatprep.subr.bf16.mxu0 0
      %1137 = vmatpush2.bf16.msra.mxu0 0
      %1138 = vmatprep.subr.bf16.mxu0 0
      %1139 = vmatpush2.bf16.msra.mxu0 0
      %1140 = vmatprep.subr.bf16.mxu0 0
      %1141 = vmatpush2.bf16.msra.mxu0 0
      %1142 = vmatprep.subr.bf16.mxu0 0
      %1143 = vmatpush2.bf16.msra.mxu0 0
      %1144 = vmatprep.mubr.bf16.mxu0 0
      %1145 = vmatmul.mubr.bf16.gmra.mxu0 %v1032
      %v1146 = vpop.f32.mrf.mxu0
      %v1147 = vadd.f32 %v842, %v1146
      %v1148 = vpop.f32.mrf.mxu0
      %v1149 = vpop.f32.mrf.mxu0
      %v1150 = vadd.f32 %v845, %v1149
      %v1151 = vpop.f32.mrf.mxu0
      %1152 = vmatprep.mubr.bf16.mxu0 0
      %1153 = vmatmul.mubr.bf16.gmra.mxu0 %v1033
      %v1154 = vpop.f32.mrf.mxu0
      %v1155 = vadd.f32 %v850, %v1154
      %v1156 = vpop.f32.mrf.mxu0
      %v1157 = vpop.f32.mrf.mxu0
      %v1158 = vadd.f32 %v853, %v1157
      %v1159 = vpop.f32.mrf.mxu0
      %1160 = vmatprep.mubr.bf16.mxu0 0
      %1161 = vmatmul.mubr.bf16.gmra.mxu0 %v1034
      %v1162 = vpop.f32.mrf.mxu0
      %v1163 = vadd.f32 %v858, %v1162
      %v1164 = vpop.f32.mrf.mxu0
      %v1165 = vpop.f32.mrf.mxu0
      %v1166 = vadd.f32 %v861, %v1165
      %v1167 = vpop.f32.mrf.mxu0
      %1168 = vmatprep.mubr.bf16.mxu0 0
      %1169 = vmatmul.mubr.bf16.gmra.mxu0 %v1035
      %v1170 = vpop.f32.mrf.mxu0
      %v1171 = vadd.f32 %v866, %v1170
      %v1172 = vpop.f32.mrf.mxu0
      %v1173 = vpop.f32.mrf.mxu0
      %v1174 = vadd.f32 %v869, %v1173
      %v1175 = vpop.f32.mrf.mxu0
      %1176 = vmatprep.mubr.bf16.mxu0 0
      %1177 = vmatmul.mubr.bf16.gmra.mxu0 %v1036
      %v1178 = vpop.f32.mrf.mxu0
      %v1179 = vadd.f32 %v874, %v1178
      %v1180 = vpop.f32.mrf.mxu0
      %v1181 = vpop.f32.mrf.mxu0
      %v1182 = vadd.f32 %v877, %v1181
      %v1183 = vpop.f32.mrf.mxu0
      %1184 = vmatprep.mubr.bf16.mxu0 0
      %1185 = vmatmul.mubr.bf16.gmra.mxu0 %v1037
      %v1186 = vpop.f32.mrf.mxu0
      %v1187 = vadd.f32 %v882, %v1186
      %v1188 = vpop.f32.mrf.mxu0
      %v1189 = vpop.f32.mrf.mxu0
      %v1190 = vadd.f32 %v885, %v1189
      %v1191 = vpop.f32.mrf.mxu0
      %1192 = vmatprep.mubr.bf16.mxu0 0
      %1193 = vmatmul.mubr.bf16.gmra.mxu0 %v1038
      %v1194 = vpop.f32.mrf.mxu0
      %v1195 = vadd.f32 %v890, %v1194
      %v1196 = vpop.f32.mrf.mxu0
      %v1197 = vpop.f32.mrf.mxu0
      %v1198 = vadd.f32 %v893, %v1197
      %v1199 = vpop.f32.mrf.mxu0
      %1200 = vmatprep.mubr.bf16.mxu0 0
      %1201 = vmatmul.mubr.bf16.gmra.mxu0 %v1039
      %v1202 = vpop.f32.mrf.mxu0
      %v1203 = vadd.f32 %v898, %v1202
      %v1204 = vpop.f32.mrf.mxu0
      %v1205 = vpop.f32.mrf.mxu0
      %v1206 = vadd.f32 %v901, %v1205
      %v1207 = vpop.f32.mrf.mxu0
      %1208 = vmatprep.mubr.bf16.mxu0 0
      %1209 = vmatmul.mubr.bf16.gmra.mxu0 %v1040
      %v1210 = vpop.f32.mrf.mxu0
      %v1211 = vadd.f32 %v906, %v1210
      %v1212 = vpop.f32.mrf.mxu0
      %v1213 = vpop.f32.mrf.mxu0
      %v1214 = vadd.f32 %v909, %v1213
      %v1215 = vpop.f32.mrf.mxu0
      %1216 = vmatprep.mubr.bf16.mxu0 0
      %1217 = vmatmul.mubr.bf16.gmra.mxu0 %v1041
      %v1218 = vpop.f32.mrf.mxu0
      %v1219 = vadd.f32 %v914, %v1218
      %v1220 = vpop.f32.mrf.mxu0
      %v1221 = vpop.f32.mrf.mxu0
      %v1222 = vadd.f32 %v917, %v1221
      %v1223 = vpop.f32.mrf.mxu0
      %1224 = vmatprep.mubr.bf16.mxu0 0
      %1225 = vmatmul.mubr.bf16.gmra.mxu0 %v1042
      %v1226 = vpop.f32.mrf.mxu0
      %v1227 = vadd.f32 %v922, %v1226
      %v1228 = vpop.f32.mrf.mxu0
      %v1229 = vpop.f32.mrf.mxu0
      %v1230 = vadd.f32 %v925, %v1229
      %v1231 = vpop.f32.mrf.mxu0
      %1232 = vmatprep.mubr.bf16.mxu0 0
      %1233 = vmatmul.mubr.bf16.gmra.mxu0 %v1043
      %v1234 = vpop.f32.mrf.mxu0
      %v1235 = vadd.f32 %v930, %v1234
      %v1236 = vpop.f32.mrf.mxu0
      %v1237 = vpop.f32.mrf.mxu0
      %v1238 = vadd.f32 %v933, %v1237
      %v1239 = vpop.f32.mrf.mxu0
      %1240 = vmatprep.mubr.bf16.mxu0 0
      %1241 = vmatmul.mubr.bf16.gmra.mxu0 %v1044
      %v1242 = vpop.f32.mrf.mxu0
      %v1243 = vadd.f32 %v938, %v1242
      %v1244 = vpop.f32.mrf.mxu0
      %v1245 = vpop.f32.mrf.mxu0
      %v1246 = vadd.f32 %v941, %v1245
      %v1247 = vpop.f32.mrf.mxu0
      %1248 = vmatprep.mubr.bf16.mxu0 0
      %1249 = vmatmul.mubr.bf16.gmra.mxu0 %v1045
      %v1250 = vpop.f32.mrf.mxu0
      %v1251 = vadd.f32 %v946, %v1250
      %v1252 = vpop.f32.mrf.mxu0
      %v1253 = vpop.f32.mrf.mxu0
      %v1254 = vadd.f32 %v949, %v1253
      %v1255 = vpop.f32.mrf.mxu0
      %1256 = vmatprep.mubr.bf16.mxu0 0
      %1257 = vmatmul.mubr.bf16.gmra.mxu0 %v1046
      %v1258 = vpop.f32.mrf.mxu0
      %v1259 = vadd.f32 %v954, %v1258
      %v1260 = vpop.f32.mrf.mxu0
      %v1261 = vpop.f32.mrf.mxu0
      %v1262 = vadd.f32 %v957, %v1261
      %v1263 = vpop.f32.mrf.mxu0
      %1264 = vmatprep.mubr.bf16.mxu0 0
      %1265 = vmatmul.mubr.bf16.gmra.mxu0 %v1047
      %v1266 = vpop.f32.mrf.mxu0
      %v1267 = vadd.f32 %v962, %v1266
      %v1268 = vpop.f32.mrf.mxu0
      %v1269 = vpop.f32.mrf.mxu0
      %v1270 = vadd.f32 %v965, %v1269
      %v1271 = vpop.f32.mrf.mxu0
      %1272 = vdwg.mxu0
      %v1273 = vld [vmem:[%s226] sm:$0xe]
      %v1274 = vld [vmem:[%s226 + $0xc] sm:$0xe]
      %v1275 = vld [vmem:[%s226 + $0x18] sm:$0xe]
      %v1276 = vld [vmem:[%s226 + $0x24] sm:$0xe]
      %v1277 = vld [vmem:[%s226 + $0x30] sm:$0xe]
      %v1278 = vld [vmem:[%s226 + $0x3c] sm:$0xe]
      %v1279 = vld [vmem:[%s226 + $0x48] sm:$0xe]
      %v1280 = vld [vmem:[%s226 + $0x54] sm:$0xe]
      %v1281 = vld [vmem:[%s226 + $0x60] sm:$0xe]
      %v1282 = vld [vmem:[%s226 + $0x6c] sm:$0xe]
      %v1283 = vld [vmem:[%s226 + $0x78] sm:$0xe]
      %v1284 = vld [vmem:[%s226 + $0x84] sm:$0xe]
      %v1285 = vld [vmem:[%s226 + $0x90] sm:$0xe]
      %v1286 = vld [vmem:[%s226 + $0x9c] sm:$0xe]
      %v1287 = vld [vmem:[%s226 + $0xa8] sm:$0xe]
      %v1288 = vld [vmem:[%s226 + $0xb4] sm:$0xe]
      %vm1321 = vcmask 1042432
      %vm1322 = vcmask 1046532
      %vm1323 = vmor %vm1321, %vm1322
      %v1324 = vrot.slane %v1273, 5
      %v1325 = vrot.slane %v1324, 4
      %v1326 = vrot.slane %v228, 5
      %v1327 = vsel %vm1323, %v1325, %v1326
      %v1328 = vrot.slane %v1326, 4
      %v1329 = vrot.slane %v275, 5
      %v1330 = vsel %vm1323, %v1328, %v1329
      %v1331 = vrot.slane %v1274, 5
      %v1332 = vrot.slane %v1331, 4
      %v1333 = vrot.slane %v230, 5
      %v1334 = vsel %vm1323, %v1332, %v1333
      %v1335 = vrot.slane %v1333, 4
      %v1336 = vrot.slane %v276, 5
      %v1337 = vsel %vm1323, %v1335, %v1336
      %v1338 = vrot.slane %v1275, 5
      %v1339 = vrot.slane %v1338, 4
      %v1340 = vrot.slane %v232, 5
      %v1341 = vsel %vm1323, %v1339, %v1340
      %v1342 = vrot.slane %v1340, 4
      %v1343 = vrot.slane %v277, 5
      %v1344 = vsel %vm1323, %v1342, %v1343
      %v1345 = vrot.slane %v1276, 5
      %v1346 = vrot.slane %v1345, 4
      %v1347 = vrot.slane %v234, 5
      %v1348 = vsel %vm1323, %v1346, %v1347
      %v1349 = vrot.slane %v1347, 4
      %v1350 = vrot.slane %v278, 5
      %v1351 = vsel %vm1323, %v1349, %v1350
      %v1352 = vrot.slane %v1277, 5
      %v1353 = vrot.slane %v1352, 4
      %v1354 = vrot.slane %v236, 5
      %v1355 = vsel %vm1323, %v1353, %v1354
      %v1356 = vrot.slane %v1354, 4
      %v1357 = vrot.slane %v279, 5
      %v1358 = vsel %vm1323, %v1356, %v1357
      %v1359 = vrot.slane %v1278, 5
      %v1360 = vrot.slane %v1359, 4
      %v1361 = vrot.slane %v238, 5
      %v1362 = vsel %vm1323, %v1360, %v1361
      %v1363 = vrot.slane %v1361, 4
      %v1364 = vrot.slane %v280, 5
      %v1365 = vsel %vm1323, %v1363, %v1364
      %v1366 = vrot.slane %v1279, 5
      %v1367 = vrot.slane %v1366, 4
      %v1368 = vrot.slane %v240, 5
      %v1369 = vsel %vm1323, %v1367, %v1368
      %v1370 = vrot.slane %v1368, 4
      %v1371 = vrot.slane %v281, 5
      %v1372 = vsel %vm1323, %v1370, %v1371
      %v1373 = vrot.slane %v1280, 5
      %v1374 = vrot.slane %v1373, 4
      %v1375 = vrot.slane %v242, 5
      %v1376 = vsel %vm1323, %v1374, %v1375
      %v1377 = vrot.slane %v1375, 4
      %v1378 = vrot.slane %v282, 5
      %v1379 = vsel %vm1323, %v1377, %v1378
      %v1380 = vrot.slane %v1281, 5
      %v1381 = vrot.slane %v1380, 4
      %v1382 = vrot.slane %v244, 5
      %v1383 = vsel %vm1323, %v1381, %v1382
      %v1384 = vrot.slane %v1382, 4
      %v1385 = vrot.slane %v283, 5
      %v1386 = vsel %vm1323, %v1384, %v1385
      %v1387 = vrot.slane %v1282, 5
      %v1388 = vrot.slane %v1387, 4
      %v1389 = vrot.slane %v246, 5
      %v1390 = vsel %vm1323, %v1388, %v1389
      %v1391 = vrot.slane %v1389, 4
      %v1392 = vrot.slane %v284, 5
      %v1393 = vsel %vm1323, %v1391, %v1392
      %v1394 = vrot.slane %v1283, 5
      %v1395 = vrot.slane %v1394, 4
      %v1396 = vrot.slane %v248, 5
      %v1397 = vsel %vm1323, %v1395, %v1396
      %v1398 = vrot.slane %v1396, 4
      %v1399 = vrot.slane %v285, 5
      %v1400 = vsel %vm1323, %v1398, %v1399
      %v1401 = vrot.slane %v1284, 5
      %v1402 = vrot.slane %v1401, 4
      %v1403 = vrot.slane %v250, 5
      %v1404 = vsel %vm1323, %v1402, %v1403
      %v1405 = vrot.slane %v1403, 4
      %v1406 = vrot.slane %v286, 5
      %v1407 = vsel %vm1323, %v1405, %v1406
      %v1408 = vrot.slane %v1285, 5
      %v1409 = vrot.slane %v1408, 4
      %v1410 = vrot.slane %v252, 5
      %v1411 = vsel %vm1323, %v1409, %v1410
      %v1412 = vrot.slane %v1410, 4
      %v1413 = vrot.slane %v287, 5
      %v1414 = vsel %vm1323, %v1412, %v1413
      %v1415 = vrot.slane %v1286, 5
      %v1416 = vrot.slane %v1415, 4
      %v1417 = vrot.slane %v254, 5
      %v1418 = vsel %vm1323, %v1416, %v1417
      %v1419 = vrot.slane %v1417, 4
      %v1420 = vrot.slane %v288, 5
      %v1421 = vsel %vm1323, %v1419, %v1420
      %v1422 = vrot.slane %v1287, 5
      %v1423 = vrot.slane %v1422, 4
      %v1424 = vrot.slane %v256, 5
      %v1425 = vsel %vm1323, %v1423, %v1424
      %v1426 = vrot.slane %v1424, 4
      %v1427 = vrot.slane %v289, 5
      %v1428 = vsel %vm1323, %v1426, %v1427
      %v1429 = vrot.slane %v1288, 5
      %v1430 = vrot.slane %v1429, 4
      %v1431 = vrot.slane %v258, 5
      %v1432 = vsel %vm1323, %v1430, %v1431
      %v1433 = vrot.slane %v1431, 4
      %v1434 = vrot.slane %v290, 5
      %v1435 = vsel %vm1323, %v1433, %v1434
      %s1436 = scalar_lea.vmem %s1, 128
      %v1437 = vld [vmem:[%s1436] sm:$0xf]
      %v1438 = vld [vmem:[%s1436 + $0x4] sm:$0xf]
      %v1439 = vld [vmem:[%s1436 + $0x8] sm:$0xf]
      %v1440 = vld [vmem:[%s1436 + $0xc] sm:$0xf]
      %v1441 = vld [vmem:[%s1436 + $0x10] sm:$0xf]
      %v1442 = vld [vmem:[%s1436 + $0x14] sm:$0xf]
      %v1443 = vld [vmem:[%s1436 + $0x18] sm:$0xf]
      %v1444 = vld [vmem:[%s1436 + $0x1c] sm:$0xf]
      %v1445 = vld [vmem:[%s1436 + $0x20] sm:$0xf]
      %v1446 = vld [vmem:[%s1436 + $0x24] sm:$0xf]
      %v1447 = vld [vmem:[%s1436 + $0x28] sm:$0xf]
      %v1448 = vld [vmem:[%s1436 + $0x2c] sm:$0xf]
      %v1449 = vld [vmem:[%s1436 + $0x30] sm:$0xf]
      %v1450 = vld [vmem:[%s1436 + $0x34] sm:$0xf]
      %v1451 = vld [vmem:[%s1436 + $0x38] sm:$0xf]
      %v1452 = vld [vmem:[%s1436 + $0x3c] sm:$0xf]
      %v1453 = vunpack.c.l.b16 %v1327
      %v1454 = vunpack.c.l.b16 %v1330
      %v1455 = vunpack.c.l.b16 %v1334
      %v1456 = vunpack.c.l.b16 %v1337
      %v1457 = vunpack.c.l.b16 %v1341
      %v1458 = vunpack.c.l.b16 %v1344
      %v1459 = vunpack.c.l.b16 %v1348
      %v1460 = vunpack.c.l.b16 %v1351
      %v1461 = vunpack.c.l.b16 %v1355
      %v1462 = vunpack.c.l.b16 %v1358
      %v1463 = vunpack.c.l.b16 %v1362
      %v1464 = vunpack.c.l.b16 %v1365
      %v1465 = vunpack.c.l.b16 %v1369
      %v1466 = vunpack.c.l.b16 %v1372
      %v1467 = vunpack.c.l.b16 %v1376
      %v1468 = vunpack.c.l.b16 %v1379
      %v1469 = vunpack.c.l.b16 %v1383
      %v1470 = vunpack.c.l.b16 %v1386
      %v1471 = vunpack.c.l.b16 %v1390
      %v1472 = vunpack.c.l.b16 %v1393
      %v1473 = vunpack.c.l.b16 %v1397
      %v1474 = vunpack.c.l.b16 %v1400
      %v1475 = vunpack.c.l.b16 %v1404
      %v1476 = vunpack.c.l.b16 %v1407
      %v1477 = vunpack.c.l.b16 %v1411
      %v1478 = vunpack.c.l.b16 %v1414
      %v1479 = vunpack.c.l.b16 %v1418
      %v1480 = vunpack.c.l.b16 %v1421
      %v1481 = vunpack.c.l.b16 %v1425
      %v1482 = vunpack.c.l.b16 %v1428
      %v1483 = vunpack.c.l.b16 %v1432
      %v1484 = vunpack.c.l.b16 %v1435
      %v1485 = vpack.c.b16 %v1454, %v1453
      %v1486 = vpack.c.b16 %v1456, %v1455
      %v1487 = vpack.c.b16 %v1458, %v1457
      %v1488 = vpack.c.b16 %v1460, %v1459
      %v1489 = vpack.c.b16 %v1462, %v1461
      %v1490 = vpack.c.b16 %v1464, %v1463
      %v1491 = vpack.c.b16 %v1466, %v1465
      %v1492 = vpack.c.b16 %v1468, %v1467
      %v1493 = vpack.c.b16 %v1470, %v1469
      %v1494 = vpack.c.b16 %v1472, %v1471
      %v1495 = vpack.c.b16 %v1474, %v1473
      %v1496 = vpack.c.b16 %v1476, %v1475
      %v1497 = vpack.c.b16 %v1478, %v1477
      %v1498 = vpack.c.b16 %v1480, %v1479
      %v1499 = vpack.c.b16 %v1482, %v1481
      %v1500 = vpack.c.b16 %v1484, %v1483
      %v1533 = vunpack.c.l.b16 %v1437
      %v1534 = vunpack.c.l.b16 %v1438
      %v1535 = vunpack.c.l.b16 %v1439
      %v1536 = vunpack.c.l.b16 %v1440
      %v1537 = vunpack.c.l.b16 %v1441
      %v1538 = vunpack.c.l.b16 %v1442
      %v1539 = vunpack.c.l.b16 %v1443
      %v1540 = vunpack.c.l.b16 %v1444
      %v1541 = vunpack.c.l.b16 %v1445
      %v1542 = vunpack.c.l.b16 %v1446
      %v1543 = vunpack.c.l.b16 %v1447
      %v1544 = vunpack.c.l.b16 %v1448
      %v1545 = vunpack.c.l.b16 %v1449
      %v1546 = vunpack.c.l.b16 %v1450
      %v1547 = vunpack.c.l.b16 %v1451
      %v1548 = vunpack.c.l.b16 %v1452
      %v1549 = vpack.c.b16 %v1534, %v1533
      %v1550 = vpack.c.b16 %v1536, %v1535
      %v1551 = vpack.c.b16 %v1538, %v1537
      %v1552 = vpack.c.b16 %v1540, %v1539
      %v1553 = vpack.c.b16 %v1542, %v1541
      %v1554 = vpack.c.b16 %v1544, %v1543
      %v1555 = vpack.c.b16 %v1546, %v1545
      %v1556 = vpack.c.b16 %v1548, %v1547
      %1565 = vmatprep.subr.bf16.mxu0 0
      %1566 = vmatpush1.bf16.msra.mxu0 %v1556
      %1567 = vmatprep.subr.bf16.mxu0 0
      %1568 = vmatpush1.bf16.msra.mxu0 %v1555
      %1569 = vmatprep.subr.bf16.mxu0 0
      %1570 = vmatpush1.bf16.msra.mxu0 %v1554
      %1571 = vmatprep.subr.bf16.mxu0 0
      %1572 = vmatpush1.bf16.msra.mxu0 %v1553
      %1573 = vmatprep.subr.bf16.mxu0 0
      %1574 = vmatpush1.bf16.msra.mxu0 %v1552
      %1575 = vmatprep.subr.bf16.mxu0 0
      %1576 = vmatpush1.bf16.msra.mxu0 %v1551
      %1577 = vmatprep.subr.bf16.mxu0 0
      %1578 = vmatpush1.bf16.msra.mxu0 %v1550
      %1579 = vmatprep.subr.bf16.mxu0 0
      %1580 = vmatpush1.bf16.msra.mxu0 %v1549
      %1581 = vmatprep.subr.bf16.mxu0 0
      %1582 = vmatpush2.bf16.msra.mxu0 0
      %1583 = vmatprep.subr.bf16.mxu0 0
      %1584 = vmatpush2.bf16.msra.mxu0 0
      %1585 = vmatprep.subr.bf16.mxu0 0
      %1586 = vmatpush2.bf16.msra.mxu0 0
      %1587 = vmatprep.subr.bf16.mxu0 0
      %1588 = vmatpush2.bf16.msra.mxu0 0
      %1589 = vmatprep.subr.bf16.mxu0 0
      %1590 = vmatpush2.bf16.msra.mxu0 0
      %1591 = vmatprep.subr.bf16.mxu0 0
      %1592 = vmatpush2.bf16.msra.mxu0 0
      %1593 = vmatprep.subr.bf16.mxu0 0
      %1594 = vmatpush2.bf16.msra.mxu0 0
      %1595 = vmatprep.subr.bf16.mxu0 0
      %1596 = vmatpush2.bf16.msra.mxu0 0
      %1597 = vmatprep.mubr.bf16.mxu0 0
      %1598 = vmatmul.mubr.bf16.gmra.mxu0 %v1485
      %v1599 = vpop.f32.mrf.mxu0
      %v1600 = vadd.f32 0.0, %v1599
      %v1601 = vpop.f32.mrf.mxu0
      %v1602 = vpop.f32.mrf.mxu0
      %v1603 = vadd.f32 0.0, %v1602
      %v1604 = vpop.f32.mrf.mxu0
      %1605 = vmatprep.mubr.bf16.mxu0 0
      %1606 = vmatmul.mubr.bf16.gmra.mxu0 %v1486
      %v1607 = vpop.f32.mrf.mxu0
      %v1608 = vadd.f32 0.0, %v1607
      %v1609 = vpop.f32.mrf.mxu0
      %v1610 = vpop.f32.mrf.mxu0
      %v1611 = vadd.f32 0.0, %v1610
      %v1612 = vpop.f32.mrf.mxu0
      %1613 = vmatprep.mubr.bf16.mxu0 0
      %1614 = vmatmul.mubr.bf16.gmra.mxu0 %v1487
      %v1615 = vpop.f32.mrf.mxu0
      %v1616 = vadd.f32 0.0, %v1615
      %v1617 = vpop.f32.mrf.mxu0
      %v1618 = vpop.f32.mrf.mxu0
      %v1619 = vadd.f32 0.0, %v1618
      %v1620 = vpop.f32.mrf.mxu0
      %1621 = vmatprep.mubr.bf16.mxu0 0
      %1622 = vmatmul.mubr.bf16.gmra.mxu0 %v1488
      %v1623 = vpop.f32.mrf.mxu0
      %v1624 = vadd.f32 0.0, %v1623
      %v1625 = vpop.f32.mrf.mxu0
      %v1626 = vpop.f32.mrf.mxu0
      %v1627 = vadd.f32 0.0, %v1626
      %v1628 = vpop.f32.mrf.mxu0
      %1629 = vmatprep.mubr.bf16.mxu0 0
      %1630 = vmatmul.mubr.bf16.gmra.mxu0 %v1489
      %v1631 = vpop.f32.mrf.mxu0
      %v1632 = vadd.f32 0.0, %v1631
      %v1633 = vpop.f32.mrf.mxu0
      %v1634 = vpop.f32.mrf.mxu0
      %v1635 = vadd.f32 0.0, %v1634
      %v1636 = vpop.f32.mrf.mxu0
      %1637 = vmatprep.mubr.bf16.mxu0 0
      %1638 = vmatmul.mubr.bf16.gmra.mxu0 %v1490
      %v1639 = vpop.f32.mrf.mxu0
      %v1640 = vadd.f32 0.0, %v1639
      %v1641 = vpop.f32.mrf.mxu0
      %v1642 = vpop.f32.mrf.mxu0
      %v1643 = vadd.f32 0.0, %v1642
      %v1644 = vpop.f32.mrf.mxu0
      %1645 = vmatprep.mubr.bf16.mxu0 0
      %1646 = vmatmul.mubr.bf16.gmra.mxu0 %v1491
      %v1647 = vpop.f32.mrf.mxu0
      %v1648 = vadd.f32 0.0, %v1647
      %v1649 = vpop.f32.mrf.mxu0
      %v1650 = vpop.f32.mrf.mxu0
      %v1651 = vadd.f32 0.0, %v1650
      %v1652 = vpop.f32.mrf.mxu0
      %1653 = vmatprep.mubr.bf16.mxu0 0
      %1654 = vmatmul.mubr.bf16.gmra.mxu0 %v1492
      %v1655 = vpop.f32.mrf.mxu0
      %v1656 = vadd.f32 0.0, %v1655
      %v1657 = vpop.f32.mrf.mxu0
      %v1658 = vpop.f32.mrf.mxu0
      %v1659 = vadd.f32 0.0, %v1658
      %v1660 = vpop.f32.mrf.mxu0
      %1661 = vmatprep.mubr.bf16.mxu0 0
      %1662 = vmatmul.mubr.bf16.gmra.mxu0 %v1493
      %v1663 = vpop.f32.mrf.mxu0
      %v1664 = vadd.f32 0.0, %v1663
      %v1665 = vpop.f32.mrf.mxu0
      %v1666 = vpop.f32.mrf.mxu0
      %v1667 = vadd.f32 0.0, %v1666
      %v1668 = vpop.f32.mrf.mxu0
      %1669 = vmatprep.mubr.bf16.mxu0 0
      %1670 = vmatmul.mubr.bf16.gmra.mxu0 %v1494
      %v1671 = vpop.f32.mrf.mxu0
      %v1672 = vadd.f32 0.0, %v1671
      %v1673 = vpop.f32.mrf.mxu0
      %v1674 = vpop.f32.mrf.mxu0
      %v1675 = vadd.f32 0.0, %v1674
      %v1676 = vpop.f32.mrf.mxu0
      %1677 = vmatprep.mubr.bf16.mxu0 0
      %1678 = vmatmul.mubr.bf16.gmra.mxu0 %v1495
      %v1679 = vpop.f32.mrf.mxu0
      %v1680 = vadd.f32 0.0, %v1679
      %v1681 = vpop.f32.mrf.mxu0
      %v1682 = vpop.f32.mrf.mxu0
      %v1683 = vadd.f32 0.0, %v1682
      %v1684 = vpop.f32.mrf.mxu0
      %1685 = vmatprep.mubr.bf16.mxu0 0
      %1686 = vmatmul.mubr.bf16.gmra.mxu0 %v1496
      %v1687 = vpop.f32.mrf.mxu0
      %v1688 = vadd.f32 0.0, %v1687
      %v1689 = vpop.f32.mrf.mxu0
      %v1690 = vpop.f32.mrf.mxu0
      %v1691 = vadd.f32 0.0, %v1690
      %v1692 = vpop.f32.mrf.mxu0
      %1693 = vmatprep.mubr.bf16.mxu0 0
      %1694 = vmatmul.mubr.bf16.gmra.mxu0 %v1497
      %v1695 = vpop.f32.mrf.mxu0
      %v1696 = vadd.f32 0.0, %v1695
      %v1697 = vpop.f32.mrf.mxu0
      %v1698 = vpop.f32.mrf.mxu0
      %v1699 = vadd.f32 0.0, %v1698
      %v1700 = vpop.f32.mrf.mxu0
      %1701 = vmatprep.mubr.bf16.mxu0 0
      %1702 = vmatmul.mubr.bf16.gmra.mxu0 %v1498
      %v1703 = vpop.f32.mrf.mxu0
      %v1704 = vadd.f32 0.0, %v1703
      %v1705 = vpop.f32.mrf.mxu0
      %v1706 = vpop.f32.mrf.mxu0
      %v1707 = vadd.f32 0.0, %v1706
      %v1708 = vpop.f32.mrf.mxu0
      %1709 = vmatprep.mubr.bf16.mxu0 0
      %1710 = vmatmul.mubr.bf16.gmra.mxu0 %v1499
      %v1711 = vpop.f32.mrf.mxu0
      %v1712 = vadd.f32 0.0, %v1711
      %v1713 = vpop.f32.mrf.mxu0
      %v1714 = vpop.f32.mrf.mxu0
      %v1715 = vadd.f32 0.0, %v1714
      %v1716 = vpop.f32.mrf.mxu0
      %1717 = vmatprep.mubr.bf16.mxu0 0
      %1718 = vmatmul.mubr.bf16.gmra.mxu0 %v1500
      %v1719 = vpop.f32.mrf.mxu0
      %v1720 = vadd.f32 0.0, %v1719
      %v1721 = vpop.f32.mrf.mxu0
      %v1722 = vpop.f32.mrf.mxu0
      %v1723 = vadd.f32 0.0, %v1722
      %v1724 = vpop.f32.mrf.mxu0
      %1725 = vdwg.mxu0
      %v1726 = vadd.f32 %v1147, %v1600
      %v1727 = vadd.f32 %v1150, %v1603
      %v1728 = vadd.f32 %v1155, %v1608
      %v1729 = vadd.f32 %v1158, %v1611
      %v1730 = vadd.f32 %v1163, %v1616
      %v1731 = vadd.f32 %v1166, %v1619
      %v1732 = vadd.f32 %v1171, %v1624
      %v1733 = vadd.f32 %v1174, %v1627
      %v1734 = vadd.f32 %v1179, %v1632
      %v1735 = vadd.f32 %v1182, %v1635
      %v1736 = vadd.f32 %v1187, %v1640
      %v1737 = vadd.f32 %v1190, %v1643
      %v1738 = vadd.f32 %v1195, %v1648
      %v1739 = vadd.f32 %v1198, %v1651
      %v1740 = vadd.f32 %v1203, %v1656
      %v1741 = vadd.f32 %v1206, %v1659
      %v1742 = vadd.f32 %v1211, %v1664
      %v1743 = vadd.f32 %v1214, %v1667
      %v1744 = vadd.f32 %v1219, %v1672
      %v1745 = vadd.f32 %v1222, %v1675
      %v1746 = vadd.f32 %v1227, %v1680
      %v1747 = vadd.f32 %v1230, %v1683
      %v1748 = vadd.f32 %v1235, %v1688
      %v1749 = vadd.f32 %v1238, %v1691
      %v1750 = vadd.f32 %v1243, %v1696
      %v1751 = vadd.f32 %v1246, %v1699
      %v1752 = vadd.f32 %v1251, %v1704
      %v1753 = vadd.f32 %v1254, %v1707
      %v1754 = vadd.f32 %v1259, %v1712
      %v1755 = vadd.f32 %v1262, %v1715
      %v1756 = vadd.f32 %v1267, %v1720
      %v1757 = vadd.f32 %v1270, %v1723
      %v1758 = vld [vmem:[%s2] sm:$0x1]
      %v1760 = vlaneseq
      %v1761 = vshrl.u32 %v1760, 7
      %v1762 = vsub.s32 0, %v1761
      %v1763 = vrot.slane %v1758, %v1762
      %v1765 = vadd.f32 %v1726, %v1763
      %v1766 = vadd.f32 %v1727, %v1763
      %v1767 = vadd.f32 %v1728, %v1763
      %v1768 = vadd.f32 %v1729, %v1763
      %v1769 = vadd.f32 %v1730, %v1763
      %v1770 = vadd.f32 %v1731, %v1763
      %v1771 = vadd.f32 %v1732, %v1763
      %v1772 = vadd.f32 %v1733, %v1763
      %v1773 = vadd.f32 %v1734, %v1763
      %v1774 = vadd.f32 %v1735, %v1763
      %v1775 = vadd.f32 %v1736, %v1763
      %v1776 = vadd.f32 %v1737, %v1763
      %v1777 = vadd.f32 %v1738, %v1763
      %v1778 = vadd.f32 %v1739, %v1763
      %v1779 = vadd.f32 %v1740, %v1763
      %v1780 = vadd.f32 %v1741, %v1763
      %v1781 = vadd.f32 %v1742, %v1763
      %v1782 = vadd.f32 %v1743, %v1763
      %v1783 = vadd.f32 %v1744, %v1763
      %v1784 = vadd.f32 %v1745, %v1763
      %v1785 = vadd.f32 %v1746, %v1763
      %v1786 = vadd.f32 %v1747, %v1763
      %v1787 = vadd.f32 %v1748, %v1763
      %v1788 = vadd.f32 %v1749, %v1763
      %v1789 = vadd.f32 %v1750, %v1763
      %v1790 = vadd.f32 %v1751, %v1763
      %v1791 = vadd.f32 %v1752, %v1763
      %v1792 = vadd.f32 %v1753, %v1763
      %v1793 = vadd.f32 %v1754, %v1763
      %v1794 = vadd.f32 %v1755, %v1763
      %v1795 = vadd.f32 %v1756, %v1763
      %v1796 = vadd.f32 %v1757, %v1763
      %v1797 = vmax.f32 %v1765, 0.0
      %v1798 = vmax.f32 %v1766, 0.0
      %v1799 = vmax.f32 %v1767, 0.0
      %v1800 = vmax.f32 %v1768, 0.0
      %v1801 = vmax.f32 %v1769, 0.0
      %v1802 = vmax.f32 %v1770, 0.0
      %v1803 = vmax.f32 %v1771, 0.0
      %v1804 = vmax.f32 %v1772, 0.0
      %v1805 = vmax.f32 %v1773, 0.0
      %v1806 = vmax.f32 %v1774, 0.0
      %v1807 = vmax.f32 %v1775, 0.0
      %v1808 = vmax.f32 %v1776, 0.0
      %v1809 = vmax.f32 %v1777, 0.0
      %v1810 = vmax.f32 %v1778, 0.0
      %v1811 = vmax.f32 %v1779, 0.0
      %v1812 = vmax.f32 %v1780, 0.0
      %v1813 = vmax.f32 %v1781, 0.0
      %v1814 = vmax.f32 %v1782, 0.0
      %v1815 = vmax.f32 %v1783, 0.0
      %v1816 = vmax.f32 %v1784, 0.0
      %v1817 = vmax.f32 %v1785, 0.0
      %v1818 = vmax.f32 %v1786, 0.0
      %v1819 = vmax.f32 %v1787, 0.0
      %v1820 = vmax.f32 %v1788, 0.0
      %v1821 = vmax.f32 %v1789, 0.0
      %v1822 = vmax.f32 %v1790, 0.0
      %v1823 = vmax.f32 %v1791, 0.0
      %v1824 = vmax.f32 %v1792, 0.0
      %v1825 = vmax.f32 %v1793, 0.0
      %v1826 = vmax.f32 %v1794, 0.0
      %v1827 = vmax.f32 %v1795, 0.0
      %v1828 = vmax.f32 %v1796, 0.0
      %v1829 = vld [vmem:[%s219] sm:$0xf]
      %v1830 = vld [vmem:[%s219 + $0x4] sm:$0xf]
      %v1831 = vld [vmem:[%s219 + $0x8] sm:$0x1]
      %v1832 = vld [vmem:[%s219 + $0xc] sm:$0xf]
      %v1833 = vld [vmem:[%s219 + $0x10] sm:$0xf]
      %v1834 = vld [vmem:[%s219 + $0x14] sm:$0x1]
      %v1835 = vld [vmem:[%s219 + $0x18] sm:$0xf]
      %v1836 = vld [vmem:[%s219 + $0x1c] sm:$0xf]
      %v1837 = vld [vmem:[%s219 + $0x20] sm:$0x1]
      %v1838 = vld [vmem:[%s219 + $0x24] sm:$0xf]
      %v1839 = vld [vmem:[%s219 + $0x28] sm:$0xf]
      %v1840 = vld [vmem:[%s219 + $0x2c] sm:$0x1]
      %v1841 = vld [vmem:[%s219 + $0x30] sm:$0xf]
      %v1842 = vld [vmem:[%s219 + $0x34] sm:$0xf]
      %v1843 = vld [vmem:[%s219 + $0x38] sm:$0x1]
      %v1844 = vld [vmem:[%s219 + $0x3c] sm:$0xf]
      %v1845 = vld [vmem:[%s219 + $0x40] sm:$0xf]
      %v1846 = vld [vmem:[%s219 + $0x44] sm:$0x1]
      %v1847 = vld [vmem:[%s219 + $0x48] sm:$0xf]
      %v1848 = vld [vmem:[%s219 + $0x4c] sm:$0xf]
      %v1849 = vld [vmem:[%s219 + $0x50] sm:$0x1]
      %v1850 = vld [vmem:[%s219 + $0x54] sm:$0xf]
      %v1851 = vld [vmem:[%s219 + $0x58] sm:$0xf]
      %v1852 = vld [vmem:[%s219 + $0x5c] sm:$0x1]
      %v1853 = vld [vmem:[%s219 + $0x60] sm:$0xf]
      %v1854 = vld [vmem:[%s219 + $0x64] sm:$0xf]
      %v1855 = vld [vmem:[%s219 + $0x68] sm:$0x1]
      %v1856 = vld [vmem:[%s219 + $0x6c] sm:$0xf]
      %v1857 = vld [vmem:[%s219 + $0x70] sm:$0xf]
      %v1858 = vld [vmem:[%s219 + $0x74] sm:$0x1]
      %v1859 = vld [vmem:[%s219 + $0x78] sm:$0xf]
      %v1860 = vld [vmem:[%s219 + $0x7c] sm:$0xf]
      %v1861 = vld [vmem:[%s219 + $0x80] sm:$0x1]
      %v1862 = vld [vmem:[%s219 + $0x84] sm:$0xf]
      %v1863 = vld [vmem:[%s219 + $0x88] sm:$0xf]
      %v1864 = vld [vmem:[%s219 + $0x8c] sm:$0x1]
      %v1865 = vld [vmem:[%s219 + $0x90] sm:$0xf]
      %v1866 = vld [vmem:[%s219 + $0x94] sm:$0xf]
      %v1867 = vld [vmem:[%s219 + $0x98] sm:$0x1]
      %v1868 = vld [vmem:[%s219 + $0x9c] sm:$0xf]
      %v1869 = vld [vmem:[%s219 + $0xa0] sm:$0xf]
      %v1870 = vld [vmem:[%s219 + $0xa4] sm:$0x1]
      %v1871 = vld [vmem:[%s219 + $0xa8] sm:$0xf]
      %v1872 = vld [vmem:[%s219 + $0xac] sm:$0xf]
      %v1873 = vld [vmem:[%s219 + $0xb0] sm:$0x1]
      %v1874 = vld [vmem:[%s219 + $0xb4] sm:$0xf]
      %v1875 = vld [vmem:[%s219 + $0xb8] sm:$0xf]
      %v1876 = vld [vmem:[%s219 + $0xbc] sm:$0x1]
      %v1878 = vshrl.u32 %v1829, 16
      %v1880 = vrot.slane %v1878, 4
      %v1881 = vshll.u32 %v1829, 16
      %v1883 = vrot.slane %v1881, 5
      %v1884 = vor.u32 %v1880, %v1883
      %v1885 = vrot.slane %v1884, 4
      %v1887 = vshll.u32 %v1830, 16
      %v1889 = vrot.slane %v1887, 5
      %v1890 = vsel %vm293, %v1885, %v1889
      %v1891 = vshrl.u32 %v1830, 16
      %v1893 = vrot.slane %v1891, 4
      %v1894 = vor.u32 %v1893, %v1889
      %v1895 = vrot.slane %v1894, 4
      %v1897 = vshll.u32 %v1831, 16
      %v1899 = vrot.slane %v1897, 5
      %v1900 = vsel %vm293, %v1895, %v1899
      %v1902 = vshrl.u32 %v1832, 16
      %v1904 = vrot.slane %v1902, 4
      %v1905 = vshll.u32 %v1832, 16
      %v1907 = vrot.slane %v1905, 5
      %v1908 = vor.u32 %v1904, %v1907
      %v1909 = vrot.slane %v1908, 4
      %v1911 = vshll.u32 %v1833, 16
      %v1913 = vrot.slane %v1911, 5
      %v1914 = vsel %vm293, %v1909, %v1913
      %v1915 = vshrl.u32 %v1833, 16
      %v1917 = vrot.slane %v1915, 4
      %v1918 = vor.u32 %v1917, %v1913
      %v1919 = vrot.slane %v1918, 4
      %v1921 = vshll.u32 %v1834, 16
      %v1923 = vrot.slane %v1921, 5
      %v1924 = vsel %vm293, %v1919, %v1923
      %v1926 = vshrl.u32 %v1835, 16
      %v1928 = vrot.slane %v1926, 4
      %v1929 = vshll.u32 %v1835, 16
      %v1931 = vrot.slane %v1929, 5
      %v1932 = vor.u32 %v1928, %v1931
      %v1933 = vrot.slane %v1932, 4
      %v1935 = vshll.u32 %v1836, 16
      %v1937 = vrot.slane %v1935, 5
      %v1938 = vsel %vm293, %v1933, %v1937
      %v1939 = vshrl.u32 %v1836, 16
      %v1941 = vrot.slane %v1939, 4
      %v1942 = vor.u32 %v1941, %v1937
      %v1943 = vrot.slane %v1942, 4
      %v1945 = vshll.u32 %v1837, 16
      %v1947 = vrot.slane %v1945, 5
      %v1948 = vsel %vm293, %v1943, %v1947
      %v1950 = vshrl.u32 %v1838, 16
      %v1952 = vrot.slane %v1950, 4
      %v1953 = vshll.u32 %v1838, 16
      %v1955 = vrot.slane %v1953, 5
      %v1956 = vor.u32 %v1952, %v1955
      %v1957 = vrot.slane %v1956, 4
      %v1959 = vshll.u32 %v1839, 16
      %v1961 = vrot.slane %v1959, 5
      %v1962 = vsel %vm293, %v1957, %v1961
      %v1963 = vshrl.u32 %v1839, 16
      %v1965 = vrot.slane %v1963, 4
      %v1966 = vor.u32 %v1965, %v1961
      %v1967 = vrot.slane %v1966, 4
      %v1969 = vshll.u32 %v1840, 16
      %v1971 = vrot.slane %v1969, 5
      %v1972 = vsel %vm293, %v1967, %v1971
      %v1974 = vshrl.u32 %v1841, 16
      %v1976 = vrot.slane %v1974, 4
      %v1977 = vshll.u32 %v1841, 16
      %v1979 = vrot.slane %v1977, 5
      %v1980 = vor.u32 %v1976, %v1979
      %v1981 = vrot.slane %v1980, 4
      %v1983 = vshll.u32 %v1842, 16
      %v1985 = vrot.slane %v1983, 5
      %v1986 = vsel %vm293, %v1981, %v1985
      %v1987 = vshrl.u32 %v1842, 16
      %v1989 = vrot.slane %v1987, 4
      %v1990 = vor.u32 %v1989, %v1985
      %v1991 = vrot.slane %v1990, 4
      %v1993 = vshll.u32 %v1843, 16
      %v1995 = vrot.slane %v1993, 5
      %v1996 = vsel %vm293, %v1991, %v1995
      %v1998 = vshrl.u32 %v1844, 16
      %v2000 = vrot.slane %v1998, 4
      %v2001 = vshll.u32 %v1844, 16
      %v2003 = vrot.slane %v2001, 5
      %v2004 = vor.u32 %v2000, %v2003
      %v2005 = vrot.slane %v2004, 4
      %v2007 = vshll.u32 %v1845, 16
      %v2009 = vrot.slane %v2007, 5
      %v2010 = vsel %vm293, %v2005, %v2009
      %v2011 = vshrl.u32 %v1845, 16
      %v2013 = vrot.slane %v2011, 4
      %v2014 = vor.u32 %v2013, %v2009
      %v2015 = vrot.slane %v2014, 4
      %v2017 = vshll.u32 %v1846, 16
      %v2019 = vrot.slane %v2017, 5
      %v2020 = vsel %vm293, %v2015, %v2019
      %v2022 = vshrl.u32 %v1847, 16
      %v2024 = vrot.slane %v2022, 4
      %v2025 = vshll.u32 %v1847, 16
      %v2027 = vrot.slane %v2025, 5
      %v2028 = vor.u32 %v2024, %v2027
      %v2029 = vrot.slane %v2028, 4
      %v2031 = vshll.u32 %v1848, 16
      %v2033 = vrot.slane %v2031, 5
      %v2034 = vsel %vm293, %v2029, %v2033
      %v2035 = vshrl.u32 %v1848, 16
      %v2037 = vrot.slane %v2035, 4
      %v2038 = vor.u32 %v2037, %v2033
      %v2039 = vrot.slane %v2038, 4
      %v2041 = vshll.u32 %v1849, 16
      %v2043 = vrot.slane %v2041, 5
      %v2044 = vsel %vm293, %v2039, %v2043
      %v2046 = vshrl.u32 %v1850, 16
      %v2048 = vrot.slane %v2046, 4
      %v2049 = vshll.u32 %v1850, 16
      %v2051 = vrot.slane %v2049, 5
      %v2052 = vor.u32 %v2048, %v2051
      %v2053 = vrot.slane %v2052, 4
      %v2055 = vshll.u32 %v1851, 16
      %v2057 = vrot.slane %v2055, 5
      %v2058 = vsel %vm293, %v2053, %v2057
      %v2059 = vshrl.u32 %v1851, 16
      %v2061 = vrot.slane %v2059, 4
      %v2062 = vor.u32 %v2061, %v2057
      %v2063 = vrot.slane %v2062, 4
      %v2065 = vshll.u32 %v1852, 16
      %v2067 = vrot.slane %v2065, 5
      %v2068 = vsel %vm293, %v2063, %v2067
      %v2070 = vshrl.u32 %v1853, 16
      %v2072 = vrot.slane %v2070, 4
      %v2073 = vshll.u32 %v1853, 16
      %v2075 = vrot.slane %v2073, 5
      %v2076 = vor.u32 %v2072, %v2075
      %v2077 = vrot.slane %v2076, 4
      %v2079 = vshll.u32 %v1854, 16
      %v2081 = vrot.slane %v2079, 5
      %v2082 = vsel %vm293, %v2077, %v2081
      %v2083 = vshrl.u32 %v1854, 16
      %v2085 = vrot.slane %v2083, 4
      %v2086 = vor.u32 %v2085, %v2081
      %v2087 = vrot.slane %v2086, 4
      %v2089 = vshll.u32 %v1855, 16
      %v2091 = vrot.slane %v2089, 5
      %v2092 = vsel %vm293, %v2087, %v2091
      %v2094 = vshrl.u32 %v1856, 16
      %v2096 = vrot.slane %v2094, 4
      %v2097 = vshll.u32 %v1856, 16
      %v2099 = vrot.slane %v2097, 5
      %v2100 = vor.u32 %v2096, %v2099
      %v2101 = vrot.slane %v2100, 4
      %v2103 = vshll.u32 %v1857, 16
      %v2105 = vrot.slane %v2103, 5
      %v2106 = vsel %vm293, %v2101, %v2105
      %v2107 = vshrl.u32 %v1857, 16
      %v2109 = vrot.slane %v2107, 4
      %v2110 = vor.u32 %v2109, %v2105
      %v2111 = vrot.slane %v2110, 4
      %v2113 = vshll.u32 %v1858, 16
      %v2115 = vrot.slane %v2113, 5
      %v2116 = vsel %vm293, %v2111, %v2115
      %v2118 = vshrl.u32 %v1859, 16
      %v2120 = vrot.slane %v2118, 4
      %v2121 = vshll.u32 %v1859, 16
      %v2123 = vrot.slane %v2121, 5
      %v2124 = vor.u32 %v2120, %v2123
      %v2125 = vrot.slane %v2124, 4
      %v2127 = vshll.u32 %v1860, 16
      %v2129 = vrot.slane %v2127, 5
      %v2130 = vsel %vm293, %v2125, %v2129
      %v2131 = vshrl.u32 %v1860, 16
      %v2133 = vrot.slane %v2131, 4
      %v2134 = vor.u32 %v2133, %v2129
      %v2135 = vrot.slane %v2134, 4
      %v2137 = vshll.u32 %v1861, 16
      %v2139 = vrot.slane %v2137, 5
      %v2140 = vsel %vm293, %v2135, %v2139
      %v2142 = vshrl.u32 %v1862, 16
      %v2144 = vrot.slane %v2142, 4
      %v2145 = vshll.u32 %v1862, 16
      %v2147 = vrot.slane %v2145, 5
      %v2148 = vor.u32 %v2144, %v2147
      %v2149 = vrot.slane %v2148, 4
      %v2151 = vshll.u32 %v1863, 16
      %v2153 = vrot.slane %v2151, 5
      %v2154 = vsel %vm293, %v2149, %v2153
      %v2155 = vshrl.u32 %v1863, 16
      %v2157 = vrot.slane %v2155, 4
      %v2158 = vor.u32 %v2157, %v2153
      %v2159 = vrot.slane %v2158, 4
      %v2161 = vshll.u32 %v1864, 16
      %v2163 = vrot.slane %v2161, 5
      %v2164 = vsel %vm293, %v2159, %v2163
      %v2166 = vshrl.u32 %v1865, 16
      %v2168 = vrot.slane %v2166, 4
      %v2169 = vshll.u32 %v1865, 16
      %v2171 = vrot.slane %v2169, 5
      %v2172 = vor.u32 %v2168, %v2171
      %v2173 = vrot.slane %v2172, 4
      %v2175 = vshll.u32 %v1866, 16
      %v2177 = vrot.slane %v2175, 5
      %v2178 = vsel %vm293, %v2173, %v2177
      %v2179 = vshrl.u32 %v1866, 16
      %v2181 = vrot.slane %v2179, 4
      %v2182 = vor.u32 %v2181, %v2177
      %v2183 = vrot.slane %v2182, 4
      %v2185 = vshll.u32 %v1867, 16
      %v2187 = vrot.slane %v2185, 5
      %v2188 = vsel %vm293, %v2183, %v2187
      %v2190 = vshrl.u32 %v1868, 16
      %v2192 = vrot.slane %v2190, 4
      %v2193 = vshll.u32 %v1868, 16
      %v2195 = vrot.slane %v2193, 5
      %v2196 = vor.u32 %v2192, %v2195
      %v2197 = vrot.slane %v2196, 4
      %v2199 = vshll.u32 %v1869, 16
      %v2201 = vrot.slane %v2199, 5
      %v2202 = vsel %vm293, %v2197, %v2201
      %v2203 = vshrl.u32 %v1869, 16
      %v2205 = vrot.slane %v2203, 4
      %v2206 = vor.u32 %v2205, %v2201
      %v2207 = vrot.slane %v2206, 4
      %v2209 = vshll.u32 %v1870, 16
      %v2211 = vrot.slane %v2209, 5
      %v2212 = vsel %vm293, %v2207, %v2211
      %v2214 = vshrl.u32 %v1871, 16
      %v2216 = vrot.slane %v2214, 4
      %v2217 = vshll.u32 %v1871, 16
      %v2219 = vrot.slane %v2217, 5
      %v2220 = vor.u32 %v2216, %v2219
      %v2221 = vrot.slane %v2220, 4
      %v2223 = vshll.u32 %v1872, 16
      %v2225 = vrot.slane %v2223, 5
      %v2226 = vsel %vm293, %v2221, %v2225
      %v2227 = vshrl.u32 %v1872, 16
      %v2229 = vrot.slane %v2227, 4
      %v2230 = vor.u32 %v2229, %v2225
      %v2231 = vrot.slane %v2230, 4
      %v2233 = vshll.u32 %v1873, 16
      %v2235 = vrot.slane %v2233, 5
      %v2236 = vsel %vm293, %v2231, %v2235
      %v2238 = vshrl.u32 %v1874, 16
      %v2240 = vrot.slane %v2238, 4
      %v2241 = vshll.u32 %v1874, 16
      %v2243 = vrot.slane %v2241, 5
      %v2244 = vor.u32 %v2240, %v2243
      %v2245 = vrot.slane %v2244, 4
      %v2247 = vshll.u32 %v1875, 16
      %v2249 = vrot.slane %v2247, 5
      %v2250 = vsel %vm293, %v2245, %v2249
      %v2251 = vshrl.u32 %v1875, 16
      %v2253 = vrot.slane %v2251, 4
      %v2254 = vor.u32 %v2253, %v2249
      %v2255 = vrot.slane %v2254, 4
      %v2257 = vshll.u32 %v1876, 16
      %v2259 = vrot.slane %v2257, 5
      %v2260 = vsel %vm293, %v2255, %v2259
      %v2261 = vld [vmem:[%s3] sm:$0xf]
      %v2262 = vld [vmem:[%s3 + $0x4] sm:$0xf]
      %v2263 = vld [vmem:[%s3 + $0x8] sm:$0xf]
      %v2264 = vld [vmem:[%s3 + $0xc] sm:$0xf]
      %v2265 = vld [vmem:[%s3 + $0x10] sm:$0xf]
      %v2266 = vld [vmem:[%s3 + $0x14] sm:$0xf]
      %v2267 = vld [vmem:[%s3 + $0x18] sm:$0xf]
      %v2268 = vld [vmem:[%s3 + $0x1c] sm:$0xf]
      %v2269 = vld [vmem:[%s3 + $0x20] sm:$0xf]
      %v2270 = vld [vmem:[%s3 + $0x24] sm:$0xf]
      %v2271 = vld [vmem:[%s3 + $0x28] sm:$0xf]
      %v2272 = vld [vmem:[%s3 + $0x2c] sm:$0xf]
      %v2273 = vld [vmem:[%s3 + $0x30] sm:$0xf]
      %v2274 = vld [vmem:[%s3 + $0x34] sm:$0xf]
      %v2275 = vld [vmem:[%s3 + $0x38] sm:$0xf]
      %v2276 = vld [vmem:[%s3 + $0x3c] sm:$0xf]
      %s2277 = scalar_lea.vmem %s3, 64
      %v2278 = vld [vmem:[%s2277] sm:$0xf]
      %v2279 = vld [vmem:[%s2277 + $0x4] sm:$0xf]
      %v2280 = vld [vmem:[%s2277 + $0x8] sm:$0xf]
      %v2281 = vld [vmem:[%s2277 + $0xc] sm:$0xf]
      %v2282 = vld [vmem:[%s2277 + $0x10] sm:$0xf]
      %v2283 = vld [vmem:[%s2277 + $0x14] sm:$0xf]
      %v2284 = vld [vmem:[%s2277 + $0x18] sm:$0xf]
      %v2285 = vld [vmem:[%s2277 + $0x1c] sm:$0xf]
      %v2286 = vld [vmem:[%s2277 + $0x20] sm:$0xf]
      %v2287 = vld [vmem:[%s2277 + $0x24] sm:$0xf]
      %v2288 = vld [vmem:[%s2277 + $0x28] sm:$0xf]
      %v2289 = vld [vmem:[%s2277 + $0x2c] sm:$0xf]
      %v2290 = vld [vmem:[%s2277 + $0x30] sm:$0xf]
      %v2291 = vld [vmem:[%s2277 + $0x34] sm:$0xf]
      %v2292 = vld [vmem:[%s2277 + $0x38] sm:$0xf]
      %v2293 = vld [vmem:[%s2277 + $0x3c] sm:$0xf]
      %v2310 = vunpack.c.l.b16 %v2278
      %v2311 = vunpack.c.l.b16 %v2279
      %v2312 = vunpack.c.l.b16 %v2280
      %v2313 = vunpack.c.l.b16 %v2281
      %v2314 = vunpack.c.l.b16 %v2282
      %v2315 = vunpack.c.l.b16 %v2283
      %v2316 = vunpack.c.l.b16 %v2284
      %v2317 = vunpack.c.l.b16 %v2285
      %v2318 = vunpack.c.l.b16 %v2286
      %v2319 = vunpack.c.l.b16 %v2287
      %v2320 = vunpack.c.l.b16 %v2288
      %v2321 = vunpack.c.l.b16 %v2289
      %v2322 = vunpack.c.l.b16 %v2290
      %v2323 = vunpack.c.l.b16 %v2291
      %v2324 = vunpack.c.l.b16 %v2292
      %v2325 = vunpack.c.l.b16 %v2293
      %v2326 = vpack.c.b16 %v2311, %v2310
      %v2327 = vpack.c.b16 %v2313, %v2312
      %v2328 = vpack.c.b16 %v2315, %v2314
      %v2329 = vpack.c.b16 %v2317, %v2316
      %v2330 = vpack.c.b16 %v2319, %v2318
      %v2331 = vpack.c.b16 %v2321, %v2320
      %v2332 = vpack.c.b16 %v2323, %v2322
      %v2333 = vpack.c.b16 %v2325, %v2324
      %2342 = vmatprep.subr.bf16.mxu0 0
      %2343 = vmatpush1.bf16.msra.mxu0 %v2333
      %2344 = vmatprep.subr.bf16.mxu0 0
      %2345 = vmatpush1.bf16.msra.mxu0 %v2332
      %2346 = vmatprep.subr.bf16.mxu0 0
      %2347 = vmatpush1.bf16.msra.mxu0 %v2331
      %2348 = vmatprep.subr.bf16.mxu0 0
      %2349 = vmatpush1.bf16.msra.mxu0 %v2330
      %2350 = vmatprep.subr.bf16.mxu0 0
      %2351 = vmatpush1.bf16.msra.mxu0 %v2329
      %2352 = vmatprep.subr.bf16.mxu0 0
      %2353 = vmatpush1.bf16.msra.mxu0 %v2328
      %2354 = vmatprep.subr.bf16.mxu0 0
      %2355 = vmatpush1.bf16.msra.mxu0 %v2327
      %2356 = vmatprep.subr.bf16.mxu0 0
      %2357 = vmatpush1.bf16.msra.mxu0 %v2326
      %2358 = vmatprep.subr.bf16.mxu0 0
      %2359 = vmatpush2.bf16.msra.mxu0 0
      %2360 = vmatprep.subr.bf16.mxu0 0
      %2361 = vmatpush2.bf16.msra.mxu0 0
      %2362 = vmatprep.subr.bf16.mxu0 0
      %2363 = vmatpush2.bf16.msra.mxu0 0
      %2364 = vmatprep.subr.bf16.mxu0 0
      %2365 = vmatpush2.bf16.msra.mxu0 0
      %2366 = vmatprep.subr.bf16.mxu0 0
      %2367 = vmatpush2.bf16.msra.mxu0 0
      %2368 = vmatprep.subr.bf16.mxu0 0
      %2369 = vmatpush2.bf16.msra.mxu0 0
      %2370 = vmatprep.subr.bf16.mxu0 0
      %2371 = vmatpush2.bf16.msra.mxu0 0
      %2372 = vmatprep.subr.bf16.mxu0 0
      %2373 = vmatpush2.bf16.msra.mxu0 0
      %2374 = vmatprep.mubr.bf16.mxu0 0
      %2375 = vmatmul.mubr.bf16.gmra.mxu0 %v727
      %v2376 = vpop.f32.mrf.mxu0
      %v2377 = vadd.f32 0.0, %v2376
      %v2378 = vpop.f32.mrf.mxu0
      %v2379 = vpop.f32.mrf.mxu0
      %v2380 = vadd.f32 0.0, %v2379
      %v2381 = vpop.f32.mrf.mxu0
      %2382 = vmatprep.mubr.bf16.mxu0 0
      %2383 = vmatmul.mubr.bf16.gmra.mxu0 %v728
      %v2384 = vpop.f32.mrf.mxu0
      %v2385 = vadd.f32 0.0, %v2384
      %v2386 = vpop.f32.mrf.mxu0
      %v2387 = vpop.f32.mrf.mxu0
      %v2388 = vadd.f32 0.0, %v2387
      %v2389 = vpop.f32.mrf.mxu0
      %2390 = vmatprep.mubr.bf16.mxu0 0
      %2391 = vmatmul.mubr.bf16.gmra.mxu0 %v729
      %v2392 = vpop.f32.mrf.mxu0
      %v2393 = vadd.f32 0.0, %v2392
      %v2394 = vpop.f32.mrf.mxu0
      %v2395 = vpop.f32.mrf.mxu0
      %v2396 = vadd.f32 0.0, %v2395
      %v2397 = vpop.f32.mrf.mxu0
      %2398 = vmatprep.mubr.bf16.mxu0 0
      %2399 = vmatmul.mubr.bf16.gmra.mxu0 %v730
      %v2400 = vpop.f32.mrf.mxu0
      %v2401 = vadd.f32 0.0, %v2400
      %v2402 = vpop.f32.mrf.mxu0
      %v2403 = vpop.f32.mrf.mxu0
      %v2404 = vadd.f32 0.0, %v2403
      %v2405 = vpop.f32.mrf.mxu0
      %2406 = vmatprep.mubr.bf16.mxu0 0
      %2407 = vmatmul.mubr.bf16.gmra.mxu0 %v731
      %v2408 = vpop.f32.mrf.mxu0
      %v2409 = vadd.f32 0.0, %v2408
      %v2410 = vpop.f32.mrf.mxu0
      %v2411 = vpop.f32.mrf.mxu0
      %v2412 = vadd.f32 0.0, %v2411
      %v2413 = vpop.f32.mrf.mxu0
      %2414 = vmatprep.mubr.bf16.mxu0 0
      %2415 = vmatmul.mubr.bf16.gmra.mxu0 %v732
      %v2416 = vpop.f32.mrf.mxu0
      %v2417 = vadd.f32 0.0, %v2416
      %v2418 = vpop.f32.mrf.mxu0
      %v2419 = vpop.f32.mrf.mxu0
      %v2420 = vadd.f32 0.0, %v2419
      %v2421 = vpop.f32.mrf.mxu0
      %2422 = vmatprep.mubr.bf16.mxu0 0
      %2423 = vmatmul.mubr.bf16.gmra.mxu0 %v733
      %v2424 = vpop.f32.mrf.mxu0
      %v2425 = vadd.f32 0.0, %v2424
      %v2426 = vpop.f32.mrf.mxu0
      %v2427 = vpop.f32.mrf.mxu0
      %v2428 = vadd.f32 0.0, %v2427
      %v2429 = vpop.f32.mrf.mxu0
      %2430 = vmatprep.mubr.bf16.mxu0 0
      %2431 = vmatmul.mubr.bf16.gmra.mxu0 %v734
      %v2432 = vpop.f32.mrf.mxu0
      %v2433 = vadd.f32 0.0, %v2432
      %v2434 = vpop.f32.mrf.mxu0
      %v2435 = vpop.f32.mrf.mxu0
      %v2436 = vadd.f32 0.0, %v2435
      %v2437 = vpop.f32.mrf.mxu0
      %2438 = vmatprep.mubr.bf16.mxu0 0
      %2439 = vmatmul.mubr.bf16.gmra.mxu0 %v735
      %v2440 = vpop.f32.mrf.mxu0
      %v2441 = vadd.f32 0.0, %v2440
      %v2442 = vpop.f32.mrf.mxu0
      %v2443 = vpop.f32.mrf.mxu0
      %v2444 = vadd.f32 0.0, %v2443
      %v2445 = vpop.f32.mrf.mxu0
      %2446 = vmatprep.mubr.bf16.mxu0 0
      %2447 = vmatmul.mubr.bf16.gmra.mxu0 %v736
      %v2448 = vpop.f32.mrf.mxu0
      %v2449 = vadd.f32 0.0, %v2448
      %v2450 = vpop.f32.mrf.mxu0
      %v2451 = vpop.f32.mrf.mxu0
      %v2452 = vadd.f32 0.0, %v2451
      %v2453 = vpop.f32.mrf.mxu0
      %2454 = vmatprep.mubr.bf16.mxu0 0
      %2455 = vmatmul.mubr.bf16.gmra.mxu0 %v737
      %v2456 = vpop.f32.mrf.mxu0
      %v2457 = vadd.f32 0.0, %v2456
      %v2458 = vpop.f32.mrf.mxu0
      %v2459 = vpop.f32.mrf.mxu0
      %v2460 = vadd.f32 0.0, %v2459
      %v2461 = vpop.f32.mrf.mxu0
      %2462 = vmatprep.mubr.bf16.mxu0 0
      %2463 = vmatmul.mubr.bf16.gmra.mxu0 %v738
      %v2464 = vpop.f32.mrf.mxu0
      %v2465 = vadd.f32 0.0, %v2464
      %v2466 = vpop.f32.mrf.mxu0
      %v2467 = vpop.f32.mrf.mxu0
      %v2468 = vadd.f32 0.0, %v2467
      %v2469 = vpop.f32.mrf.mxu0
      %2470 = vmatprep.mubr.bf16.mxu0 0
      %2471 = vmatmul.mubr.bf16.gmra.mxu0 %v739
      %v2472 = vpop.f32.mrf.mxu0
      %v2473 = vadd.f32 0.0, %v2472
      %v2474 = vpop.f32.mrf.mxu0
      %v2475 = vpop.f32.mrf.mxu0
      %v2476 = vadd.f32 0.0, %v2475
      %v2477 = vpop.f32.mrf.mxu0
      %2478 = vmatprep.mubr.bf16.mxu0 0
      %2479 = vmatmul.mubr.bf16.gmra.mxu0 %v740
      %v2480 = vpop.f32.mrf.mxu0
      %v2481 = vadd.f32 0.0, %v2480
      %v2482 = vpop.f32.mrf.mxu0
      %v2483 = vpop.f32.mrf.mxu0
      %v2484 = vadd.f32 0.0, %v2483
      %v2485 = vpop.f32.mrf.mxu0
      %2486 = vmatprep.mubr.bf16.mxu0 0
      %2487 = vmatmul.mubr.bf16.gmra.mxu0 %v741
      %v2488 = vpop.f32.mrf.mxu0
      %v2489 = vadd.f32 0.0, %v2488
      %v2490 = vpop.f32.mrf.mxu0
      %v2491 = vpop.f32.mrf.mxu0
      %v2492 = vadd.f32 0.0, %v2491
      %v2493 = vpop.f32.mrf.mxu0
      %2494 = vmatprep.mubr.bf16.mxu0 0
      %2495 = vmatmul.mubr.bf16.gmra.mxu0 %v742
      %v2496 = vpop.f32.mrf.mxu0
      %v2497 = vadd.f32 0.0, %v2496
      %v2498 = vpop.f32.mrf.mxu0
      %v2499 = vpop.f32.mrf.mxu0
      %v2500 = vadd.f32 0.0, %v2499
      %v2501 = vpop.f32.mrf.mxu0
      %2502 = vdwg.mxu0
      %v2503 = vunpack.c.l.b16 %v1890
      %v2504 = vunpack.c.l.b16 %v1900
      %v2505 = vunpack.c.l.b16 %v1914
      %v2506 = vunpack.c.l.b16 %v1924
      %v2507 = vunpack.c.l.b16 %v1938
      %v2508 = vunpack.c.l.b16 %v1948
      %v2509 = vunpack.c.l.b16 %v1962
      %v2510 = vunpack.c.l.b16 %v1972
      %v2511 = vunpack.c.l.b16 %v1986
      %v2512 = vunpack.c.l.b16 %v1996
      %v2513 = vunpack.c.l.b16 %v2010
      %v2514 = vunpack.c.l.b16 %v2020
      %v2515 = vunpack.c.l.b16 %v2034
      %v2516 = vunpack.c.l.b16 %v2044
      %v2517 = vunpack.c.l.b16 %v2058
      %v2518 = vunpack.c.l.b16 %v2068
      %v2519 = vunpack.c.l.b16 %v2082
      %v2520 = vunpack.c.l.b16 %v2092
      %v2521 = vunpack.c.l.b16 %v2106
      %v2522 = vunpack.c.l.b16 %v2116
      %v2523 = vunpack.c.l.b16 %v2130
      %v2524 = vunpack.c.l.b16 %v2140
      %v2525 = vunpack.c.l.b16 %v2154
      %v2526 = vunpack.c.l.b16 %v2164
      %v2527 = vunpack.c.l.b16 %v2178
      %v2528 = vunpack.c.l.b16 %v2188
      %v2529 = vunpack.c.l.b16 %v2202
      %v2530 = vunpack.c.l.b16 %v2212
      %v2531 = vunpack.c.l.b16 %v2226
      %v2532 = vunpack.c.l.b16 %v2236
      %v2533 = vunpack.c.l.b16 %v2250
      %v2534 = vunpack.c.l.b16 %v2260
      %v2535 = vpack.c.b16 %v2504, %v2503
      %v2536 = vpack.c.b16 %v2506, %v2505
      %v2537 = vpack.c.b16 %v2508, %v2507
      %v2538 = vpack.c.b16 %v2510, %v2509
      %v2539 = vpack.c.b16 %v2512, %v2511
      %v2540 = vpack.c.b16 %v2514, %v2513
      %v2541 = vpack.c.b16 %v2516, %v2515
      %v2542 = vpack.c.b16 %v2518, %v2517
      %v2543 = vpack.c.b16 %v2520, %v2519
      %v2544 = vpack.c.b16 %v2522, %v2521
      %v2545 = vpack.c.b16 %v2524, %v2523
      %v2546 = vpack.c.b16 %v2526, %v2525
      %v2547 = vpack.c.b16 %v2528, %v2527
      %v2548 = vpack.c.b16 %v2530, %v2529
      %v2549 = vpack.c.b16 %v2532, %v2531
      %v2550 = vpack.c.b16 %v2534, %v2533
      %v2583 = vunpack.c.l.b16 %v2261
      %v2584 = vunpack.c.l.b16 %v2262
      %v2585 = vunpack.c.l.b16 %v2263
      %v2586 = vunpack.c.l.b16 %v2264
      %v2587 = vunpack.c.l.b16 %v2265
      %v2588 = vunpack.c.l.b16 %v2266
      %v2589 = vunpack.c.l.b16 %v2267
      %v2590 = vunpack.c.l.b16 %v2268
      %v2591 = vunpack.c.l.b16 %v2269
      %v2592 = vunpack.c.l.b16 %v2270
      %v2593 = vunpack.c.l.b16 %v2271
      %v2594 = vunpack.c.l.b16 %v2272
      %v2595 = vunpack.c.l.b16 %v2273
      %v2596 = vunpack.c.l.b16 %v2274
      %v2597 = vunpack.c.l.b16 %v2275
      %v2598 = vunpack.c.l.b16 %v2276
      %v2599 = vpack.c.b16 %v2584, %v2583
      %v2600 = vpack.c.b16 %v2586, %v2585
      %v2601 = vpack.c.b16 %v2588, %v2587
      %v2602 = vpack.c.b16 %v2590, %v2589
      %v2603 = vpack.c.b16 %v2592, %v2591
      %v2604 = vpack.c.b16 %v2594, %v2593
      %v2605 = vpack.c.b16 %v2596, %v2595
      %v2606 = vpack.c.b16 %v2598, %v2597
      %2615 = vmatprep.subr.bf16.mxu0 0
      %2616 = vmatpush1.bf16.msra.mxu0 %v2606
      %2617 = vmatprep.subr.bf16.mxu0 0
      %2618 = vmatpush1.bf16.msra.mxu0 %v2605
      %2619 = vmatprep.subr.bf16.mxu0 0
      %2620 = vmatpush1.bf16.msra.mxu0 %v2604
      %2621 = vmatprep.subr.bf16.mxu0 0
      %2622 = vmatpush1.bf16.msra.mxu0 %v2603
      %2623 = vmatprep.subr.bf16.mxu0 0
      %2624 = vmatpush1.bf16.msra.mxu0 %v2602
      %2625 = vmatprep.subr.bf16.mxu0 0
      %2626 = vmatpush1.bf16.msra.mxu0 %v2601
      %2627 = vmatprep.subr.bf16.mxu0 0
      %2628 = vmatpush1.bf16.msra.mxu0 %v2600
      %2629 = vmatprep.subr.bf16.mxu0 0
      %2630 = vmatpush1.bf16.msra.mxu0 %v2599
      %2631 = vmatprep.subr.bf16.mxu0 0
      %2632 = vmatpush2.bf16.msra.mxu0 0
      %2633 = vmatprep.subr.bf16.mxu0 0
      %2634 = vmatpush2.bf16.msra.mxu0 0
      %2635 = vmatprep.subr.bf16.mxu0 0
      %2636 = vmatpush2.bf16.msra.mxu0 0
      %2637 = vmatprep.subr.bf16.mxu0 0
      %2638 = vmatpush2.bf16.msra.mxu0 0
      %2639 = vmatprep.subr.bf16.mxu0 0
      %2640 = vmatpush2.bf16.msra.mxu0 0
      %2641 = vmatprep.subr.bf16.mxu0 0
      %2642 = vmatpush2.bf16.msra.mxu0 0
      %2643 = vmatprep.subr.bf16.mxu0 0
      %2644 = vmatpush2.bf16.msra.mxu0 0
      %2645 = vmatprep.subr.bf16.mxu0 0
      %2646 = vmatpush2.bf16.msra.mxu0 0
      %2647 = vmatprep.mubr.bf16.mxu0 0
      %2648 = vmatmul.mubr.bf16.gmra.mxu0 %v2535
      %v2649 = vpop.f32.mrf.mxu0
      %v2650 = vadd.f32 %v2377, %v2649
      %v2651 = vpop.f32.mrf.mxu0
      %v2652 = vpop.f32.mrf.mxu0
      %v2653 = vadd.f32 %v2380, %v2652
      %v2654 = vpop.f32.mrf.mxu0
      %2655 = vmatprep.mubr.bf16.mxu0 0
      %2656 = vmatmul.mubr.bf16.gmra.mxu0 %v2536
      %v2657 = vpop.f32.mrf.mxu0
      %v2658 = vadd.f32 %v2385, %v2657
      %v2659 = vpop.f32.mrf.mxu0
      %v2660 = vpop.f32.mrf.mxu0
      %v2661 = vadd.f32 %v2388, %v2660
      %v2662 = vpop.f32.mrf.mxu0
      %2663 = vmatprep.mubr.bf16.mxu0 0
      %2664 = vmatmul.mubr.bf16.gmra.mxu0 %v2537
      %v2665 = vpop.f32.mrf.mxu0
      %v2666 = vadd.f32 %v2393, %v2665
      %v2667 = vpop.f32.mrf.mxu0
      %v2668 = vpop.f32.mrf.mxu0
      %v2669 = vadd.f32 %v2396, %v2668
      %v2670 = vpop.f32.mrf.mxu0
      %2671 = vmatprep.mubr.bf16.mxu0 0
      %2672 = vmatmul.mubr.bf16.gmra.mxu0 %v2538
      %v2673 = vpop.f32.mrf.mxu0
      %v2674 = vadd.f32 %v2401, %v2673
      %v2675 = vpop.f32.mrf.mxu0
      %v2676 = vpop.f32.mrf.mxu0
      %v2677 = vadd.f32 %v2404, %v2676
      %v2678 = vpop.f32.mrf.mxu0
      %2679 = vmatprep.mubr.bf16.mxu0 0
      %2680 = vmatmul.mubr.bf16.gmra.mxu0 %v2539
      %v2681 = vpop.f32.mrf.mxu0
      %v2682 = vadd.f32 %v2409, %v2681
      %v2683 = vpop.f32.mrf.mxu0
      %v2684 = vpop.f32.mrf.mxu0
      %v2685 = vadd.f32 %v2412, %v2684
      %v2686 = vpop.f32.mrf.mxu0
      %2687 = vmatprep.mubr.bf16.mxu0 0
      %2688 = vmatmul.mubr.bf16.gmra.mxu0 %v2540
      %v2689 = vpop.f32.mrf.mxu0
      %v2690 = vadd.f32 %v2417, %v2689
      %v2691 = vpop.f32.mrf.mxu0
      %v2692 = vpop.f32.mrf.mxu0
      %v2693 = vadd.f32 %v2420, %v2692
      %v2694 = vpop.f32.mrf.mxu0
      %2695 = vmatprep.mubr.bf16.mxu0 0
      %2696 = vmatmul.mubr.bf16.gmra.mxu0 %v2541
      %v2697 = vpop.f32.mrf.mxu0
      %v2698 = vadd.f32 %v2425, %v2697
      %v2699 = vpop.f32.mrf.mxu0
      %v2700 = vpop.f32.mrf.mxu0
      %v2701 = vadd.f32 %v2428, %v2700
      %v2702 = vpop.f32.mrf.mxu0
      %2703 = vmatprep.mubr.bf16.mxu0 0
      %2704 = vmatmul.mubr.bf16.gmra.mxu0 %v2542
      %v2705 = vpop.f32.mrf.mxu0
      %v2706 = vadd.f32 %v2433, %v2705
      %v2707 = vpop.f32.mrf.mxu0
      %v2708 = vpop.f32.mrf.mxu0
      %v2709 = vadd.f32 %v2436, %v2708
      %v2710 = vpop.f32.mrf.mxu0
      %2711 = vmatprep.mubr.bf16.mxu0 0
      %2712 = vmatmul.mubr.bf16.gmra.mxu0 %v2543
      %v2713 = vpop.f32.mrf.mxu0
      %v2714 = vadd.f32 %v2441, %v2713
      %v2715 = vpop.f32.mrf.mxu0
      %v2716 = vpop.f32.mrf.mxu0
      %v2717 = vadd.f32 %v2444, %v2716
      %v2718 = vpop.f32.mrf.mxu0
      %2719 = vmatprep.mubr.bf16.mxu0 0
      %2720 = vmatmul.mubr.bf16.gmra.mxu0 %v2544
      %v2721 = vpop.f32.mrf.mxu0
      %v2722 = vadd.f32 %v2449, %v2721
      %v2723 = vpop.f32.mrf.mxu0
      %v2724 = vpop.f32.mrf.mxu0
      %v2725 = vadd.f32 %v2452, %v2724
      %v2726 = vpop.f32.mrf.mxu0
      %2727 = vmatprep.mubr.bf16.mxu0 0
      %2728 = vmatmul.mubr.bf16.gmra.mxu0 %v2545
      %v2729 = vpop.f32.mrf.mxu0
      %v2730 = vadd.f32 %v2457, %v2729
      %v2731 = vpop.f32.mrf.mxu0
      %v2732 = vpop.f32.mrf.mxu0
      %v2733 = vadd.f32 %v2460, %v2732
      %v2734 = vpop.f32.mrf.mxu0
      %2735 = vmatprep.mubr.bf16.mxu0 0
      %2736 = vmatmul.mubr.bf16.gmra.mxu0 %v2546
      %v2737 = vpop.f32.mrf.mxu0
      %v2738 = vadd.f32 %v2465, %v2737
      %v2739 = vpop.f32.mrf.mxu0
      %v2740 = vpop.f32.mrf.mxu0
      %v2741 = vadd.f32 %v2468, %v2740
      %v2742 = vpop.f32.mrf.mxu0
      %2743 = vmatprep.mubr.bf16.mxu0 0
      %2744 = vmatmul.mubr.bf16.gmra.mxu0 %v2547
      %v2745 = vpop.f32.mrf.mxu0
      %v2746 = vadd.f32 %v2473, %v2745
      %v2747 = vpop.f32.mrf.mxu0
      %v2748 = vpop.f32.mrf.mxu0
      %v2749 = vadd.f32 %v2476, %v2748
      %v2750 = vpop.f32.mrf.mxu0
      %2751 = vmatprep.mubr.bf16.mxu0 0
      %2752 = vmatmul.mubr.bf16.gmra.mxu0 %v2548
      %v2753 = vpop.f32.mrf.mxu0
      %v2754 = vadd.f32 %v2481, %v2753
      %v2755 = vpop.f32.mrf.mxu0
      %v2756 = vpop.f32.mrf.mxu0
      %v2757 = vadd.f32 %v2484, %v2756
      %v2758 = vpop.f32.mrf.mxu0
      %2759 = vmatprep.mubr.bf16.mxu0 0
      %2760 = vmatmul.mubr.bf16.gmra.mxu0 %v2549
      %v2761 = vpop.f32.mrf.mxu0
      %v2762 = vadd.f32 %v2489, %v2761
      %v2763 = vpop.f32.mrf.mxu0
      %v2764 = vpop.f32.mrf.mxu0
      %v2765 = vadd.f32 %v2492, %v2764
      %v2766 = vpop.f32.mrf.mxu0
      %2767 = vmatprep.mubr.bf16.mxu0 0
      %2768 = vmatmul.mubr.bf16.gmra.mxu0 %v2550
      %v2769 = vpop.f32.mrf.mxu0
      %v2770 = vadd.f32 %v2497, %v2769
      %v2771 = vpop.f32.mrf.mxu0
      %v2772 = vpop.f32.mrf.mxu0
      %v2773 = vadd.f32 %v2500, %v2772
      %v2774 = vpop.f32.mrf.mxu0
      %2775 = vdwg.mxu0
      %s2776 = scalar_lea.vmem %s219, 24
      %v2777 = vld [vmem:[%s2776] sm:$0xf]
      %v2778 = vld [vmem:[%s2776 + $0x4] sm:$0xf]
      %v2779 = vld [vmem:[%s2776 + $0x8] sm:$0x1]
      %v2780 = vld [vmem:[%s2776 + $0xc] sm:$0xf]
      %v2781 = vld [vmem:[%s2776 + $0x10] sm:$0xf]
      %v2782 = vld [vmem:[%s2776 + $0x14] sm:$0x1]
      %v2783 = vld [vmem:[%s2776 + $0x18] sm:$0xf]
      %v2784 = vld [vmem:[%s2776 + $0x1c] sm:$0xf]
      %v2785 = vld [vmem:[%s2776 + $0x20] sm:$0x1]
      %v2786 = vld [vmem:[%s2776 + $0x24] sm:$0xf]
      %v2787 = vld [vmem:[%s2776 + $0x28] sm:$0xf]
      %v2788 = vld [vmem:[%s2776 + $0x2c] sm:$0x1]
      %v2789 = vld [vmem:[%s2776 + $0x30] sm:$0xf]
      %v2790 = vld [vmem:[%s2776 + $0x34] sm:$0xf]
      %v2791 = vld [vmem:[%s2776 + $0x38] sm:$0x1]
      %v2792 = vld [vmem:[%s2776 + $0x3c] sm:$0xf]
      %v2793 = vld [vmem:[%s2776 + $0x40] sm:$0xf]
      %v2794 = vld [vmem:[%s2776 + $0x44] sm:$0x1]
      %v2795 = vld [vmem:[%s2776 + $0x48] sm:$0xf]
      %v2796 = vld [vmem:[%s2776 + $0x4c] sm:$0xf]
      %v2797 = vld [vmem:[%s2776 + $0x50] sm:$0x1]
      %v2798 = vld [vmem:[%s2776 + $0x54] sm:$0xf]
      %v2799 = vld [vmem:[%s2776 + $0x58] sm:$0xf]
      %v2800 = vld [vmem:[%s2776 + $0x5c] sm:$0x1]
      %v2801 = vld [vmem:[%s2776 + $0x60] sm:$0xf]
      %v2802 = vld [vmem:[%s2776 + $0x64] sm:$0xf]
      %v2803 = vld [vmem:[%s2776 + $0x68] sm:$0x1]
      %v2804 = vld [vmem:[%s2776 + $0x6c] sm:$0xf]
      %v2805 = vld [vmem:[%s2776 + $0x70] sm:$0xf]
      %v2806 = vld [vmem:[%s2776 + $0x74] sm:$0x1]
      %v2807 = vld [vmem:[%s2776 + $0x78] sm:$0xf]
      %v2808 = vld [vmem:[%s2776 + $0x7c] sm:$0xf]
      %v2809 = vld [vmem:[%s2776 + $0x80] sm:$0x1]
      %v2810 = vld [vmem:[%s2776 + $0x84] sm:$0xf]
      %v2811 = vld [vmem:[%s2776 + $0x88] sm:$0xf]
      %v2812 = vld [vmem:[%s2776 + $0x8c] sm:$0x1]
      %v2813 = vld [vmem:[%s2776 + $0x90] sm:$0xf]
      %v2814 = vld [vmem:[%s2776 + $0x94] sm:$0xf]
      %v2815 = vld [vmem:[%s2776 + $0x98] sm:$0x1]
      %v2816 = vld [vmem:[%s2776 + $0x9c] sm:$0xf]
      %v2817 = vld [vmem:[%s2776 + $0xa0] sm:$0xf]
      %v2818 = vld [vmem:[%s2776 + $0xa4] sm:$0x1]
      %v2819 = vld [vmem:[%s2776 + $0xa8] sm:$0xf]
      %v2820 = vld [vmem:[%s2776 + $0xac] sm:$0xf]
      %v2821 = vld [vmem:[%s2776 + $0xb0] sm:$0x1]
      %v2822 = vld [vmem:[%s2776 + $0xb4] sm:$0xf]
      %v2823 = vld [vmem:[%s2776 + $0xb8] sm:$0xf]
      %v2824 = vld [vmem:[%s2776 + $0xbc] sm:$0x1]
      %v2826 = vshrl.u32 %v2777, 16
      %v2828 = vrot.slane %v2826, 4
      %v2829 = vshll.u32 %v2777, 16
      %v2831 = vrot.slane %v2829, 5
      %v2832 = vor.u32 %v2828, %v2831
      %v2833 = vrot.slane %v2832, 4
      %v2835 = vshll.u32 %v2778, 16
      %v2837 = vrot.slane %v2835, 5
      %v2838 = vsel %vm293, %v2833, %v2837
      %v2839 = vshrl.u32 %v2778, 16
      %v2841 = vrot.slane %v2839, 4
      %v2842 = vor.u32 %v2841, %v2837
      %v2843 = vrot.slane %v2842, 4
      %v2845 = vshll.u32 %v2779, 16
      %v2847 = vrot.slane %v2845, 5
      %v2848 = vsel %vm293, %v2843, %v2847
      %v2850 = vshrl.u32 %v2780, 16
      %v2852 = vrot.slane %v2850, 4
      %v2853 = vshll.u32 %v2780, 16
      %v2855 = vrot.slane %v2853, 5
      %v2856 = vor.u32 %v2852, %v2855
      %v2857 = vrot.slane %v2856, 4
      %v2859 = vshll.u32 %v2781, 16
      %v2861 = vrot.slane %v2859, 5
      %v2862 = vsel %vm293, %v2857, %v2861
      %v2863 = vshrl.u32 %v2781, 16
      %v2865 = vrot.slane %v2863, 4
      %v2866 = vor.u32 %v2865, %v2861
      %v2867 = vrot.slane %v2866, 4
      %v2869 = vshll.u32 %v2782, 16
      %v2871 = vrot.slane %v2869, 5
      %v2872 = vsel %vm293, %v2867, %v2871
      %v2874 = vshrl.u32 %v2783, 16
      %v2876 = vrot.slane %v2874, 4
      %v2877 = vshll.u32 %v2783, 16
      %v2879 = vrot.slane %v2877, 5
      %v2880 = vor.u32 %v2876, %v2879
      %v2881 = vrot.slane %v2880, 4
      %v2883 = vshll.u32 %v2784, 16
      %v2885 = vrot.slane %v2883, 5
      %v2886 = vsel %vm293, %v2881, %v2885
      %v2887 = vshrl.u32 %v2784, 16
      %v2889 = vrot.slane %v2887, 4
      %v2890 = vor.u32 %v2889, %v2885
      %v2891 = vrot.slane %v2890, 4
      %v2893 = vshll.u32 %v2785, 16
      %v2895 = vrot.slane %v2893, 5
      %v2896 = vsel %vm293, %v2891, %v2895
      %v2898 = vshrl.u32 %v2786, 16
      %v2900 = vrot.slane %v2898, 4
      %v2901 = vshll.u32 %v2786, 16
      %v2903 = vrot.slane %v2901, 5
      %v2904 = vor.u32 %v2900, %v2903
      %v2905 = vrot.slane %v2904, 4
      %v2907 = vshll.u32 %v2787, 16
      %v2909 = vrot.slane %v2907, 5
      %v2910 = vsel %vm293, %v2905, %v2909
      %v2911 = vshrl.u32 %v2787, 16
      %v2913 = vrot.slane %v2911, 4
      %v2914 = vor.u32 %v2913, %v2909
      %v2915 = vrot.slane %v2914, 4
      %v2917 = vshll.u32 %v2788, 16
      %v2919 = vrot.slane %v2917, 5
      %v2920 = vsel %vm293, %v2915, %v2919
      %v2922 = vshrl.u32 %v2789, 16
      %v2924 = vrot.slane %v2922, 4
      %v2925 = vshll.u32 %v2789, 16
      %v2927 = vrot.slane %v2925, 5
      %v2928 = vor.u32 %v2924, %v2927
      %v2929 = vrot.slane %v2928, 4
      %v2931 = vshll.u32 %v2790, 16
      %v2933 = vrot.slane %v2931, 5
      %v2934 = vsel %vm293, %v2929, %v2933
      %v2935 = vshrl.u32 %v2790, 16
      %v2937 = vrot.slane %v2935, 4
      %v2938 = vor.u32 %v2937, %v2933
      %v2939 = vrot.slane %v2938, 4
      %v2941 = vshll.u32 %v2791, 16
      %v2943 = vrot.slane %v2941, 5
      %v2944 = vsel %vm293, %v2939, %v2943
      %v2946 = vshrl.u32 %v2792, 16
      %v2948 = vrot.slane %v2946, 4
      %v2949 = vshll.u32 %v2792, 16
      %v2951 = vrot.slane %v2949, 5
      %v2952 = vor.u32 %v2948, %v2951
      %v2953 = vrot.slane %v2952, 4
      %v2955 = vshll.u32 %v2793, 16
      %v2957 = vrot.slane %v2955, 5
      %v2958 = vsel %vm293, %v2953, %v2957
      %v2959 = vshrl.u32 %v2793, 16
      %v2961 = vrot.slane %v2959, 4
      %v2962 = vor.u32 %v2961, %v2957
      %v2963 = vrot.slane %v2962, 4
      %v2965 = vshll.u32 %v2794, 16
      %v2967 = vrot.slane %v2965, 5
      %v2968 = vsel %vm293, %v2963, %v2967
      %v2970 = vshrl.u32 %v2795, 16
      %v2972 = vrot.slane %v2970, 4
      %v2973 = vshll.u32 %v2795, 16
      %v2975 = vrot.slane %v2973, 5
      %v2976 = vor.u32 %v2972, %v2975
      %v2977 = vrot.slane %v2976, 4
      %v2979 = vshll.u32 %v2796, 16
      %v2981 = vrot.slane %v2979, 5
      %v2982 = vsel %vm293, %v2977, %v2981
      %v2983 = vshrl.u32 %v2796, 16
      %v2985 = vrot.slane %v2983, 4
      %v2986 = vor.u32 %v2985, %v2981
      %v2987 = vrot.slane %v2986, 4
      %v2989 = vshll.u32 %v2797, 16
      %v2991 = vrot.slane %v2989, 5
      %v2992 = vsel %vm293, %v2987, %v2991
      %v2994 = vshrl.u32 %v2798, 16
      %v2996 = vrot.slane %v2994, 4
      %v2997 = vshll.u32 %v2798, 16
      %v2999 = vrot.slane %v2997, 5
      %v3000 = vor.u32 %v2996, %v2999
      %v3001 = vrot.slane %v3000, 4
      %v3003 = vshll.u32 %v2799, 16
      %v3005 = vrot.slane %v3003, 5
      %v3006 = vsel %vm293, %v3001, %v3005
      %v3007 = vshrl.u32 %v2799, 16
      %v3009 = vrot.slane %v3007, 4
      %v3010 = vor.u32 %v3009, %v3005
      %v3011 = vrot.slane %v3010, 4
      %v3013 = vshll.u32 %v2800, 16
      %v3015 = vrot.slane %v3013, 5
      %v3016 = vsel %vm293, %v3011, %v3015
      %v3018 = vshrl.u32 %v2801, 16
      %v3020 = vrot.slane %v3018, 4
      %v3021 = vshll.u32 %v2801, 16
      %v3023 = vrot.slane %v3021, 5
      %v3024 = vor.u32 %v3020, %v3023
      %v3025 = vrot.slane %v3024, 4
      %v3027 = vshll.u32 %v2802, 16
      %v3029 = vrot.slane %v3027, 5
      %v3030 = vsel %vm293, %v3025, %v3029
      %v3031 = vshrl.u32 %v2802, 16
      %v3033 = vrot.slane %v3031, 4
      %v3034 = vor.u32 %v3033, %v3029
      %v3035 = vrot.slane %v3034, 4
      %v3037 = vshll.u32 %v2803, 16
      %v3039 = vrot.slane %v3037, 5
      %v3040 = vsel %vm293, %v3035, %v3039
      %v3042 = vshrl.u32 %v2804, 16
      %v3044 = vrot.slane %v3042, 4
      %v3045 = vshll.u32 %v2804, 16
      %v3047 = vrot.slane %v3045, 5
      %v3048 = vor.u32 %v3044, %v3047
      %v3049 = vrot.slane %v3048, 4
      %v3051 = vshll.u32 %v2805, 16
      %v3053 = vrot.slane %v3051, 5
      %v3054 = vsel %vm293, %v3049, %v3053
      %v3055 = vshrl.u32 %v2805, 16
      %v3057 = vrot.slane %v3055, 4
      %v3058 = vor.u32 %v3057, %v3053
      %v3059 = vrot.slane %v3058, 4
      %v3061 = vshll.u32 %v2806, 16
      %v3063 = vrot.slane %v3061, 5
      %v3064 = vsel %vm293, %v3059, %v3063
      %v3066 = vshrl.u32 %v2807, 16
      %v3068 = vrot.slane %v3066, 4
      %v3069 = vshll.u32 %v2807, 16
      %v3071 = vrot.slane %v3069, 5
      %v3072 = vor.u32 %v3068, %v3071
      %v3073 = vrot.slane %v3072, 4
      %v3075 = vshll.u32 %v2808, 16
      %v3077 = vrot.slane %v3075, 5
      %v3078 = vsel %vm293, %v3073, %v3077
      %v3079 = vshrl.u32 %v2808, 16
      %v3081 = vrot.slane %v3079, 4
      %v3082 = vor.u32 %v3081, %v3077
      %v3083 = vrot.slane %v3082, 4
      %v3085 = vshll.u32 %v2809, 16
      %v3087 = vrot.slane %v3085, 5
      %v3088 = vsel %vm293, %v3083, %v3087
      %v3090 = vshrl.u32 %v2810, 16
      %v3092 = vrot.slane %v3090, 4
      %v3093 = vshll.u32 %v2810, 16
      %v3095 = vrot.slane %v3093, 5
      %v3096 = vor.u32 %v3092, %v3095
      %v3097 = vrot.slane %v3096, 4
      %v3099 = vshll.u32 %v2811, 16
      %v3101 = vrot.slane %v3099, 5
      %v3102 = vsel %vm293, %v3097, %v3101
      %v3103 = vshrl.u32 %v2811, 16
      %v3105 = vrot.slane %v3103, 4
      %v3106 = vor.u32 %v3105, %v3101
      %v3107 = vrot.slane %v3106, 4
      %v3109 = vshll.u32 %v2812, 16
      %v3111 = vrot.slane %v3109, 5
      %v3112 = vsel %vm293, %v3107, %v3111
      %v3114 = vshrl.u32 %v2813, 16
      %v3116 = vrot.slane %v3114, 4
      %v3117 = vshll.u32 %v2813, 16
      %v3119 = vrot.slane %v3117, 5
      %v3120 = vor.u32 %v3116, %v3119
      %v3121 = vrot.slane %v3120, 4
      %v3123 = vshll.u32 %v2814, 16
      %v3125 = vrot.slane %v3123, 5
      %v3126 = vsel %vm293, %v3121, %v3125
      %v3127 = vshrl.u32 %v2814, 16
      %v3129 = vrot.slane %v3127, 4
      %v3130 = vor.u32 %v3129, %v3125
      %v3131 = vrot.slane %v3130, 4
      %v3133 = vshll.u32 %v2815, 16
      %v3135 = vrot.slane %v3133, 5
      %v3136 = vsel %vm293, %v3131, %v3135
      %v3138 = vshrl.u32 %v2816, 16
      %v3140 = vrot.slane %v3138, 4
      %v3141 = vshll.u32 %v2816, 16
      %v3143 = vrot.slane %v3141, 5
      %v3144 = vor.u32 %v3140, %v3143
      %v3145 = vrot.slane %v3144, 4
      %v3147 = vshll.u32 %v2817, 16
      %v3149 = vrot.slane %v3147, 5
      %v3150 = vsel %vm293, %v3145, %v3149
      %v3151 = vshrl.u32 %v2817, 16
      %v3153 = vrot.slane %v3151, 4
      %v3154 = vor.u32 %v3153, %v3149
      %v3155 = vrot.slane %v3154, 4
      %v3157 = vshll.u32 %v2818, 16
      %v3159 = vrot.slane %v3157, 5
      %v3160 = vsel %vm293, %v3155, %v3159
      %v3162 = vshrl.u32 %v2819, 16
      %v3164 = vrot.slane %v3162, 4
      %v3165 = vshll.u32 %v2819, 16
      %v3167 = vrot.slane %v3165, 5
      %v3168 = vor.u32 %v3164, %v3167
      %v3169 = vrot.slane %v3168, 4
      %v3171 = vshll.u32 %v2820, 16
      %v3173 = vrot.slane %v3171, 5
      %v3174 = vsel %vm293, %v3169, %v3173
      %v3175 = vshrl.u32 %v2820, 16
      %v3177 = vrot.slane %v3175, 4
      %v3178 = vor.u32 %v3177, %v3173
      %v3179 = vrot.slane %v3178, 4
      %v3181 = vshll.u32 %v2821, 16
      %v3183 = vrot.slane %v3181, 5
      %v3184 = vsel %vm293, %v3179, %v3183
      %v3186 = vshrl.u32 %v2822, 16
      %v3188 = vrot.slane %v3186, 4
      %v3189 = vshll.u32 %v2822, 16
      %v3191 = vrot.slane %v3189, 5
      %v3192 = vor.u32 %v3188, %v3191
      %v3193 = vrot.slane %v3192, 4
      %v3195 = vshll.u32 %v2823, 16
      %v3197 = vrot.slane %v3195, 5
      %v3198 = vsel %vm293, %v3193, %v3197
      %v3199 = vshrl.u32 %v2823, 16
      %v3201 = vrot.slane %v3199, 4
      %v3202 = vor.u32 %v3201, %v3197
      %v3203 = vrot.slane %v3202, 4
      %v3205 = vshll.u32 %v2824, 16
      %v3207 = vrot.slane %v3205, 5
      %v3208 = vsel %vm293, %v3203, %v3207
      %s3209 = scalar_lea.vmem %s3, 128
      %v3210 = vld [vmem:[%s3209] sm:$0xf]
      %v3211 = vld [vmem:[%s3209 + $0x4] sm:$0xf]
      %v3212 = vld [vmem:[%s3209 + $0x8] sm:$0xf]
      %v3213 = vld [vmem:[%s3209 + $0xc] sm:$0xf]
      %v3214 = vld [vmem:[%s3209 + $0x10] sm:$0xf]
      %v3215 = vld [vmem:[%s3209 + $0x14] sm:$0xf]
      %v3216 = vld [vmem:[%s3209 + $0x18] sm:$0xf]
      %v3217 = vld [vmem:[%s3209 + $0x1c] sm:$0xf]
      %v3218 = vld [vmem:[%s3209 + $0x20] sm:$0xf]
      %v3219 = vld [vmem:[%s3209 + $0x24] sm:$0xf]
      %v3220 = vld [vmem:[%s3209 + $0x28] sm:$0xf]
      %v3221 = vld [vmem:[%s3209 + $0x2c] sm:$0xf]
      %v3222 = vld [vmem:[%s3209 + $0x30] sm:$0xf]
      %v3223 = vld [vmem:[%s3209 + $0x34] sm:$0xf]
      %v3224 = vld [vmem:[%s3209 + $0x38] sm:$0xf]
      %v3225 = vld [vmem:[%s3209 + $0x3c] sm:$0xf]
      %v3226 = vunpack.c.l.b16 %v2838
      %v3227 = vunpack.c.l.b16 %v2848
      %v3228 = vunpack.c.l.b16 %v2862
      %v3229 = vunpack.c.l.b16 %v2872
      %v3230 = vunpack.c.l.b16 %v2886
      %v3231 = vunpack.c.l.b16 %v2896
      %v3232 = vunpack.c.l.b16 %v2910
      %v3233 = vunpack.c.l.b16 %v2920
      %v3234 = vunpack.c.l.b16 %v2934
      %v3235 = vunpack.c.l.b16 %v2944
      %v3236 = vunpack.c.l.b16 %v2958
      %v3237 = vunpack.c.l.b16 %v2968
      %v3238 = vunpack.c.l.b16 %v2982
      %v3239 = vunpack.c.l.b16 %v2992
      %v3240 = vunpack.c.l.b16 %v3006
      %v3241 = vunpack.c.l.b16 %v3016
      %v3242 = vunpack.c.l.b16 %v3030
      %v3243 = vunpack.c.l.b16 %v3040
      %v3244 = vunpack.c.l.b16 %v3054
      %v3245 = vunpack.c.l.b16 %v3064
      %v3246 = vunpack.c.l.b16 %v3078
      %v3247 = vunpack.c.l.b16 %v3088
      %v3248 = vunpack.c.l.b16 %v3102
      %v3249 = vunpack.c.l.b16 %v3112
      %v3250 = vunpack.c.l.b16 %v3126
      %v3251 = vunpack.c.l.b16 %v3136
      %v3252 = vunpack.c.l.b16 %v3150
      %v3253 = vunpack.c.l.b16 %v3160
      %v3254 = vunpack.c.l.b16 %v3174
      %v3255 = vunpack.c.l.b16 %v3184
      %v3256 = vunpack.c.l.b16 %v3198
      %v3257 = vunpack.c.l.b16 %v3208
      %v3258 = vpack.c.b16 %v3227, %v3226
      %v3259 = vpack.c.b16 %v3229, %v3228
      %v3260 = vpack.c.b16 %v3231, %v3230
      %v3261 = vpack.c.b16 %v3233, %v3232
      %v3262 = vpack.c.b16 %v3235, %v3234
      %v3263 = vpack.c.b16 %v3237, %v3236
      %v3264 = vpack.c.b16 %v3239, %v3238
      %v3265 = vpack.c.b16 %v3241, %v3240
      %v3266 = vpack.c.b16 %v3243, %v3242
      %v3267 = vpack.c.b16 %v3245, %v3244
      %v3268 = vpack.c.b16 %v3247, %v3246
      %v3269 = vpack.c.b16 %v3249, %v3248
      %v3270 = vpack.c.b16 %v3251, %v3250
      %v3271 = vpack.c.b16 %v3253, %v3252
      %v3272 = vpack.c.b16 %v3255, %v3254
      %v3273 = vpack.c.b16 %v3257, %v3256
      %v3306 = vunpack.c.l.b16 %v3210
      %v3307 = vunpack.c.l.b16 %v3211
      %v3308 = vunpack.c.l.b16 %v3212
      %v3309 = vunpack.c.l.b16 %v3213
      %v3310 = vunpack.c.l.b16 %v3214
      %v3311 = vunpack.c.l.b16 %v3215
      %v3312 = vunpack.c.l.b16 %v3216
      %v3313 = vunpack.c.l.b16 %v3217
      %v3314 = vunpack.c.l.b16 %v3218
      %v3315 = vunpack.c.l.b16 %v3219
      %v3316 = vunpack.c.l.b16 %v3220
      %v3317 = vunpack.c.l.b16 %v3221
      %v3318 = vunpack.c.l.b16 %v3222
      %v3319 = vunpack.c.l.b16 %v3223
      %v3320 = vunpack.c.l.b16 %v3224
      %v3321 = vunpack.c.l.b16 %v3225
      %v3322 = vpack.c.b16 %v3307, %v3306
      %v3323 = vpack.c.b16 %v3309, %v3308
      %v3324 = vpack.c.b16 %v3311, %v3310
      %v3325 = vpack.c.b16 %v3313, %v3312
      %v3326 = vpack.c.b16 %v3315, %v3314
      %v3327 = vpack.c.b16 %v3317, %v3316
      %v3328 = vpack.c.b16 %v3319, %v3318
      %v3329 = vpack.c.b16 %v3321, %v3320
      %3338 = vmatprep.subr.bf16.mxu0 0
      %3339 = vmatpush1.bf16.msra.mxu0 %v3329
      %3340 = vmatprep.subr.bf16.mxu0 0
      %3341 = vmatpush1.bf16.msra.mxu0 %v3328
      %3342 = vmatprep.subr.bf16.mxu0 0
      %3343 = vmatpush1.bf16.msra.mxu0 %v3327
      %3344 = vmatprep.subr.bf16.mxu0 0
      %3345 = vmatpush1.bf16.msra.mxu0 %v3326
      %3346 = vmatprep.subr.bf16.mxu0 0
      %3347 = vmatpush1.bf16.msra.mxu0 %v3325
      %3348 = vmatprep.subr.bf16.mxu0 0
      %3349 = vmatpush1.bf16.msra.mxu0 %v3324
      %3350 = vmatprep.subr.bf16.mxu0 0
      %3351 = vmatpush1.bf16.msra.mxu0 %v3323
      %3352 = vmatprep.subr.bf16.mxu0 0
      %3353 = vmatpush1.bf16.msra.mxu0 %v3322
      %3354 = vmatprep.subr.bf16.mxu0 0
      %3355 = vmatpush2.bf16.msra.mxu0 0
      %3356 = vmatprep.subr.bf16.mxu0 0
      %3357 = vmatpush2.bf16.msra.mxu0 0
      %3358 = vmatprep.subr.bf16.mxu0 0
      %3359 = vmatpush2.bf16.msra.mxu0 0
      %3360 = vmatprep.subr.bf16.mxu0 0
      %3361 = vmatpush2.bf16.msra.mxu0 0
      %3362 = vmatprep.subr.bf16.mxu0 0
      %3363 = vmatpush2.bf16.msra.mxu0 0
      %3364 = vmatprep.subr.bf16.mxu0 0
      %3365 = vmatpush2.bf16.msra.mxu0 0
      %3366 = vmatprep.subr.bf16.mxu0 0
      %3367 = vmatpush2.bf16.msra.mxu0 0
      %3368 = vmatprep.subr.bf16.mxu0 0
      %3369 = vmatpush2.bf16.msra.mxu0 0
      %3370 = vmatprep.mubr.bf16.mxu0 0
      %3371 = vmatmul.mubr.bf16.gmra.mxu0 %v3258
      %v3372 = vpop.f32.mrf.mxu0
      %v3373 = vadd.f32 0.0, %v3372
      %v3374 = vpop.f32.mrf.mxu0
      %v3375 = vpop.f32.mrf.mxu0
      %v3376 = vadd.f32 0.0, %v3375
      %v3377 = vpop.f32.mrf.mxu0
      %3378 = vmatprep.mubr.bf16.mxu0 0
      %3379 = vmatmul.mubr.bf16.gmra.mxu0 %v3259
      %v3380 = vpop.f32.mrf.mxu0
      %v3381 = vadd.f32 0.0, %v3380
      %v3382 = vpop.f32.mrf.mxu0
      %v3383 = vpop.f32.mrf.mxu0
      %v3384 = vadd.f32 0.0, %v3383
      %v3385 = vpop.f32.mrf.mxu0
      %3386 = vmatprep.mubr.bf16.mxu0 0
      %3387 = vmatmul.mubr.bf16.gmra.mxu0 %v3260
      %v3388 = vpop.f32.mrf.mxu0
      %v3389 = vadd.f32 0.0, %v3388
      %v3390 = vpop.f32.mrf.mxu0
      %v3391 = vpop.f32.mrf.mxu0
      %v3392 = vadd.f32 0.0, %v3391
      %v3393 = vpop.f32.mrf.mxu0
      %3394 = vmatprep.mubr.bf16.mxu0 0
      %3395 = vmatmul.mubr.bf16.gmra.mxu0 %v3261
      %v3396 = vpop.f32.mrf.mxu0
      %v3397 = vadd.f32 0.0, %v3396
      %v3398 = vpop.f32.mrf.mxu0
      %v3399 = vpop.f32.mrf.mxu0
      %v3400 = vadd.f32 0.0, %v3399
      %v3401 = vpop.f32.mrf.mxu0
      %3402 = vmatprep.mubr.bf16.mxu0 0
      %3403 = vmatmul.mubr.bf16.gmra.mxu0 %v3262
      %v3404 = vpop.f32.mrf.mxu0
      %v3405 = vadd.f32 0.0, %v3404
      %v3406 = vpop.f32.mrf.mxu0
      %v3407 = vpop.f32.mrf.mxu0
      %v3408 = vadd.f32 0.0, %v3407
      %v3409 = vpop.f32.mrf.mxu0
      %3410 = vmatprep.mubr.bf16.mxu0 0
      %3411 = vmatmul.mubr.bf16.gmra.mxu0 %v3263
      %v3412 = vpop.f32.mrf.mxu0
      %v3413 = vadd.f32 0.0, %v3412
      %v3414 = vpop.f32.mrf.mxu0
      %v3415 = vpop.f32.mrf.mxu0
      %v3416 = vadd.f32 0.0, %v3415
      %v3417 = vpop.f32.mrf.mxu0
      %3418 = vmatprep.mubr.bf16.mxu0 0
      %3419 = vmatmul.mubr.bf16.gmra.mxu0 %v3264
      %v3420 = vpop.f32.mrf.mxu0
      %v3421 = vadd.f32 0.0, %v3420
      %v3422 = vpop.f32.mrf.mxu0
      %v3423 = vpop.f32.mrf.mxu0
      %v3424 = vadd.f32 0.0, %v3423
      %v3425 = vpop.f32.mrf.mxu0
      %3426 = vmatprep.mubr.bf16.mxu0 0
      %3427 = vmatmul.mubr.bf16.gmra.mxu0 %v3265
      %v3428 = vpop.f32.mrf.mxu0
      %v3429 = vadd.f32 0.0, %v3428
      %v3430 = vpop.f32.mrf.mxu0
      %v3431 = vpop.f32.mrf.mxu0
      %v3432 = vadd.f32 0.0, %v3431
      %v3433 = vpop.f32.mrf.mxu0
      %3434 = vmatprep.mubr.bf16.mxu0 0
      %3435 = vmatmul.mubr.bf16.gmra.mxu0 %v3266
      %v3436 = vpop.f32.mrf.mxu0
      %v3437 = vadd.f32 0.0, %v3436
      %v3438 = vpop.f32.mrf.mxu0
      %v3439 = vpop.f32.mrf.mxu0
      %v3440 = vadd.f32 0.0, %v3439
      %v3441 = vpop.f32.mrf.mxu0
      %3442 = vmatprep.mubr.bf16.mxu0 0
      %3443 = vmatmul.mubr.bf16.gmra.mxu0 %v3267
      %v3444 = vpop.f32.mrf.mxu0
      %v3445 = vadd.f32 0.0, %v3444
      %v3446 = vpop.f32.mrf.mxu0
      %v3447 = vpop.f32.mrf.mxu0
      %v3448 = vadd.f32 0.0, %v3447
      %v3449 = vpop.f32.mrf.mxu0
      %3450 = vmatprep.mubr.bf16.mxu0 0
      %3451 = vmatmul.mubr.bf16.gmra.mxu0 %v3268
      %v3452 = vpop.f32.mrf.mxu0
      %v3453 = vadd.f32 0.0, %v3452
      %v3454 = vpop.f32.mrf.mxu0
      %v3455 = vpop.f32.mrf.mxu0
      %v3456 = vadd.f32 0.0, %v3455
      %v3457 = vpop.f32.mrf.mxu0
      %3458 = vmatprep.mubr.bf16.mxu0 0
      %3459 = vmatmul.mubr.bf16.gmra.mxu0 %v3269
      %v3460 = vpop.f32.mrf.mxu0
      %v3461 = vadd.f32 0.0, %v3460
      %v3462 = vpop.f32.mrf.mxu0
      %v3463 = vpop.f32.mrf.mxu0
      %v3464 = vadd.f32 0.0, %v3463
      %v3465 = vpop.f32.mrf.mxu0
      %3466 = vmatprep.mubr.bf16.mxu0 0
      %3467 = vmatmul.mubr.bf16.gmra.mxu0 %v3270
      %v3468 = vpop.f32.mrf.mxu0
      %v3469 = vadd.f32 0.0, %v3468
      %v3470 = vpop.f32.mrf.mxu0
      %v3471 = vpop.f32.mrf.mxu0
      %v3472 = vadd.f32 0.0, %v3471
      %v3473 = vpop.f32.mrf.mxu0
      %3474 = vmatprep.mubr.bf16.mxu0 0
      %3475 = vmatmul.mubr.bf16.gmra.mxu0 %v3271
      %v3476 = vpop.f32.mrf.mxu0
      %v3477 = vadd.f32 0.0, %v3476
      %v3478 = vpop.f32.mrf.mxu0
      %v3479 = vpop.f32.mrf.mxu0
      %v3480 = vadd.f32 0.0, %v3479
      %v3481 = vpop.f32.mrf.mxu0
      %3482 = vmatprep.mubr.bf16.mxu0 0
      %3483 = vmatmul.mubr.bf16.gmra.mxu0 %v3272
      %v3484 = vpop.f32.mrf.mxu0
      %v3485 = vadd.f32 0.0, %v3484
      %v3486 = vpop.f32.mrf.mxu0
      %v3487 = vpop.f32.mrf.mxu0
      %v3488 = vadd.f32 0.0, %v3487
      %v3489 = vpop.f32.mrf.mxu0
      %3490 = vmatprep.mubr.bf16.mxu0 0
      %3491 = vmatmul.mubr.bf16.gmra.mxu0 %v3273
      %v3492 = vpop.f32.mrf.mxu0
      %v3493 = vadd.f32 0.0, %v3492
      %v3494 = vpop.f32.mrf.mxu0
      %v3495 = vpop.f32.mrf.mxu0
      %v3496 = vadd.f32 0.0, %v3495
      %v3497 = vpop.f32.mrf.mxu0
      %3498 = vdwg.mxu0
      %v3499 = vadd.f32 %v2650, %v3373
      %v3500 = vadd.f32 %v2653, %v3376
      %v3501 = vadd.f32 %v2658, %v3381
      %v3502 = vadd.f32 %v2661, %v3384
      %v3503 = vadd.f32 %v2666, %v3389
      %v3504 = vadd.f32 %v2669, %v3392
      %v3505 = vadd.f32 %v2674, %v3397
      %v3506 = vadd.f32 %v2677, %v3400
      %v3507 = vadd.f32 %v2682, %v3405
      %v3508 = vadd.f32 %v2685, %v3408
      %v3509 = vadd.f32 %v2690, %v3413
      %v3510 = vadd.f32 %v2693, %v3416
      %v3511 = vadd.f32 %v2698, %v3421
      %v3512 = vadd.f32 %v2701, %v3424
      %v3513 = vadd.f32 %v2706, %v3429
      %v3514 = vadd.f32 %v2709, %v3432
      %v3515 = vadd.f32 %v2714, %v3437
      %v3516 = vadd.f32 %v2717, %v3440
      %v3517 = vadd.f32 %v2722, %v3445
      %v3518 = vadd.f32 %v2725, %v3448
      %v3519 = vadd.f32 %v2730, %v3453
      %v3520 = vadd.f32 %v2733, %v3456
      %v3521 = vadd.f32 %v2738, %v3461
      %v3522 = vadd.f32 %v2741, %v3464
      %v3523 = vadd.f32 %v2746, %v3469
      %v3524 = vadd.f32 %v2749, %v3472
      %v3525 = vadd.f32 %v2754, %v3477
      %v3526 = vadd.f32 %v2757, %v3480
      %v3527 = vadd.f32 %v2762, %v3485
      %v3528 = vadd.f32 %v2765, %v3488
      %v3529 = vadd.f32 %v2770, %v3493
      %v3530 = vadd.f32 %v2773, %v3496
      %v3531 = vld [vmem:[%s4] sm:$0x1]
      %v3533 = vlaneseq
      %v3534 = vshrl.u32 %v3533, 7
      %v3535 = vsub.s32 0, %v3534
      %v3536 = vrot.slane %v3531, %v3535
      %v3538 = vadd.f32 %v3499, %v3536
      %v3539 = vadd.f32 %v3500, %v3536
      %v3540 = vadd.f32 %v3501, %v3536
      %v3541 = vadd.f32 %v3502, %v3536
      %v3542 = vadd.f32 %v3503, %v3536
      %v3543 = vadd.f32 %v3504, %v3536
      %v3544 = vadd.f32 %v3505, %v3536
      %v3545 = vadd.f32 %v3506, %v3536
      %v3546 = vadd.f32 %v3507, %v3536
      %v3547 = vadd.f32 %v3508, %v3536
      %v3548 = vadd.f32 %v3509, %v3536
      %v3549 = vadd.f32 %v3510, %v3536
      %v3550 = vadd.f32 %v3511, %v3536
      %v3551 = vadd.f32 %v3512, %v3536
      %v3552 = vadd.f32 %v3513, %v3536
      %v3553 = vadd.f32 %v3514, %v3536
      %v3554 = vadd.f32 %v3515, %v3536
      %v3555 = vadd.f32 %v3516, %v3536
      %v3556 = vadd.f32 %v3517, %v3536
      %v3557 = vadd.f32 %v3518, %v3536
      %v3558 = vadd.f32 %v3519, %v3536
      %v3559 = vadd.f32 %v3520, %v3536
      %v3560 = vadd.f32 %v3521, %v3536
      %v3561 = vadd.f32 %v3522, %v3536
      %v3562 = vadd.f32 %v3523, %v3536
      %v3563 = vadd.f32 %v3524, %v3536
      %v3564 = vadd.f32 %v3525, %v3536
      %v3565 = vadd.f32 %v3526, %v3536
      %v3566 = vadd.f32 %v3527, %v3536
      %v3567 = vadd.f32 %v3528, %v3536
      %v3568 = vadd.f32 %v3529, %v3536
      %v3569 = vadd.f32 %v3530, %v3536
      %v3570 = vmax.f32 %v3538, 0.0
      %v3571 = vmax.f32 %v3539, 0.0
      %v3572 = vmax.f32 %v3540, 0.0
      %v3573 = vmax.f32 %v3541, 0.0
      %v3574 = vmax.f32 %v3542, 0.0
      %v3575 = vmax.f32 %v3543, 0.0
      %v3576 = vmax.f32 %v3544, 0.0
      %v3577 = vmax.f32 %v3545, 0.0
      %v3578 = vmax.f32 %v3546, 0.0
      %v3579 = vmax.f32 %v3547, 0.0
      %v3580 = vmax.f32 %v3548, 0.0
      %v3581 = vmax.f32 %v3549, 0.0
      %v3582 = vmax.f32 %v3550, 0.0
      %v3583 = vmax.f32 %v3551, 0.0
      %v3584 = vmax.f32 %v3552, 0.0
      %v3585 = vmax.f32 %v3553, 0.0
      %v3586 = vmax.f32 %v3554, 0.0
      %v3587 = vmax.f32 %v3555, 0.0
      %v3588 = vmax.f32 %v3556, 0.0
      %v3589 = vmax.f32 %v3557, 0.0
      %v3590 = vmax.f32 %v3558, 0.0
      %v3591 = vmax.f32 %v3559, 0.0
      %v3592 = vmax.f32 %v3560, 0.0
      %v3593 = vmax.f32 %v3561, 0.0
      %v3594 = vmax.f32 %v3562, 0.0
      %v3595 = vmax.f32 %v3563, 0.0
      %v3596 = vmax.f32 %v3564, 0.0
      %v3597 = vmax.f32 %v3565, 0.0
      %v3598 = vmax.f32 %v3566, 0.0
      %v3599 = vmax.f32 %v3567, 0.0
      %v3600 = vmax.f32 %v3568, 0.0
      %v3601 = vmax.f32 %v3569, 0.0
      %3602 = vst [vmem:[%s224] sm:$0xff] %v1797
      %3603 = vst [vmem:[%s224 + $0x8] sm:$0xff] %v3570
      %3604 = vst [vmem:[%s224 + $0x10] sm:$0xff] %v1798
      %3605 = vst [vmem:[%s224 + $0x18] sm:$0xff] %v3571
      %3606 = vst [vmem:[%s224 + $0x20] sm:$0xff] %v1799
      %3607 = vst [vmem:[%s224 + $0x28] sm:$0xff] %v3572
      %3608 = vst [vmem:[%s224 + $0x30] sm:$0xff] %v1800
      %3609 = vst [vmem:[%s224 + $0x38] sm:$0xff] %v3573
      %3610 = vst [vmem:[%s224 + $0x40] sm:$0xff] %v1801
      %3611 = vst [vmem:[%s224 + $0x48] sm:$0xff] %v3574
      %3612 = vst [vmem:[%s224 + $0x50] sm:$0xff] %v1802
      %3613 = vst [vmem:[%s224 + $0x58] sm:$0xff] %v3575
      %3614 = vst [vmem:[%s224 + $0x60] sm:$0xff] %v1803
      %3615 = vst [vmem:[%s224 + $0x68] sm:$0xff] %v3576
      %3616 = vst [vmem:[%s224 + $0x70] sm:$0xff] %v1804
      %3617 = vst [vmem:[%s224 + $0x78] sm:$0xff] %v3577
      %3618 = vst [vmem:[%s224 + $0x80] sm:$0xff] %v1805
      %3619 = vst [vmem:[%s224 + $0x88] sm:$0xff] %v3578
      %3620 = vst [vmem:[%s224 + $0x90] sm:$0xff] %v1806
      %3621 = vst [vmem:[%s224 + $0x98] sm:$0xff] %v3579
      %3622 = vst [vmem:[%s224 + $0xa0] sm:$0xff] %v1807
      %3623 = vst [vmem:[%s224 + $0xa8] sm:$0xff] %v3580
      %3624 = vst [vmem:[%s224 + $0xb0] sm:$0xff] %v1808
      %3625 = vst [vmem:[%s224 + $0xb8] sm:$0xff] %v3581
      %3626 = vst [vmem:[%s224 + $0xc0] sm:$0xff] %v1809
      %3627 = vst [vmem:[%s224 + $0xc8] sm:$0xff] %v3582
      %3628 = vst [vmem:[%s224 + $0xd0] sm:$0xff] %v1810
      %3629 = vst [vmem:[%s224 + $0xd8] sm:$0xff] %v3583
      %3630 = vst [vmem:[%s224 + $0xe0] sm:$0xff] %v1811
      %3631 = vst [vmem:[%s224 + $0xe8] sm:$0xff] %v3584
      %3632 = vst [vmem:[%s224 + $0xf0] sm:$0xff] %v1812
      %3633 = vst [vmem:[%s224 + $0xf8] sm:$0xff] %v3585
      %3634 = vst [vmem:[%s224 + $0x100] sm:$0xff] %v1813
      %3635 = vst [vmem:[%s224 + $0x108] sm:$0xff] %v3586
      %3636 = vst [vmem:[%s224 + $0x110] sm:$0xff] %v1814
      %3637 = vst [vmem:[%s224 + $0x118] sm:$0xff] %v3587
      %3638 = vst [vmem:[%s224 + $0x120] sm:$0xff] %v1815
      %3639 = vst [vmem:[%s224 + $0x128] sm:$0xff] %v3588
      %3640 = vst [vmem:[%s224 + $0x130] sm:$0xff] %v1816
      %3641 = vst [vmem:[%s224 + $0x138] sm:$0xff] %v3589
      %3642 = vst [vmem:[%s224 + $0x140] sm:$0xff] %v1817
      %3643 = vst [vmem:[%s224 + $0x148] sm:$0xff] %v3590
      %3644 = vst [vmem:[%s224 + $0x150] sm:$0xff] %v1818
      %3645 = vst [vmem:[%s224 + $0x158] sm:$0xff] %v3591
      %3646 = vst [vmem:[%s224 + $0x160] sm:$0xff] %v1819
      %3647 = vst [vmem:[%s224 + $0x168] sm:$0xff] %v3592
      %3648 = vst [vmem:[%s224 + $0x170] sm:$0xff] %v1820
      %3649 = vst [vmem:[%s224 + $0x178] sm:$0xff] %v3593
      %3650 = vst [vmem:[%s224 + $0x180] sm:$0xff] %v1821
      %3651 = vst [vmem:[%s224 + $0x188] sm:$0xff] %v3594
      %3652 = vst [vmem:[%s224 + $0x190] sm:$0xff] %v1822
      %3653 = vst [vmem:[%s224 + $0x198] sm:$0xff] %v3595
      %3654 = vst [vmem:[%s224 + $0x1a0] sm:$0xff] %v1823
      %3655 = vst [vmem:[%s224 + $0x1a8] sm:$0xff] %v3596
      %3656 = vst [vmem:[%s224 + $0x1b0] sm:$0xff] %v1824
      %3657 = vst [vmem:[%s224 + $0x1b8] sm:$0xff] %v3597
      %3658 = vst [vmem:[%s224 + $0x1c0] sm:$0xff] %v1825
      %3659 = vst [vmem:[%s224 + $0x1c8] sm:$0xff] %v3598
      %3660 = vst [vmem:[%s224 + $0x1d0] sm:$0xff] %v1826
      %3661 = vst [vmem:[%s224 + $0x1d8] sm:$0xff] %v3599
      %3662 = vst [vmem:[%s224 + $0x1e0] sm:$0xff] %v1827
      %3663 = vst [vmem:[%s224 + $0x1e8] sm:$0xff] %v3600
      %3664 = vst [vmem:[%s224 + $0x1f0] sm:$0xff] %v1828
      %3665 = vst [vmem:[%s224 + $0x1f8] sm:$0xff] %v3601
      %p3666 = scmp.lt.s32.totalorder %s16, 1
      %s3667 = scalar_select %p3666, %s16, 1
      %s3668 = smul.addr %s3667, 64
      %s3669 = smul.addr %s3668, 8
      %s3670 = scalar_lea.vmem %s5, %s3669
      // Predicated region
      $region41: #{branch.5} parent=39 // pred_check
        %p3671 = pneg %p144
      $region42: #{branch.5} parent=39 // pred_check_branch
        %3673 = sbr.rel (%p3671) target = $region44
      $region43: #{branch.5} parent=39 // pred_region
        _
      $region44: #{branch.5} parent=39 // pred_fallthru
        _
    $region40: #{branch.5} parent=5 // pred_fallthru
      _
    %p3674 = scmp.le.s32.totalorder 2, %s11
    // Predicated region
    $region45: #{branch.5} parent=5 // pred_check
      %p3675 = pneg %p3674
    $region46: #{branch.5} parent=5 // pred_check_branch
      %3677 = sbr.rel (%p3675) target = $region48
    $region47: #{branch.5} parent=5 // pred_region
      %s3678 = ssub.s32 %s11, 2
      // Predicated region
      $region49: #{branch.5} parent=47 // pred_check
        %p3679 = pneg %p150
      $region50: #{branch.5} parent=47 // pred_check_branch
        %3681 = sbr.rel (%p3679) target = $region52
      $region51: #{branch.5} parent=47 // pred_region
        %p3682 = scmp.lt.s32.totalorder %s17, 1
        %s3683 = scalar_select %p3682, %s17, 1
        %s3684 = smul.addr %s3683, 64
        %s3685 = smul.addr %s3684, 8
        %s3686 = scalar_lea.vmem %s5, %s3685
      $region52: #{branch.5} parent=47 // pred_fallthru
        _
    $region48: #{branch.5} parent=5 // pred_fallthru
      _
  $region6: #{branch.5} parent=0 // loop_footer
    %s15 = sadd.s32 1, %s11
  $region7: #{branch.5} parent=0 // loop_footer_branch
    %10 = sbr.rel target = $region3
  $region8: #{branch.5} parent=0 // loop_exit
    _

// kernel: branch.4
$region0: #{branch.4}
  #allocation0 [shape = 'u32[]', space=smem, size = 0x4, offset = 0x4, fixed_abs, tag = 'smem constant byte address 0x4 - core index']
  #allocation1 [shape = 'u32[144,128]{1,0:T(1,128)}', space=vmem, size = 0x12000, scoped, tag = 'internal scratch']
  %s0 = inlined_call_operand.vmem [shape: bf16[2,18,18,128], index: 0, kind: input, shape index: {}]
  %s1 = inlined_call_operand.vmem [shape: bf16[9,128,128], index: 1, kind: input, shape index: {}]
  %s2 = inlined_call_operand.vmem [shape: f32[1,128], index: 2, kind: input, shape index: {}]
  %s3 = inlined_call_operand.vmem [shape: bf16[2,16,16,128], index: 3, kind: output, shape index: {}]
  %s4 = sld [smem:[#allocation0]]
  $region45: #{branch.4} parent=0
    _
  %s6 = ssub.s32 1, %s4
  %s7 = scalar_select 0, %s6, %s4
  loop: start=0, step=1, limit=4
  $region2: #{branch.4} parent=0 // loop_pre_header
    _
  $region3: #{branch.4} parent=0 // loop_header
    %s9 = sphi 0, %s13
    %p10 = scmp.ge.s32.totalorder %s9, 4
    %s19 = sphi 0, %s21
    %s22 = sphi 0, %s19
    %s23 = sphi 0, %s22
    %s39 = sphi 0, %s23
    %s43 = sphi 0, %s43
    %s45 = sphi 0, %s43
    %s46 = sphi 0, %s45
    %s60 = sphi 0, %s46
    %s64 = sphi 0, %s64
    %s66 = sphi 0, %s64
    %s67 = sphi 0, %s66
    %s81 = sphi 0, %s67
    %s87 = sphi 0, %s89
    %s90 = sphi 0, %s87
    %s91 = sphi 0, %s90
    %s107 = sphi 0, %s91
  $region4: #{branch.4} parent=0 // loop_header_branch
    %12 = sbr.rel (%p10) target = $region8
  $region5: #{branch.4} parent=0 // loop_body
    %s14 = ssub.s32 %s9, 1
    %s15 = ssub.s32 %s9, 2
    %s16 = sadd.s32 %s9, 1
    %s17 = ssub.s32 %s9, %s16
    %p18 = scmp.eq.s32.totalorder %s17, 0
    %s20 = sadd.s32 %s19, 1
    %s21 = scalar_select %p18, %s19, %s20
    %p24 = pneg %p18
    %p25 = scmp.eq.s32.totalorder %s9, 1
    %p26 = por %p24, %p25
    %p27 = scmp.ne.s32.totalorder %s19, %s22
    %p28 = scmp.eq.s32.totalorder %s9, 0
    %p29 = por %p27, %p28
    %p30 = scmp.ne.s32.totalorder %s19, %s22
    %p31 = scmp.eq.s32.totalorder %s14, 1
    %p32 = por %p30, %p31
    %p33 = scmp.ne.s32.totalorder %s22, %s23
    %p34 = scmp.eq.s32.totalorder %s14, 0
    %p35 = por %p33, %p34
    %p36 = scmp.ne.s32.totalorder %s22, %s23
    %p37 = scmp.eq.s32.totalorder %s15, 1
    %p38 = por %p36, %p37
    %p40 = scmp.ne.s32.totalorder %s23, %s39
    %p41 = scmp.eq.s32.totalorder %s15, 0
    %p42 = por %p40, %p41
    %s44 = sadd.s32 %s43, 1
    %p47 = scmp.eq.s32.totalorder %s9, 1
    %p48 = scmp.ne.s32.totalorder %s43, %s45
    %p49 = scmp.eq.s32.totalorder %s9, 0
    %p50 = por %p48, %p49
    %p51 = scmp.ne.s32.totalorder %s43, %s45
    %p52 = scmp.eq.s32.totalorder %s14, 1
    %p53 = por %p51, %p52
    %p54 = scmp.ne.s32.totalorder %s45, %s46
    %p55 = scmp.eq.s32.totalorder %s14, 0
    %p56 = por %p54, %p55
    %p57 = scmp.ne.s32.totalorder %s45, %s46
    %p58 = scmp.eq.s32.totalorder %s15, 1
    %p59 = por %p57, %p58
    %p61 = scmp.ne.s32.totalorder %s46, %s60
    %p62 = scmp.eq.s32.totalorder %s15, 0
    %p63 = por %p61, %p62
    %s65 = sadd.s32 %s64, 1
    %p68 = scmp.eq.s32.totalorder %s9, 1
    %p69 = scmp.ne.s32.totalorder %s64, %s66
    %p70 = scmp.eq.s32.totalorder %s9, 0
    %p71 = por %p69, %p70
    %p72 = scmp.ne.s32.totalorder %s64, %s66
    %p73 = scmp.eq.s32.totalorder %s14, 1
    %p74 = por %p72, %p73
    %p75 = scmp.ne.s32.totalorder %s66, %s67
    %p76 = scmp.eq.s32.totalorder %s14, 0
    %p77 = por %p75, %p76
    %p78 = scmp.ne.s32.totalorder %s66, %s67
    %p79 = scmp.eq.s32.totalorder %s15, 1
    %p80 = por %p78, %p79
    %p82 = scmp.ne.s32.totalorder %s67, %s81
    %p83 = scmp.eq.s32.totalorder %s15, 0
    %p84 = por %p82, %p83
    %s85 = ssub.s32 %s9, %s16
    %p86 = scmp.eq.s32.totalorder %s85, 0
    %s88 = sadd.s32 %s87, 1
    %s89 = scalar_select %p86, %s87, %s88
    %p92 = pneg %p86
    %p93 = scmp.eq.s32.totalorder %s9, 1
    %p94 = por %p92, %p93
    %p95 = scmp.ne.s32.totalorder %s87, %s90
    %p96 = scmp.eq.s32.totalorder %s9, 0
    %p97 = por %p95, %p96
    %p98 = scmp.ne.s32.totalorder %s87, %s90
    %p99 = scmp.eq.s32.totalorder %s14, 1
    %p100 = por %p98, %p99
    %p101 = scmp.ne.s32.totalorder %s90, %s91
    %p102 = scmp.eq.s32.totalorder %s14, 0
    %p103 = por %p101, %p102
    %p104 = scmp.ne.s32.totalorder %s90, %s91
    %p105 = scmp.eq.s32.totalorder %s15, 1
    %p106 = por %p104, %p105
    %p108 = scmp.ne.s32.totalorder %s91, %s107
    %p109 = scmp.eq.s32.totalorder %s15, 0
    %p110 = por %p108, %p109
    %p111 = scmp.le.s32.totalorder 1, %s9
    %p112 = scmp.lt.s32.totalorder %s9, 3
    %p113 = pnand %p111, %p112
    %p114 = pneg %p113
    // Predicated region
    $region9: #{branch.4} parent=5 // pred_check
      _
    $region10: #{branch.4} parent=5 // pred_check_branch
      %116 = sbr.rel (%p113) target = $region12
    $region11: #{branch.4} parent=5 // pred_region
      %s117 = ssub.s32 %s9, 1
      // Predicated region
      $region13: #{branch.4} parent=11 // pred_check
        %p118 = pneg %p56
      $region14: #{branch.4} parent=11 // pred_check_branch
        %120 = sbr.rel (%p118) target = $region16
      $region15: #{branch.4} parent=11 // pred_region
        _
      $region16: #{branch.4} parent=11 // pred_fallthru
        _
      // Predicated region
      $region17: #{branch.4} parent=11 // pred_check
        %p121 = pneg %p77
      $region18: #{branch.4} parent=11 // pred_check_branch
        %123 = sbr.rel (%p121) target = $region20
      $region19: #{branch.4} parent=11 // pred_region
        _
      $region20: #{branch.4} parent=11 // pred_fallthru
        _
    $region12: #{branch.4} parent=5 // pred_fallthru
      _
    %p124 = scmp.lt.s32.totalorder %s9, 2
    // Predicated region
    $region21: #{branch.4} parent=5 // pred_check
      %p125 = pneg %p124
    $region22: #{branch.4} parent=5 // pred_check_branch
      %127 = sbr.rel (%p125) target = $region24
    $region23: #{branch.4} parent=5 // pred_region
      // Predicated region
      $region25: #{branch.4} parent=23 // pred_check
        %p128 = pneg %p29
      $region26: #{branch.4} parent=23 // pred_check_branch
        %130 = sbr.rel (%p128) target = $region28
      $region27: #{branch.4} parent=23 // pred_region
        %p131 = scmp.lt.s32.totalorder %s9, 1
        %s132 = scalar_select %p131, %s9, 1
        %s133 = smul.addr %s132, 54
        %s134 = smul.addr %s133, 4
        %s135 = scalar_lea.vmem %s0, %s134
      $region28: #{branch.4} parent=23 // pred_fallthru
        _
    $region24: #{branch.4} parent=5 // pred_fallthru
      _
    %p136 = scmp.le.s32.totalorder 1, %s9
    %p137 = scmp.lt.s32.totalorder %s9, 3
    %p138 = pnand %p136, %p137
    %p139 = pneg %p138
    // Predicated region
    $region29: #{branch.4} parent=5 // pred_check
      _
    $region30: #{branch.4} parent=5 // pred_check_branch
      %141 = sbr.rel (%p138) target = $region32
    $region31: #{branch.4} parent=5 // pred_region
      %s142 = ssub.s32 %s9, 1
      %p143 = scmp.lt.s32.totalorder %s14, 1
      %s144 = scalar_select %p143, %s14, 1
      %s145 = smul.addr %s144, 54
      %s146 = smul.addr %s145, 4
      %s147 = scalar_lea.vmem %s0, %s146
      %p148 = pneg %p35
      %p149 = pneg %p32
      %p150 = pneg %p56
      %p151 = pneg %p53
      %p152 = pneg %p77
      %p153 = pneg %p74
      %p154 = pneg %p103
      %p155 = pneg %p100
      %p156 = scmp.lt.s32.totalorder %s14, 1
      %s157 = scalar_select %p156, %s14, 1
      %s158 = smul.addr %s157, 32
      %s159 = smul.addr %s158, 4
      %s160 = scalar_lea.vmem %s3, %s159
      %p161 = scmp.lt.s32.totalorder %s14, 1
      %s162 = scalar_select %p161, %s14, 1
      %s163 = smul.addr %s162, 54
      %s164 = smul.addr %s163, 4
      %s165 = scalar_lea.vmem %s0, %s164
      %p166 = scmp.lt.s32.totalorder %s14, 1
      %s167 = scalar_select %p166, %s14, 1
      %s168 = smul.addr %s167, 32
      %s169 = smul.addr %s168, 4
      %s170 = scalar_lea.vmem %s3, %s169
      %v172 = vld [vmem:[%s165] sm:$0xf]
      %v173 = vld [vmem:[%s165 + $0x4] sm:$0xf]
      %v174 = vld [vmem:[%s165 + $0xc] sm:$0xf]
      %v175 = vld [vmem:[%s165 + $0x10] sm:$0xf]
      %v176 = vld [vmem:[%s165 + $0x18] sm:$0xf]
      %v177 = vld [vmem:[%s165 + $0x1c] sm:$0xf]
      %v178 = vld [vmem:[%s165 + $0x24] sm:$0xf]
      %v179 = vld [vmem:[%s165 + $0x28] sm:$0xf]
      %v180 = vld [vmem:[%s165 + $0x30] sm:$0xf]
      %v181 = vld [vmem:[%s165 + $0x34] sm:$0xf]
      %v182 = vld [vmem:[%s165 + $0x3c] sm:$0xf]
      %v183 = vld [vmem:[%s165 + $0x40] sm:$0xf]
      %v184 = vld [vmem:[%s165 + $0x48] sm:$0xf]
      %v185 = vld [vmem:[%s165 + $0x4c] sm:$0xf]
      %v186 = vld [vmem:[%s165 + $0x54] sm:$0xf]
      %v187 = vld [vmem:[%s165 + $0x58] sm:$0xf]
      %v188 = vld [vmem:[%s165 + $0x60] sm:$0xf]
      %v189 = vld [vmem:[%s165 + $0x64] sm:$0xf]
      %v190 = vld [vmem:[%s165 + $0x6c] sm:$0xf]
      %v191 = vld [vmem:[%s165 + $0x70] sm:$0xf]
      %v192 = vld [vmem:[%s165 + $0x78] sm:$0xf]
      %v193 = vld [vmem:[%s165 + $0x7c] sm:$0xf]
      %v194 = vld [vmem:[%s165 + $0x84] sm:$0xf]
      %v195 = vld [vmem:[%s165 + $0x88] sm:$0xf]
      %v196 = vld [vmem:[%s165 + $0x90] sm:$0xf]
      %v197 = vld [vmem:[%s165 + $0x94] sm:$0xf]
      %v198 = vld [vmem:[%s165 + $0x9c] sm:$0xf]
      %v199 = vld [vmem:[%s165 + $0xa0] sm:$0xf]
      %v200 = vld [vmem:[%s165 + $0xa8] sm:$0xf]
      %v201 = vld [vmem:[%s165 + $0xac] sm:$0xf]
      %v202 = vld [vmem:[%s165 + $0xb4] sm:$0xf]
      %v203 = vld [vmem:[%s165 + $0xb8] sm:$0xf]
      %v204 = vld [vmem:[%s1] sm:$0xf]
      %v205 = vld [vmem:[%s1 + $0x4] sm:$0xf]
      %v206 = vld [vmem:[%s1 + $0x8] sm:$0xf]
      %v207 = vld [vmem:[%s1 + $0xc] sm:$0xf]
      %v208 = vld [vmem:[%s1 + $0x10] sm:$0xf]
      %v209 = vld [vmem:[%s1 + $0x14] sm:$0xf]
      %v210 = vld [vmem:[%s1 + $0x18] sm:$0xf]
      %v211 = vld [vmem:[%s1 + $0x1c] sm:$0xf]
      %v212 = vld [vmem:[%s1 + $0x20] sm:$0xf]
      %v213 = vld [vmem:[%s1 + $0x24] sm:$0xf]
      %v214 = vld [vmem:[%s1 + $0x28] sm:$0xf]
      %v215 = vld [vmem:[%s1 + $0x2c] sm:$0xf]
      %v216 = vld [vmem:[%s1 + $0x30] sm:$0xf]
      %v217 = vld [vmem:[%s1 + $0x34] sm:$0xf]
      %v218 = vld [vmem:[%s1 + $0x38] sm:$0xf]
      %v219 = vld [vmem:[%s1 + $0x3c] sm:$0xf]
      %v220 = vld [vmem:[%s165 + $0x8] sm:$0x1]
      %v221 = vld [vmem:[%s165 + $0x14] sm:$0x1]
      %v222 = vld [vmem:[%s165 + $0x20] sm:$0x1]
      %v223 = vld [vmem:[%s165 + $0x2c] sm:$0x1]
      %v224 = vld [vmem:[%s165 + $0x38] sm:$0x1]
      %v225 = vld [vmem:[%s165 + $0x44] sm:$0x1]
      %v226 = vld [vmem:[%s165 + $0x50] sm:$0x1]
      %v227 = vld [vmem:[%s165 + $0x5c] sm:$0x1]
      %v228 = vld [vmem:[%s165 + $0x68] sm:$0x1]
      %v229 = vld [vmem:[%s165 + $0x74] sm:$0x1]
      %v230 = vld [vmem:[%s165 + $0x80] sm:$0x1]
      %v231 = vld [vmem:[%s165 + $0x8c] sm:$0x1]
      %v232 = vld [vmem:[%s165 + $0x98] sm:$0x1]
      %v233 = vld [vmem:[%s165 + $0xa4] sm:$0x1]
      %v234 = vld [vmem:[%s165 + $0xb0] sm:$0x1]
      %v235 = vld [vmem:[%s165 + $0xbc] sm:$0x1]
      %vm236 = vsmask.f32 3328
      %vm237 = vsmask.f32 7440
      %vm238 = vmor %vm236, %vm237
      %v240 = vshrl.u32 %v172, 16
      %v242 = vrot.slane %v240, 4
      %v243 = vshll.u32 %v172, 16
      %v245 = vrot.slane %v243, 5
      %v246 = vor.u32 %v242, %v245
      %v247 = vrot.slane %v246, 4
      %v249 = vshll.u32 %v173, 16
      %v251 = vrot.slane %v249, 5
      %v252 = vsel %vm238, %v247, %v251
      %v253 = vshrl.u32 %v173, 16
      %v255 = vrot.slane %v253, 4
      %v256 = vor.u32 %v255, %v251
      %v257 = vrot.slane %v256, 4
      %v259 = vshll.u32 %v220, 16
      %v261 = vrot.slane %v259, 5
      %v262 = vsel %vm238, %v257, %v261
      %v264 = vshrl.u32 %v174, 16
      %v266 = vrot.slane %v264, 4
      %v267 = vshll.u32 %v174, 16
      %v269 = vrot.slane %v267, 5
      %v270 = vor.u32 %v266, %v269
      %v271 = vrot.slane %v270, 4
      %v273 = vshll.u32 %v175, 16
      %v275 = vrot.slane %v273, 5
      %v276 = vsel %vm238, %v271, %v275
      %v277 = vshrl.u32 %v175, 16
      %v279 = vrot.slane %v277, 4
      %v280 = vor.u32 %v279, %v275
      %v281 = vrot.slane %v280, 4
      %v283 = vshll.u32 %v221, 16
      %v285 = vrot.slane %v283, 5
      %v286 = vsel %vm238, %v281, %v285
      %v288 = vshrl.u32 %v176, 16
      %v290 = vrot.slane %v288, 4
      %v291 = vshll.u32 %v176, 16
      %v293 = vrot.slane %v291, 5
      %v294 = vor.u32 %v290, %v293
      %v295 = vrot.slane %v294, 4
      %v297 = vshll.u32 %v177, 16
      %v299 = vrot.slane %v297, 5
      %v300 = vsel %vm238, %v295, %v299
      %v301 = vshrl.u32 %v177, 16
      %v303 = vrot.slane %v301, 4
      %v304 = vor.u32 %v303, %v299
      %v305 = vrot.slane %v304, 4
      %v307 = vshll.u32 %v222, 16
      %v309 = vrot.slane %v307, 5
      %v310 = vsel %vm238, %v305, %v309
      %v312 = vshrl.u32 %v178, 16
      %v314 = vrot.slane %v312, 4
      %v315 = vshll.u32 %v178, 16
      %v317 = vrot.slane %v315, 5
      %v318 = vor.u32 %v314, %v317
      %v319 = vrot.slane %v318, 4
      %v321 = vshll.u32 %v179, 16
      %v323 = vrot.slane %v321, 5
      %v324 = vsel %vm238, %v319, %v323
      %v325 = vshrl.u32 %v179, 16
      %v327 = vrot.slane %v325, 4
      %v328 = vor.u32 %v327, %v323
      %v329 = vrot.slane %v328, 4
      %v331 = vshll.u32 %v223, 16
      %v333 = vrot.slane %v331, 5
      %v334 = vsel %vm238, %v329, %v333
      %v336 = vshrl.u32 %v180, 16
      %v338 = vrot.slane %v336, 4
      %v339 = vshll.u32 %v180, 16
      %v341 = vrot.slane %v339, 5
      %v342 = vor.u32 %v338, %v341
      %v343 = vrot.slane %v342, 4
      %v345 = vshll.u32 %v181, 16
      %v347 = vrot.slane %v345, 5
      %v348 = vsel %vm238, %v343, %v347
      %v349 = vshrl.u32 %v181, 16
      %v351 = vrot.slane %v349, 4
      %v352 = vor.u32 %v351, %v347
      %v353 = vrot.slane %v352, 4
      %v355 = vshll.u32 %v224, 16
      %v357 = vrot.slane %v355, 5
      %v358 = vsel %vm238, %v353, %v357
      %v360 = vshrl.u32 %v182, 16
      %v362 = vrot.slane %v360, 4
      %v363 = vshll.u32 %v182, 16
      %v365 = vrot.slane %v363, 5
      %v366 = vor.u32 %v362, %v365
      %v367 = vrot.slane %v366, 4
      %v369 = vshll.u32 %v183, 16
      %v371 = vrot.slane %v369, 5
      %v372 = vsel %vm238, %v367, %v371
      %v373 = vshrl.u32 %v183, 16
      %v375 = vrot.slane %v373, 4
      %v376 = vor.u32 %v375, %v371
      %v377 = vrot.slane %v376, 4
      %v379 = vshll.u32 %v225, 16
      %v381 = vrot.slane %v379, 5
      %v382 = vsel %vm238, %v377, %v381
      %v384 = vshrl.u32 %v184, 16
      %v386 = vrot.slane %v384, 4
      %v387 = vshll.u32 %v184, 16
      %v389 = vrot.slane %v387, 5
      %v390 = vor.u32 %v386, %v389
      %v391 = vrot.slane %v390, 4
      %v393 = vshll.u32 %v185, 16
      %v395 = vrot.slane %v393, 5
      %v396 = vsel %vm238, %v391, %v395
      %v397 = vshrl.u32 %v185, 16
      %v399 = vrot.slane %v397, 4
      %v400 = vor.u32 %v399, %v395
      %v401 = vrot.slane %v400, 4
      %v403 = vshll.u32 %v226, 16
      %v405 = vrot.slane %v403, 5
      %v406 = vsel %vm238, %v401, %v405
      %v408 = vshrl.u32 %v186, 16
      %v410 = vrot.slane %v408, 4
      %v411 = vshll.u32 %v186, 16
      %v413 = vrot.slane %v411, 5
      %v414 = vor.u32 %v410, %v413
      %v415 = vrot.slane %v414, 4
      %v417 = vshll.u32 %v187, 16
      %v419 = vrot.slane %v417, 5
      %v420 = vsel %vm238, %v415, %v419
      %v421 = vshrl.u32 %v187, 16
      %v423 = vrot.slane %v421, 4
      %v424 = vor.u32 %v423, %v419
      %v425 = vrot.slane %v424, 4
      %v427 = vshll.u32 %v227, 16
      %v429 = vrot.slane %v427, 5
      %v430 = vsel %vm238, %v425, %v429
      %v432 = vshrl.u32 %v188, 16
      %v434 = vrot.slane %v432, 4
      %v435 = vshll.u32 %v188, 16
      %v437 = vrot.slane %v435, 5
      %v438 = vor.u32 %v434, %v437
      %v439 = vrot.slane %v438, 4
      %v441 = vshll.u32 %v189, 16
      %v443 = vrot.slane %v441, 5
      %v444 = vsel %vm238, %v439, %v443
      %v445 = vshrl.u32 %v189, 16
      %v447 = vrot.slane %v445, 4
      %v448 = vor.u32 %v447, %v443
      %v449 = vrot.slane %v448, 4
      %v451 = vshll.u32 %v228, 16
      %v453 = vrot.slane %v451, 5
      %v454 = vsel %vm238, %v449, %v453
      %v456 = vshrl.u32 %v190, 16
      %v458 = vrot.slane %v456, 4
      %v459 = vshll.u32 %v190, 16
      %v461 = vrot.slane %v459, 5
      %v462 = vor.u32 %v458, %v461
      %v463 = vrot.slane %v462, 4
      %v465 = vshll.u32 %v191, 16
      %v467 = vrot.slane %v465, 5
      %v468 = vsel %vm238, %v463, %v467
      %v469 = vshrl.u32 %v191, 16
      %v471 = vrot.slane %v469, 4
      %v472 = vor.u32 %v471, %v467
      %v473 = vrot.slane %v472, 4
      %v475 = vshll.u32 %v229, 16
      %v477 = vrot.slane %v475, 5
      %v478 = vsel %vm238, %v473, %v477
      %v480 = vshrl.u32 %v192, 16
      %v482 = vrot.slane %v480, 4
      %v483 = vshll.u32 %v192, 16
      %v485 = vrot.slane %v483, 5
      %v486 = vor.u32 %v482, %v485
      %v487 = vrot.slane %v486, 4
      %v489 = vshll.u32 %v193, 16
      %v491 = vrot.slane %v489, 5
      %v492 = vsel %vm238, %v487, %v491
      %v493 = vshrl.u32 %v193, 16
      %v495 = vrot.slane %v493, 4
      %v496 = vor.u32 %v495, %v491
      %v497 = vrot.slane %v496, 4
      %v499 = vshll.u32 %v230, 16
      %v501 = vrot.slane %v499, 5
      %v502 = vsel %vm238, %v497, %v501
      %v504 = vshrl.u32 %v194, 16
      %v506 = vrot.slane %v504, 4
      %v507 = vshll.u32 %v194, 16
      %v509 = vrot.slane %v507, 5
      %v510 = vor.u32 %v506, %v509
      %v511 = vrot.slane %v510, 4
      %v513 = vshll.u32 %v195, 16
      %v515 = vrot.slane %v513, 5
      %v516 = vsel %vm238, %v511, %v515
      %v517 = vshrl.u32 %v195, 16
      %v519 = vrot.slane %v517, 4
      %v520 = vor.u32 %v519, %v515
      %v521 = vrot.slane %v520, 4
      %v523 = vshll.u32 %v231, 16
      %v525 = vrot.slane %v523, 5
      %v526 = vsel %vm238, %v521, %v525
      %v528 = vshrl.u32 %v196, 16
      %v530 = vrot.slane %v528, 4
      %v531 = vshll.u32 %v196, 16
      %v533 = vrot.slane %v531, 5
      %v534 = vor.u32 %v530, %v533
      %v535 = vrot.slane %v534, 4
      %v537 = vshll.u32 %v197, 16
      %v539 = vrot.slane %v537, 5
      %v540 = vsel %vm238, %v535, %v539
      %v541 = vshrl.u32 %v197, 16
      %v543 = vrot.slane %v541, 4
      %v544 = vor.u32 %v543, %v539
      %v545 = vrot.slane %v544, 4
      %v547 = vshll.u32 %v232, 16
      %v549 = vrot.slane %v547, 5
      %v550 = vsel %vm238, %v545, %v549
      %v552 = vshrl.u32 %v198, 16
      %v554 = vrot.slane %v552, 4
      %v555 = vshll.u32 %v198, 16
      %v557 = vrot.slane %v555, 5
      %v558 = vor.u32 %v554, %v557
      %v559 = vrot.slane %v558, 4
      %v561 = vshll.u32 %v199, 16
      %v563 = vrot.slane %v561, 5
      %v564 = vsel %vm238, %v559, %v563
      %v565 = vshrl.u32 %v199, 16
      %v567 = vrot.slane %v565, 4
      %v568 = vor.u32 %v567, %v563
      %v569 = vrot.slane %v568, 4
      %v571 = vshll.u32 %v233, 16
      %v573 = vrot.slane %v571, 5
      %v574 = vsel %vm238, %v569, %v573
      %v576 = vshrl.u32 %v200, 16
      %v578 = vrot.slane %v576, 4
      %v579 = vshll.u32 %v200, 16
      %v581 = vrot.slane %v579, 5
      %v582 = vor.u32 %v578, %v581
      %v583 = vrot.slane %v582, 4
      %v585 = vshll.u32 %v201, 16
      %v587 = vrot.slane %v585, 5
      %v588 = vsel %vm238, %v583, %v587
      %v589 = vshrl.u32 %v201, 16
      %v591 = vrot.slane %v589, 4
      %v592 = vor.u32 %v591, %v587
      %v593 = vrot.slane %v592, 4
      %v595 = vshll.u32 %v234, 16
      %v597 = vrot.slane %v595, 5
      %v598 = vsel %vm238, %v593, %v597
      %v600 = vshrl.u32 %v202, 16
      %v602 = vrot.slane %v600, 4
      %v603 = vshll.u32 %v202, 16
      %v605 = vrot.slane %v603, 5
      %v606 = vor.u32 %v602, %v605
      %v607 = vrot.slane %v606, 4
      %v609 = vshll.u32 %v203, 16
      %v611 = vrot.slane %v609, 5
      %v612 = vsel %vm238, %v607, %v611
      %v613 = vshrl.u32 %v203, 16
      %v615 = vrot.slane %v613, 4
      %v616 = vor.u32 %v615, %v611
      %v617 = vrot.slane %v616, 4
      %v619 = vshll.u32 %v235, 16
      %v621 = vrot.slane %v619, 5
      %v622 = vsel %vm238, %v617, %v621
      %s623 = scalar_lea.vmem %s1, 64
      %v624 = vld [vmem:[%s623] sm:$0xf]
      %v625 = vld [vmem:[%s623 + $0x4] sm:$0xf]
      %v626 = vld [vmem:[%s623 + $0x8] sm:$0xf]
      %v627 = vld [vmem:[%s623 + $0xc] sm:$0xf]
      %v628 = vld [vmem:[%s623 + $0x10] sm:$0xf]
      %v629 = vld [vmem:[%s623 + $0x14] sm:$0xf]
      %v630 = vld [vmem:[%s623 + $0x18] sm:$0xf]
      %v631 = vld [vmem:[%s623 + $0x1c] sm:$0xf]
      %v632 = vld [vmem:[%s623 + $0x20] sm:$0xf]
      %v633 = vld [vmem:[%s623 + $0x24] sm:$0xf]
      %v634 = vld [vmem:[%s623 + $0x28] sm:$0xf]
      %v635 = vld [vmem:[%s623 + $0x2c] sm:$0xf]
      %v636 = vld [vmem:[%s623 + $0x30] sm:$0xf]
      %v637 = vld [vmem:[%s623 + $0x34] sm:$0xf]
      %v638 = vld [vmem:[%s623 + $0x38] sm:$0xf]
      %v639 = vld [vmem:[%s623 + $0x3c] sm:$0xf]
      %v640 = vunpack.c.l.b16 %v252
      %v641 = vunpack.c.l.b16 %v262
      %v642 = vunpack.c.l.b16 %v276
      %v643 = vunpack.c.l.b16 %v286
      %v644 = vunpack.c.l.b16 %v300
      %v645 = vunpack.c.l.b16 %v310
      %v646 = vunpack.c.l.b16 %v324
      %v647 = vunpack.c.l.b16 %v334
      %v648 = vunpack.c.l.b16 %v348
      %v649 = vunpack.c.l.b16 %v358
      %v650 = vunpack.c.l.b16 %v372
      %v651 = vunpack.c.l.b16 %v382
      %v652 = vunpack.c.l.b16 %v396
      %v653 = vunpack.c.l.b16 %v406
      %v654 = vunpack.c.l.b16 %v420
      %v655 = vunpack.c.l.b16 %v430
      %v656 = vunpack.c.l.b16 %v444
      %v657 = vunpack.c.l.b16 %v454
      %v658 = vunpack.c.l.b16 %v468
      %v659 = vunpack.c.l.b16 %v478
      %v660 = vunpack.c.l.b16 %v492
      %v661 = vunpack.c.l.b16 %v502
      %v662 = vunpack.c.l.b16 %v516
      %v663 = vunpack.c.l.b16 %v526
      %v664 = vunpack.c.l.b16 %v540
      %v665 = vunpack.c.l.b16 %v550
      %v666 = vunpack.c.l.b16 %v564
      %v667 = vunpack.c.l.b16 %v574
      %v668 = vunpack.c.l.b16 %v588
      %v669 = vunpack.c.l.b16 %v598
      %v670 = vunpack.c.l.b16 %v612
      %v671 = vunpack.c.l.b16 %v622
      %v672 = vpack.c.b16 %v641, %v640
      %v673 = vpack.c.b16 %v643, %v642
      %v674 = vpack.c.b16 %v645, %v644
      %v675 = vpack.c.b16 %v647, %v646
      %v676 = vpack.c.b16 %v649, %v648
      %v677 = vpack.c.b16 %v651, %v650
      %v678 = vpack.c.b16 %v653, %v652
      %v679 = vpack.c.b16 %v655, %v654
      %v680 = vpack.c.b16 %v657, %v656
      %v681 = vpack.c.b16 %v659, %v658
      %v682 = vpack.c.b16 %v661, %v660
      %v683 = vpack.c.b16 %v663, %v662
      %v684 = vpack.c.b16 %v665, %v664
      %v685 = vpack.c.b16 %v667, %v666
      %v686 = vpack.c.b16 %v669, %v668
      %v687 = vpack.c.b16 %v671, %v670
      %v720 = vunpack.c.l.b16 %v624
      %v721 = vunpack.c.l.b16 %v625
      %v722 = vunpack.c.l.b16 %v626
      %v723 = vunpack.c.l.b16 %v627
      %v724 = vunpack.c.l.b16 %v628
      %v725 = vunpack.c.l.b16 %v629
      %v726 = vunpack.c.l.b16 %v630
      %v727 = vunpack.c.l.b16 %v631
      %v728 = vunpack.c.l.b16 %v632
      %v729 = vunpack.c.l.b16 %v633
      %v730 = vunpack.c.l.b16 %v634
      %v731 = vunpack.c.l.b16 %v635
      %v732 = vunpack.c.l.b16 %v636
      %v733 = vunpack.c.l.b16 %v637
      %v734 = vunpack.c.l.b16 %v638
      %v735 = vunpack.c.l.b16 %v639
      %v736 = vpack.c.b16 %v721, %v720
      %v737 = vpack.c.b16 %v723, %v722
      %v738 = vpack.c.b16 %v725, %v724
      %v739 = vpack.c.b16 %v727, %v726
      %v740 = vpack.c.b16 %v729, %v728
      %v741 = vpack.c.b16 %v731, %v730
      %v742 = vpack.c.b16 %v733, %v732
      %v743 = vpack.c.b16 %v735, %v734
      %752 = vmatprep.subr.bf16.mxu0 0
      %753 = vmatpush1.bf16.msra.mxu0 %v743
      %754 = vmatprep.subr.bf16.mxu0 0
      %755 = vmatpush1.bf16.msra.mxu0 %v742
      %756 = vmatprep.subr.bf16.mxu0 0
      %757 = vmatpush1.bf16.msra.mxu0 %v741
      %758 = vmatprep.subr.bf16.mxu0 0
      %759 = vmatpush1.bf16.msra.mxu0 %v740
      %760 = vmatprep.subr.bf16.mxu0 0
      %761 = vmatpush1.bf16.msra.mxu0 %v739
      %762 = vmatprep.subr.bf16.mxu0 0
      %763 = vmatpush1.bf16.msra.mxu0 %v738
      %764 = vmatprep.subr.bf16.mxu0 0
      %765 = vmatpush1.bf16.msra.mxu0 %v737
      %766 = vmatprep.subr.bf16.mxu0 0
      %767 = vmatpush1.bf16.msra.mxu0 %v736
      %768 = vmatprep.subr.bf16.mxu0 0
      %769 = vmatpush2.bf16.msra.mxu0 0
      %770 = vmatprep.subr.bf16.mxu0 0
      %771 = vmatpush2.bf16.msra.mxu0 0
      %772 = vmatprep.subr.bf16.mxu0 0
      %773 = vmatpush2.bf16.msra.mxu0 0
      %774 = vmatprep.subr.bf16.mxu0 0
      %775 = vmatpush2.bf16.msra.mxu0 0
      %776 = vmatprep.subr.bf16.mxu0 0
      %777 = vmatpush2.bf16.msra.mxu0 0
      %778 = vmatprep.subr.bf16.mxu0 0
      %779 = vmatpush2.bf16.msra.mxu0 0
      %780 = vmatprep.subr.bf16.mxu0 0
      %781 = vmatpush2.bf16.msra.mxu0 0
      %782 = vmatprep.subr.bf16.mxu0 0
      %783 = vmatpush2.bf16.msra.mxu0 0
      %784 = vmatprep.mubr.bf16.mxu0 0
      %785 = vmatmul.mubr.bf16.gmra.mxu0 %v672
      %v786 = vpop.f32.mrf.mxu0
      %v787 = vadd.f32 0.0, %v786
      %v788 = vpop.f32.mrf.mxu0
      %v789 = vpop.f32.mrf.mxu0
      %v790 = vadd.f32 0.0, %v789
      %v791 = vpop.f32.mrf.mxu0
      %792 = vmatprep.mubr.bf16.mxu0 0
      %793 = vmatmul.mubr.bf16.gmra.mxu0 %v673
      %v794 = vpop.f32.mrf.mxu0
      %v795 = vadd.f32 0.0, %v794
      %v796 = vpop.f32.mrf.mxu0
      %v797 = vpop.f32.mrf.mxu0
      %v798 = vadd.f32 0.0, %v797
      %v799 = vpop.f32.mrf.mxu0
      %800 = vmatprep.mubr.bf16.mxu0 0
      %801 = vmatmul.mubr.bf16.gmra.mxu0 %v674
      %v802 = vpop.f32.mrf.mxu0
      %v803 = vadd.f32 0.0, %v802
      %v804 = vpop.f32.mrf.mxu0
      %v805 = vpop.f32.mrf.mxu0
      %v806 = vadd.f32 0.0, %v805
      %v807 = vpop.f32.mrf.mxu0
      %808 = vmatprep.mubr.bf16.mxu0 0
      %809 = vmatmul.mubr.bf16.gmra.mxu0 %v675
      %v810 = vpop.f32.mrf.mxu0
      %v811 = vadd.f32 0.0, %v810
      %v812 = vpop.f32.mrf.mxu0
      %v813 = vpop.f32.mrf.mxu0
      %v814 = vadd.f32 0.0, %v813
      %v815 = vpop.f32.mrf.mxu0
      %816 = vmatprep.mubr.bf16.mxu0 0
      %817 = vmatmul.mubr.bf16.gmra.mxu0 %v676
      %v818 = vpop.f32.mrf.mxu0
      %v819 = vadd.f32 0.0, %v818
      %v820 = vpop.f32.mrf.mxu0
      %v821 = vpop.f32.mrf.mxu0
      %v822 = vadd.f32 0.0, %v821
      %v823 = vpop.f32.mrf.mxu0
      %824 = vmatprep.mubr.bf16.mxu0 0
      %825 = vmatmul.mubr.bf16.gmra.mxu0 %v677
      %v826 = vpop.f32.mrf.mxu0
      %v827 = vadd.f32 0.0, %v826
      %v828 = vpop.f32.mrf.mxu0
      %v829 = vpop.f32.mrf.mxu0
      %v830 = vadd.f32 0.0, %v829
      %v831 = vpop.f32.mrf.mxu0
      %832 = vmatprep.mubr.bf16.mxu0 0
      %833 = vmatmul.mubr.bf16.gmra.mxu0 %v678
      %v834 = vpop.f32.mrf.mxu0
      %v835 = vadd.f32 0.0, %v834
      %v836 = vpop.f32.mrf.mxu0
      %v837 = vpop.f32.mrf.mxu0
      %v838 = vadd.f32 0.0, %v837
      %v839 = vpop.f32.mrf.mxu0
      %840 = vmatprep.mubr.bf16.mxu0 0
      %841 = vmatmul.mubr.bf16.gmra.mxu0 %v679
      %v842 = vpop.f32.mrf.mxu0
      %v843 = vadd.f32 0.0, %v842
      %v844 = vpop.f32.mrf.mxu0
      %v845 = vpop.f32.mrf.mxu0
      %v846 = vadd.f32 0.0, %v845
      %v847 = vpop.f32.mrf.mxu0
      %848 = vmatprep.mubr.bf16.mxu0 0
      %849 = vmatmul.mubr.bf16.gmra.mxu0 %v680
      %v850 = vpop.f32.mrf.mxu0
      %v851 = vadd.f32 0.0, %v850
      %v852 = vpop.f32.mrf.mxu0
      %v853 = vpop.f32.mrf.mxu0
      %v854 = vadd.f32 0.0, %v853
      %v855 = vpop.f32.mrf.mxu0
      %856 = vmatprep.mubr.bf16.mxu0 0
      %857 = vmatmul.mubr.bf16.gmra.mxu0 %v681
      %v858 = vpop.f32.mrf.mxu0
      %v859 = vadd.f32 0.0, %v858
      %v860 = vpop.f32.mrf.mxu0
      %v861 = vpop.f32.mrf.mxu0
      %v862 = vadd.f32 0.0, %v861
      %v863 = vpop.f32.mrf.mxu0
      %864 = vmatprep.mubr.bf16.mxu0 0
      %865 = vmatmul.mubr.bf16.gmra.mxu0 %v682
      %v866 = vpop.f32.mrf.mxu0
      %v867 = vadd.f32 0.0, %v866
      %v868 = vpop.f32.mrf.mxu0
      %v869 = vpop.f32.mrf.mxu0
      %v870 = vadd.f32 0.0, %v869
      %v871 = vpop.f32.mrf.mxu0
      %872 = vmatprep.mubr.bf16.mxu0 0
      %873 = vmatmul.mubr.bf16.gmra.mxu0 %v683
      %v874 = vpop.f32.mrf.mxu0
      %v875 = vadd.f32 0.0, %v874
      %v876 = vpop.f32.mrf.mxu0
      %v877 = vpop.f32.mrf.mxu0
      %v878 = vadd.f32 0.0, %v877
      %v879 = vpop.f32.mrf.mxu0
      %880 = vmatprep.mubr.bf16.mxu0 0
      %881 = vmatmul.mubr.bf16.gmra.mxu0 %v684
      %v882 = vpop.f32.mrf.mxu0
      %v883 = vadd.f32 0.0, %v882
      %v884 = vpop.f32.mrf.mxu0
      %v885 = vpop.f32.mrf.mxu0
      %v886 = vadd.f32 0.0, %v885
      %v887 = vpop.f32.mrf.mxu0
      %888 = vmatprep.mubr.bf16.mxu0 0
      %889 = vmatmul.mubr.bf16.gmra.mxu0 %v685
      %v890 = vpop.f32.mrf.mxu0
      %v891 = vadd.f32 0.0, %v890
      %v892 = vpop.f32.mrf.mxu0
      %v893 = vpop.f32.mrf.mxu0
      %v894 = vadd.f32 0.0, %v893
      %v895 = vpop.f32.mrf.mxu0
      %896 = vmatprep.mubr.bf16.mxu0 0
      %897 = vmatmul.mubr.bf16.gmra.mxu0 %v686
      %v898 = vpop.f32.mrf.mxu0
      %v899 = vadd.f32 0.0, %v898
      %v900 = vpop.f32.mrf.mxu0
      %v901 = vpop.f32.mrf.mxu0
      %v902 = vadd.f32 0.0, %v901
      %v903 = vpop.f32.mrf.mxu0
      %904 = vmatprep.mubr.bf16.mxu0 0
      %905 = vmatmul.mubr.bf16.gmra.mxu0 %v687
      %v906 = vpop.f32.mrf.mxu0
      %v907 = vadd.f32 0.0, %v906
      %v908 = vpop.f32.mrf.mxu0
      %v909 = vpop.f32.mrf.mxu0
      %v910 = vadd.f32 0.0, %v909
      %v911 = vpop.f32.mrf.mxu0
      %912 = vdwg.mxu0
      %v945 = vunpack.c.l.b16 %v172
      %v946 = vunpack.c.l.b16 %v173
      %v947 = vunpack.c.l.b16 %v174
      %v948 = vunpack.c.l.b16 %v175
      %v949 = vunpack.c.l.b16 %v176
      %v950 = vunpack.c.l.b16 %v177
      %v951 = vunpack.c.l.b16 %v178
      %v952 = vunpack.c.l.b16 %v179
      %v953 = vunpack.c.l.b16 %v180
      %v954 = vunpack.c.l.b16 %v181
      %v955 = vunpack.c.l.b16 %v182
      %v956 = vunpack.c.l.b16 %v183
      %v957 = vunpack.c.l.b16 %v184
      %v958 = vunpack.c.l.b16 %v185
      %v959 = vunpack.c.l.b16 %v186
      %v960 = vunpack.c.l.b16 %v187
      %v961 = vunpack.c.l.b16 %v188
      %v962 = vunpack.c.l.b16 %v189
      %v963 = vunpack.c.l.b16 %v190
      %v964 = vunpack.c.l.b16 %v191
      %v965 = vunpack.c.l.b16 %v192
      %v966 = vunpack.c.l.b16 %v193
      %v967 = vunpack.c.l.b16 %v194
      %v968 = vunpack.c.l.b16 %v195
      %v969 = vunpack.c.l.b16 %v196
      %v970 = vunpack.c.l.b16 %v197
      %v971 = vunpack.c.l.b16 %v198
      %v972 = vunpack.c.l.b16 %v199
      %v973 = vunpack.c.l.b16 %v200
      %v974 = vunpack.c.l.b16 %v201
      %v975 = vunpack.c.l.b16 %v202
      %v976 = vunpack.c.l.b16 %v203
      %v977 = vpack.c.b16 %v946, %v945
      %v978 = vpack.c.b16 %v948, %v947
      %v979 = vpack.c.b16 %v950, %v949
      %v980 = vpack.c.b16 %v952, %v951
      %v981 = vpack.c.b16 %v954, %v953
      %v982 = vpack.c.b16 %v956, %v955
      %v983 = vpack.c.b16 %v958, %v957
      %v984 = vpack.c.b16 %v960, %v959
      %v985 = vpack.c.b16 %v962, %v961
      %v986 = vpack.c.b16 %v964, %v963
      %v987 = vpack.c.b16 %v966, %v965
      %v988 = vpack.c.b16 %v968, %v967
      %v989 = vpack.c.b16 %v970, %v969
      %v990 = vpack.c.b16 %v972, %v971
      %v991 = vpack.c.b16 %v974, %v973
      %v992 = vpack.c.b16 %v976, %v975
      %v1025 = vunpack.c.l.b16 %v204
      %v1026 = vunpack.c.l.b16 %v205
      %v1027 = vunpack.c.l.b16 %v206
      %v1028 = vunpack.c.l.b16 %v207
      %v1029 = vunpack.c.l.b16 %v208
      %v1030 = vunpack.c.l.b16 %v209
      %v1031 = vunpack.c.l.b16 %v210
      %v1032 = vunpack.c.l.b16 %v211
      %v1033 = vunpack.c.l.b16 %v212
      %v1034 = vunpack.c.l.b16 %v213
      %v1035 = vunpack.c.l.b16 %v214
      %v1036 = vunpack.c.l.b16 %v215
      %v1037 = vunpack.c.l.b16 %v216
      %v1038 = vunpack.c.l.b16 %v217
      %v1039 = vunpack.c.l.b16 %v218
      %v1040 = vunpack.c.l.b16 %v219
      %v1041 = vpack.c.b16 %v1026, %v1025
      %v1042 = vpack.c.b16 %v1028, %v1027
      %v1043 = vpack.c.b16 %v1030, %v1029
      %v1044 = vpack.c.b16 %v1032, %v1031
      %v1045 = vpack.c.b16 %v1034, %v1033
      %v1046 = vpack.c.b16 %v1036, %v1035
      %v1047 = vpack.c.b16 %v1038, %v1037
      %v1048 = vpack.c.b16 %v1040, %v1039
      %1057 = vmatprep.subr.bf16.mxu0 0
      %1058 = vmatpush1.bf16.msra.mxu0 %v1048
      %1059 = vmatprep.subr.bf16.mxu0 0
      %1060 = vmatpush1.bf16.msra.mxu0 %v1047
      %1061 = vmatprep.subr.bf16.mxu0 0
      %1062 = vmatpush1.bf16.msra.mxu0 %v1046
      %1063 = vmatprep.subr.bf16.mxu0 0
      %1064 = vmatpush1.bf16.msra.mxu0 %v1045
      %1065 = vmatprep.subr.bf16.mxu0 0
      %1066 = vmatpush1.bf16.msra.mxu0 %v1044
      %1067 = vmatprep.subr.bf16.mxu0 0
      %1068 = vmatpush1.bf16.msra.mxu0 %v1043
      %1069 = vmatprep.subr.bf16.mxu0 0
      %1070 = vmatpush1.bf16.msra.mxu0 %v1042
      %1071 = vmatprep.subr.bf16.mxu0 0
      %1072 = vmatpush1.bf16.msra.mxu0 %v1041
      %1073 = vmatprep.subr.bf16.mxu0 0
      %1074 = vmatpush2.bf16.msra.mxu0 0
      %1075 = vmatprep.subr.bf16.mxu0 0
      %1076 = vmatpush2.bf16.msra.mxu0 0
      %1077 = vmatprep.subr.bf16.mxu0 0
      %1078 = vmatpush2.bf16.msra.mxu0 0
      %1079 = vmatprep.subr.bf16.mxu0 0
      %1080 = vmatpush2.bf16.msra.mxu0 0
      %1081 = vmatprep.subr.bf16.mxu0 0
      %1082 = vmatpush2.bf16.msra.mxu0 0
      %1083 = vmatprep.subr.bf16.mxu0 0
      %1084 = vmatpush2.bf16.msra.mxu0 0
      %1085 = vmatprep.subr.bf16.mxu0 0
      %1086 = vmatpush2.bf16.msra.mxu0 0
      %1087 = vmatprep.subr.bf16.mxu0 0
      %1088 = vmatpush2.bf16.msra.mxu0 0
      %1089 = vmatprep.mubr.bf16.mxu0 0
      %1090 = vmatmul.mubr.bf16.gmra.mxu0 %v977
      %v1091 = vpop.f32.mrf.mxu0
      %v1092 = vadd.f32 %v787, %v1091
      %v1093 = vpop.f32.mrf.mxu0
      %v1094 = vpop.f32.mrf.mxu0
      %v1095 = vadd.f32 %v790, %v1094
      %v1096 = vpop.f32.mrf.mxu0
      %1097 = vmatprep.mubr.bf16.mxu0 0
      %1098 = vmatmul.mubr.bf16.gmra.mxu0 %v978
      %v1099 = vpop.f32.mrf.mxu0
      %v1100 = vadd.f32 %v795, %v1099
      %v1101 = vpop.f32.mrf.mxu0
      %v1102 = vpop.f32.mrf.mxu0
      %v1103 = vadd.f32 %v798, %v1102
      %v1104 = vpop.f32.mrf.mxu0
      %1105 = vmatprep.mubr.bf16.mxu0 0
      %1106 = vmatmul.mubr.bf16.gmra.mxu0 %v979
      %v1107 = vpop.f32.mrf.mxu0
      %v1108 = vadd.f32 %v803, %v1107
      %v1109 = vpop.f32.mrf.mxu0
      %v1110 = vpop.f32.mrf.mxu0
      %v1111 = vadd.f32 %v806, %v1110
      %v1112 = vpop.f32.mrf.mxu0
      %1113 = vmatprep.mubr.bf16.mxu0 0
      %1114 = vmatmul.mubr.bf16.gmra.mxu0 %v980
      %v1115 = vpop.f32.mrf.mxu0
      %v1116 = vadd.f32 %v811, %v1115
      %v1117 = vpop.f32.mrf.mxu0
      %v1118 = vpop.f32.mrf.mxu0
      %v1119 = vadd.f32 %v814, %v1118
      %v1120 = vpop.f32.mrf.mxu0
      %1121 = vmatprep.mubr.bf16.mxu0 0
      %1122 = vmatmul.mubr.bf16.gmra.mxu0 %v981
      %v1123 = vpop.f32.mrf.mxu0
      %v1124 = vadd.f32 %v819, %v1123
      %v1125 = vpop.f32.mrf.mxu0
      %v1126 = vpop.f32.mrf.mxu0
      %v1127 = vadd.f32 %v822, %v1126
      %v1128 = vpop.f32.mrf.mxu0
      %1129 = vmatprep.mubr.bf16.mxu0 0
      %1130 = vmatmul.mubr.bf16.gmra.mxu0 %v982
      %v1131 = vpop.f32.mrf.mxu0
      %v1132 = vadd.f32 %v827, %v1131
      %v1133 = vpop.f32.mrf.mxu0
      %v1134 = vpop.f32.mrf.mxu0
      %v1135 = vadd.f32 %v830, %v1134
      %v1136 = vpop.f32.mrf.mxu0
      %1137 = vmatprep.mubr.bf16.mxu0 0
      %1138 = vmatmul.mubr.bf16.gmra.mxu0 %v983
      %v1139 = vpop.f32.mrf.mxu0
      %v1140 = vadd.f32 %v835, %v1139
      %v1141 = vpop.f32.mrf.mxu0
      %v1142 = vpop.f32.mrf.mxu0
      %v1143 = vadd.f32 %v838, %v1142
      %v1144 = vpop.f32.mrf.mxu0
      %1145 = vmatprep.mubr.bf16.mxu0 0
      %1146 = vmatmul.mubr.bf16.gmra.mxu0 %v984
      %v1147 = vpop.f32.mrf.mxu0
      %v1148 = vadd.f32 %v843, %v1147
      %v1149 = vpop.f32.mrf.mxu0
      %v1150 = vpop.f32.mrf.mxu0
      %v1151 = vadd.f32 %v846, %v1150
      %v1152 = vpop.f32.mrf.mxu0
      %1153 = vmatprep.mubr.bf16.mxu0 0
      %1154 = vmatmul.mubr.bf16.gmra.mxu0 %v985
      %v1155 = vpop.f32.mrf.mxu0
      %v1156 = vadd.f32 %v851, %v1155
      %v1157 = vpop.f32.mrf.mxu0
      %v1158 = vpop.f32.mrf.mxu0
      %v1159 = vadd.f32 %v854, %v1158
      %v1160 = vpop.f32.mrf.mxu0
      %1161 = vmatprep.mubr.bf16.mxu0 0
      %1162 = vmatmul.mubr.bf16.gmra.mxu0 %v986
      %v1163 = vpop.f32.mrf.mxu0
      %v1164 = vadd.f32 %v859, %v1163
      %v1165 = vpop.f32.mrf.mxu0
      %v1166 = vpop.f32.mrf.mxu0
      %v1167 = vadd.f32 %v862, %v1166
      %v1168 = vpop.f32.mrf.mxu0
      %1169 = vmatprep.mubr.bf16.mxu0 0
      %1170 = vmatmul.mubr.bf16.gmra.mxu0 %v987
      %v1171 = vpop.f32.mrf.mxu0
      %v1172 = vadd.f32 %v867, %v1171
      %v1173 = vpop.f32.mrf.mxu0
      %v1174 = vpop.f32.mrf.mxu0
      %v1175 = vadd.f32 %v870, %v1174
      %v1176 = vpop.f32.mrf.mxu0
      %1177 = vmatprep.mubr.bf16.mxu0 0
      %1178 = vmatmul.mubr.bf16.gmra.mxu0 %v988
      %v1179 = vpop.f32.mrf.mxu0
      %v1180 = vadd.f32 %v875, %v1179
      %v1181 = vpop.f32.mrf.mxu0
      %v1182 = vpop.f32.mrf.mxu0
      %v1183 = vadd.f32 %v878, %v1182
      %v1184 = vpop.f32.mrf.mxu0
      %1185 = vmatprep.mubr.bf16.mxu0 0
      %1186 = vmatmul.mubr.bf16.gmra.mxu0 %v989
      %v1187 = vpop.f32.mrf.mxu0
      %v1188 = vadd.f32 %v883, %v1187
      %v1189 = vpop.f32.mrf.mxu0
      %v1190 = vpop.f32.mrf.mxu0
      %v1191 = vadd.f32 %v886, %v1190
      %v1192 = vpop.f32.mrf.mxu0
      %1193 = vmatprep.mubr.bf16.mxu0 0
      %1194 = vmatmul.mubr.bf16.gmra.mxu0 %v990
      %v1195 = vpop.f32.mrf.mxu0
      %v1196 = vadd.f32 %v891, %v1195
      %v1197 = vpop.f32.mrf.mxu0
      %v1198 = vpop.f32.mrf.mxu0
      %v1199 = vadd.f32 %v894, %v1198
      %v1200 = vpop.f32.mrf.mxu0
      %1201 = vmatprep.mubr.bf16.mxu0 0
      %1202 = vmatmul.mubr.bf16.gmra.mxu0 %v991
      %v1203 = vpop.f32.mrf.mxu0
      %v1204 = vadd.f32 %v899, %v1203
      %v1205 = vpop.f32.mrf.mxu0
      %v1206 = vpop.f32.mrf.mxu0
      %v1207 = vadd.f32 %v902, %v1206
      %v1208 = vpop.f32.mrf.mxu0
      %1209 = vmatprep.mubr.bf16.mxu0 0
      %1210 = vmatmul.mubr.bf16.gmra.mxu0 %v992
      %v1211 = vpop.f32.mrf.mxu0
      %v1212 = vadd.f32 %v907, %v1211
      %v1213 = vpop.f32.mrf.mxu0
      %v1214 = vpop.f32.mrf.mxu0
      %v1215 = vadd.f32 %v910, %v1214
      %v1216 = vpop.f32.mrf.mxu0
      %1217 = vdwg.mxu0
      %v1218 = vld [vmem:[%s165] sm:$0xe]
      %v1219 = vld [vmem:[%s165 + $0xc] sm:$0xe]
      %v1220 = vld [vmem:[%s165 + $0x18] sm:$0xe]
      %v1221 = vld [vmem:[%s165 + $0x24] sm:$0xe]
      %v1222 = vld [vmem:[%s165 + $0x30] sm:$0xe]
      %v1223 = vld [vmem:[%s165 + $0x3c] sm:$0xe]
      %v1224 = vld [vmem:[%s165 + $0x48] sm:$0xe]
      %v1225 = vld [vmem:[%s165 + $0x54] sm:$0xe]
      %v1226 = vld [vmem:[%s165 + $0x60] sm:$0xe]
      %v1227 = vld [vmem:[%s165 + $0x6c] sm:$0xe]
      %v1228 = vld [vmem:[%s165 + $0x78] sm:$0xe]
      %v1229 = vld [vmem:[%s165 + $0x84] sm:$0xe]
      %v1230 = vld [vmem:[%s165 + $0x90] sm:$0xe]
      %v1231 = vld [vmem:[%s165 + $0x9c] sm:$0xe]
      %v1232 = vld [vmem:[%s165 + $0xa8] sm:$0xe]
      %v1233 = vld [vmem:[%s165 + $0xb4] sm:$0xe]
      %vm1266 = vcmask 1042432
      %vm1267 = vcmask 1046532
      %vm1268 = vmor %vm1266, %vm1267
      %v1269 = vrot.slane %v1218, 5
      %v1270 = vrot.slane %v1269, 4
      %v1271 = vrot.slane %v173, 5
      %v1272 = vsel %vm1268, %v1270, %v1271
      %v1273 = vrot.slane %v1271, 4
      %v1274 = vrot.slane %v220, 5
      %v1275 = vsel %vm1268, %v1273, %v1274
      %v1276 = vrot.slane %v1219, 5
      %v1277 = vrot.slane %v1276, 4
      %v1278 = vrot.slane %v175, 5
      %v1279 = vsel %vm1268, %v1277, %v1278
      %v1280 = vrot.slane %v1278, 4
      %v1281 = vrot.slane %v221, 5
      %v1282 = vsel %vm1268, %v1280, %v1281
      %v1283 = vrot.slane %v1220, 5
      %v1284 = vrot.slane %v1283, 4
      %v1285 = vrot.slane %v177, 5
      %v1286 = vsel %vm1268, %v1284, %v1285
      %v1287 = vrot.slane %v1285, 4
      %v1288 = vrot.slane %v222, 5
      %v1289 = vsel %vm1268, %v1287, %v1288
      %v1290 = vrot.slane %v1221, 5
      %v1291 = vrot.slane %v1290, 4
      %v1292 = vrot.slane %v179, 5
      %v1293 = vsel %vm1268, %v1291, %v1292
      %v1294 = vrot.slane %v1292, 4
      %v1295 = vrot.slane %v223, 5
      %v1296 = vsel %vm1268, %v1294, %v1295
      %v1297 = vrot.slane %v1222, 5
      %v1298 = vrot.slane %v1297, 4
      %v1299 = vrot.slane %v181, 5
      %v1300 = vsel %vm1268, %v1298, %v1299
      %v1301 = vrot.slane %v1299, 4
      %v1302 = vrot.slane %v224, 5
      %v1303 = vsel %vm1268, %v1301, %v1302
      %v1304 = vrot.slane %v1223, 5
      %v1305 = vrot.slane %v1304, 4
      %v1306 = vrot.slane %v183, 5
      %v1307 = vsel %vm1268, %v1305, %v1306
      %v1308 = vrot.slane %v1306, 4
      %v1309 = vrot.slane %v225, 5
      %v1310 = vsel %vm1268, %v1308, %v1309
      %v1311 = vrot.slane %v1224, 5
      %v1312 = vrot.slane %v1311, 4
      %v1313 = vrot.slane %v185, 5
      %v1314 = vsel %vm1268, %v1312, %v1313
      %v1315 = vrot.slane %v1313, 4
      %v1316 = vrot.slane %v226, 5
      %v1317 = vsel %vm1268, %v1315, %v1316
      %v1318 = vrot.slane %v1225, 5
      %v1319 = vrot.slane %v1318, 4
      %v1320 = vrot.slane %v187, 5
      %v1321 = vsel %vm1268, %v1319, %v1320
      %v1322 = vrot.slane %v1320, 4
      %v1323 = vrot.slane %v227, 5
      %v1324 = vsel %vm1268, %v1322, %v1323
      %v1325 = vrot.slane %v1226, 5
      %v1326 = vrot.slane %v1325, 4
      %v1327 = vrot.slane %v189, 5
      %v1328 = vsel %vm1268, %v1326, %v1327
      %v1329 = vrot.slane %v1327, 4
      %v1330 = vrot.slane %v228, 5
      %v1331 = vsel %vm1268, %v1329, %v1330
      %v1332 = vrot.slane %v1227, 5
      %v1333 = vrot.slane %v1332, 4
      %v1334 = vrot.slane %v191, 5
      %v1335 = vsel %vm1268, %v1333, %v1334
      %v1336 = vrot.slane %v1334, 4
      %v1337 = vrot.slane %v229, 5
      %v1338 = vsel %vm1268, %v1336, %v1337
      %v1339 = vrot.slane %v1228, 5
      %v1340 = vrot.slane %v1339, 4
      %v1341 = vrot.slane %v193, 5
      %v1342 = vsel %vm1268, %v1340, %v1341
      %v1343 = vrot.slane %v1341, 4
      %v1344 = vrot.slane %v230, 5
      %v1345 = vsel %vm1268, %v1343, %v1344
      %v1346 = vrot.slane %v1229, 5
      %v1347 = vrot.slane %v1346, 4
      %v1348 = vrot.slane %v195, 5
      %v1349 = vsel %vm1268, %v1347, %v1348
      %v1350 = vrot.slane %v1348, 4
      %v1351 = vrot.slane %v231, 5
      %v1352 = vsel %vm1268, %v1350, %v1351
      %v1353 = vrot.slane %v1230, 5
      %v1354 = vrot.slane %v1353, 4
      %v1355 = vrot.slane %v197, 5
      %v1356 = vsel %vm1268, %v1354, %v1355
      %v1357 = vrot.slane %v1355, 4
      %v1358 = vrot.slane %v232, 5
      %v1359 = vsel %vm1268, %v1357, %v1358
      %v1360 = vrot.slane %v1231, 5
      %v1361 = vrot.slane %v1360, 4
      %v1362 = vrot.slane %v199, 5
      %v1363 = vsel %vm1268, %v1361, %v1362
      %v1364 = vrot.slane %v1362, 4
      %v1365 = vrot.slane %v233, 5
      %v1366 = vsel %vm1268, %v1364, %v1365
      %v1367 = vrot.slane %v1232, 5
      %v1368 = vrot.slane %v1367, 4
      %v1369 = vrot.slane %v201, 5
      %v1370 = vsel %vm1268, %v1368, %v1369
      %v1371 = vrot.slane %v1369, 4
      %v1372 = vrot.slane %v234, 5
      %v1373 = vsel %vm1268, %v1371, %v1372
      %v1374 = vrot.slane %v1233, 5
      %v1375 = vrot.slane %v1374, 4
      %v1376 = vrot.slane %v203, 5
      %v1377 = vsel %vm1268, %v1375, %v1376
      %v1378 = vrot.slane %v1376, 4
      %v1379 = vrot.slane %v235, 5
      %v1380 = vsel %vm1268, %v1378, %v1379
      %s1381 = scalar_lea.vmem %s1, 128
      %v1382 = vld [vmem:[%s1381] sm:$0xf]
      %v1383 = vld [vmem:[%s1381 + $0x4] sm:$0xf]
      %v1384 = vld [vmem:[%s1381 + $0x8] sm:$0xf]
      %v1385 = vld [vmem:[%s1381 + $0xc] sm:$0xf]
      %v1386 = vld [vmem:[%s1381 + $0x10] sm:$0xf]
      %v1387 = vld [vmem:[%s1381 + $0x14] sm:$0xf]
      %v1388 = vld [vmem:[%s1381 + $0x18] sm:$0xf]
      %v1389 = vld [vmem:[%s1381 + $0x1c] sm:$0xf]
      %v1390 = vld [vmem:[%s1381 + $0x20] sm:$0xf]
      %v1391 = vld [vmem:[%s1381 + $0x24] sm:$0xf]
      %v1392 = vld [vmem:[%s1381 + $0x28] sm:$0xf]
      %v1393 = vld [vmem:[%s1381 + $0x2c] sm:$0xf]
      %v1394 = vld [vmem:[%s1381 + $0x30] sm:$0xf]
      %v1395 = vld [vmem:[%s1381 + $0x34] sm:$0xf]
      %v1396 = vld [vmem:[%s1381 + $0x38] sm:$0xf]
      %v1397 = vld [vmem:[%s1381 + $0x3c] sm:$0xf]
      %v1398 = vunpack.c.l.b16 %v1272
      %v1399 = vunpack.c.l.b16 %v1275
      %v1400 = vunpack.c.l.b16 %v1279
      %v1401 = vunpack.c.l.b16 %v1282
      %v1402 = vunpack.c.l.b16 %v1286
      %v1403 = vunpack.c.l.b16 %v1289
      %v1404 = vunpack.c.l.b16 %v1293
      %v1405 = vunpack.c.l.b16 %v1296
      %v1406 = vunpack.c.l.b16 %v1300
      %v1407 = vunpack.c.l.b16 %v1303
      %v1408 = vunpack.c.l.b16 %v1307
      %v1409 = vunpack.c.l.b16 %v1310
      %v1410 = vunpack.c.l.b16 %v1314
      %v1411 = vunpack.c.l.b16 %v1317
      %v1412 = vunpack.c.l.b16 %v1321
      %v1413 = vunpack.c.l.b16 %v1324
      %v1414 = vunpack.c.l.b16 %v1328
      %v1415 = vunpack.c.l.b16 %v1331
      %v1416 = vunpack.c.l.b16 %v1335
      %v1417 = vunpack.c.l.b16 %v1338
      %v1418 = vunpack.c.l.b16 %v1342
      %v1419 = vunpack.c.l.b16 %v1345
      %v1420 = vunpack.c.l.b16 %v1349
      %v1421 = vunpack.c.l.b16 %v1352
      %v1422 = vunpack.c.l.b16 %v1356
      %v1423 = vunpack.c.l.b16 %v1359
      %v1424 = vunpack.c.l.b16 %v1363
      %v1425 = vunpack.c.l.b16 %v1366
      %v1426 = vunpack.c.l.b16 %v1370
      %v1427 = vunpack.c.l.b16 %v1373
      %v1428 = vunpack.c.l.b16 %v1377
      %v1429 = vunpack.c.l.b16 %v1380
      %v1430 = vpack.c.b16 %v1399, %v1398
      %v1431 = vpack.c.b16 %v1401, %v1400
      %v1432 = vpack.c.b16 %v1403, %v1402
      %v1433 = vpack.c.b16 %v1405, %v1404
      %v1434 = vpack.c.b16 %v1407, %v1406
      %v1435 = vpack.c.b16 %v1409, %v1408
      %v1436 = vpack.c.b16 %v1411, %v1410
      %v1437 = vpack.c.b16 %v1413, %v1412
      %v1438 = vpack.c.b16 %v1415, %v1414
      %v1439 = vpack.c.b16 %v1417, %v1416
      %v1440 = vpack.c.b16 %v1419, %v1418
      %v1441 = vpack.c.b16 %v1421, %v1420
      %v1442 = vpack.c.b16 %v1423, %v1422
      %v1443 = vpack.c.b16 %v1425, %v1424
      %v1444 = vpack.c.b16 %v1427, %v1426
      %v1445 = vpack.c.b16 %v1429, %v1428
      %v1478 = vunpack.c.l.b16 %v1382
      %v1479 = vunpack.c.l.b16 %v1383
      %v1480 = vunpack.c.l.b16 %v1384
      %v1481 = vunpack.c.l.b16 %v1385
      %v1482 = vunpack.c.l.b16 %v1386
      %v1483 = vunpack.c.l.b16 %v1387
      %v1484 = vunpack.c.l.b16 %v1388
      %v1485 = vunpack.c.l.b16 %v1389
      %v1486 = vunpack.c.l.b16 %v1390
      %v1487 = vunpack.c.l.b16 %v1391
      %v1488 = vunpack.c.l.b16 %v1392
      %v1489 = vunpack.c.l.b16 %v1393
      %v1490 = vunpack.c.l.b16 %v1394
      %v1491 = vunpack.c.l.b16 %v1395
      %v1492 = vunpack.c.l.b16 %v1396
      %v1493 = vunpack.c.l.b16 %v1397
      %v1494 = vpack.c.b16 %v1479, %v1478
      %v1495 = vpack.c.b16 %v1481, %v1480
      %v1496 = vpack.c.b16 %v1483, %v1482
      %v1497 = vpack.c.b16 %v1485, %v1484
      %v1498 = vpack.c.b16 %v1487, %v1486
      %v1499 = vpack.c.b16 %v1489, %v1488
      %v1500 = vpack.c.b16 %v1491, %v1490
      %v1501 = vpack.c.b16 %v1493, %v1492
      %1510 = vmatprep.subr.bf16.mxu0 0
      %1511 = vmatpush1.bf16.msra.mxu0 %v1501
      %1512 = vmatprep.subr.bf16.mxu0 0
      %1513 = vmatpush1.bf16.msra.mxu0 %v1500
      %1514 = vmatprep.subr.bf16.mxu0 0
      %1515 = vmatpush1.bf16.msra.mxu0 %v1499
      %1516 = vmatprep.subr.bf16.mxu0 0
      %1517 = vmatpush1.bf16.msra.mxu0 %v1498
      %1518 = vmatprep.subr.bf16.mxu0 0
      %1519 = vmatpush1.bf16.msra.mxu0 %v1497
      %1520 = vmatprep.subr.bf16.mxu0 0
      %1521 = vmatpush1.bf16.msra.mxu0 %v1496
      %1522 = vmatprep.subr.bf16.mxu0 0
      %1523 = vmatpush1.bf16.msra.mxu0 %v1495
      %1524 = vmatprep.subr.bf16.mxu0 0
      %1525 = vmatpush1.bf16.msra.mxu0 %v1494
      %1526 = vmatprep.subr.bf16.mxu0 0
      %1527 = vmatpush2.bf16.msra.mxu0 0
      %1528 = vmatprep.subr.bf16.mxu0 0
      %1529 = vmatpush2.bf16.msra.mxu0 0
      %1530 = vmatprep.subr.bf16.mxu0 0
      %1531 = vmatpush2.bf16.msra.mxu0 0
      %1532 = vmatprep.subr.bf16.mxu0 0
      %1533 = vmatpush2.bf16.msra.mxu0 0
      %1534 = vmatprep.subr.bf16.mxu0 0
      %1535 = vmatpush2.bf16.msra.mxu0 0
      %1536 = vmatprep.subr.bf16.mxu0 0
      %1537 = vmatpush2.bf16.msra.mxu0 0
      %1538 = vmatprep.subr.bf16.mxu0 0
      %1539 = vmatpush2.bf16.msra.mxu0 0
      %1540 = vmatprep.subr.bf16.mxu0 0
      %1541 = vmatpush2.bf16.msra.mxu0 0
      %1542 = vmatprep.mubr.bf16.mxu0 0
      %1543 = vmatmul.mubr.bf16.gmra.mxu0 %v1430
      %v1544 = vpop.f32.mrf.mxu0
      %v1545 = vadd.f32 0.0, %v1544
      %v1546 = vpop.f32.mrf.mxu0
      %v1547 = vpop.f32.mrf.mxu0
      %v1548 = vadd.f32 0.0, %v1547
      %v1549 = vpop.f32.mrf.mxu0
      %1550 = vmatprep.mubr.bf16.mxu0 0
      %1551 = vmatmul.mubr.bf16.gmra.mxu0 %v1431
      %v1552 = vpop.f32.mrf.mxu0
      %v1553 = vadd.f32 0.0, %v1552
      %v1554 = vpop.f32.mrf.mxu0
      %v1555 = vpop.f32.mrf.mxu0
      %v1556 = vadd.f32 0.0, %v1555
      %v1557 = vpop.f32.mrf.mxu0
      %1558 = vmatprep.mubr.bf16.mxu0 0
      %1559 = vmatmul.mubr.bf16.gmra.mxu0 %v1432
      %v1560 = vpop.f32.mrf.mxu0
      %v1561 = vadd.f32 0.0, %v1560
      %v1562 = vpop.f32.mrf.mxu0
      %v1563 = vpop.f32.mrf.mxu0
      %v1564 = vadd.f32 0.0, %v1563
      %v1565 = vpop.f32.mrf.mxu0
      %1566 = vmatprep.mubr.bf16.mxu0 0
      %1567 = vmatmul.mubr.bf16.gmra.mxu0 %v1433
      %v1568 = vpop.f32.mrf.mxu0
      %v1569 = vadd.f32 0.0, %v1568
      %v1570 = vpop.f32.mrf.mxu0
      %v1571 = vpop.f32.mrf.mxu0
      %v1572 = vadd.f32 0.0, %v1571
      %v1573 = vpop.f32.mrf.mxu0
      %1574 = vmatprep.mubr.bf16.mxu0 0
      %1575 = vmatmul.mubr.bf16.gmra.mxu0 %v1434
      %v1576 = vpop.f32.mrf.mxu0
      %v1577 = vadd.f32 0.0, %v1576
      %v1578 = vpop.f32.mrf.mxu0
      %v1579 = vpop.f32.mrf.mxu0
      %v1580 = vadd.f32 0.0, %v1579
      %v1581 = vpop.f32.mrf.mxu0
      %1582 = vmatprep.mubr.bf16.mxu0 0
      %1583 = vmatmul.mubr.bf16.gmra.mxu0 %v1435
      %v1584 = vpop.f32.mrf.mxu0
      %v1585 = vadd.f32 0.0, %v1584
      %v1586 = vpop.f32.mrf.mxu0
      %v1587 = vpop.f32.mrf.mxu0
      %v1588 = vadd.f32 0.0, %v1587
      %v1589 = vpop.f32.mrf.mxu0
      %1590 = vmatprep.mubr.bf16.mxu0 0
      %1591 = vmatmul.mubr.bf16.gmra.mxu0 %v1436
      %v1592 = vpop.f32.mrf.mxu0
      %v1593 = vadd.f32 0.0, %v1592
      %v1594 = vpop.f32.mrf.mxu0
      %v1595 = vpop.f32.mrf.mxu0
      %v1596 = vadd.f32 0.0, %v1595
      %v1597 = vpop.f32.mrf.mxu0
      %1598 = vmatprep.mubr.bf16.mxu0 0
      %1599 = vmatmul.mubr.bf16.gmra.mxu0 %v1437
      %v1600 = vpop.f32.mrf.mxu0
      %v1601 = vadd.f32 0.0, %v1600
      %v1602 = vpop.f32.mrf.mxu0
      %v1603 = vpop.f32.mrf.mxu0
      %v1604 = vadd.f32 0.0, %v1603
      %v1605 = vpop.f32.mrf.mxu0
      %1606 = vmatprep.mubr.bf16.mxu0 0
      %1607 = vmatmul.mubr.bf16.gmra.mxu0 %v1438
      %v1608 = vpop.f32.mrf.mxu0
      %v1609 = vadd.f32 0.0, %v1608
      %v1610 = vpop.f32.mrf.mxu0
      %v1611 = vpop.f32.mrf.mxu0
      %v1612 = vadd.f32 0.0, %v1611
      %v1613 = vpop.f32.mrf.mxu0
      %1614 = vmatprep.mubr.bf16.mxu0 0
      %1615 = vmatmul.mubr.bf16.gmra.mxu0 %v1439
      %v1616 = vpop.f32.mrf.mxu0
      %v1617 = vadd.f32 0.0, %v1616
      %v1618 = vpop.f32.mrf.mxu0
      %v1619 = vpop.f32.mrf.mxu0
      %v1620 = vadd.f32 0.0, %v1619
      %v1621 = vpop.f32.mrf.mxu0
      %1622 = vmatprep.mubr.bf16.mxu0 0
      %1623 = vmatmul.mubr.bf16.gmra.mxu0 %v1440
      %v1624 = vpop.f32.mrf.mxu0
      %v1625 = vadd.f32 0.0, %v1624
      %v1626 = vpop.f32.mrf.mxu0
      %v1627 = vpop.f32.mrf.mxu0
      %v1628 = vadd.f32 0.0, %v1627
      %v1629 = vpop.f32.mrf.mxu0
      %1630 = vmatprep.mubr.bf16.mxu0 0
      %1631 = vmatmul.mubr.bf16.gmra.mxu0 %v1441
      %v1632 = vpop.f32.mrf.mxu0
      %v1633 = vadd.f32 0.0, %v1632
      %v1634 = vpop.f32.mrf.mxu0
      %v1635 = vpop.f32.mrf.mxu0
      %v1636 = vadd.f32 0.0, %v1635
      %v1637 = vpop.f32.mrf.mxu0
      %1638 = vmatprep.mubr.bf16.mxu0 0
      %1639 = vmatmul.mubr.bf16.gmra.mxu0 %v1442
      %v1640 = vpop.f32.mrf.mxu0
      %v1641 = vadd.f32 0.0, %v1640
      %v1642 = vpop.f32.mrf.mxu0
      %v1643 = vpop.f32.mrf.mxu0
      %v1644 = vadd.f32 0.0, %v1643
      %v1645 = vpop.f32.mrf.mxu0
      %1646 = vmatprep.mubr.bf16.mxu0 0
      %1647 = vmatmul.mubr.bf16.gmra.mxu0 %v1443
      %v1648 = vpop.f32.mrf.mxu0
      %v1649 = vadd.f32 0.0, %v1648
      %v1650 = vpop.f32.mrf.mxu0
      %v1651 = vpop.f32.mrf.mxu0
      %v1652 = vadd.f32 0.0, %v1651
      %v1653 = vpop.f32.mrf.mxu0
      %1654 = vmatprep.mubr.bf16.mxu0 0
      %1655 = vmatmul.mubr.bf16.gmra.mxu0 %v1444
      %v1656 = vpop.f32.mrf.mxu0
      %v1657 = vadd.f32 0.0, %v1656
      %v1658 = vpop.f32.mrf.mxu0
      %v1659 = vpop.f32.mrf.mxu0
      %v1660 = vadd.f32 0.0, %v1659
      %v1661 = vpop.f32.mrf.mxu0
      %1662 = vmatprep.mubr.bf16.mxu0 0
      %1663 = vmatmul.mubr.bf16.gmra.mxu0 %v1445
      %v1664 = vpop.f32.mrf.mxu0
      %v1665 = vadd.f32 0.0, %v1664
      %v1666 = vpop.f32.mrf.mxu0
      %v1667 = vpop.f32.mrf.mxu0
      %v1668 = vadd.f32 0.0, %v1667
      %v1669 = vpop.f32.mrf.mxu0
      %1670 = vdwg.mxu0
      %v1671 = vadd.f32 %v1092, %v1545
      %v1672 = vadd.f32 %v1095, %v1548
      %v1673 = vadd.f32 %v1100, %v1553
      %v1674 = vadd.f32 %v1103, %v1556
      %v1675 = vadd.f32 %v1108, %v1561
      %v1676 = vadd.f32 %v1111, %v1564
      %v1677 = vadd.f32 %v1116, %v1569
      %v1678 = vadd.f32 %v1119, %v1572
      %v1679 = vadd.f32 %v1124, %v1577
      %v1680 = vadd.f32 %v1127, %v1580
      %v1681 = vadd.f32 %v1132, %v1585
      %v1682 = vadd.f32 %v1135, %v1588
      %v1683 = vadd.f32 %v1140, %v1593
      %v1684 = vadd.f32 %v1143, %v1596
      %v1685 = vadd.f32 %v1148, %v1601
      %v1686 = vadd.f32 %v1151, %v1604
      %v1687 = vadd.f32 %v1156, %v1609
      %v1688 = vadd.f32 %v1159, %v1612
      %v1689 = vadd.f32 %v1164, %v1617
      %v1690 = vadd.f32 %v1167, %v1620
      %v1691 = vadd.f32 %v1172, %v1625
      %v1692 = vadd.f32 %v1175, %v1628
      %v1693 = vadd.f32 %v1180, %v1633
      %v1694 = vadd.f32 %v1183, %v1636
      %v1695 = vadd.f32 %v1188, %v1641
      %v1696 = vadd.f32 %v1191, %v1644
      %v1697 = vadd.f32 %v1196, %v1649
      %v1698 = vadd.f32 %v1199, %v1652
      %v1699 = vadd.f32 %v1204, %v1657
      %v1700 = vadd.f32 %v1207, %v1660
      %v1701 = vadd.f32 %v1212, %v1665
      %v1702 = vadd.f32 %v1215, %v1668
      %s1703 = scalar_lea.vmem %s165, 12
      %v1704 = vld [vmem:[%s1703] sm:$0xf]
      %v1705 = vld [vmem:[%s1703 + $0x4] sm:$0xf]
      %v1706 = vld [vmem:[%s1703 + $0xc] sm:$0xf]
      %v1707 = vld [vmem:[%s1703 + $0x10] sm:$0xf]
      %v1708 = vld [vmem:[%s1703 + $0x18] sm:$0xf]
      %v1709 = vld [vmem:[%s1703 + $0x1c] sm:$0xf]
      %v1710 = vld [vmem:[%s1703 + $0x24] sm:$0xf]
      %v1711 = vld [vmem:[%s1703 + $0x28] sm:$0xf]
      %v1712 = vld [vmem:[%s1703 + $0x30] sm:$0xf]
      %v1713 = vld [vmem:[%s1703 + $0x34] sm:$0xf]
      %v1714 = vld [vmem:[%s1703 + $0x3c] sm:$0xf]
      %v1715 = vld [vmem:[%s1703 + $0x40] sm:$0xf]
      %v1716 = vld [vmem:[%s1703 + $0x48] sm:$0xf]
      %v1717 = vld [vmem:[%s1703 + $0x4c] sm:$0xf]
      %v1718 = vld [vmem:[%s1703 + $0x54] sm:$0xf]
      %v1719 = vld [vmem:[%s1703 + $0x58] sm:$0xf]
      %v1720 = vld [vmem:[%s1703 + $0x60] sm:$0xf]
      %v1721 = vld [vmem:[%s1703 + $0x64] sm:$0xf]
      %v1722 = vld [vmem:[%s1703 + $0x6c] sm:$0xf]
      %v1723 = vld [vmem:[%s1703 + $0x70] sm:$0xf]
      %v1724 = vld [vmem:[%s1703 + $0x78] sm:$0xf]
      %v1725 = vld [vmem:[%s1703 + $0x7c] sm:$0xf]
      %v1726 = vld [vmem:[%s1703 + $0x84] sm:$0xf]
      %v1727 = vld [vmem:[%s1703 + $0x88] sm:$0xf]
      %v1728 = vld [vmem:[%s1703 + $0x90] sm:$0xf]
      %v1729 = vld [vmem:[%s1703 + $0x94] sm:$0xf]
      %v1730 = vld [vmem:[%s1703 + $0x9c] sm:$0xf]
      %v1731 = vld [vmem:[%s1703 + $0xa0] sm:$0xf]
      %v1732 = vld [vmem:[%s1703 + $0xa8] sm:$0xf]
      %v1733 = vld [vmem:[%s1703 + $0xac] sm:$0xf]
      %v1734 = vld [vmem:[%s1703 + $0xb4] sm:$0xf]
      %v1735 = vld [vmem:[%s1703 + $0xb8] sm:$0xf]
      %s1736 = scalar_lea.vmem %s1, 192
      %v1737 = vld [vmem:[%s1736] sm:$0xf]
      %v1738 = vld [vmem:[%s1736 + $0x4] sm:$0xf]
      %v1739 = vld [vmem:[%s1736 + $0x8] sm:$0xf]
      %v1740 = vld [vmem:[%s1736 + $0xc] sm:$0xf]
      %v1741 = vld [vmem:[%s1736 + $0x10] sm:$0xf]
      %v1742 = vld [vmem:[%s1736 + $0x14] sm:$0xf]
      %v1743 = vld [vmem:[%s1736 + $0x18] sm:$0xf]
      %v1744 = vld [vmem:[%s1736 + $0x1c] sm:$0xf]
      %v1745 = vld [vmem:[%s1736 + $0x20] sm:$0xf]
      %v1746 = vld [vmem:[%s1736 + $0x24] sm:$0xf]
      %v1747 = vld [vmem:[%s1736 + $0x28] sm:$0xf]
      %v1748 = vld [vmem:[%s1736 + $0x2c] sm:$0xf]
      %v1749 = vld [vmem:[%s1736 + $0x30] sm:$0xf]
      %v1750 = vld [vmem:[%s1736 + $0x34] sm:$0xf]
      %v1751 = vld [vmem:[%s1736 + $0x38] sm:$0xf]
      %v1752 = vld [vmem:[%s1736 + $0x3c] sm:$0xf]
      %v1785 = vunpack.c.l.b16 %v1704
      %v1786 = vunpack.c.l.b16 %v1705
      %v1787 = vunpack.c.l.b16 %v1706
      %v1788 = vunpack.c.l.b16 %v1707
      %v1789 = vunpack.c.l.b16 %v1708
      %v1790 = vunpack.c.l.b16 %v1709
      %v1791 = vunpack.c.l.b16 %v1710
      %v1792 = vunpack.c.l.b16 %v1711
      %v1793 = vunpack.c.l.b16 %v1712
      %v1794 = vunpack.c.l.b16 %v1713
      %v1795 = vunpack.c.l.b16 %v1714
      %v1796 = vunpack.c.l.b16 %v1715
      %v1797 = vunpack.c.l.b16 %v1716
      %v1798 = vunpack.c.l.b16 %v1717
      %v1799 = vunpack.c.l.b16 %v1718
      %v1800 = vunpack.c.l.b16 %v1719
      %v1801 = vunpack.c.l.b16 %v1720
      %v1802 = vunpack.c.l.b16 %v1721
      %v1803 = vunpack.c.l.b16 %v1722
      %v1804 = vunpack.c.l.b16 %v1723
      %v1805 = vunpack.c.l.b16 %v1724
      %v1806 = vunpack.c.l.b16 %v1725
      %v1807 = vunpack.c.l.b16 %v1726
      %v1808 = vunpack.c.l.b16 %v1727
      %v1809 = vunpack.c.l.b16 %v1728
      %v1810 = vunpack.c.l.b16 %v1729
      %v1811 = vunpack.c.l.b16 %v1730
      %v1812 = vunpack.c.l.b16 %v1731
      %v1813 = vunpack.c.l.b16 %v1732
      %v1814 = vunpack.c.l.b16 %v1733
      %v1815 = vunpack.c.l.b16 %v1734
      %v1816 = vunpack.c.l.b16 %v1735
      %v1817 = vpack.c.b16 %v1786, %v1785
      %v1818 = vpack.c.b16 %v1788, %v1787
      %v1819 = vpack.c.b16 %v1790, %v1789
      %v1820 = vpack.c.b16 %v1792, %v1791
      %v1821 = vpack.c.b16 %v1794, %v1793
      %v1822 = vpack.c.b16 %v1796, %v1795
      %v1823 = vpack.c.b16 %v1798, %v1797
      %v1824 = vpack.c.b16 %v1800, %v1799
      %v1825 = vpack.c.b16 %v1802, %v1801
      %v1826 = vpack.c.b16 %v1804, %v1803
      %v1827 = vpack.c.b16 %v1806, %v1805
      %v1828 = vpack.c.b16 %v1808, %v1807
      %v1829 = vpack.c.b16 %v1810, %v1809
      %v1830 = vpack.c.b16 %v1812, %v1811
      %v1831 = vpack.c.b16 %v1814, %v1813
      %v1832 = vpack.c.b16 %v1816, %v1815
      %v1865 = vunpack.c.l.b16 %v1737
      %v1866 = vunpack.c.l.b16 %v1738
      %v1867 = vunpack.c.l.b16 %v1739
      %v1868 = vunpack.c.l.b16 %v1740
      %v1869 = vunpack.c.l.b16 %v1741
      %v1870 = vunpack.c.l.b16 %v1742
      %v1871 = vunpack.c.l.b16 %v1743
      %v1872 = vunpack.c.l.b16 %v1744
      %v1873 = vunpack.c.l.b16 %v1745
      %v1874 = vunpack.c.l.b16 %v1746
      %v1875 = vunpack.c.l.b16 %v1747
      %v1876 = vunpack.c.l.b16 %v1748
      %v1877 = vunpack.c.l.b16 %v1749
      %v1878 = vunpack.c.l.b16 %v1750
      %v1879 = vunpack.c.l.b16 %v1751
      %v1880 = vunpack.c.l.b16 %v1752
      %v1881 = vpack.c.b16 %v1866, %v1865
      %v1882 = vpack.c.b16 %v1868, %v1867
      %v1883 = vpack.c.b16 %v1870, %v1869
      %v1884 = vpack.c.b16 %v1872, %v1871
      %v1885 = vpack.c.b16 %v1874, %v1873
      %v1886 = vpack.c.b16 %v1876, %v1875
      %v1887 = vpack.c.b16 %v1878, %v1877
      %v1888 = vpack.c.b16 %v1880, %v1879
      %1897 = vmatprep.subr.bf16.mxu0 0
      %1898 = vmatpush1.bf16.msra.mxu0 %v1888
      %1899 = vmatprep.subr.bf16.mxu0 0
      %1900 = vmatpush1.bf16.msra.mxu0 %v1887
      %1901 = vmatprep.subr.bf16.mxu0 0
      %1902 = vmatpush1.bf16.msra.mxu0 %v1886
      %1903 = vmatprep.subr.bf16.mxu0 0
      %1904 = vmatpush1.bf16.msra.mxu0 %v1885
      %1905 = vmatprep.subr.bf16.mxu0 0
      %1906 = vmatpush1.bf16.msra.mxu0 %v1884
      %1907 = vmatprep.subr.bf16.mxu0 0
      %1908 = vmatpush1.bf16.msra.mxu0 %v1883
      %1909 = vmatprep.subr.bf16.mxu0 0
      %1910 = vmatpush1.bf16.msra.mxu0 %v1882
      %1911 = vmatprep.subr.bf16.mxu0 0
      %1912 = vmatpush1.bf16.msra.mxu0 %v1881
      %1913 = vmatprep.subr.bf16.mxu0 0
      %1914 = vmatpush2.bf16.msra.mxu0 0
      %1915 = vmatprep.subr.bf16.mxu0 0
      %1916 = vmatpush2.bf16.msra.mxu0 0
      %1917 = vmatprep.subr.bf16.mxu0 0
      %1918 = vmatpush2.bf16.msra.mxu0 0
      %1919 = vmatprep.subr.bf16.mxu0 0
      %1920 = vmatpush2.bf16.msra.mxu0 0
      %1921 = vmatprep.subr.bf16.mxu0 0
      %1922 = vmatpush2.bf16.msra.mxu0 0
      %1923 = vmatprep.subr.bf16.mxu0 0
      %1924 = vmatpush2.bf16.msra.mxu0 0
      %1925 = vmatprep.subr.bf16.mxu0 0
      %1926 = vmatpush2.bf16.msra.mxu0 0
      %1927 = vmatprep.subr.bf16.mxu0 0
      %1928 = vmatpush2.bf16.msra.mxu0 0
      %1929 = vmatprep.mubr.bf16.mxu0 0
      %1930 = vmatmul.mubr.bf16.gmra.mxu0 %v1817
      %v1931 = vpop.f32.mrf.mxu0
      %v1932 = vadd.f32 0.0, %v1931
      %v1933 = vpop.f32.mrf.mxu0
      %v1934 = vpop.f32.mrf.mxu0
      %v1935 = vadd.f32 0.0, %v1934
      %v1936 = vpop.f32.mrf.mxu0
      %1937 = vmatprep.mubr.bf16.mxu0 0
      %1938 = vmatmul.mubr.bf16.gmra.mxu0 %v1818
      %v1939 = vpop.f32.mrf.mxu0
      %v1940 = vadd.f32 0.0, %v1939
      %v1941 = vpop.f32.mrf.mxu0
      %v1942 = vpop.f32.mrf.mxu0
      %v1943 = vadd.f32 0.0, %v1942
      %v1944 = vpop.f32.mrf.mxu0
      %1945 = vmatprep.mubr.bf16.mxu0 0
      %1946 = vmatmul.mubr.bf16.gmra.mxu0 %v1819
      %v1947 = vpop.f32.mrf.mxu0
      %v1948 = vadd.f32 0.0, %v1947
      %v1949 = vpop.f32.mrf.mxu0
      %v1950 = vpop.f32.mrf.mxu0
      %v1951 = vadd.f32 0.0, %v1950
      %v1952 = vpop.f32.mrf.mxu0
      %1953 = vmatprep.mubr.bf16.mxu0 0
      %1954 = vmatmul.mubr.bf16.gmra.mxu0 %v1820
      %v1955 = vpop.f32.mrf.mxu0
      %v1956 = vadd.f32 0.0, %v1955
      %v1957 = vpop.f32.mrf.mxu0
      %v1958 = vpop.f32.mrf.mxu0
      %v1959 = vadd.f32 0.0, %v1958
      %v1960 = vpop.f32.mrf.mxu0
      %1961 = vmatprep.mubr.bf16.mxu0 0
      %1962 = vmatmul.mubr.bf16.gmra.mxu0 %v1821
      %v1963 = vpop.f32.mrf.mxu0
      %v1964 = vadd.f32 0.0, %v1963
      %v1965 = vpop.f32.mrf.mxu0
      %v1966 = vpop.f32.mrf.mxu0
      %v1967 = vadd.f32 0.0, %v1966
      %v1968 = vpop.f32.mrf.mxu0
      %1969 = vmatprep.mubr.bf16.mxu0 0
      %1970 = vmatmul.mubr.bf16.gmra.mxu0 %v1822
      %v1971 = vpop.f32.mrf.mxu0
      %v1972 = vadd.f32 0.0, %v1971
      %v1973 = vpop.f32.mrf.mxu0
      %v1974 = vpop.f32.mrf.mxu0
      %v1975 = vadd.f32 0.0, %v1974
      %v1976 = vpop.f32.mrf.mxu0
      %1977 = vmatprep.mubr.bf16.mxu0 0
      %1978 = vmatmul.mubr.bf16.gmra.mxu0 %v1823
      %v1979 = vpop.f32.mrf.mxu0
      %v1980 = vadd.f32 0.0, %v1979
      %v1981 = vpop.f32.mrf.mxu0
      %v1982 = vpop.f32.mrf.mxu0
      %v1983 = vadd.f32 0.0, %v1982
      %v1984 = vpop.f32.mrf.mxu0
      %1985 = vmatprep.mubr.bf16.mxu0 0
      %1986 = vmatmul.mubr.bf16.gmra.mxu0 %v1824
      %v1987 = vpop.f32.mrf.mxu0
      %v1988 = vadd.f32 0.0, %v1987
      %v1989 = vpop.f32.mrf.mxu0
      %v1990 = vpop.f32.mrf.mxu0
      %v1991 = vadd.f32 0.0, %v1990
      %v1992 = vpop.f32.mrf.mxu0
      %1993 = vmatprep.mubr.bf16.mxu0 0
      %1994 = vmatmul.mubr.bf16.gmra.mxu0 %v1825
      %v1995 = vpop.f32.mrf.mxu0
      %v1996 = vadd.f32 0.0, %v1995
      %v1997 = vpop.f32.mrf.mxu0
      %v1998 = vpop.f32.mrf.mxu0
      %v1999 = vadd.f32 0.0, %v1998
      %v2000 = vpop.f32.mrf.mxu0
      %2001 = vmatprep.mubr.bf16.mxu0 0
      %2002 = vmatmul.mubr.bf16.gmra.mxu0 %v1826
      %v2003 = vpop.f32.mrf.mxu0
      %v2004 = vadd.f32 0.0, %v2003
      %v2005 = vpop.f32.mrf.mxu0
      %v2006 = vpop.f32.mrf.mxu0
      %v2007 = vadd.f32 0.0, %v2006
      %v2008 = vpop.f32.mrf.mxu0
      %2009 = vmatprep.mubr.bf16.mxu0 0
      %2010 = vmatmul.mubr.bf16.gmra.mxu0 %v1827
      %v2011 = vpop.f32.mrf.mxu0
      %v2012 = vadd.f32 0.0, %v2011
      %v2013 = vpop.f32.mrf.mxu0
      %v2014 = vpop.f32.mrf.mxu0
      %v2015 = vadd.f32 0.0, %v2014
      %v2016 = vpop.f32.mrf.mxu0
      %2017 = vmatprep.mubr.bf16.mxu0 0
      %2018 = vmatmul.mubr.bf16.gmra.mxu0 %v1828
      %v2019 = vpop.f32.mrf.mxu0
      %v2020 = vadd.f32 0.0, %v2019
      %v2021 = vpop.f32.mrf.mxu0
      %v2022 = vpop.f32.mrf.mxu0
      %v2023 = vadd.f32 0.0, %v2022
      %v2024 = vpop.f32.mrf.mxu0
      %2025 = vmatprep.mubr.bf16.mxu0 0
      %2026 = vmatmul.mubr.bf16.gmra.mxu0 %v1829
      %v2027 = vpop.f32.mrf.mxu0
      %v2028 = vadd.f32 0.0, %v2027
      %v2029 = vpop.f32.mrf.mxu0
      %v2030 = vpop.f32.mrf.mxu0
      %v2031 = vadd.f32 0.0, %v2030
      %v2032 = vpop.f32.mrf.mxu0
      %2033 = vmatprep.mubr.bf16.mxu0 0
      %2034 = vmatmul.mubr.bf16.gmra.mxu0 %v1830
      %v2035 = vpop.f32.mrf.mxu0
      %v2036 = vadd.f32 0.0, %v2035
      %v2037 = vpop.f32.mrf.mxu0
      %v2038 = vpop.f32.mrf.mxu0
      %v2039 = vadd.f32 0.0, %v2038
      %v2040 = vpop.f32.mrf.mxu0
      %2041 = vmatprep.mubr.bf16.mxu0 0
      %2042 = vmatmul.mubr.bf16.gmra.mxu0 %v1831
      %v2043 = vpop.f32.mrf.mxu0
      %v2044 = vadd.f32 0.0, %v2043
      %v2045 = vpop.f32.mrf.mxu0
      %v2046 = vpop.f32.mrf.mxu0
      %v2047 = vadd.f32 0.0, %v2046
      %v2048 = vpop.f32.mrf.mxu0
      %2049 = vmatprep.mubr.bf16.mxu0 0
      %2050 = vmatmul.mubr.bf16.gmra.mxu0 %v1832
      %v2051 = vpop.f32.mrf.mxu0
      %v2052 = vadd.f32 0.0, %v2051
      %v2053 = vpop.f32.mrf.mxu0
      %v2054 = vpop.f32.mrf.mxu0
      %v2055 = vadd.f32 0.0, %v2054
      %v2056 = vpop.f32.mrf.mxu0
      %2057 = vdwg.mxu0
      %v2058 = vadd.f32 %v1671, %v1932
      %v2059 = vadd.f32 %v1672, %v1935
      %v2060 = vadd.f32 %v1673, %v1940
      %v2061 = vadd.f32 %v1674, %v1943
      %v2062 = vadd.f32 %v1675, %v1948
      %v2063 = vadd.f32 %v1676, %v1951
      %v2064 = vadd.f32 %v1677, %v1956
      %v2065 = vadd.f32 %v1678, %v1959
      %v2066 = vadd.f32 %v1679, %v1964
      %v2067 = vadd.f32 %v1680, %v1967
      %v2068 = vadd.f32 %v1681, %v1972
      %v2069 = vadd.f32 %v1682, %v1975
      %v2070 = vadd.f32 %v1683, %v1980
      %v2071 = vadd.f32 %v1684, %v1983
      %v2072 = vadd.f32 %v1685, %v1988
      %v2073 = vadd.f32 %v1686, %v1991
      %v2074 = vadd.f32 %v1687, %v1996
      %v2075 = vadd.f32 %v1688, %v1999
      %v2076 = vadd.f32 %v1689, %v2004
      %v2077 = vadd.f32 %v1690, %v2007
      %v2078 = vadd.f32 %v1691, %v2012
      %v2079 = vadd.f32 %v1692, %v2015
      %v2080 = vadd.f32 %v1693, %v2020
      %v2081 = vadd.f32 %v1694, %v2023
      %v2082 = vadd.f32 %v1695, %v2028
      %v2083 = vadd.f32 %v1696, %v2031
      %v2084 = vadd.f32 %v1697, %v2036
      %v2085 = vadd.f32 %v1698, %v2039
      %v2086 = vadd.f32 %v1699, %v2044
      %v2087 = vadd.f32 %v1700, %v2047
      %v2088 = vadd.f32 %v1701, %v2052
      %v2089 = vadd.f32 %v1702, %v2055
      %v2090 = vld [vmem:[%s1703] sm:$0xf]
      %v2091 = vld [vmem:[%s1703 + $0x4] sm:$0xf]
      %v2092 = vld [vmem:[%s1703 + $0x8] sm:$0x1]
      %v2093 = vld [vmem:[%s1703 + $0xc] sm:$0xf]
      %v2094 = vld [vmem:[%s1703 + $0x10] sm:$0xf]
      %v2095 = vld [vmem:[%s1703 + $0x14] sm:$0x1]
      %v2096 = vld [vmem:[%s1703 + $0x18] sm:$0xf]
      %v2097 = vld [vmem:[%s1703 + $0x1c] sm:$0xf]
      %v2098 = vld [vmem:[%s1703 + $0x20] sm:$0x1]
      %v2099 = vld [vmem:[%s1703 + $0x24] sm:$0xf]
      %v2100 = vld [vmem:[%s1703 + $0x28] sm:$0xf]
      %v2101 = vld [vmem:[%s1703 + $0x2c] sm:$0x1]
      %v2102 = vld [vmem:[%s1703 + $0x30] sm:$0xf]
      %v2103 = vld [vmem:[%s1703 + $0x34] sm:$0xf]
      %v2104 = vld [vmem:[%s1703 + $0x38] sm:$0x1]
      %v2105 = vld [vmem:[%s1703 + $0x3c] sm:$0xf]
      %v2106 = vld [vmem:[%s1703 + $0x40] sm:$0xf]
      %v2107 = vld [vmem:[%s1703 + $0x44] sm:$0x1]
      %v2108 = vld [vmem:[%s1703 + $0x48] sm:$0xf]
      %v2109 = vld [vmem:[%s1703 + $0x4c] sm:$0xf]
      %v2110 = vld [vmem:[%s1703 + $0x50] sm:$0x1]
      %v2111 = vld [vmem:[%s1703 + $0x54] sm:$0xf]
      %v2112 = vld [vmem:[%s1703 + $0x58] sm:$0xf]
      %v2113 = vld [vmem:[%s1703 + $0x5c] sm:$0x1]
      %v2114 = vld [vmem:[%s1703 + $0x60] sm:$0xf]
      %v2115 = vld [vmem:[%s1703 + $0x64] sm:$0xf]
      %v2116 = vld [vmem:[%s1703 + $0x68] sm:$0x1]
      %v2117 = vld [vmem:[%s1703 + $0x6c] sm:$0xf]
      %v2118 = vld [vmem:[%s1703 + $0x70] sm:$0xf]
      %v2119 = vld [vmem:[%s1703 + $0x74] sm:$0x1]
      %v2120 = vld [vmem:[%s1703 + $0x78] sm:$0xf]
      %v2121 = vld [vmem:[%s1703 + $0x7c] sm:$0xf]
      %v2122 = vld [vmem:[%s1703 + $0x80] sm:$0x1]
      %v2123 = vld [vmem:[%s1703 + $0x84] sm:$0xf]
      %v2124 = vld [vmem:[%s1703 + $0x88] sm:$0xf]
      %v2125 = vld [vmem:[%s1703 + $0x8c] sm:$0x1]
      %v2126 = vld [vmem:[%s1703 + $0x90] sm:$0xf]
      %v2127 = vld [vmem:[%s1703 + $0x94] sm:$0xf]
      %v2128 = vld [vmem:[%s1703 + $0x98] sm:$0x1]
      %v2129 = vld [vmem:[%s1703 + $0x9c] sm:$0xf]
      %v2130 = vld [vmem:[%s1703 + $0xa0] sm:$0xf]
      %v2131 = vld [vmem:[%s1703 + $0xa4] sm:$0x1]
      %v2132 = vld [vmem:[%s1703 + $0xa8] sm:$0xf]
      %v2133 = vld [vmem:[%s1703 + $0xac] sm:$0xf]
      %v2134 = vld [vmem:[%s1703 + $0xb0] sm:$0x1]
      %v2135 = vld [vmem:[%s1703 + $0xb4] sm:$0xf]
      %v2136 = vld [vmem:[%s1703 + $0xb8] sm:$0xf]
      %v2137 = vld [vmem:[%s1703 + $0xbc] sm:$0x1]
      %v2139 = vshrl.u32 %v2090, 16
      %v2141 = vrot.slane %v2139, 4
      %v2142 = vshll.u32 %v2090, 16
      %v2144 = vrot.slane %v2142, 5
      %v2145 = vor.u32 %v2141, %v2144
      %v2146 = vrot.slane %v2145, 4
      %v2148 = vshll.u32 %v2091, 16
      %v2150 = vrot.slane %v2148, 5
      %v2151 = vsel %vm238, %v2146, %v2150
      %v2152 = vshrl.u32 %v2091, 16
      %v2154 = vrot.slane %v2152, 4
      %v2155 = vor.u32 %v2154, %v2150
      %v2156 = vrot.slane %v2155, 4
      %v2158 = vshll.u32 %v2092, 16
      %v2160 = vrot.slane %v2158, 5
      %v2161 = vsel %vm238, %v2156, %v2160
      %v2163 = vshrl.u32 %v2093, 16
      %v2165 = vrot.slane %v2163, 4
      %v2166 = vshll.u32 %v2093, 16
      %v2168 = vrot.slane %v2166, 5
      %v2169 = vor.u32 %v2165, %v2168
      %v2170 = vrot.slane %v2169, 4
      %v2172 = vshll.u32 %v2094, 16
      %v2174 = vrot.slane %v2172, 5
      %v2175 = vsel %vm238, %v2170, %v2174
      %v2176 = vshrl.u32 %v2094, 16
      %v2178 = vrot.slane %v2176, 4
      %v2179 = vor.u32 %v2178, %v2174
      %v2180 = vrot.slane %v2179, 4
      %v2182 = vshll.u32 %v2095, 16
      %v2184 = vrot.slane %v2182, 5
      %v2185 = vsel %vm238, %v2180, %v2184
      %v2187 = vshrl.u32 %v2096, 16
      %v2189 = vrot.slane %v2187, 4
      %v2190 = vshll.u32 %v2096, 16
      %v2192 = vrot.slane %v2190, 5
      %v2193 = vor.u32 %v2189, %v2192
      %v2194 = vrot.slane %v2193, 4
      %v2196 = vshll.u32 %v2097, 16
      %v2198 = vrot.slane %v2196, 5
      %v2199 = vsel %vm238, %v2194, %v2198
      %v2200 = vshrl.u32 %v2097, 16
      %v2202 = vrot.slane %v2200, 4
      %v2203 = vor.u32 %v2202, %v2198
      %v2204 = vrot.slane %v2203, 4
      %v2206 = vshll.u32 %v2098, 16
      %v2208 = vrot.slane %v2206, 5
      %v2209 = vsel %vm238, %v2204, %v2208
      %v2211 = vshrl.u32 %v2099, 16
      %v2213 = vrot.slane %v2211, 4
      %v2214 = vshll.u32 %v2099, 16
      %v2216 = vrot.slane %v2214, 5
      %v2217 = vor.u32 %v2213, %v2216
      %v2218 = vrot.slane %v2217, 4
      %v2220 = vshll.u32 %v2100, 16
      %v2222 = vrot.slane %v2220, 5
      %v2223 = vsel %vm238, %v2218, %v2222
      %v2224 = vshrl.u32 %v2100, 16
      %v2226 = vrot.slane %v2224, 4
      %v2227 = vor.u32 %v2226, %v2222
      %v2228 = vrot.slane %v2227, 4
      %v2230 = vshll.u32 %v2101, 16
      %v2232 = vrot.slane %v2230, 5
      %v2233 = vsel %vm238, %v2228, %v2232
      %v2235 = vshrl.u32 %v2102, 16
      %v2237 = vrot.slane %v2235, 4
      %v2238 = vshll.u32 %v2102, 16
      %v2240 = vrot.slane %v2238, 5
      %v2241 = vor.u32 %v2237, %v2240
      %v2242 = vrot.slane %v2241, 4
      %v2244 = vshll.u32 %v2103, 16
      %v2246 = vrot.slane %v2244, 5
      %v2247 = vsel %vm238, %v2242, %v2246
      %v2248 = vshrl.u32 %v2103, 16
      %v2250 = vrot.slane %v2248, 4
      %v2251 = vor.u32 %v2250, %v2246
      %v2252 = vrot.slane %v2251, 4
      %v2254 = vshll.u32 %v2104, 16
      %v2256 = vrot.slane %v2254, 5
      %v2257 = vsel %vm238, %v2252, %v2256
      %v2259 = vshrl.u32 %v2105, 16
      %v2261 = vrot.slane %v2259, 4
      %v2262 = vshll.u32 %v2105, 16
      %v2264 = vrot.slane %v2262, 5
      %v2265 = vor.u32 %v2261, %v2264
      %v2266 = vrot.slane %v2265, 4
      %v2268 = vshll.u32 %v2106, 16
      %v2270 = vrot.slane %v2268, 5
      %v2271 = vsel %vm238, %v2266, %v2270
      %v2272 = vshrl.u32 %v2106, 16
      %v2274 = vrot.slane %v2272, 4
      %v2275 = vor.u32 %v2274, %v2270
      %v2276 = vrot.slane %v2275, 4
      %v2278 = vshll.u32 %v2107, 16
      %v2280 = vrot.slane %v2278, 5
      %v2281 = vsel %vm238, %v2276, %v2280
      %v2283 = vshrl.u32 %v2108, 16
      %v2285 = vrot.slane %v2283, 4
      %v2286 = vshll.u32 %v2108, 16
      %v2288 = vrot.slane %v2286, 5
      %v2289 = vor.u32 %v2285, %v2288
      %v2290 = vrot.slane %v2289, 4
      %v2292 = vshll.u32 %v2109, 16
      %v2294 = vrot.slane %v2292, 5
      %v2295 = vsel %vm238, %v2290, %v2294
      %v2296 = vshrl.u32 %v2109, 16
      %v2298 = vrot.slane %v2296, 4
      %v2299 = vor.u32 %v2298, %v2294
      %v2300 = vrot.slane %v2299, 4
      %v2302 = vshll.u32 %v2110, 16
      %v2304 = vrot.slane %v2302, 5
      %v2305 = vsel %vm238, %v2300, %v2304
      %v2307 = vshrl.u32 %v2111, 16
      %v2309 = vrot.slane %v2307, 4
      %v2310 = vshll.u32 %v2111, 16
      %v2312 = vrot.slane %v2310, 5
      %v2313 = vor.u32 %v2309, %v2312
      %v2314 = vrot.slane %v2313, 4
      %v2316 = vshll.u32 %v2112, 16
      %v2318 = vrot.slane %v2316, 5
      %v2319 = vsel %vm238, %v2314, %v2318
      %v2320 = vshrl.u32 %v2112, 16
      %v2322 = vrot.slane %v2320, 4
      %v2323 = vor.u32 %v2322, %v2318
      %v2324 = vrot.slane %v2323, 4
      %v2326 = vshll.u32 %v2113, 16
      %v2328 = vrot.slane %v2326, 5
      %v2329 = vsel %vm238, %v2324, %v2328
      %v2331 = vshrl.u32 %v2114, 16
      %v2333 = vrot.slane %v2331, 4
      %v2334 = vshll.u32 %v2114, 16
      %v2336 = vrot.slane %v2334, 5
      %v2337 = vor.u32 %v2333, %v2336
      %v2338 = vrot.slane %v2337, 4
      %v2340 = vshll.u32 %v2115, 16
      %v2342 = vrot.slane %v2340, 5
      %v2343 = vsel %vm238, %v2338, %v2342
      %v2344 = vshrl.u32 %v2115, 16
      %v2346 = vrot.slane %v2344, 4
      %v2347 = vor.u32 %v2346, %v2342
      %v2348 = vrot.slane %v2347, 4
      %v2350 = vshll.u32 %v2116, 16
      %v2352 = vrot.slane %v2350, 5
      %v2353 = vsel %vm238, %v2348, %v2352
      %v2355 = vshrl.u32 %v2117, 16
      %v2357 = vrot.slane %v2355, 4
      %v2358 = vshll.u32 %v2117, 16
      %v2360 = vrot.slane %v2358, 5
      %v2361 = vor.u32 %v2357, %v2360
      %v2362 = vrot.slane %v2361, 4
      %v2364 = vshll.u32 %v2118, 16
      %v2366 = vrot.slane %v2364, 5
      %v2367 = vsel %vm238, %v2362, %v2366
      %v2368 = vshrl.u32 %v2118, 16
      %v2370 = vrot.slane %v2368, 4
      %v2371 = vor.u32 %v2370, %v2366
      %v2372 = vrot.slane %v2371, 4
      %v2374 = vshll.u32 %v2119, 16
      %v2376 = vrot.slane %v2374, 5
      %v2377 = vsel %vm238, %v2372, %v2376
      %v2379 = vshrl.u32 %v2120, 16
      %v2381 = vrot.slane %v2379, 4
      %v2382 = vshll.u32 %v2120, 16
      %v2384 = vrot.slane %v2382, 5
      %v2385 = vor.u32 %v2381, %v2384
      %v2386 = vrot.slane %v2385, 4
      %v2388 = vshll.u32 %v2121, 16
      %v2390 = vrot.slane %v2388, 5
      %v2391 = vsel %vm238, %v2386, %v2390
      %v2392 = vshrl.u32 %v2121, 16
      %v2394 = vrot.slane %v2392, 4
      %v2395 = vor.u32 %v2394, %v2390
      %v2396 = vrot.slane %v2395, 4
      %v2398 = vshll.u32 %v2122, 16
      %v2400 = vrot.slane %v2398, 5
      %v2401 = vsel %vm238, %v2396, %v2400
      %v2403 = vshrl.u32 %v2123, 16
      %v2405 = vrot.slane %v2403, 4
      %v2406 = vshll.u32 %v2123, 16
      %v2408 = vrot.slane %v2406, 5
      %v2409 = vor.u32 %v2405, %v2408
      %v2410 = vrot.slane %v2409, 4
      %v2412 = vshll.u32 %v2124, 16
      %v2414 = vrot.slane %v2412, 5
      %v2415 = vsel %vm238, %v2410, %v2414
      %v2416 = vshrl.u32 %v2124, 16
      %v2418 = vrot.slane %v2416, 4
      %v2419 = vor.u32 %v2418, %v2414
      %v2420 = vrot.slane %v2419, 4
      %v2422 = vshll.u32 %v2125, 16
      %v2424 = vrot.slane %v2422, 5
      %v2425 = vsel %vm238, %v2420, %v2424
      %v2427 = vshrl.u32 %v2126, 16
      %v2429 = vrot.slane %v2427, 4
      %v2430 = vshll.u32 %v2126, 16
      %v2432 = vrot.slane %v2430, 5
      %v2433 = vor.u32 %v2429, %v2432
      %v2434 = vrot.slane %v2433, 4
      %v2436 = vshll.u32 %v2127, 16
      %v2438 = vrot.slane %v2436, 5
      %v2439 = vsel %vm238, %v2434, %v2438
      %v2440 = vshrl.u32 %v2127, 16
      %v2442 = vrot.slane %v2440, 4
      %v2443 = vor.u32 %v2442, %v2438
      %v2444 = vrot.slane %v2443, 4
      %v2446 = vshll.u32 %v2128, 16
      %v2448 = vrot.slane %v2446, 5
      %v2449 = vsel %vm238, %v2444, %v2448
      %v2451 = vshrl.u32 %v2129, 16
      %v2453 = vrot.slane %v2451, 4
      %v2454 = vshll.u32 %v2129, 16
      %v2456 = vrot.slane %v2454, 5
      %v2457 = vor.u32 %v2453, %v2456
      %v2458 = vrot.slane %v2457, 4
      %v2460 = vshll.u32 %v2130, 16
      %v2462 = vrot.slane %v2460, 5
      %v2463 = vsel %vm238, %v2458, %v2462
      %v2464 = vshrl.u32 %v2130, 16
      %v2466 = vrot.slane %v2464, 4
      %v2467 = vor.u32 %v2466, %v2462
      %v2468 = vrot.slane %v2467, 4
      %v2470 = vshll.u32 %v2131, 16
      %v2472 = vrot.slane %v2470, 5
      %v2473 = vsel %vm238, %v2468, %v2472
      %v2475 = vshrl.u32 %v2132, 16
      %v2477 = vrot.slane %v2475, 4
      %v2478 = vshll.u32 %v2132, 16
      %v2480 = vrot.slane %v2478, 5
      %v2481 = vor.u32 %v2477, %v2480
      %v2482 = vrot.slane %v2481, 4
      %v2484 = vshll.u32 %v2133, 16
      %v2486 = vrot.slane %v2484, 5
      %v2487 = vsel %vm238, %v2482, %v2486
      %v2488 = vshrl.u32 %v2133, 16
      %v2490 = vrot.slane %v2488, 4
      %v2491 = vor.u32 %v2490, %v2486
      %v2492 = vrot.slane %v2491, 4
      %v2494 = vshll.u32 %v2134, 16
      %v2496 = vrot.slane %v2494, 5
      %v2497 = vsel %vm238, %v2492, %v2496
      %v2499 = vshrl.u32 %v2135, 16
      %v2501 = vrot.slane %v2499, 4
      %v2502 = vshll.u32 %v2135, 16
      %v2504 = vrot.slane %v2502, 5
      %v2505 = vor.u32 %v2501, %v2504
      %v2506 = vrot.slane %v2505, 4
      %v2508 = vshll.u32 %v2136, 16
      %v2510 = vrot.slane %v2508, 5
      %v2511 = vsel %vm238, %v2506, %v2510
      %v2512 = vshrl.u32 %v2136, 16
      %v2514 = vrot.slane %v2512, 4
      %v2515 = vor.u32 %v2514, %v2510
      %v2516 = vrot.slane %v2515, 4
      %v2518 = vshll.u32 %v2137, 16
      %v2520 = vrot.slane %v2518, 5
      %v2521 = vsel %vm238, %v2516, %v2520
      %s2522 = scalar_lea.vmem %s1, 256
      %v2523 = vld [vmem:[%s2522] sm:$0xf]
      %v2524 = vld [vmem:[%s2522 + $0x4] sm:$0xf]
      %v2525 = vld [vmem:[%s2522 + $0x8] sm:$0xf]
      %v2526 = vld [vmem:[%s2522 + $0xc] sm:$0xf]
      %v2527 = vld [vmem:[%s2522 + $0x10] sm:$0xf]
      %v2528 = vld [vmem:[%s2522 + $0x14] sm:$0xf]
      %v2529 = vld [vmem:[%s2522 + $0x18] sm:$0xf]
      %v2530 = vld [vmem:[%s2522 + $0x1c] sm:$0xf]
      %v2531 = vld [vmem:[%s2522 + $0x20] sm:$0xf]
      %v2532 = vld [vmem:[%s2522 + $0x24] sm:$0xf]
      %v2533 = vld [vmem:[%s2522 + $0x28] sm:$0xf]
      %v2534 = vld [vmem:[%s2522 + $0x2c] sm:$0xf]
      %v2535 = vld [vmem:[%s2522 + $0x30] sm:$0xf]
      %v2536 = vld [vmem:[%s2522 + $0x34] sm:$0xf]
      %v2537 = vld [vmem:[%s2522 + $0x38] sm:$0xf]
      %v2538 = vld [vmem:[%s2522 + $0x3c] sm:$0xf]
      %v2539 = vunpack.c.l.b16 %v2151
      %v2540 = vunpack.c.l.b16 %v2161
      %v2541 = vunpack.c.l.b16 %v2175
      %v2542 = vunpack.c.l.b16 %v2185
      %v2543 = vunpack.c.l.b16 %v2199
      %v2544 = vunpack.c.l.b16 %v2209
      %v2545 = vunpack.c.l.b16 %v2223
      %v2546 = vunpack.c.l.b16 %v2233
      %v2547 = vunpack.c.l.b16 %v2247
      %v2548 = vunpack.c.l.b16 %v2257
      %v2549 = vunpack.c.l.b16 %v2271
      %v2550 = vunpack.c.l.b16 %v2281
      %v2551 = vunpack.c.l.b16 %v2295
      %v2552 = vunpack.c.l.b16 %v2305
      %v2553 = vunpack.c.l.b16 %v2319
      %v2554 = vunpack.c.l.b16 %v2329
      %v2555 = vunpack.c.l.b16 %v2343
      %v2556 = vunpack.c.l.b16 %v2353
      %v2557 = vunpack.c.l.b16 %v2367
      %v2558 = vunpack.c.l.b16 %v2377
      %v2559 = vunpack.c.l.b16 %v2391
      %v2560 = vunpack.c.l.b16 %v2401
      %v2561 = vunpack.c.l.b16 %v2415
      %v2562 = vunpack.c.l.b16 %v2425
      %v2563 = vunpack.c.l.b16 %v2439
      %v2564 = vunpack.c.l.b16 %v2449
      %v2565 = vunpack.c.l.b16 %v2463
      %v2566 = vunpack.c.l.b16 %v2473
      %v2567 = vunpack.c.l.b16 %v2487
      %v2568 = vunpack.c.l.b16 %v2497
      %v2569 = vunpack.c.l.b16 %v2511
      %v2570 = vunpack.c.l.b16 %v2521
      %v2571 = vpack.c.b16 %v2540, %v2539
      %v2572 = vpack.c.b16 %v2542, %v2541
      %v2573 = vpack.c.b16 %v2544, %v2543
      %v2574 = vpack.c.b16 %v2546, %v2545
      %v2575 = vpack.c.b16 %v2548, %v2547
      %v2576 = vpack.c.b16 %v2550, %v2549
      %v2577 = vpack.c.b16 %v2552, %v2551
      %v2578 = vpack.c.b16 %v2554, %v2553
      %v2579 = vpack.c.b16 %v2556, %v2555
      %v2580 = vpack.c.b16 %v2558, %v2557
      %v2581 = vpack.c.b16 %v2560, %v2559
      %v2582 = vpack.c.b16 %v2562, %v2561
      %v2583 = vpack.c.b16 %v2564, %v2563
      %v2584 = vpack.c.b16 %v2566, %v2565
      %v2585 = vpack.c.b16 %v2568, %v2567
      %v2586 = vpack.c.b16 %v2570, %v2569
      %v2619 = vunpack.c.l.b16 %v2523
      %v2620 = vunpack.c.l.b16 %v2524
      %v2621 = vunpack.c.l.b16 %v2525
      %v2622 = vunpack.c.l.b16 %v2526
      %v2623 = vunpack.c.l.b16 %v2527
      %v2624 = vunpack.c.l.b16 %v2528
      %v2625 = vunpack.c.l.b16 %v2529
      %v2626 = vunpack.c.l.b16 %v2530
      %v2627 = vunpack.c.l.b16 %v2531
      %v2628 = vunpack.c.l.b16 %v2532
      %v2629 = vunpack.c.l.b16 %v2533
      %v2630 = vunpack.c.l.b16 %v2534
      %v2631 = vunpack.c.l.b16 %v2535
      %v2632 = vunpack.c.l.b16 %v2536
      %v2633 = vunpack.c.l.b16 %v2537
      %v2634 = vunpack.c.l.b16 %v2538
      %v2635 = vpack.c.b16 %v2620, %v2619
      %v2636 = vpack.c.b16 %v2622, %v2621
      %v2637 = vpack.c.b16 %v2624, %v2623
      %v2638 = vpack.c.b16 %v2626, %v2625
      %v2639 = vpack.c.b16 %v2628, %v2627
      %v2640 = vpack.c.b16 %v2630, %v2629
      %v2641 = vpack.c.b16 %v2632, %v2631
      %v2642 = vpack.c.b16 %v2634, %v2633
      %2651 = vmatprep.subr.bf16.mxu0 0
      %2652 = vmatpush1.bf16.msra.mxu0 %v2642
      %2653 = vmatprep.subr.bf16.mxu0 0
      %2654 = vmatpush1.bf16.msra.mxu0 %v2641
      %2655 = vmatprep.subr.bf16.mxu0 0
      %2656 = vmatpush1.bf16.msra.mxu0 %v2640
      %2657 = vmatprep.subr.bf16.mxu0 0
      %2658 = vmatpush1.bf16.msra.mxu0 %v2639
      %2659 = vmatprep.subr.bf16.mxu0 0
      %2660 = vmatpush1.bf16.msra.mxu0 %v2638
      %2661 = vmatprep.subr.bf16.mxu0 0
      %2662 = vmatpush1.bf16.msra.mxu0 %v2637
      %2663 = vmatprep.subr.bf16.mxu0 0
      %2664 = vmatpush1.bf16.msra.mxu0 %v2636
      %2665 = vmatprep.subr.bf16.mxu0 0
      %2666 = vmatpush1.bf16.msra.mxu0 %v2635
      %2667 = vmatprep.subr.bf16.mxu0 0
      %2668 = vmatpush2.bf16.msra.mxu0 0
      %2669 = vmatprep.subr.bf16.mxu0 0
      %2670 = vmatpush2.bf16.msra.mxu0 0
      %2671 = vmatprep.subr.bf16.mxu0 0
      %2672 = vmatpush2.bf16.msra.mxu0 0
      %2673 = vmatprep.subr.bf16.mxu0 0
      %2674 = vmatpush2.bf16.msra.mxu0 0
      %2675 = vmatprep.subr.bf16.mxu0 0
      %2676 = vmatpush2.bf16.msra.mxu0 0
      %2677 = vmatprep.subr.bf16.mxu0 0
      %2678 = vmatpush2.bf16.msra.mxu0 0
      %2679 = vmatprep.subr.bf16.mxu0 0
      %2680 = vmatpush2.bf16.msra.mxu0 0
      %2681 = vmatprep.subr.bf16.mxu0 0
      %2682 = vmatpush2.bf16.msra.mxu0 0
      %2683 = vmatprep.mubr.bf16.mxu0 0
      %2684 = vmatmul.mubr.bf16.gmra.mxu0 %v2571
      %v2685 = vpop.f32.mrf.mxu0
      %v2686 = vadd.f32 0.0, %v2685
      %v2687 = vpop.f32.mrf.mxu0
      %v2688 = vpop.f32.mrf.mxu0
      %v2689 = vadd.f32 0.0, %v2688
      %v2690 = vpop.f32.mrf.mxu0
      %2691 = vmatprep.mubr.bf16.mxu0 0
      %2692 = vmatmul.mubr.bf16.gmra.mxu0 %v2572
      %v2693 = vpop.f32.mrf.mxu0
      %v2694 = vadd.f32 0.0, %v2693
      %v2695 = vpop.f32.mrf.mxu0
      %v2696 = vpop.f32.mrf.mxu0
      %v2697 = vadd.f32 0.0, %v2696
      %v2698 = vpop.f32.mrf.mxu0
      %2699 = vmatprep.mubr.bf16.mxu0 0
      %2700 = vmatmul.mubr.bf16.gmra.mxu0 %v2573
      %v2701 = vpop.f32.mrf.mxu0
      %v2702 = vadd.f32 0.0, %v2701
      %v2703 = vpop.f32.mrf.mxu0
      %v2704 = vpop.f32.mrf.mxu0
      %v2705 = vadd.f32 0.0, %v2704
      %v2706 = vpop.f32.mrf.mxu0
      %2707 = vmatprep.mubr.bf16.mxu0 0
      %2708 = vmatmul.mubr.bf16.gmra.mxu0 %v2574
      %v2709 = vpop.f32.mrf.mxu0
      %v2710 = vadd.f32 0.0, %v2709
      %v2711 = vpop.f32.mrf.mxu0
      %v2712 = vpop.f32.mrf.mxu0
      %v2713 = vadd.f32 0.0, %v2712
      %v2714 = vpop.f32.mrf.mxu0
      %2715 = vmatprep.mubr.bf16.mxu0 0
      %2716 = vmatmul.mubr.bf16.gmra.mxu0 %v2575
      %v2717 = vpop.f32.mrf.mxu0
      %v2718 = vadd.f32 0.0, %v2717
      %v2719 = vpop.f32.mrf.mxu0
      %v2720 = vpop.f32.mrf.mxu0
      %v2721 = vadd.f32 0.0, %v2720
      %v2722 = vpop.f32.mrf.mxu0
      %2723 = vmatprep.mubr.bf16.mxu0 0
      %2724 = vmatmul.mubr.bf16.gmra.mxu0 %v2576
      %v2725 = vpop.f32.mrf.mxu0
      %v2726 = vadd.f32 0.0, %v2725
      %v2727 = vpop.f32.mrf.mxu0
      %v2728 = vpop.f32.mrf.mxu0
      %v2729 = vadd.f32 0.0, %v2728
      %v2730 = vpop.f32.mrf.mxu0
      %2731 = vmatprep.mubr.bf16.mxu0 0
      %2732 = vmatmul.mubr.bf16.gmra.mxu0 %v2577
      %v2733 = vpop.f32.mrf.mxu0
      %v2734 = vadd.f32 0.0, %v2733
      %v2735 = vpop.f32.mrf.mxu0
      %v2736 = vpop.f32.mrf.mxu0
      %v2737 = vadd.f32 0.0, %v2736
      %v2738 = vpop.f32.mrf.mxu0
      %2739 = vmatprep.mubr.bf16.mxu0 0
      %2740 = vmatmul.mubr.bf16.gmra.mxu0 %v2578
      %v2741 = vpop.f32.mrf.mxu0
      %v2742 = vadd.f32 0.0, %v2741
      %v2743 = vpop.f32.mrf.mxu0
      %v2744 = vpop.f32.mrf.mxu0
      %v2745 = vadd.f32 0.0, %v2744
      %v2746 = vpop.f32.mrf.mxu0
      %2747 = vmatprep.mubr.bf16.mxu0 0
      %2748 = vmatmul.mubr.bf16.gmra.mxu0 %v2579
      %v2749 = vpop.f32.mrf.mxu0
      %v2750 = vadd.f32 0.0, %v2749
      %v2751 = vpop.f32.mrf.mxu0
      %v2752 = vpop.f32.mrf.mxu0
      %v2753 = vadd.f32 0.0, %v2752
      %v2754 = vpop.f32.mrf.mxu0
      %2755 = vmatprep.mubr.bf16.mxu0 0
      %2756 = vmatmul.mubr.bf16.gmra.mxu0 %v2580
      %v2757 = vpop.f32.mrf.mxu0
      %v2758 = vadd.f32 0.0, %v2757
      %v2759 = vpop.f32.mrf.mxu0
      %v2760 = vpop.f32.mrf.mxu0
      %v2761 = vadd.f32 0.0, %v2760
      %v2762 = vpop.f32.mrf.mxu0
      %2763 = vmatprep.mubr.bf16.mxu0 0
      %2764 = vmatmul.mubr.bf16.gmra.mxu0 %v2581
      %v2765 = vpop.f32.mrf.mxu0
      %v2766 = vadd.f32 0.0, %v2765
      %v2767 = vpop.f32.mrf.mxu0
      %v2768 = vpop.f32.mrf.mxu0
      %v2769 = vadd.f32 0.0, %v2768
      %v2770 = vpop.f32.mrf.mxu0
      %2771 = vmatprep.mubr.bf16.mxu0 0
      %2772 = vmatmul.mubr.bf16.gmra.mxu0 %v2582
      %v2773 = vpop.f32.mrf.mxu0
      %v2774 = vadd.f32 0.0, %v2773
      %v2775 = vpop.f32.mrf.mxu0
      %v2776 = vpop.f32.mrf.mxu0
      %v2777 = vadd.f32 0.0, %v2776
      %v2778 = vpop.f32.mrf.mxu0
      %2779 = vmatprep.mubr.bf16.mxu0 0
      %2780 = vmatmul.mubr.bf16.gmra.mxu0 %v2583
      %v2781 = vpop.f32.mrf.mxu0
      %v2782 = vadd.f32 0.0, %v2781
      %v2783 = vpop.f32.mrf.mxu0
      %v2784 = vpop.f32.mrf.mxu0
      %v2785 = vadd.f32 0.0, %v2784
      %v2786 = vpop.f32.mrf.mxu0
      %2787 = vmatprep.mubr.bf16.mxu0 0
      %2788 = vmatmul.mubr.bf16.gmra.mxu0 %v2584
      %v2789 = vpop.f32.mrf.mxu0
      %v2790 = vadd.f32 0.0, %v2789
      %v2791 = vpop.f32.mrf.mxu0
      %v2792 = vpop.f32.mrf.mxu0
      %v2793 = vadd.f32 0.0, %v2792
      %v2794 = vpop.f32.mrf.mxu0
      %2795 = vmatprep.mubr.bf16.mxu0 0
      %2796 = vmatmul.mubr.bf16.gmra.mxu0 %v2585
      %v2797 = vpop.f32.mrf.mxu0
      %v2798 = vadd.f32 0.0, %v2797
      %v2799 = vpop.f32.mrf.mxu0
      %v2800 = vpop.f32.mrf.mxu0
      %v2801 = vadd.f32 0.0, %v2800
      %v2802 = vpop.f32.mrf.mxu0
      %2803 = vmatprep.mubr.bf16.mxu0 0
      %2804 = vmatmul.mubr.bf16.gmra.mxu0 %v2586
      %v2805 = vpop.f32.mrf.mxu0
      %v2806 = vadd.f32 0.0, %v2805
      %v2807 = vpop.f32.mrf.mxu0
      %v2808 = vpop.f32.mrf.mxu0
      %v2809 = vadd.f32 0.0, %v2808
      %v2810 = vpop.f32.mrf.mxu0
      %2811 = vdwg.mxu0
      %v2812 = vadd.f32 %v2058, %v2686
      %v2813 = vadd.f32 %v2059, %v2689
      %v2814 = vadd.f32 %v2060, %v2694
      %v2815 = vadd.f32 %v2061, %v2697
      %v2816 = vadd.f32 %v2062, %v2702
      %v2817 = vadd.f32 %v2063, %v2705
      %v2818 = vadd.f32 %v2064, %v2710
      %v2819 = vadd.f32 %v2065, %v2713
      %v2820 = vadd.f32 %v2066, %v2718
      %v2821 = vadd.f32 %v2067, %v2721
      %v2822 = vadd.f32 %v2068, %v2726
      %v2823 = vadd.f32 %v2069, %v2729
      %v2824 = vadd.f32 %v2070, %v2734
      %v2825 = vadd.f32 %v2071, %v2737
      %v2826 = vadd.f32 %v2072, %v2742
      %v2827 = vadd.f32 %v2073, %v2745
      %v2828 = vadd.f32 %v2074, %v2750
      %v2829 = vadd.f32 %v2075, %v2753
      %v2830 = vadd.f32 %v2076, %v2758
      %v2831 = vadd.f32 %v2077, %v2761
      %v2832 = vadd.f32 %v2078, %v2766
      %v2833 = vadd.f32 %v2079, %v2769
      %v2834 = vadd.f32 %v2080, %v2774
      %v2835 = vadd.f32 %v2081, %v2777
      %v2836 = vadd.f32 %v2082, %v2782
      %v2837 = vadd.f32 %v2083, %v2785
      %v2838 = vadd.f32 %v2084, %v2790
      %v2839 = vadd.f32 %v2085, %v2793
      %v2840 = vadd.f32 %v2086, %v2798
      %v2841 = vadd.f32 %v2087, %v2801
      %v2842 = vadd.f32 %v2088, %v2806
      %v2843 = vadd.f32 %v2089, %v2809
      %v2844 = vld [vmem:[%s1703] sm:$0xe]
      %v2845 = vld [vmem:[%s1703 + $0xc] sm:$0xe]
      %v2846 = vld [vmem:[%s1703 + $0x18] sm:$0xe]
      %v2847 = vld [vmem:[%s1703 + $0x24] sm:$0xe]
      %v2848 = vld [vmem:[%s1703 + $0x30] sm:$0xe]
      %v2849 = vld [vmem:[%s1703 + $0x3c] sm:$0xe]
      %v2850 = vld [vmem:[%s1703 + $0x48] sm:$0xe]
      %v2851 = vld [vmem:[%s1703 + $0x54] sm:$0xe]
      %v2852 = vld [vmem:[%s1703 + $0x60] sm:$0xe]
      %v2853 = vld [vmem:[%s1703 + $0x6c] sm:$0xe]
      %v2854 = vld [vmem:[%s1703 + $0x78] sm:$0xe]
      %v2855 = vld [vmem:[%s1703 + $0x84] sm:$0xe]
      %v2856 = vld [vmem:[%s1703 + $0x90] sm:$0xe]
      %v2857 = vld [vmem:[%s1703 + $0x9c] sm:$0xe]
      %v2858 = vld [vmem:[%s1703 + $0xa8] sm:$0xe]
      %v2859 = vld [vmem:[%s1703 + $0xb4] sm:$0xe]
      %v2908 = vrot.slane %v2844, 5
      %v2909 = vrot.slane %v2908, 4
      %v2910 = vrot.slane %v2091, 5
      %v2911 = vsel %vm1268, %v2909, %v2910
      %v2912 = vrot.slane %v2910, 4
      %v2913 = vrot.slane %v2092, 5
      %v2914 = vsel %vm1268, %v2912, %v2913
      %v2915 = vrot.slane %v2845, 5
      %v2916 = vrot.slane %v2915, 4
      %v2917 = vrot.slane %v2094, 5
      %v2918 = vsel %vm1268, %v2916, %v2917
      %v2919 = vrot.slane %v2917, 4
      %v2920 = vrot.slane %v2095, 5
      %v2921 = vsel %vm1268, %v2919, %v2920
      %v2922 = vrot.slane %v2846, 5
      %v2923 = vrot.slane %v2922, 4
      %v2924 = vrot.slane %v2097, 5
      %v2925 = vsel %vm1268, %v2923, %v2924
      %v2926 = vrot.slane %v2924, 4
      %v2927 = vrot.slane %v2098, 5
      %v2928 = vsel %vm1268, %v2926, %v2927
      %v2929 = vrot.slane %v2847, 5
      %v2930 = vrot.slane %v2929, 4
      %v2931 = vrot.slane %v2100, 5
      %v2932 = vsel %vm1268, %v2930, %v2931
      %v2933 = vrot.slane %v2931, 4
      %v2934 = vrot.slane %v2101, 5
      %v2935 = vsel %vm1268, %v2933, %v2934
      %v2936 = vrot.slane %v2848, 5
      %v2937 = vrot.slane %v2936, 4
      %v2938 = vrot.slane %v2103, 5
      %v2939 = vsel %vm1268, %v2937, %v2938
      %v2940 = vrot.slane %v2938, 4
      %v2941 = vrot.slane %v2104, 5
      %v2942 = vsel %vm1268, %v2940, %v2941
      %v2943 = vrot.slane %v2849, 5
      %v2944 = vrot.slane %v2943, 4
      %v2945 = vrot.slane %v2106, 5
      %v2946 = vsel %vm1268, %v2944, %v2945
      %v2947 = vrot.slane %v2945, 4
      %v2948 = vrot.slane %v2107, 5
      %v2949 = vsel %vm1268, %v2947, %v2948
      %v2950 = vrot.slane %v2850, 5
      %v2951 = vrot.slane %v2950, 4
      %v2952 = vrot.slane %v2109, 5
      %v2953 = vsel %vm1268, %v2951, %v2952
      %v2954 = vrot.slane %v2952, 4
      %v2955 = vrot.slane %v2110, 5
      %v2956 = vsel %vm1268, %v2954, %v2955
      %v2957 = vrot.slane %v2851, 5
      %v2958 = vrot.slane %v2957, 4
      %v2959 = vrot.slane %v2112, 5
      %v2960 = vsel %vm1268, %v2958, %v2959
      %v2961 = vrot.slane %v2959, 4
      %v2962 = vrot.slane %v2113, 5
      %v2963 = vsel %vm1268, %v2961, %v2962
      %v2964 = vrot.slane %v2852, 5
      %v2965 = vrot.slane %v2964, 4
      %v2966 = vrot.slane %v2115, 5
      %v2967 = vsel %vm1268, %v2965, %v2966
      %v2968 = vrot.slane %v2966, 4
      %v2969 = vrot.slane %v2116, 5
      %v2970 = vsel %vm1268, %v2968, %v2969
      %v2971 = vrot.slane %v2853, 5
      %v2972 = vrot.slane %v2971, 4
      %v2973 = vrot.slane %v2118, 5
      %v2974 = vsel %vm1268, %v2972, %v2973
      %v2975 = vrot.slane %v2973, 4
      %v2976 = vrot.slane %v2119, 5
      %v2977 = vsel %vm1268, %v2975, %v2976
      %v2978 = vrot.slane %v2854, 5
      %v2979 = vrot.slane %v2978, 4
      %v2980 = vrot.slane %v2121, 5
      %v2981 = vsel %vm1268, %v2979, %v2980
      %v2982 = vrot.slane %v2980, 4
      %v2983 = vrot.slane %v2122, 5
      %v2984 = vsel %vm1268, %v2982, %v2983
      %v2985 = vrot.slane %v2855, 5
      %v2986 = vrot.slane %v2985, 4
      %v2987 = vrot.slane %v2124, 5
      %v2988 = vsel %vm1268, %v2986, %v2987
      %v2989 = vrot.slane %v2987, 4
      %v2990 = vrot.slane %v2125, 5
      %v2991 = vsel %vm1268, %v2989, %v2990
      %v2992 = vrot.slane %v2856, 5
      %v2993 = vrot.slane %v2992, 4
      %v2994 = vrot.slane %v2127, 5
      %v2995 = vsel %vm1268, %v2993, %v2994
      %v2996 = vrot.slane %v2994, 4
      %v2997 = vrot.slane %v2128, 5
      %v2998 = vsel %vm1268, %v2996, %v2997
      %v2999 = vrot.slane %v2857, 5
      %v3000 = vrot.slane %v2999, 4
      %v3001 = vrot.slane %v2130, 5
      %v3002 = vsel %vm1268, %v3000, %v3001
      %v3003 = vrot.slane %v3001, 4
      %v3004 = vrot.slane %v2131, 5
      %v3005 = vsel %vm1268, %v3003, %v3004
      %v3006 = vrot.slane %v2858, 5
      %v3007 = vrot.slane %v3006, 4
      %v3008 = vrot.slane %v2133, 5
      %v3009 = vsel %vm1268, %v3007, %v3008
      %v3010 = vrot.slane %v3008, 4
      %v3011 = vrot.slane %v2134, 5
      %v3012 = vsel %vm1268, %v3010, %v3011
      %v3013 = vrot.slane %v2859, 5
      %v3014 = vrot.slane %v3013, 4
      %v3015 = vrot.slane %v2136, 5
      %v3016 = vsel %vm1268, %v3014, %v3015
      %v3017 = vrot.slane %v3015, 4
      %v3018 = vrot.slane %v2137, 5
      %v3019 = vsel %vm1268, %v3017, %v3018
      %s3020 = scalar_lea.vmem %s1, 320
      %v3021 = vld [vmem:[%s3020] sm:$0xf]
      %v3022 = vld [vmem:[%s3020 + $0x4] sm:$0xf]
      %v3023 = vld [vmem:[%s3020 + $0x8] sm:$0xf]
      %v3024 = vld [vmem:[%s3020 + $0xc] sm:$0xf]
      %v3025 = vld [vmem:[%s3020 + $0x10] sm:$0xf]
      %v3026 = vld [vmem:[%s3020 + $0x14] sm:$0xf]
      %v3027 = vld [vmem:[%s3020 + $0x18] sm:$0xf]
      %v3028 = vld [vmem:[%s3020 + $0x1c] sm:$0xf]
      %v3029 = vld [vmem:[%s3020 + $0x20] sm:$0xf]
      %v3030 = vld [vmem:[%s3020 + $0x24] sm:$0xf]
      %v3031 = vld [vmem:[%s3020 + $0x28] sm:$0xf]
      %v3032 = vld [vmem:[%s3020 + $0x2c] sm:$0xf]
      %v3033 = vld [vmem:[%s3020 + $0x30] sm:$0xf]
      %v3034 = vld [vmem:[%s3020 + $0x34] sm:$0xf]
      %v3035 = vld [vmem:[%s3020 + $0x38] sm:$0xf]
      %v3036 = vld [vmem:[%s3020 + $0x3c] sm:$0xf]
      %v3037 = vunpack.c.l.b16 %v2911
      %v3038 = vunpack.c.l.b16 %v2914
      %v3039 = vunpack.c.l.b16 %v2918
      %v3040 = vunpack.c.l.b16 %v2921
      %v3041 = vunpack.c.l.b16 %v2925
      %v3042 = vunpack.c.l.b16 %v2928
      %v3043 = vunpack.c.l.b16 %v2932
      %v3044 = vunpack.c.l.b16 %v2935
      %v3045 = vunpack.c.l.b16 %v2939
      %v3046 = vunpack.c.l.b16 %v2942
      %v3047 = vunpack.c.l.b16 %v2946
      %v3048 = vunpack.c.l.b16 %v2949
      %v3049 = vunpack.c.l.b16 %v2953
      %v3050 = vunpack.c.l.b16 %v2956
      %v3051 = vunpack.c.l.b16 %v2960
      %v3052 = vunpack.c.l.b16 %v2963
      %v3053 = vunpack.c.l.b16 %v2967
      %v3054 = vunpack.c.l.b16 %v2970
      %v3055 = vunpack.c.l.b16 %v2974
      %v3056 = vunpack.c.l.b16 %v2977
      %v3057 = vunpack.c.l.b16 %v2981
      %v3058 = vunpack.c.l.b16 %v2984
      %v3059 = vunpack.c.l.b16 %v2988
      %v3060 = vunpack.c.l.b16 %v2991
      %v3061 = vunpack.c.l.b16 %v2995
      %v3062 = vunpack.c.l.b16 %v2998
      %v3063 = vunpack.c.l.b16 %v3002
      %v3064 = vunpack.c.l.b16 %v3005
      %v3065 = vunpack.c.l.b16 %v3009
      %v3066 = vunpack.c.l.b16 %v3012
      %v3067 = vunpack.c.l.b16 %v3016
      %v3068 = vunpack.c.l.b16 %v3019
      %v3069 = vpack.c.b16 %v3038, %v3037
      %v3070 = vpack.c.b16 %v3040, %v3039
      %v3071 = vpack.c.b16 %v3042, %v3041
      %v3072 = vpack.c.b16 %v3044, %v3043
      %v3073 = vpack.c.b16 %v3046, %v3045
      %v3074 = vpack.c.b16 %v3048, %v3047
      %v3075 = vpack.c.b16 %v3050, %v3049
      %v3076 = vpack.c.b16 %v3052, %v3051
      %v3077 = vpack.c.b16 %v3054, %v3053
      %v3078 = vpack.c.b16 %v3056, %v3055
      %v3079 = vpack.c.b16 %v3058, %v3057
      %v3080 = vpack.c.b16 %v3060, %v3059
      %v3081 = vpack.c.b16 %v3062, %v3061
      %v3082 = vpack.c.b16 %v3064, %v3063
      %v3083 = vpack.c.b16 %v3066, %v3065
      %v3084 = vpack.c.b16 %v3068, %v3067
      %v3117 = vunpack.c.l.b16 %v3021
      %v3118 = vunpack.c.l.b16 %v3022
      %v3119 = vunpack.c.l.b16 %v3023
      %v3120 = vunpack.c.l.b16 %v3024
      %v3121 = vunpack.c.l.b16 %v3025
      %v3122 = vunpack.c.l.b16 %v3026
      %v3123 = vunpack.c.l.b16 %v3027
      %v3124 = vunpack.c.l.b16 %v3028
      %v3125 = vunpack.c.l.b16 %v3029
      %v3126 = vunpack.c.l.b16 %v3030
      %v3127 = vunpack.c.l.b16 %v3031
      %v3128 = vunpack.c.l.b16 %v3032
      %v3129 = vunpack.c.l.b16 %v3033
      %v3130 = vunpack.c.l.b16 %v3034
      %v3131 = vunpack.c.l.b16 %v3035
      %v3132 = vunpack.c.l.b16 %v3036
      %v3133 = vpack.c.b16 %v3118, %v3117
      %v3134 = vpack.c.b16 %v3120, %v3119
      %v3135 = vpack.c.b16 %v3122, %v3121
      %v3136 = vpack.c.b16 %v3124, %v3123
      %v3137 = vpack.c.b16 %v3126, %v3125
      %v3138 = vpack.c.b16 %v3128, %v3127
      %v3139 = vpack.c.b16 %v3130, %v3129
      %v3140 = vpack.c.b16 %v3132, %v3131
      %3149 = vmatprep.subr.bf16.mxu0 0
      %3150 = vmatpush1.bf16.msra.mxu0 %v3140
      %3151 = vmatprep.subr.bf16.mxu0 0
      %3152 = vmatpush1.bf16.msra.mxu0 %v3139
      %3153 = vmatprep.subr.bf16.mxu0 0
      %3154 = vmatpush1.bf16.msra.mxu0 %v3138
      %3155 = vmatprep.subr.bf16.mxu0 0
      %3156 = vmatpush1.bf16.msra.mxu0 %v3137
      %3157 = vmatprep.subr.bf16.mxu0 0
      %3158 = vmatpush1.bf16.msra.mxu0 %v3136
      %3159 = vmatprep.subr.bf16.mxu0 0
      %3160 = vmatpush1.bf16.msra.mxu0 %v3135
      %3161 = vmatprep.subr.bf16.mxu0 0
      %3162 = vmatpush1.bf16.msra.mxu0 %v3134
      %3163 = vmatprep.subr.bf16.mxu0 0
      %3164 = vmatpush1.bf16.msra.mxu0 %v3133
      %3165 = vmatprep.subr.bf16.mxu0 0
      %3166 = vmatpush2.bf16.msra.mxu0 0
      %3167 = vmatprep.subr.bf16.mxu0 0
      %3168 = vmatpush2.bf16.msra.mxu0 0
      %3169 = vmatprep.subr.bf16.mxu0 0
      %3170 = vmatpush2.bf16.msra.mxu0 0
      %3171 = vmatprep.subr.bf16.mxu0 0
      %3172 = vmatpush2.bf16.msra.mxu0 0
      %3173 = vmatprep.subr.bf16.mxu0 0
      %3174 = vmatpush2.bf16.msra.mxu0 0
      %3175 = vmatprep.subr.bf16.mxu0 0
      %3176 = vmatpush2.bf16.msra.mxu0 0
      %3177 = vmatprep.subr.bf16.mxu0 0
      %3178 = vmatpush2.bf16.msra.mxu0 0
      %3179 = vmatprep.subr.bf16.mxu0 0
      %3180 = vmatpush2.bf16.msra.mxu0 0
      %3181 = vmatprep.mubr.bf16.mxu0 0
      %3182 = vmatmul.mubr.bf16.gmra.mxu0 %v3069
      %v3183 = vpop.f32.mrf.mxu0
      %v3184 = vadd.f32 0.0, %v3183
      %v3185 = vpop.f32.mrf.mxu0
      %v3186 = vpop.f32.mrf.mxu0
      %v3187 = vadd.f32 0.0, %v3186
      %v3188 = vpop.f32.mrf.mxu0
      %3189 = vmatprep.mubr.bf16.mxu0 0
      %3190 = vmatmul.mubr.bf16.gmra.mxu0 %v3070
      %v3191 = vpop.f32.mrf.mxu0
      %v3192 = vadd.f32 0.0, %v3191
      %v3193 = vpop.f32.mrf.mxu0
      %v3194 = vpop.f32.mrf.mxu0
      %v3195 = vadd.f32 0.0, %v3194
      %v3196 = vpop.f32.mrf.mxu0
      %3197 = vmatprep.mubr.bf16.mxu0 0
      %3198 = vmatmul.mubr.bf16.gmra.mxu0 %v3071
      %v3199 = vpop.f32.mrf.mxu0
      %v3200 = vadd.f32 0.0, %v3199
      %v3201 = vpop.f32.mrf.mxu0
      %v3202 = vpop.f32.mrf.mxu0
      %v3203 = vadd.f32 0.0, %v3202
      %v3204 = vpop.f32.mrf.mxu0
      %3205 = vmatprep.mubr.bf16.mxu0 0
      %3206 = vmatmul.mubr.bf16.gmra.mxu0 %v3072
      %v3207 = vpop.f32.mrf.mxu0
      %v3208 = vadd.f32 0.0, %v3207
      %v3209 = vpop.f32.mrf.mxu0
      %v3210 = vpop.f32.mrf.mxu0
      %v3211 = vadd.f32 0.0, %v3210
      %v3212 = vpop.f32.mrf.mxu0
      %3213 = vmatprep.mubr.bf16.mxu0 0
      %3214 = vmatmul.mubr.bf16.gmra.mxu0 %v3073
      %v3215 = vpop.f32.mrf.mxu0
      %v3216 = vadd.f32 0.0, %v3215
      %v3217 = vpop.f32.mrf.mxu0
      %v3218 = vpop.f32.mrf.mxu0
      %v3219 = vadd.f32 0.0, %v3218
      %v3220 = vpop.f32.mrf.mxu0
      %3221 = vmatprep.mubr.bf16.mxu0 0
      %3222 = vmatmul.mubr.bf16.gmra.mxu0 %v3074
      %v3223 = vpop.f32.mrf.mxu0
      %v3224 = vadd.f32 0.0, %v3223
      %v3225 = vpop.f32.mrf.mxu0
      %v3226 = vpop.f32.mrf.mxu0
      %v3227 = vadd.f32 0.0, %v3226
      %v3228 = vpop.f32.mrf.mxu0
      %3229 = vmatprep.mubr.bf16.mxu0 0
      %3230 = vmatmul.mubr.bf16.gmra.mxu0 %v3075
      %v3231 = vpop.f32.mrf.mxu0
      %v3232 = vadd.f32 0.0, %v3231
      %v3233 = vpop.f32.mrf.mxu0
      %v3234 = vpop.f32.mrf.mxu0
      %v3235 = vadd.f32 0.0, %v3234
      %v3236 = vpop.f32.mrf.mxu0
      %3237 = vmatprep.mubr.bf16.mxu0 0
      %3238 = vmatmul.mubr.bf16.gmra.mxu0 %v3076
      %v3239 = vpop.f32.mrf.mxu0
      %v3240 = vadd.f32 0.0, %v3239
      %v3241 = vpop.f32.mrf.mxu0
      %v3242 = vpop.f32.mrf.mxu0
      %v3243 = vadd.f32 0.0, %v3242
      %v3244 = vpop.f32.mrf.mxu0
      %3245 = vmatprep.mubr.bf16.mxu0 0
      %3246 = vmatmul.mubr.bf16.gmra.mxu0 %v3077
      %v3247 = vpop.f32.mrf.mxu0
      %v3248 = vadd.f32 0.0, %v3247
      %v3249 = vpop.f32.mrf.mxu0
      %v3250 = vpop.f32.mrf.mxu0
      %v3251 = vadd.f32 0.0, %v3250
      %v3252 = vpop.f32.mrf.mxu0
      %3253 = vmatprep.mubr.bf16.mxu0 0
      %3254 = vmatmul.mubr.bf16.gmra.mxu0 %v3078
      %v3255 = vpop.f32.mrf.mxu0
      %v3256 = vadd.f32 0.0, %v3255
      %v3257 = vpop.f32.mrf.mxu0
      %v3258 = vpop.f32.mrf.mxu0
      %v3259 = vadd.f32 0.0, %v3258
      %v3260 = vpop.f32.mrf.mxu0
      %3261 = vmatprep.mubr.bf16.mxu0 0
      %3262 = vmatmul.mubr.bf16.gmra.mxu0 %v3079
      %v3263 = vpop.f32.mrf.mxu0
      %v3264 = vadd.f32 0.0, %v3263
      %v3265 = vpop.f32.mrf.mxu0
      %v3266 = vpop.f32.mrf.mxu0
      %v3267 = vadd.f32 0.0, %v3266
      %v3268 = vpop.f32.mrf.mxu0
      %3269 = vmatprep.mubr.bf16.mxu0 0
      %3270 = vmatmul.mubr.bf16.gmra.mxu0 %v3080
      %v3271 = vpop.f32.mrf.mxu0
      %v3272 = vadd.f32 0.0, %v3271
      %v3273 = vpop.f32.mrf.mxu0
      %v3274 = vpop.f32.mrf.mxu0
      %v3275 = vadd.f32 0.0, %v3274
      %v3276 = vpop.f32.mrf.mxu0
      %3277 = vmatprep.mubr.bf16.mxu0 0
      %3278 = vmatmul.mubr.bf16.gmra.mxu0 %v3081
      %v3279 = vpop.f32.mrf.mxu0
      %v3280 = vadd.f32 0.0, %v3279
      %v3281 = vpop.f32.mrf.mxu0
      %v3282 = vpop.f32.mrf.mxu0
      %v3283 = vadd.f32 0.0, %v3282
      %v3284 = vpop.f32.mrf.mxu0
      %3285 = vmatprep.mubr.bf16.mxu0 0
      %3286 = vmatmul.mubr.bf16.gmra.mxu0 %v3082
      %v3287 = vpop.f32.mrf.mxu0
      %v3288 = vadd.f32 0.0, %v3287
      %v3289 = vpop.f32.mrf.mxu0
      %v3290 = vpop.f32.mrf.mxu0
      %v3291 = vadd.f32 0.0, %v3290
      %v3292 = vpop.f32.mrf.mxu0
      %3293 = vmatprep.mubr.bf16.mxu0 0
      %3294 = vmatmul.mubr.bf16.gmra.mxu0 %v3083
      %v3295 = vpop.f32.mrf.mxu0
      %v3296 = vadd.f32 0.0, %v3295
      %v3297 = vpop.f32.mrf.mxu0
      %v3298 = vpop.f32.mrf.mxu0
      %v3299 = vadd.f32 0.0, %v3298
      %v3300 = vpop.f32.mrf.mxu0
      %3301 = vmatprep.mubr.bf16.mxu0 0
      %3302 = vmatmul.mubr.bf16.gmra.mxu0 %v3084
      %v3303 = vpop.f32.mrf.mxu0
      %v3304 = vadd.f32 0.0, %v3303
      %v3305 = vpop.f32.mrf.mxu0
      %v3306 = vpop.f32.mrf.mxu0
      %v3307 = vadd.f32 0.0, %v3306
      %v3308 = vpop.f32.mrf.mxu0
      %3309 = vdwg.mxu0
      %v3310 = vadd.f32 %v2812, %v3184
      %v3311 = vadd.f32 %v2813, %v3187
      %v3312 = vadd.f32 %v2814, %v3192
      %v3313 = vadd.f32 %v2815, %v3195
      %v3314 = vadd.f32 %v2816, %v3200
      %v3315 = vadd.f32 %v2817, %v3203
      %v3316 = vadd.f32 %v2818, %v3208
      %v3317 = vadd.f32 %v2819, %v3211
      %v3318 = vadd.f32 %v2820, %v3216
      %v3319 = vadd.f32 %v2821, %v3219
      %v3320 = vadd.f32 %v2822, %v3224
      %v3321 = vadd.f32 %v2823, %v3227
      %v3322 = vadd.f32 %v2824, %v3232
      %v3323 = vadd.f32 %v2825, %v3235
      %v3324 = vadd.f32 %v2826, %v3240
      %v3325 = vadd.f32 %v2827, %v3243
      %v3326 = vadd.f32 %v2828, %v3248
      %v3327 = vadd.f32 %v2829, %v3251
      %v3328 = vadd.f32 %v2830, %v3256
      %v3329 = vadd.f32 %v2831, %v3259
      %v3330 = vadd.f32 %v2832, %v3264
      %v3331 = vadd.f32 %v2833, %v3267
      %v3332 = vadd.f32 %v2834, %v3272
      %v3333 = vadd.f32 %v2835, %v3275
      %v3334 = vadd.f32 %v2836, %v3280
      %v3335 = vadd.f32 %v2837, %v3283
      %v3336 = vadd.f32 %v2838, %v3288
      %v3337 = vadd.f32 %v2839, %v3291
      %v3338 = vadd.f32 %v2840, %v3296
      %v3339 = vadd.f32 %v2841, %v3299
      %v3340 = vadd.f32 %v2842, %v3304
      %v3341 = vadd.f32 %v2843, %v3307
      %s3342 = scalar_lea.vmem %s165, 24
      %v3343 = vld [vmem:[%s3342] sm:$0xf]
      %v3344 = vld [vmem:[%s3342 + $0x4] sm:$0xf]
      %v3345 = vld [vmem:[%s3342 + $0xc] sm:$0xf]
      %v3346 = vld [vmem:[%s3342 + $0x10] sm:$0xf]
      %v3347 = vld [vmem:[%s3342 + $0x18] sm:$0xf]
      %v3348 = vld [vmem:[%s3342 + $0x1c] sm:$0xf]
      %v3349 = vld [vmem:[%s3342 + $0x24] sm:$0xf]
      %v3350 = vld [vmem:[%s3342 + $0x28] sm:$0xf]
      %v3351 = vld [vmem:[%s3342 + $0x30] sm:$0xf]
      %v3352 = vld [vmem:[%s3342 + $0x34] sm:$0xf]
      %v3353 = vld [vmem:[%s3342 + $0x3c] sm:$0xf]
      %v3354 = vld [vmem:[%s3342 + $0x40] sm:$0xf]
      %v3355 = vld [vmem:[%s3342 + $0x48] sm:$0xf]
      %v3356 = vld [vmem:[%s3342 + $0x4c] sm:$0xf]
      %v3357 = vld [vmem:[%s3342 + $0x54] sm:$0xf]
      %v3358 = vld [vmem:[%s3342 + $0x58] sm:$0xf]
      %v3359 = vld [vmem:[%s3342 + $0x60] sm:$0xf]
      %v3360 = vld [vmem:[%s3342 + $0x64] sm:$0xf]
      %v3361 = vld [vmem:[%s3342 + $0x6c] sm:$0xf]
      %v3362 = vld [vmem:[%s3342 + $0x70] sm:$0xf]
      %v3363 = vld [vmem:[%s3342 + $0x78] sm:$0xf]
      %v3364 = vld [vmem:[%s3342 + $0x7c] sm:$0xf]
      %v3365 = vld [vmem:[%s3342 + $0x84] sm:$0xf]
      %v3366 = vld [vmem:[%s3342 + $0x88] sm:$0xf]
      %v3367 = vld [vmem:[%s3342 + $0x90] sm:$0xf]
      %v3368 = vld [vmem:[%s3342 + $0x94] sm:$0xf]
      %v3369 = vld [vmem:[%s3342 + $0x9c] sm:$0xf]
      %v3370 = vld [vmem:[%s3342 + $0xa0] sm:$0xf]
      %v3371 = vld [vmem:[%s3342 + $0xa8] sm:$0xf]
      %v3372 = vld [vmem:[%s3342 + $0xac] sm:$0xf]
      %v3373 = vld [vmem:[%s3342 + $0xb4] sm:$0xf]
      %v3374 = vld [vmem:[%s3342 + $0xb8] sm:$0xf]
      %s3375 = scalar_lea.vmem %s1, 384
      %v3376 = vld [vmem:[%s3375] sm:$0xf]
      %v3377 = vld [vmem:[%s3375 + $0x4] sm:$0xf]
      %v3378 = vld [vmem:[%s3375 + $0x8] sm:$0xf]
      %v3379 = vld [vmem:[%s3375 + $0xc] sm:$0xf]
      %v3380 = vld [vmem:[%s3375 + $0x10] sm:$0xf]
      %v3381 = vld [vmem:[%s3375 + $0x14] sm:$0xf]
      %v3382 = vld [vmem:[%s3375 + $0x18] sm:$0xf]
      %v3383 = vld [vmem:[%s3375 + $0x1c] sm:$0xf]
      %v3384 = vld [vmem:[%s3375 + $0x20] sm:$0xf]
      %v3385 = vld [vmem:[%s3375 + $0x24] sm:$0xf]
      %v3386 = vld [vmem:[%s3375 + $0x28] sm:$0xf]
      %v3387 = vld [vmem:[%s3375 + $0x2c] sm:$0xf]
      %v3388 = vld [vmem:[%s3375 + $0x30] sm:$0xf]
      %v3389 = vld [vmem:[%s3375 + $0x34] sm:$0xf]
      %v3390 = vld [vmem:[%s3375 + $0x38] sm:$0xf]
      %v3391 = vld [vmem:[%s3375 + $0x3c] sm:$0xf]
      %v3424 = vunpack.c.l.b16 %v3343
      %v3425 = vunpack.c.l.b16 %v3344
      %v3426 = vunpack.c.l.b16 %v3345
      %v3427 = vunpack.c.l.b16 %v3346
      %v3428 = vunpack.c.l.b16 %v3347
      %v3429 = vunpack.c.l.b16 %v3348
      %v3430 = vunpack.c.l.b16 %v3349
      %v3431 = vunpack.c.l.b16 %v3350
      %v3432 = vunpack.c.l.b16 %v3351
      %v3433 = vunpack.c.l.b16 %v3352
      %v3434 = vunpack.c.l.b16 %v3353
      %v3435 = vunpack.c.l.b16 %v3354
      %v3436 = vunpack.c.l.b16 %v3355
      %v3437 = vunpack.c.l.b16 %v3356
      %v3438 = vunpack.c.l.b16 %v3357
      %v3439 = vunpack.c.l.b16 %v3358
      %v3440 = vunpack.c.l.b16 %v3359
      %v3441 = vunpack.c.l.b16 %v3360
      %v3442 = vunpack.c.l.b16 %v3361
      %v3443 = vunpack.c.l.b16 %v3362
      %v3444 = vunpack.c.l.b16 %v3363
      %v3445 = vunpack.c.l.b16 %v3364
      %v3446 = vunpack.c.l.b16 %v3365
      %v3447 = vunpack.c.l.b16 %v3366
      %v3448 = vunpack.c.l.b16 %v3367
      %v3449 = vunpack.c.l.b16 %v3368
      %v3450 = vunpack.c.l.b16 %v3369
      %v3451 = vunpack.c.l.b16 %v3370
      %v3452 = vunpack.c.l.b16 %v3371
      %v3453 = vunpack.c.l.b16 %v3372
      %v3454 = vunpack.c.l.b16 %v3373
      %v3455 = vunpack.c.l.b16 %v3374
      %v3456 = vpack.c.b16 %v3425, %v3424
      %v3457 = vpack.c.b16 %v3427, %v3426
      %v3458 = vpack.c.b16 %v3429, %v3428
      %v3459 = vpack.c.b16 %v3431, %v3430
      %v3460 = vpack.c.b16 %v3433, %v3432
      %v3461 = vpack.c.b16 %v3435, %v3434
      %v3462 = vpack.c.b16 %v3437, %v3436
      %v3463 = vpack.c.b16 %v3439, %v3438
      %v3464 = vpack.c.b16 %v3441, %v3440
      %v3465 = vpack.c.b16 %v3443, %v3442
      %v3466 = vpack.c.b16 %v3445, %v3444
      %v3467 = vpack.c.b16 %v3447, %v3446
      %v3468 = vpack.c.b16 %v3449, %v3448
      %v3469 = vpack.c.b16 %v3451, %v3450
      %v3470 = vpack.c.b16 %v3453, %v3452
      %v3471 = vpack.c.b16 %v3455, %v3454
      %v3504 = vunpack.c.l.b16 %v3376
      %v3505 = vunpack.c.l.b16 %v3377
      %v3506 = vunpack.c.l.b16 %v3378
      %v3507 = vunpack.c.l.b16 %v3379
      %v3508 = vunpack.c.l.b16 %v3380
      %v3509 = vunpack.c.l.b16 %v3381
      %v3510 = vunpack.c.l.b16 %v3382
      %v3511 = vunpack.c.l.b16 %v3383
      %v3512 = vunpack.c.l.b16 %v3384
      %v3513 = vunpack.c.l.b16 %v3385
      %v3514 = vunpack.c.l.b16 %v3386
      %v3515 = vunpack.c.l.b16 %v3387
      %v3516 = vunpack.c.l.b16 %v3388
      %v3517 = vunpack.c.l.b16 %v3389
      %v3518 = vunpack.c.l.b16 %v3390
      %v3519 = vunpack.c.l.b16 %v3391
      %v3520 = vpack.c.b16 %v3505, %v3504
      %v3521 = vpack.c.b16 %v3507, %v3506
      %v3522 = vpack.c.b16 %v3509, %v3508
      %v3523 = vpack.c.b16 %v3511, %v3510
      %v3524 = vpack.c.b16 %v3513, %v3512
      %v3525 = vpack.c.b16 %v3515, %v3514
      %v3526 = vpack.c.b16 %v3517, %v3516
      %v3527 = vpack.c.b16 %v3519, %v3518
      %3536 = vmatprep.subr.bf16.mxu0 0
      %3537 = vmatpush1.bf16.msra.mxu0 %v3527
      %3538 = vmatprep.subr.bf16.mxu0 0
      %3539 = vmatpush1.bf16.msra.mxu0 %v3526
      %3540 = vmatprep.subr.bf16.mxu0 0
      %3541 = vmatpush1.bf16.msra.mxu0 %v3525
      %3542 = vmatprep.subr.bf16.mxu0 0
      %3543 = vmatpush1.bf16.msra.mxu0 %v3524
      %3544 = vmatprep.subr.bf16.mxu0 0
      %3545 = vmatpush1.bf16.msra.mxu0 %v3523
      %3546 = vmatprep.subr.bf16.mxu0 0
      %3547 = vmatpush1.bf16.msra.mxu0 %v3522
      %3548 = vmatprep.subr.bf16.mxu0 0
      %3549 = vmatpush1.bf16.msra.mxu0 %v3521
      %3550 = vmatprep.subr.bf16.mxu0 0
      %3551 = vmatpush1.bf16.msra.mxu0 %v3520
      %3552 = vmatprep.subr.bf16.mxu0 0
      %3553 = vmatpush2.bf16.msra.mxu0 0
      %3554 = vmatprep.subr.bf16.mxu0 0
      %3555 = vmatpush2.bf16.msra.mxu0 0
      %3556 = vmatprep.subr.bf16.mxu0 0
      %3557 = vmatpush2.bf16.msra.mxu0 0
      %3558 = vmatprep.subr.bf16.mxu0 0
      %3559 = vmatpush2.bf16.msra.mxu0 0
      %3560 = vmatprep.subr.bf16.mxu0 0
      %3561 = vmatpush2.bf16.msra.mxu0 0
      %3562 = vmatprep.subr.bf16.mxu0 0
      %3563 = vmatpush2.bf16.msra.mxu0 0
      %3564 = vmatprep.subr.bf16.mxu0 0
      %3565 = vmatpush2.bf16.msra.mxu0 0
      %3566 = vmatprep.subr.bf16.mxu0 0
      %3567 = vmatpush2.bf16.msra.mxu0 0
      %3568 = vmatprep.mubr.bf16.mxu0 0
      %3569 = vmatmul.mubr.bf16.gmra.mxu0 %v3456
      %v3570 = vpop.f32.mrf.mxu0
      %v3571 = vadd.f32 0.0, %v3570
      %v3572 = vpop.f32.mrf.mxu0
      %v3573 = vpop.f32.mrf.mxu0
      %v3574 = vadd.f32 0.0, %v3573
      %v3575 = vpop.f32.mrf.mxu0
      %3576 = vmatprep.mubr.bf16.mxu0 0
      %3577 = vmatmul.mubr.bf16.gmra.mxu0 %v3457
      %v3578 = vpop.f32.mrf.mxu0
      %v3579 = vadd.f32 0.0, %v3578
      %v3580 = vpop.f32.mrf.mxu0
      %v3581 = vpop.f32.mrf.mxu0
      %v3582 = vadd.f32 0.0, %v3581
      %v3583 = vpop.f32.mrf.mxu0
      %3584 = vmatprep.mubr.bf16.mxu0 0
      %3585 = vmatmul.mubr.bf16.gmra.mxu0 %v3458
      %v3586 = vpop.f32.mrf.mxu0
      %v3587 = vadd.f32 0.0, %v3586
      %v3588 = vpop.f32.mrf.mxu0
      %v3589 = vpop.f32.mrf.mxu0
      %v3590 = vadd.f32 0.0, %v3589
      %v3591 = vpop.f32.mrf.mxu0
      %3592 = vmatprep.mubr.bf16.mxu0 0
      %3593 = vmatmul.mubr.bf16.gmra.mxu0 %v3459
      %v3594 = vpop.f32.mrf.mxu0
      %v3595 = vadd.f32 0.0, %v3594
      %v3596 = vpop.f32.mrf.mxu0
      %v3597 = vpop.f32.mrf.mxu0
      %v3598 = vadd.f32 0.0, %v3597
      %v3599 = vpop.f32.mrf.mxu0
      %3600 = vmatprep.mubr.bf16.mxu0 0
      %3601 = vmatmul.mubr.bf16.gmra.mxu0 %v3460
      %v3602 = vpop.f32.mrf.mxu0
      %v3603 = vadd.f32 0.0, %v3602
      %v3604 = vpop.f32.mrf.mxu0
      %v3605 = vpop.f32.mrf.mxu0
      %v3606 = vadd.f32 0.0, %v3605
      %v3607 = vpop.f32.mrf.mxu0
      %3608 = vmatprep.mubr.bf16.mxu0 0
      %3609 = vmatmul.mubr.bf16.gmra.mxu0 %v3461
      %v3610 = vpop.f32.mrf.mxu0
      %v3611 = vadd.f32 0.0, %v3610
      %v3612 = vpop.f32.mrf.mxu0
      %v3613 = vpop.f32.mrf.mxu0
      %v3614 = vadd.f32 0.0, %v3613
      %v3615 = vpop.f32.mrf.mxu0
      %3616 = vmatprep.mubr.bf16.mxu0 0
      %3617 = vmatmul.mubr.bf16.gmra.mxu0 %v3462
      %v3618 = vpop.f32.mrf.mxu0
      %v3619 = vadd.f32 0.0, %v3618
      %v3620 = vpop.f32.mrf.mxu0
      %v3621 = vpop.f32.mrf.mxu0
      %v3622 = vadd.f32 0.0, %v3621
      %v3623 = vpop.f32.mrf.mxu0
      %3624 = vmatprep.mubr.bf16.mxu0 0
      %3625 = vmatmul.mubr.bf16.gmra.mxu0 %v3463
      %v3626 = vpop.f32.mrf.mxu0
      %v3627 = vadd.f32 0.0, %v3626
      %v3628 = vpop.f32.mrf.mxu0
      %v3629 = vpop.f32.mrf.mxu0
      %v3630 = vadd.f32 0.0, %v3629
      %v3631 = vpop.f32.mrf.mxu0
      %3632 = vmatprep.mubr.bf16.mxu0 0
      %3633 = vmatmul.mubr.bf16.gmra.mxu0 %v3464
      %v3634 = vpop.f32.mrf.mxu0
      %v3635 = vadd.f32 0.0, %v3634
      %v3636 = vpop.f32.mrf.mxu0
      %v3637 = vpop.f32.mrf.mxu0
      %v3638 = vadd.f32 0.0, %v3637
      %v3639 = vpop.f32.mrf.mxu0
      %3640 = vmatprep.mubr.bf16.mxu0 0
      %3641 = vmatmul.mubr.bf16.gmra.mxu0 %v3465
      %v3642 = vpop.f32.mrf.mxu0
      %v3643 = vadd.f32 0.0, %v3642
      %v3644 = vpop.f32.mrf.mxu0
      %v3645 = vpop.f32.mrf.mxu0
      %v3646 = vadd.f32 0.0, %v3645
      %v3647 = vpop.f32.mrf.mxu0
      %3648 = vmatprep.mubr.bf16.mxu0 0
      %3649 = vmatmul.mubr.bf16.gmra.mxu0 %v3466
      %v3650 = vpop.f32.mrf.mxu0
      %v3651 = vadd.f32 0.0, %v3650
      %v3652 = vpop.f32.mrf.mxu0
      %v3653 = vpop.f32.mrf.mxu0
      %v3654 = vadd.f32 0.0, %v3653
      %v3655 = vpop.f32.mrf.mxu0
      %3656 = vmatprep.mubr.bf16.mxu0 0
      %3657 = vmatmul.mubr.bf16.gmra.mxu0 %v3467
      %v3658 = vpop.f32.mrf.mxu0
      %v3659 = vadd.f32 0.0, %v3658
      %v3660 = vpop.f32.mrf.mxu0
      %v3661 = vpop.f32.mrf.mxu0
      %v3662 = vadd.f32 0.0, %v3661
      %v3663 = vpop.f32.mrf.mxu0
      %3664 = vmatprep.mubr.bf16.mxu0 0
      %3665 = vmatmul.mubr.bf16.gmra.mxu0 %v3468
      %v3666 = vpop.f32.mrf.mxu0
      %v3667 = vadd.f32 0.0, %v3666
      %v3668 = vpop.f32.mrf.mxu0
      %v3669 = vpop.f32.mrf.mxu0
      %v3670 = vadd.f32 0.0, %v3669
      %v3671 = vpop.f32.mrf.mxu0
      %3672 = vmatprep.mubr.bf16.mxu0 0
      %3673 = vmatmul.mubr.bf16.gmra.mxu0 %v3469
      %v3674 = vpop.f32.mrf.mxu0
      %v3675 = vadd.f32 0.0, %v3674
      %v3676 = vpop.f32.mrf.mxu0
      %v3677 = vpop.f32.mrf.mxu0
      %v3678 = vadd.f32 0.0, %v3677
      %v3679 = vpop.f32.mrf.mxu0
      %3680 = vmatprep.mubr.bf16.mxu0 0
      %3681 = vmatmul.mubr.bf16.gmra.mxu0 %v3470
      %v3682 = vpop.f32.mrf.mxu0
      %v3683 = vadd.f32 0.0, %v3682
      %v3684 = vpop.f32.mrf.mxu0
      %v3685 = vpop.f32.mrf.mxu0
      %v3686 = vadd.f32 0.0, %v3685
      %v3687 = vpop.f32.mrf.mxu0
      %3688 = vmatprep.mubr.bf16.mxu0 0
      %3689 = vmatmul.mubr.bf16.gmra.mxu0 %v3471
      %v3690 = vpop.f32.mrf.mxu0
      %v3691 = vadd.f32 0.0, %v3690
      %v3692 = vpop.f32.mrf.mxu0
      %v3693 = vpop.f32.mrf.mxu0
      %v3694 = vadd.f32 0.0, %v3693
      %v3695 = vpop.f32.mrf.mxu0
      %3696 = vdwg.mxu0
      %v3697 = vadd.f32 %v3310, %v3571
      %v3698 = vadd.f32 %v3311, %v3574
      %v3699 = vadd.f32 %v3312, %v3579
      %v3700 = vadd.f32 %v3313, %v3582
      %v3701 = vadd.f32 %v3314, %v3587
      %v3702 = vadd.f32 %v3315, %v3590
      %v3703 = vadd.f32 %v3316, %v3595
      %v3704 = vadd.f32 %v3317, %v3598
      %v3705 = vadd.f32 %v3318, %v3603
      %v3706 = vadd.f32 %v3319, %v3606
      %v3707 = vadd.f32 %v3320, %v3611
      %v3708 = vadd.f32 %v3321, %v3614
      %v3709 = vadd.f32 %v3322, %v3619
      %v3710 = vadd.f32 %v3323, %v3622
      %v3711 = vadd.f32 %v3324, %v3627
      %v3712 = vadd.f32 %v3325, %v3630
      %v3713 = vadd.f32 %v3326, %v3635
      %v3714 = vadd.f32 %v3327, %v3638
      %v3715 = vadd.f32 %v3328, %v3643
      %v3716 = vadd.f32 %v3329, %v3646
      %v3717 = vadd.f32 %v3330, %v3651
      %v3718 = vadd.f32 %v3331, %v3654
      %v3719 = vadd.f32 %v3332, %v3659
      %v3720 = vadd.f32 %v3333, %v3662
      %v3721 = vadd.f32 %v3334, %v3667
      %v3722 = vadd.f32 %v3335, %v3670
      %v3723 = vadd.f32 %v3336, %v3675
      %v3724 = vadd.f32 %v3337, %v3678
      %v3725 = vadd.f32 %v3338, %v3683
      %v3726 = vadd.f32 %v3339, %v3686
      %v3727 = vadd.f32 %v3340, %v3691
      %v3728 = vadd.f32 %v3341, %v3694
      %v3729 = vld [vmem:[%s3342] sm:$0xf]
      %v3730 = vld [vmem:[%s3342 + $0x4] sm:$0xf]
      %v3731 = vld [vmem:[%s3342 + $0x8] sm:$0x1]
      %v3732 = vld [vmem:[%s3342 + $0xc] sm:$0xf]
      %v3733 = vld [vmem:[%s3342 + $0x10] sm:$0xf]
      %v3734 = vld [vmem:[%s3342 + $0x14] sm:$0x1]
      %v3735 = vld [vmem:[%s3342 + $0x18] sm:$0xf]
      %v3736 = vld [vmem:[%s3342 + $0x1c] sm:$0xf]
      %v3737 = vld [vmem:[%s3342 + $0x20] sm:$0x1]
      %v3738 = vld [vmem:[%s3342 + $0x24] sm:$0xf]
      %v3739 = vld [vmem:[%s3342 + $0x28] sm:$0xf]
      %v3740 = vld [vmem:[%s3342 + $0x2c] sm:$0x1]
      %v3741 = vld [vmem:[%s3342 + $0x30] sm:$0xf]
      %v3742 = vld [vmem:[%s3342 + $0x34] sm:$0xf]
      %v3743 = vld [vmem:[%s3342 + $0x38] sm:$0x1]
      %v3744 = vld [vmem:[%s3342 + $0x3c] sm:$0xf]
      %v3745 = vld [vmem:[%s3342 + $0x40] sm:$0xf]
      %v3746 = vld [vmem:[%s3342 + $0x44] sm:$0x1]
      %v3747 = vld [vmem:[%s3342 + $0x48] sm:$0xf]
      %v3748 = vld [vmem:[%s3342 + $0x4c] sm:$0xf]
      %v3749 = vld [vmem:[%s3342 + $0x50] sm:$0x1]
      %v3750 = vld [vmem:[%s3342 + $0x54] sm:$0xf]
      %v3751 = vld [vmem:[%s3342 + $0x58] sm:$0xf]
      %v3752 = vld [vmem:[%s3342 + $0x5c] sm:$0x1]
      %v3753 = vld [vmem:[%s3342 + $0x60] sm:$0xf]
      %v3754 = vld [vmem:[%s3342 + $0x64] sm:$0xf]
      %v3755 = vld [vmem:[%s3342 + $0x68] sm:$0x1]
      %v3756 = vld [vmem:[%s3342 + $0x6c] sm:$0xf]
      %v3757 = vld [vmem:[%s3342 + $0x70] sm:$0xf]
      %v3758 = vld [vmem:[%s3342 + $0x74] sm:$0x1]
      %v3759 = vld [vmem:[%s3342 + $0x78] sm:$0xf]
      %v3760 = vld [vmem:[%s3342 + $0x7c] sm:$0xf]
      %v3761 = vld [vmem:[%s3342 + $0x80] sm:$0x1]
      %v3762 = vld [vmem:[%s3342 + $0x84] sm:$0xf]
      %v3763 = vld [vmem:[%s3342 + $0x88] sm:$0xf]
      %v3764 = vld [vmem:[%s3342 + $0x8c] sm:$0x1]
      %v3765 = vld [vmem:[%s3342 + $0x90] sm:$0xf]
      %v3766 = vld [vmem:[%s3342 + $0x94] sm:$0xf]
      %v3767 = vld [vmem:[%s3342 + $0x98] sm:$0x1]
      %v3768 = vld [vmem:[%s3342 + $0x9c] sm:$0xf]
      %v3769 = vld [vmem:[%s3342 + $0xa0] sm:$0xf]
      %v3770 = vld [vmem:[%s3342 + $0xa4] sm:$0x1]
      %v3771 = vld [vmem:[%s3342 + $0xa8] sm:$0xf]
      %v3772 = vld [vmem:[%s3342 + $0xac] sm:$0xf]
      %v3773 = vld [vmem:[%s3342 + $0xb0] sm:$0x1]
      %v3774 = vld [vmem:[%s3342 + $0xb4] sm:$0xf]
      %v3775 = vld [vmem:[%s3342 + $0xb8] sm:$0xf]
      %v3776 = vld [vmem:[%s3342 + $0xbc] sm:$0x1]
      %v3778 = vshrl.u32 %v3729, 16
      %v3780 = vrot.slane %v3778, 4
      %v3781 = vshll.u32 %v3729, 16
      %v3783 = vrot.slane %v3781, 5
      %v3784 = vor.u32 %v3780, %v3783
      %v3785 = vrot.slane %v3784, 4
      %v3787 = vshll.u32 %v3730, 16
      %v3789 = vrot.slane %v3787, 5
      %v3790 = vsel %vm238, %v3785, %v3789
      %v3791 = vshrl.u32 %v3730, 16
      %v3793 = vrot.slane %v3791, 4
      %v3794 = vor.u32 %v3793, %v3789
      %v3795 = vrot.slane %v3794, 4
      %v3797 = vshll.u32 %v3731, 16
      %v3799 = vrot.slane %v3797, 5
      %v3800 = vsel %vm238, %v3795, %v3799
      %v3802 = vshrl.u32 %v3732, 16
      %v3804 = vrot.slane %v3802, 4
      %v3805 = vshll.u32 %v3732, 16
      %v3807 = vrot.slane %v3805, 5
      %v3808 = vor.u32 %v3804, %v3807
      %v3809 = vrot.slane %v3808, 4
      %v3811 = vshll.u32 %v3733, 16
      %v3813 = vrot.slane %v3811, 5
      %v3814 = vsel %vm238, %v3809, %v3813
      %v3815 = vshrl.u32 %v3733, 16
      %v3817 = vrot.slane %v3815, 4
      %v3818 = vor.u32 %v3817, %v3813
      %v3819 = vrot.slane %v3818, 4
      %v3821 = vshll.u32 %v3734, 16
      %v3823 = vrot.slane %v3821, 5
      %v3824 = vsel %vm238, %v3819, %v3823
      %v3826 = vshrl.u32 %v3735, 16
      %v3828 = vrot.slane %v3826, 4
      %v3829 = vshll.u32 %v3735, 16
      %v3831 = vrot.slane %v3829, 5
      %v3832 = vor.u32 %v3828, %v3831
      %v3833 = vrot.slane %v3832, 4
      %v3835 = vshll.u32 %v3736, 16
      %v3837 = vrot.slane %v3835, 5
      %v3838 = vsel %vm238, %v3833, %v3837
      %v3839 = vshrl.u32 %v3736, 16
      %v3841 = vrot.slane %v3839, 4
      %v3842 = vor.u32 %v3841, %v3837
      %v3843 = vrot.slane %v3842, 4
      %v3845 = vshll.u32 %v3737, 16
      %v3847 = vrot.slane %v3845, 5
      %v3848 = vsel %vm238, %v3843, %v3847
      %v3850 = vshrl.u32 %v3738, 16
      %v3852 = vrot.slane %v3850, 4
      %v3853 = vshll.u32 %v3738, 16
      %v3855 = vrot.slane %v3853, 5
      %v3856 = vor.u32 %v3852, %v3855
      %v3857 = vrot.slane %v3856, 4
      %v3859 = vshll.u32 %v3739, 16
      %v3861 = vrot.slane %v3859, 5
      %v3862 = vsel %vm238, %v3857, %v3861
      %v3863 = vshrl.u32 %v3739, 16
      %v3865 = vrot.slane %v3863, 4
      %v3866 = vor.u32 %v3865, %v3861
      %v3867 = vrot.slane %v3866, 4
      %v3869 = vshll.u32 %v3740, 16
      %v3871 = vrot.slane %v3869, 5
      %v3872 = vsel %vm238, %v3867, %v3871
      %v3874 = vshrl.u32 %v3741, 16
      %v3876 = vrot.slane %v3874, 4
      %v3877 = vshll.u32 %v3741, 16
      %v3879 = vrot.slane %v3877, 5
      %v3880 = vor.u32 %v3876, %v3879
      %v3881 = vrot.slane %v3880, 4
      %v3883 = vshll.u32 %v3742, 16
      %v3885 = vrot.slane %v3883, 5
      %v3886 = vsel %vm238, %v3881, %v3885
      %v3887 = vshrl.u32 %v3742, 16
      %v3889 = vrot.slane %v3887, 4
      %v3890 = vor.u32 %v3889, %v3885
      %v3891 = vrot.slane %v3890, 4
      %v3893 = vshll.u32 %v3743, 16
      %v3895 = vrot.slane %v3893, 5
      %v3896 = vsel %vm238, %v3891, %v3895
      %v3898 = vshrl.u32 %v3744, 16
      %v3900 = vrot.slane %v3898, 4
      %v3901 = vshll.u32 %v3744, 16
      %v3903 = vrot.slane %v3901, 5
      %v3904 = vor.u32 %v3900, %v3903
      %v3905 = vrot.slane %v3904, 4
      %v3907 = vshll.u32 %v3745, 16
      %v3909 = vrot.slane %v3907, 5
      %v3910 = vsel %vm238, %v3905, %v3909
      %v3911 = vshrl.u32 %v3745, 16
      %v3913 = vrot.slane %v3911, 4
      %v3914 = vor.u32 %v3913, %v3909
      %v3915 = vrot.slane %v3914, 4
      %v3917 = vshll.u32 %v3746, 16
      %v3919 = vrot.slane %v3917, 5
      %v3920 = vsel %vm238, %v3915, %v3919
      %v3922 = vshrl.u32 %v3747, 16
      %v3924 = vrot.slane %v3922, 4
      %v3925 = vshll.u32 %v3747, 16
      %v3927 = vrot.slane %v3925, 5
      %v3928 = vor.u32 %v3924, %v3927
      %v3929 = vrot.slane %v3928, 4
      %v3931 = vshll.u32 %v3748, 16
      %v3933 = vrot.slane %v3931, 5
      %v3934 = vsel %vm238, %v3929, %v3933
      %v3935 = vshrl.u32 %v3748, 16
      %v3937 = vrot.slane %v3935, 4
      %v3938 = vor.u32 %v3937, %v3933
      %v3939 = vrot.slane %v3938, 4
      %v3941 = vshll.u32 %v3749, 16
      %v3943 = vrot.slane %v3941, 5
      %v3944 = vsel %vm238, %v3939, %v3943
      %v3946 = vshrl.u32 %v3750, 16
      %v3948 = vrot.slane %v3946, 4
      %v3949 = vshll.u32 %v3750, 16
      %v3951 = vrot.slane %v3949, 5
      %v3952 = vor.u32 %v3948, %v3951
      %v3953 = vrot.slane %v3952, 4
      %v3955 = vshll.u32 %v3751, 16
      %v3957 = vrot.slane %v3955, 5
      %v3958 = vsel %vm238, %v3953, %v3957
      %v3959 = vshrl.u32 %v3751, 16
      %v3961 = vrot.slane %v3959, 4
      %v3962 = vor.u32 %v3961, %v3957
      %v3963 = vrot.slane %v3962, 4
      %v3965 = vshll.u32 %v3752, 16
      %v3967 = vrot.slane %v3965, 5
      %v3968 = vsel %vm238, %v3963, %v3967
      %v3970 = vshrl.u32 %v3753, 16
      %v3972 = vrot.slane %v3970, 4
      %v3973 = vshll.u32 %v3753, 16
      %v3975 = vrot.slane %v3973, 5
      %v3976 = vor.u32 %v3972, %v3975
      %v3977 = vrot.slane %v3976, 4
      %v3979 = vshll.u32 %v3754, 16
      %v3981 = vrot.slane %v3979, 5
      %v3982 = vsel %vm238, %v3977, %v3981
      %v3983 = vshrl.u32 %v3754, 16
      %v3985 = vrot.slane %v3983, 4
      %v3986 = vor.u32 %v3985, %v3981
      %v3987 = vrot.slane %v3986, 4
      %v3989 = vshll.u32 %v3755, 16
      %v3991 = vrot.slane %v3989, 5
      %v3992 = vsel %vm238, %v3987, %v3991
      %v3994 = vshrl.u32 %v3756, 16
      %v3996 = vrot.slane %v3994, 4
      %v3997 = vshll.u32 %v3756, 16
      %v3999 = vrot.slane %v3997, 5
      %v4000 = vor.u32 %v3996, %v3999
      %v4001 = vrot.slane %v4000, 4
      %v4003 = vshll.u32 %v3757, 16
      %v4005 = vrot.slane %v4003, 5
      %v4006 = vsel %vm238, %v4001, %v4005
      %v4007 = vshrl.u32 %v3757, 16
      %v4009 = vrot.slane %v4007, 4
      %v4010 = vor.u32 %v4009, %v4005
      %v4011 = vrot.slane %v4010, 4
      %v4013 = vshll.u32 %v3758, 16
      %v4015 = vrot.slane %v4013, 5
      %v4016 = vsel %vm238, %v4011, %v4015
      %v4018 = vshrl.u32 %v3759, 16
      %v4020 = vrot.slane %v4018, 4
      %v4021 = vshll.u32 %v3759, 16
      %v4023 = vrot.slane %v4021, 5
      %v4024 = vor.u32 %v4020, %v4023
      %v4025 = vrot.slane %v4024, 4
      %v4027 = vshll.u32 %v3760, 16
      %v4029 = vrot.slane %v4027, 5
      %v4030 = vsel %vm238, %v4025, %v4029
      %v4031 = vshrl.u32 %v3760, 16
      %v4033 = vrot.slane %v4031, 4
      %v4034 = vor.u32 %v4033, %v4029
      %v4035 = vrot.slane %v4034, 4
      %v4037 = vshll.u32 %v3761, 16
      %v4039 = vrot.slane %v4037, 5
      %v4040 = vsel %vm238, %v4035, %v4039
      %v4042 = vshrl.u32 %v3762, 16
      %v4044 = vrot.slane %v4042, 4
      %v4045 = vshll.u32 %v3762, 16
      %v4047 = vrot.slane %v4045, 5
      %v4048 = vor.u32 %v4044, %v4047
      %v4049 = vrot.slane %v4048, 4
      %v4051 = vshll.u32 %v3763, 16
      %v4053 = vrot.slane %v4051, 5
      %v4054 = vsel %vm238, %v4049, %v4053
      %v4055 = vshrl.u32 %v3763, 16
      %v4057 = vrot.slane %v4055, 4
      %v4058 = vor.u32 %v4057, %v4053
      %v4059 = vrot.slane %v4058, 4
      %v4061 = vshll.u32 %v3764, 16
      %v4063 = vrot.slane %v4061, 5
      %v4064 = vsel %vm238, %v4059, %v4063
      %v4066 = vshrl.u32 %v3765, 16
      %v4068 = vrot.slane %v4066, 4
      %v4069 = vshll.u32 %v3765, 16
      %v4071 = vrot.slane %v4069, 5
      %v4072 = vor.u32 %v4068, %v4071
      %v4073 = vrot.slane %v4072, 4
      %v4075 = vshll.u32 %v3766, 16
      %v4077 = vrot.slane %v4075, 5
      %v4078 = vsel %vm238, %v4073, %v4077
      %v4079 = vshrl.u32 %v3766, 16
      %v4081 = vrot.slane %v4079, 4
      %v4082 = vor.u32 %v4081, %v4077
      %v4083 = vrot.slane %v4082, 4
      %v4085 = vshll.u32 %v3767, 16
      %v4087 = vrot.slane %v4085, 5
      %v4088 = vsel %vm238, %v4083, %v4087
      %v4090 = vshrl.u32 %v3768, 16
      %v4092 = vrot.slane %v4090, 4
      %v4093 = vshll.u32 %v3768, 16
      %v4095 = vrot.slane %v4093, 5
      %v4096 = vor.u32 %v4092, %v4095
      %v4097 = vrot.slane %v4096, 4
      %v4099 = vshll.u32 %v3769, 16
      %v4101 = vrot.slane %v4099, 5
      %v4102 = vsel %vm238, %v4097, %v4101
      %v4103 = vshrl.u32 %v3769, 16
      %v4105 = vrot.slane %v4103, 4
      %v4106 = vor.u32 %v4105, %v4101
      %v4107 = vrot.slane %v4106, 4
      %v4109 = vshll.u32 %v3770, 16
      %v4111 = vrot.slane %v4109, 5
      %v4112 = vsel %vm238, %v4107, %v4111
      %v4114 = vshrl.u32 %v3771, 16
      %v4116 = vrot.slane %v4114, 4
      %v4117 = vshll.u32 %v3771, 16
      %v4119 = vrot.slane %v4117, 5
      %v4120 = vor.u32 %v4116, %v4119
      %v4121 = vrot.slane %v4120, 4
      %v4123 = vshll.u32 %v3772, 16
      %v4125 = vrot.slane %v4123, 5
      %v4126 = vsel %vm238, %v4121, %v4125
      %v4127 = vshrl.u32 %v3772, 16
      %v4129 = vrot.slane %v4127, 4
      %v4130 = vor.u32 %v4129, %v4125
      %v4131 = vrot.slane %v4130, 4
      %v4133 = vshll.u32 %v3773, 16
      %v4135 = vrot.slane %v4133, 5
      %v4136 = vsel %vm238, %v4131, %v4135
      %v4138 = vshrl.u32 %v3774, 16
      %v4140 = vrot.slane %v4138, 4
      %v4141 = vshll.u32 %v3774, 16
      %v4143 = vrot.slane %v4141, 5
      %v4144 = vor.u32 %v4140, %v4143
      %v4145 = vrot.slane %v4144, 4
      %v4147 = vshll.u32 %v3775, 16
      %v4149 = vrot.slane %v4147, 5
      %v4150 = vsel %vm238, %v4145, %v4149
      %v4151 = vshrl.u32 %v3775, 16
      %v4153 = vrot.slane %v4151, 4
      %v4154 = vor.u32 %v4153, %v4149
      %v4155 = vrot.slane %v4154, 4
      %v4157 = vshll.u32 %v3776, 16
      %v4159 = vrot.slane %v4157, 5
      %v4160 = vsel %vm238, %v4155, %v4159
      %s4161 = scalar_lea.vmem %s1, 448
      %v4162 = vld [vmem:[%s4161] sm:$0xf]
      %v4163 = vld [vmem:[%s4161 + $0x4] sm:$0xf]
      %v4164 = vld [vmem:[%s4161 + $0x8] sm:$0xf]
      %v4165 = vld [vmem:[%s4161 + $0xc] sm:$0xf]
      %v4166 = vld [vmem:[%s4161 + $0x10] sm:$0xf]
      %v4167 = vld [vmem:[%s4161 + $0x14] sm:$0xf]
      %v4168 = vld [vmem:[%s4161 + $0x18] sm:$0xf]
      %v4169 = vld [vmem:[%s4161 + $0x1c] sm:$0xf]
      %v4170 = vld [vmem:[%s4161 + $0x20] sm:$0xf]
      %v4171 = vld [vmem:[%s4161 + $0x24] sm:$0xf]
      %v4172 = vld [vmem:[%s4161 + $0x28] sm:$0xf]
      %v4173 = vld [vmem:[%s4161 + $0x2c] sm:$0xf]
      %v4174 = vld [vmem:[%s4161 + $0x30] sm:$0xf]
      %v4175 = vld [vmem:[%s4161 + $0x34] sm:$0xf]
      %v4176 = vld [vmem:[%s4161 + $0x38] sm:$0xf]
      %v4177 = vld [vmem:[%s4161 + $0x3c] sm:$0xf]
      %v4178 = vunpack.c.l.b16 %v3790
      %v4179 = vunpack.c.l.b16 %v3800
      %v4180 = vunpack.c.l.b16 %v3814
      %v4181 = vunpack.c.l.b16 %v3824
      %v4182 = vunpack.c.l.b16 %v3838
      %v4183 = vunpack.c.l.b16 %v3848
      %v4184 = vunpack.c.l.b16 %v3862
      %v4185 = vunpack.c.l.b16 %v3872
      %v4186 = vunpack.c.l.b16 %v3886
      %v4187 = vunpack.c.l.b16 %v3896
      %v4188 = vunpack.c.l.b16 %v3910
      %v4189 = vunpack.c.l.b16 %v3920
      %v4190 = vunpack.c.l.b16 %v3934
      %v4191 = vunpack.c.l.b16 %v3944
      %v4192 = vunpack.c.l.b16 %v3958
      %v4193 = vunpack.c.l.b16 %v3968
      %v4194 = vunpack.c.l.b16 %v3982
      %v4195 = vunpack.c.l.b16 %v3992
      %v4196 = vunpack.c.l.b16 %v4006
      %v4197 = vunpack.c.l.b16 %v4016
      %v4198 = vunpack.c.l.b16 %v4030
      %v4199 = vunpack.c.l.b16 %v4040
      %v4200 = vunpack.c.l.b16 %v4054
      %v4201 = vunpack.c.l.b16 %v4064
      %v4202 = vunpack.c.l.b16 %v4078
      %v4203 = vunpack.c.l.b16 %v4088
      %v4204 = vunpack.c.l.b16 %v4102
      %v4205 = vunpack.c.l.b16 %v4112
      %v4206 = vunpack.c.l.b16 %v4126
      %v4207 = vunpack.c.l.b16 %v4136
      %v4208 = vunpack.c.l.b16 %v4150
      %v4209 = vunpack.c.l.b16 %v4160
      %v4210 = vpack.c.b16 %v4179, %v4178
      %v4211 = vpack.c.b16 %v4181, %v4180
      %v4212 = vpack.c.b16 %v4183, %v4182
      %v4213 = vpack.c.b16 %v4185, %v4184
      %v4214 = vpack.c.b16 %v4187, %v4186
      %v4215 = vpack.c.b16 %v4189, %v4188
      %v4216 = vpack.c.b16 %v4191, %v4190
      %v4217 = vpack.c.b16 %v4193, %v4192
      %v4218 = vpack.c.b16 %v4195, %v4194
      %v4219 = vpack.c.b16 %v4197, %v4196
      %v4220 = vpack.c.b16 %v4199, %v4198
      %v4221 = vpack.c.b16 %v4201, %v4200
      %v4222 = vpack.c.b16 %v4203, %v4202
      %v4223 = vpack.c.b16 %v4205, %v4204
      %v4224 = vpack.c.b16 %v4207, %v4206
      %v4225 = vpack.c.b16 %v4209, %v4208
      %v4258 = vunpack.c.l.b16 %v4162
      %v4259 = vunpack.c.l.b16 %v4163
      %v4260 = vunpack.c.l.b16 %v4164
      %v4261 = vunpack.c.l.b16 %v4165
      %v4262 = vunpack.c.l.b16 %v4166
      %v4263 = vunpack.c.l.b16 %v4167
      %v4264 = vunpack.c.l.b16 %v4168
      %v4265 = vunpack.c.l.b16 %v4169
      %v4266 = vunpack.c.l.b16 %v4170
      %v4267 = vunpack.c.l.b16 %v4171
      %v4268 = vunpack.c.l.b16 %v4172
      %v4269 = vunpack.c.l.b16 %v4173
      %v4270 = vunpack.c.l.b16 %v4174
      %v4271 = vunpack.c.l.b16 %v4175
      %v4272 = vunpack.c.l.b16 %v4176
      %v4273 = vunpack.c.l.b16 %v4177
      %v4274 = vpack.c.b16 %v4259, %v4258
      %v4275 = vpack.c.b16 %v4261, %v4260
      %v4276 = vpack.c.b16 %v4263, %v4262
      %v4277 = vpack.c.b16 %v4265, %v4264
      %v4278 = vpack.c.b16 %v4267, %v4266
      %v4279 = vpack.c.b16 %v4269, %v4268
      %v4280 = vpack.c.b16 %v4271, %v4270
      %v4281 = vpack.c.b16 %v4273, %v4272
      %4290 = vmatprep.subr.bf16.mxu0 0
      %4291 = vmatpush1.bf16.msra.mxu0 %v4281
      %4292 = vmatprep.subr.bf16.mxu0 0
      %4293 = vmatpush1.bf16.msra.mxu0 %v4280
      %4294 = vmatprep.subr.bf16.mxu0 0
      %4295 = vmatpush1.bf16.msra.mxu0 %v4279
      %4296 = vmatprep.subr.bf16.mxu0 0
      %4297 = vmatpush1.bf16.msra.mxu0 %v4278
      %4298 = vmatprep.subr.bf16.mxu0 0
      %4299 = vmatpush1.bf16.msra.mxu0 %v4277
      %4300 = vmatprep.subr.bf16.mxu0 0
      %4301 = vmatpush1.bf16.msra.mxu0 %v4276
      %4302 = vmatprep.subr.bf16.mxu0 0
      %4303 = vmatpush1.bf16.msra.mxu0 %v4275
      %4304 = vmatprep.subr.bf16.mxu0 0
      %4305 = vmatpush1.bf16.msra.mxu0 %v4274
      %4306 = vmatprep.subr.bf16.mxu0 0
      %4307 = vmatpush2.bf16.msra.mxu0 0
      %4308 = vmatprep.subr.bf16.mxu0 0
      %4309 = vmatpush2.bf16.msra.mxu0 0
      %4310 = vmatprep.subr.bf16.mxu0 0
      %4311 = vmatpush2.bf16.msra.mxu0 0
      %4312 = vmatprep.subr.bf16.mxu0 0
      %4313 = vmatpush2.bf16.msra.mxu0 0
      %4314 = vmatprep.subr.bf16.mxu0 0
      %4315 = vmatpush2.bf16.msra.mxu0 0
      %4316 = vmatprep.subr.bf16.mxu0 0
      %4317 = vmatpush2.bf16.msra.mxu0 0
      %4318 = vmatprep.subr.bf16.mxu0 0
      %4319 = vmatpush2.bf16.msra.mxu0 0
      %4320 = vmatprep.subr.bf16.mxu0 0
      %4321 = vmatpush2.bf16.msra.mxu0 0
      %4322 = vmatprep.mubr.bf16.mxu0 0
      %4323 = vmatmul.mubr.bf16.gmra.mxu0 %v4210
      %v4324 = vpop.f32.mrf.mxu0
      %v4325 = vadd.f32 0.0, %v4324
      %v4326 = vpop.f32.mrf.mxu0
      %v4327 = vpop.f32.mrf.mxu0
      %v4328 = vadd.f32 0.0, %v4327
      %v4329 = vpop.f32.mrf.mxu0
      %4330 = vmatprep.mubr.bf16.mxu0 0
      %4331 = vmatmul.mubr.bf16.gmra.mxu0 %v4211
      %v4332 = vpop.f32.mrf.mxu0
      %v4333 = vadd.f32 0.0, %v4332
      %v4334 = vpop.f32.mrf.mxu0
      %v4335 = vpop.f32.mrf.mxu0
      %v4336 = vadd.f32 0.0, %v4335
      %v4337 = vpop.f32.mrf.mxu0
      %4338 = vmatprep.mubr.bf16.mxu0 0
      %4339 = vmatmul.mubr.bf16.gmra.mxu0 %v4212
      %v4340 = vpop.f32.mrf.mxu0
      %v4341 = vadd.f32 0.0, %v4340
      %v4342 = vpop.f32.mrf.mxu0
      %v4343 = vpop.f32.mrf.mxu0
      %v4344 = vadd.f32 0.0, %v4343
      %v4345 = vpop.f32.mrf.mxu0
      %4346 = vmatprep.mubr.bf16.mxu0 0
      %4347 = vmatmul.mubr.bf16.gmra.mxu0 %v4213
      %v4348 = vpop.f32.mrf.mxu0
      %v4349 = vadd.f32 0.0, %v4348
      %v4350 = vpop.f32.mrf.mxu0
      %v4351 = vpop.f32.mrf.mxu0
      %v4352 = vadd.f32 0.0, %v4351
      %v4353 = vpop.f32.mrf.mxu0
      %4354 = vmatprep.mubr.bf16.mxu0 0
      %4355 = vmatmul.mubr.bf16.gmra.mxu0 %v4214
      %v4356 = vpop.f32.mrf.mxu0
      %v4357 = vadd.f32 0.0, %v4356
      %v4358 = vpop.f32.mrf.mxu0
      %v4359 = vpop.f32.mrf.mxu0
      %v4360 = vadd.f32 0.0, %v4359
      %v4361 = vpop.f32.mrf.mxu0
      %4362 = vmatprep.mubr.bf16.mxu0 0
      %4363 = vmatmul.mubr.bf16.gmra.mxu0 %v4215
      %v4364 = vpop.f32.mrf.mxu0
      %v4365 = vadd.f32 0.0, %v4364
      %v4366 = vpop.f32.mrf.mxu0
      %v4367 = vpop.f32.mrf.mxu0
      %v4368 = vadd.f32 0.0, %v4367
      %v4369 = vpop.f32.mrf.mxu0
      %4370 = vmatprep.mubr.bf16.mxu0 0
      %4371 = vmatmul.mubr.bf16.gmra.mxu0 %v4216
      %v4372 = vpop.f32.mrf.mxu0
      %v4373 = vadd.f32 0.0, %v4372
      %v4374 = vpop.f32.mrf.mxu0
      %v4375 = vpop.f32.mrf.mxu0
      %v4376 = vadd.f32 0.0, %v4375
      %v4377 = vpop.f32.mrf.mxu0
      %4378 = vmatprep.mubr.bf16.mxu0 0
      %4379 = vmatmul.mubr.bf16.gmra.mxu0 %v4217
      %v4380 = vpop.f32.mrf.mxu0
      %v4381 = vadd.f32 0.0, %v4380
      %v4382 = vpop.f32.mrf.mxu0
      %v4383 = vpop.f32.mrf.mxu0
      %v4384 = vadd.f32 0.0, %v4383
      %v4385 = vpop.f32.mrf.mxu0
      %4386 = vmatprep.mubr.bf16.mxu0 0
      %4387 = vmatmul.mubr.bf16.gmra.mxu0 %v4218
      %v4388 = vpop.f32.mrf.mxu0
      %v4389 = vadd.f32 0.0, %v4388
      %v4390 = vpop.f32.mrf.mxu0
      %v4391 = vpop.f32.mrf.mxu0
      %v4392 = vadd.f32 0.0, %v4391
      %v4393 = vpop.f32.mrf.mxu0
      %4394 = vmatprep.mubr.bf16.mxu0 0
      %4395 = vmatmul.mubr.bf16.gmra.mxu0 %v4219
      %v4396 = vpop.f32.mrf.mxu0
      %v4397 = vadd.f32 0.0, %v4396
      %v4398 = vpop.f32.mrf.mxu0
      %v4399 = vpop.f32.mrf.mxu0
      %v4400 = vadd.f32 0.0, %v4399
      %v4401 = vpop.f32.mrf.mxu0
      %4402 = vmatprep.mubr.bf16.mxu0 0
      %4403 = vmatmul.mubr.bf16.gmra.mxu0 %v4220
      %v4404 = vpop.f32.mrf.mxu0
      %v4405 = vadd.f32 0.0, %v4404
      %v4406 = vpop.f32.mrf.mxu0
      %v4407 = vpop.f32.mrf.mxu0
      %v4408 = vadd.f32 0.0, %v4407
      %v4409 = vpop.f32.mrf.mxu0
      %4410 = vmatprep.mubr.bf16.mxu0 0
      %4411 = vmatmul.mubr.bf16.gmra.mxu0 %v4221
      %v4412 = vpop.f32.mrf.mxu0
      %v4413 = vadd.f32 0.0, %v4412
      %v4414 = vpop.f32.mrf.mxu0
      %v4415 = vpop.f32.mrf.mxu0
      %v4416 = vadd.f32 0.0, %v4415
      %v4417 = vpop.f32.mrf.mxu0
      %4418 = vmatprep.mubr.bf16.mxu0 0
      %4419 = vmatmul.mubr.bf16.gmra.mxu0 %v4222
      %v4420 = vpop.f32.mrf.mxu0
      %v4421 = vadd.f32 0.0, %v4420
      %v4422 = vpop.f32.mrf.mxu0
      %v4423 = vpop.f32.mrf.mxu0
      %v4424 = vadd.f32 0.0, %v4423
      %v4425 = vpop.f32.mrf.mxu0
      %4426 = vmatprep.mubr.bf16.mxu0 0
      %4427 = vmatmul.mubr.bf16.gmra.mxu0 %v4223
      %v4428 = vpop.f32.mrf.mxu0
      %v4429 = vadd.f32 0.0, %v4428
      %v4430 = vpop.f32.mrf.mxu0
      %v4431 = vpop.f32.mrf.mxu0
      %v4432 = vadd.f32 0.0, %v4431
      %v4433 = vpop.f32.mrf.mxu0
      %4434 = vmatprep.mubr.bf16.mxu0 0
      %4435 = vmatmul.mubr.bf16.gmra.mxu0 %v4224
      %v4436 = vpop.f32.mrf.mxu0
      %v4437 = vadd.f32 0.0, %v4436
      %v4438 = vpop.f32.mrf.mxu0
      %v4439 = vpop.f32.mrf.mxu0
      %v4440 = vadd.f32 0.0, %v4439
      %v4441 = vpop.f32.mrf.mxu0
      %4442 = vmatprep.mubr.bf16.mxu0 0
      %4443 = vmatmul.mubr.bf16.gmra.mxu0 %v4225
      %v4444 = vpop.f32.mrf.mxu0
      %v4445 = vadd.f32 0.0, %v4444
      %v4446 = vpop.f32.mrf.mxu0
      %v4447 = vpop.f32.mrf.mxu0
      %v4448 = vadd.f32 0.0, %v4447
      %v4449 = vpop.f32.mrf.mxu0
      %4450 = vdwg.mxu0
      %v4451 = vadd.f32 %v3697, %v4325
      %v4452 = vadd.f32 %v3698, %v4328
      %v4453 = vadd.f32 %v3699, %v4333
      %v4454 = vadd.f32 %v3700, %v4336
      %v4455 = vadd.f32 %v3701, %v4341
      %v4456 = vadd.f32 %v3702, %v4344
      %v4457 = vadd.f32 %v3703, %v4349
      %v4458 = vadd.f32 %v3704, %v4352
      %v4459 = vadd.f32 %v3705, %v4357
      %v4460 = vadd.f32 %v3706, %v4360
      %v4461 = vadd.f32 %v3707, %v4365
      %v4462 = vadd.f32 %v3708, %v4368
      %v4463 = vadd.f32 %v3709, %v4373
      %v4464 = vadd.f32 %v3710, %v4376
      %v4465 = vadd.f32 %v3711, %v4381
      %v4466 = vadd.f32 %v3712, %v4384
      %v4467 = vadd.f32 %v3713, %v4389
      %v4468 = vadd.f32 %v3714, %v4392
      %v4469 = vadd.f32 %v3715, %v4397
      %v4470 = vadd.f32 %v3716, %v4400
      %v4471 = vadd.f32 %v3717, %v4405
      %v4472 = vadd.f32 %v3718, %v4408
      %v4473 = vadd.f32 %v3719, %v4413
      %v4474 = vadd.f32 %v3720, %v4416
      %v4475 = vadd.f32 %v3721, %v4421
      %v4476 = vadd.f32 %v3722, %v4424
      %v4477 = vadd.f32 %v3723, %v4429
      %v4478 = vadd.f32 %v3724, %v4432
      %v4479 = vadd.f32 %v3725, %v4437
      %v4480 = vadd.f32 %v3726, %v4440
      %v4481 = vadd.f32 %v3727, %v4445
      %v4482 = vadd.f32 %v3728, %v4448
      %v4483 = vld [vmem:[%s3342] sm:$0xe]
      %v4484 = vld [vmem:[%s3342 + $0xc] sm:$0xe]
      %v4485 = vld [vmem:[%s3342 + $0x18] sm:$0xe]
      %v4486 = vld [vmem:[%s3342 + $0x24] sm:$0xe]
      %v4487 = vld [vmem:[%s3342 + $0x30] sm:$0xe]
      %v4488 = vld [vmem:[%s3342 + $0x3c] sm:$0xe]
      %v4489 = vld [vmem:[%s3342 + $0x48] sm:$0xe]
      %v4490 = vld [vmem:[%s3342 + $0x54] sm:$0xe]
      %v4491 = vld [vmem:[%s3342 + $0x60] sm:$0xe]
      %v4492 = vld [vmem:[%s3342 + $0x6c] sm:$0xe]
      %v4493 = vld [vmem:[%s3342 + $0x78] sm:$0xe]
      %v4494 = vld [vmem:[%s3342 + $0x84] sm:$0xe]
      %v4495 = vld [vmem:[%s3342 + $0x90] sm:$0xe]
      %v4496 = vld [vmem:[%s3342 + $0x9c] sm:$0xe]
      %v4497 = vld [vmem:[%s3342 + $0xa8] sm:$0xe]
      %v4498 = vld [vmem:[%s3342 + $0xb4] sm:$0xe]
      %v4547 = vrot.slane %v4483, 5
      %v4548 = vrot.slane %v4547, 4
      %v4549 = vrot.slane %v3730, 5
      %v4550 = vsel %vm1268, %v4548, %v4549
      %v4551 = vrot.slane %v4549, 4
      %v4552 = vrot.slane %v3731, 5
      %v4553 = vsel %vm1268, %v4551, %v4552
      %v4554 = vrot.slane %v4484, 5
      %v4555 = vrot.slane %v4554, 4
      %v4556 = vrot.slane %v3733, 5
      %v4557 = vsel %vm1268, %v4555, %v4556
      %v4558 = vrot.slane %v4556, 4
      %v4559 = vrot.slane %v3734, 5
      %v4560 = vsel %vm1268, %v4558, %v4559
      %v4561 = vrot.slane %v4485, 5
      %v4562 = vrot.slane %v4561, 4
      %v4563 = vrot.slane %v3736, 5
      %v4564 = vsel %vm1268, %v4562, %v4563
      %v4565 = vrot.slane %v4563, 4
      %v4566 = vrot.slane %v3737, 5
      %v4567 = vsel %vm1268, %v4565, %v4566
      %v4568 = vrot.slane %v4486, 5
      %v4569 = vrot.slane %v4568, 4
      %v4570 = vrot.slane %v3739, 5
      %v4571 = vsel %vm1268, %v4569, %v4570
      %v4572 = vrot.slane %v4570, 4
      %v4573 = vrot.slane %v3740, 5
      %v4574 = vsel %vm1268, %v4572, %v4573
      %v4575 = vrot.slane %v4487, 5
      %v4576 = vrot.slane %v4575, 4
      %v4577 = vrot.slane %v3742, 5
      %v4578 = vsel %vm1268, %v4576, %v4577
      %v4579 = vrot.slane %v4577, 4
      %v4580 = vrot.slane %v3743, 5
      %v4581 = vsel %vm1268, %v4579, %v4580
      %v4582 = vrot.slane %v4488, 5
      %v4583 = vrot.slane %v4582, 4
      %v4584 = vrot.slane %v3745, 5
      %v4585 = vsel %vm1268, %v4583, %v4584
      %v4586 = vrot.slane %v4584, 4
      %v4587 = vrot.slane %v3746, 5
      %v4588 = vsel %vm1268, %v4586, %v4587
      %v4589 = vrot.slane %v4489, 5
      %v4590 = vrot.slane %v4589, 4
      %v4591 = vrot.slane %v3748, 5
      %v4592 = vsel %vm1268, %v4590, %v4591
      %v4593 = vrot.slane %v4591, 4
      %v4594 = vrot.slane %v3749, 5
      %v4595 = vsel %vm1268, %v4593, %v4594
      %v4596 = vrot.slane %v4490, 5
      %v4597 = vrot.slane %v4596, 4
      %v4598 = vrot.slane %v3751, 5
      %v4599 = vsel %vm1268, %v4597, %v4598
      %v4600 = vrot.slane %v4598, 4
      %v4601 = vrot.slane %v3752, 5
      %v4602 = vsel %vm1268, %v4600, %v4601
      %v4603 = vrot.slane %v4491, 5
      %v4604 = vrot.slane %v4603, 4
      %v4605 = vrot.slane %v3754, 5
      %v4606 = vsel %vm1268, %v4604, %v4605
      %v4607 = vrot.slane %v4605, 4
      %v4608 = vrot.slane %v3755, 5
      %v4609 = vsel %vm1268, %v4607, %v4608
      %v4610 = vrot.slane %v4492, 5
      %v4611 = vrot.slane %v4610, 4
      %v4612 = vrot.slane %v3757, 5
      %v4613 = vsel %vm1268, %v4611, %v4612
      %v4614 = vrot.slane %v4612, 4
      %v4615 = vrot.slane %v3758, 5
      %v4616 = vsel %vm1268, %v4614, %v4615
      %v4617 = vrot.slane %v4493, 5
      %v4618 = vrot.slane %v4617, 4
      %v4619 = vrot.slane %v3760, 5
      %v4620 = vsel %vm1268, %v4618, %v4619
      %v4621 = vrot.slane %v4619, 4
      %v4622 = vrot.slane %v3761, 5
      %v4623 = vsel %vm1268, %v4621, %v4622
      %v4624 = vrot.slane %v4494, 5
      %v4625 = vrot.slane %v4624, 4
      %v4626 = vrot.slane %v3763, 5
      %v4627 = vsel %vm1268, %v4625, %v4626
      %v4628 = vrot.slane %v4626, 4
      %v4629 = vrot.slane %v3764, 5
      %v4630 = vsel %vm1268, %v4628, %v4629
      %v4631 = vrot.slane %v4495, 5
      %v4632 = vrot.slane %v4631, 4
      %v4633 = vrot.slane %v3766, 5
      %v4634 = vsel %vm1268, %v4632, %v4633
      %v4635 = vrot.slane %v4633, 4
      %v4636 = vrot.slane %v3767, 5
      %v4637 = vsel %vm1268, %v4635, %v4636
      %v4638 = vrot.slane %v4496, 5
      %v4639 = vrot.slane %v4638, 4
      %v4640 = vrot.slane %v3769, 5
      %v4641 = vsel %vm1268, %v4639, %v4640
      %v4642 = vrot.slane %v4640, 4
      %v4643 = vrot.slane %v3770, 5
      %v4644 = vsel %vm1268, %v4642, %v4643
      %v4645 = vrot.slane %v4497, 5
      %v4646 = vrot.slane %v4645, 4
      %v4647 = vrot.slane %v3772, 5
      %v4648 = vsel %vm1268, %v4646, %v4647
      %v4649 = vrot.slane %v4647, 4
      %v4650 = vrot.slane %v3773, 5
      %v4651 = vsel %vm1268, %v4649, %v4650
      %v4652 = vrot.slane %v4498, 5
      %v4653 = vrot.slane %v4652, 4
      %v4654 = vrot.slane %v3775, 5
      %v4655 = vsel %vm1268, %v4653, %v4654
      %v4656 = vrot.slane %v4654, 4
      %v4657 = vrot.slane %v3776, 5
      %v4658 = vsel %vm1268, %v4656, %v4657
      %s4659 = scalar_lea.vmem %s1, 512
      %v4660 = vld [vmem:[%s4659] sm:$0xf]
      %v4661 = vld [vmem:[%s4659 + $0x4] sm:$0xf]
      %v4662 = vld [vmem:[%s4659 + $0x8] sm:$0xf]
      %v4663 = vld [vmem:[%s4659 + $0xc] sm:$0xf]
      %v4664 = vld [vmem:[%s4659 + $0x10] sm:$0xf]
      %v4665 = vld [vmem:[%s4659 + $0x14] sm:$0xf]
      %v4666 = vld [vmem:[%s4659 + $0x18] sm:$0xf]
      %v4667 = vld [vmem:[%s4659 + $0x1c] sm:$0xf]
      %v4668 = vld [vmem:[%s4659 + $0x20] sm:$0xf]
      %v4669 = vld [vmem:[%s4659 + $0x24] sm:$0xf]
      %v4670 = vld [vmem:[%s4659 + $0x28] sm:$0xf]
      %v4671 = vld [vmem:[%s4659 + $0x2c] sm:$0xf]
      %v4672 = vld [vmem:[%s4659 + $0x30] sm:$0xf]
      %v4673 = vld [vmem:[%s4659 + $0x34] sm:$0xf]
      %v4674 = vld [vmem:[%s4659 + $0x38] sm:$0xf]
      %v4675 = vld [vmem:[%s4659 + $0x3c] sm:$0xf]
      %v4676 = vunpack.c.l.b16 %v4550
      %v4677 = vunpack.c.l.b16 %v4553
      %v4678 = vunpack.c.l.b16 %v4557
      %v4679 = vunpack.c.l.b16 %v4560
      %v4680 = vunpack.c.l.b16 %v4564
      %v4681 = vunpack.c.l.b16 %v4567
      %v4682 = vunpack.c.l.b16 %v4571
      %v4683 = vunpack.c.l.b16 %v4574
      %v4684 = vunpack.c.l.b16 %v4578
      %v4685 = vunpack.c.l.b16 %v4581
      %v4686 = vunpack.c.l.b16 %v4585
      %v4687 = vunpack.c.l.b16 %v4588
      %v4688 = vunpack.c.l.b16 %v4592
      %v4689 = vunpack.c.l.b16 %v4595
      %v4690 = vunpack.c.l.b16 %v4599
      %v4691 = vunpack.c.l.b16 %v4602
      %v4692 = vunpack.c.l.b16 %v4606
      %v4693 = vunpack.c.l.b16 %v4609
      %v4694 = vunpack.c.l.b16 %v4613
      %v4695 = vunpack.c.l.b16 %v4616
      %v4696 = vunpack.c.l.b16 %v4620
      %v4697 = vunpack.c.l.b16 %v4623
      %v4698 = vunpack.c.l.b16 %v4627
      %v4699 = vunpack.c.l.b16 %v4630
      %v4700 = vunpack.c.l.b16 %v4634
      %v4701 = vunpack.c.l.b16 %v4637
      %v4702 = vunpack.c.l.b16 %v4641
      %v4703 = vunpack.c.l.b16 %v4644
      %v4704 = vunpack.c.l.b16 %v4648
      %v4705 = vunpack.c.l.b16 %v4651
      %v4706 = vunpack.c.l.b16 %v4655
      %v4707 = vunpack.c.l.b16 %v4658
      %v4708 = vpack.c.b16 %v4677, %v4676
      %v4709 = vpack.c.b16 %v4679, %v4678
      %v4710 = vpack.c.b16 %v4681, %v4680
      %v4711 = vpack.c.b16 %v4683, %v4682
      %v4712 = vpack.c.b16 %v4685, %v4684
      %v4713 = vpack.c.b16 %v4687, %v4686
      %v4714 = vpack.c.b16 %v4689, %v4688
      %v4715 = vpack.c.b16 %v4691, %v4690
      %v4716 = vpack.c.b16 %v4693, %v4692
      %v4717 = vpack.c.b16 %v4695, %v4694
      %v4718 = vpack.c.b16 %v4697, %v4696
      %v4719 = vpack.c.b16 %v4699, %v4698
      %v4720 = vpack.c.b16 %v4701, %v4700
      %v4721 = vpack.c.b16 %v4703, %v4702
      %v4722 = vpack.c.b16 %v4705, %v4704
      %v4723 = vpack.c.b16 %v4707, %v4706
      %v4756 = vunpack.c.l.b16 %v4660
      %v4757 = vunpack.c.l.b16 %v4661
      %v4758 = vunpack.c.l.b16 %v4662
      %v4759 = vunpack.c.l.b16 %v4663
      %v4760 = vunpack.c.l.b16 %v4664
      %v4761 = vunpack.c.l.b16 %v4665
      %v4762 = vunpack.c.l.b16 %v4666
      %v4763 = vunpack.c.l.b16 %v4667
      %v4764 = vunpack.c.l.b16 %v4668
      %v4765 = vunpack.c.l.b16 %v4669
      %v4766 = vunpack.c.l.b16 %v4670
      %v4767 = vunpack.c.l.b16 %v4671
      %v4768 = vunpack.c.l.b16 %v4672
      %v4769 = vunpack.c.l.b16 %v4673
      %v4770 = vunpack.c.l.b16 %v4674
      %v4771 = vunpack.c.l.b16 %v4675
      %v4772 = vpack.c.b16 %v4757, %v4756
      %v4773 = vpack.c.b16 %v4759, %v4758
      %v4774 = vpack.c.b16 %v4761, %v4760
      %v4775 = vpack.c.b16 %v4763, %v4762
      %v4776 = vpack.c.b16 %v4765, %v4764
      %v4777 = vpack.c.b16 %v4767, %v4766
      %v4778 = vpack.c.b16 %v4769, %v4768
      %v4779 = vpack.c.b16 %v4771, %v4770
      %4788 = vmatprep.subr.bf16.mxu0 0
      %4789 = vmatpush1.bf16.msra.mxu0 %v4779
      %4790 = vmatprep.subr.bf16.mxu0 0
      %4791 = vmatpush1.bf16.msra.mxu0 %v4778
      %4792 = vmatprep.subr.bf16.mxu0 0
      %4793 = vmatpush1.bf16.msra.mxu0 %v4777
      %4794 = vmatprep.subr.bf16.mxu0 0
      %4795 = vmatpush1.bf16.msra.mxu0 %v4776
      %4796 = vmatprep.subr.bf16.mxu0 0
      %4797 = vmatpush1.bf16.msra.mxu0 %v4775
      %4798 = vmatprep.subr.bf16.mxu0 0
      %4799 = vmatpush1.bf16.msra.mxu0 %v4774
      %4800 = vmatprep.subr.bf16.mxu0 0
      %4801 = vmatpush1.bf16.msra.mxu0 %v4773
      %4802 = vmatprep.subr.bf16.mxu0 0
      %4803 = vmatpush1.bf16.msra.mxu0 %v4772
      %4804 = vmatprep.subr.bf16.mxu0 0
      %4805 = vmatpush2.bf16.msra.mxu0 0
      %4806 = vmatprep.subr.bf16.mxu0 0
      %4807 = vmatpush2.bf16.msra.mxu0 0
      %4808 = vmatprep.subr.bf16.mxu0 0
      %4809 = vmatpush2.bf16.msra.mxu0 0
      %4810 = vmatprep.subr.bf16.mxu0 0
      %4811 = vmatpush2.bf16.msra.mxu0 0
      %4812 = vmatprep.subr.bf16.mxu0 0
      %4813 = vmatpush2.bf16.msra.mxu0 0
      %4814 = vmatprep.subr.bf16.mxu0 0
      %4815 = vmatpush2.bf16.msra.mxu0 0
      %4816 = vmatprep.subr.bf16.mxu0 0
      %4817 = vmatpush2.bf16.msra.mxu0 0
      %4818 = vmatprep.subr.bf16.mxu0 0
      %4819 = vmatpush2.bf16.msra.mxu0 0
      %4820 = vmatprep.mubr.bf16.mxu0 0
      %4821 = vmatmul.mubr.bf16.gmra.mxu0 %v4708
      %v4822 = vpop.f32.mrf.mxu0
      %v4823 = vadd.f32 0.0, %v4822
      %v4824 = vpop.f32.mrf.mxu0
      %v4825 = vpop.f32.mrf.mxu0
      %v4826 = vadd.f32 0.0, %v4825
      %v4827 = vpop.f32.mrf.mxu0
      %4828 = vmatprep.mubr.bf16.mxu0 0
      %4829 = vmatmul.mubr.bf16.gmra.mxu0 %v4709
      %v4830 = vpop.f32.mrf.mxu0
      %v4831 = vadd.f32 0.0, %v4830
      %v4832 = vpop.f32.mrf.mxu0
      %v4833 = vpop.f32.mrf.mxu0
      %v4834 = vadd.f32 0.0, %v4833
      %v4835 = vpop.f32.mrf.mxu0
      %4836 = vmatprep.mubr.bf16.mxu0 0
      %4837 = vmatmul.mubr.bf16.gmra.mxu0 %v4710
      %v4838 = vpop.f32.mrf.mxu0
      %v4839 = vadd.f32 0.0, %v4838
      %v4840 = vpop.f32.mrf.mxu0
      %v4841 = vpop.f32.mrf.mxu0
      %v4842 = vadd.f32 0.0, %v4841
      %v4843 = vpop.f32.mrf.mxu0
      %4844 = vmatprep.mubr.bf16.mxu0 0
      %4845 = vmatmul.mubr.bf16.gmra.mxu0 %v4711
      %v4846 = vpop.f32.mrf.mxu0
      %v4847 = vadd.f32 0.0, %v4846
      %v4848 = vpop.f32.mrf.mxu0
      %v4849 = vpop.f32.mrf.mxu0
      %v4850 = vadd.f32 0.0, %v4849
      %v4851 = vpop.f32.mrf.mxu0
      %4852 = vmatprep.mubr.bf16.mxu0 0
      %4853 = vmatmul.mubr.bf16.gmra.mxu0 %v4712
      %v4854 = vpop.f32.mrf.mxu0
      %v4855 = vadd.f32 0.0, %v4854
      %v4856 = vpop.f32.mrf.mxu0
      %v4857 = vpop.f32.mrf.mxu0
      %v4858 = vadd.f32 0.0, %v4857
      %v4859 = vpop.f32.mrf.mxu0
      %4860 = vmatprep.mubr.bf16.mxu0 0
      %4861 = vmatmul.mubr.bf16.gmra.mxu0 %v4713
      %v4862 = vpop.f32.mrf.mxu0
      %v4863 = vadd.f32 0.0, %v4862
      %v4864 = vpop.f32.mrf.mxu0
      %v4865 = vpop.f32.mrf.mxu0
      %v4866 = vadd.f32 0.0, %v4865
      %v4867 = vpop.f32.mrf.mxu0
      %4868 = vmatprep.mubr.bf16.mxu0 0
      %4869 = vmatmul.mubr.bf16.gmra.mxu0 %v4714
      %v4870 = vpop.f32.mrf.mxu0
      %v4871 = vadd.f32 0.0, %v4870
      %v4872 = vpop.f32.mrf.mxu0
      %v4873 = vpop.f32.mrf.mxu0
      %v4874 = vadd.f32 0.0, %v4873
      %v4875 = vpop.f32.mrf.mxu0
      %4876 = vmatprep.mubr.bf16.mxu0 0
      %4877 = vmatmul.mubr.bf16.gmra.mxu0 %v4715
      %v4878 = vpop.f32.mrf.mxu0
      %v4879 = vadd.f32 0.0, %v4878
      %v4880 = vpop.f32.mrf.mxu0
      %v4881 = vpop.f32.mrf.mxu0
      %v4882 = vadd.f32 0.0, %v4881
      %v4883 = vpop.f32.mrf.mxu0
      %4884 = vmatprep.mubr.bf16.mxu0 0
      %4885 = vmatmul.mubr.bf16.gmra.mxu0 %v4716
      %v4886 = vpop.f32.mrf.mxu0
      %v4887 = vadd.f32 0.0, %v4886
      %v4888 = vpop.f32.mrf.mxu0
      %v4889 = vpop.f32.mrf.mxu0
      %v4890 = vadd.f32 0.0, %v4889
      %v4891 = vpop.f32.mrf.mxu0
      %4892 = vmatprep.mubr.bf16.mxu0 0
      %4893 = vmatmul.mubr.bf16.gmra.mxu0 %v4717
      %v4894 = vpop.f32.mrf.mxu0
      %v4895 = vadd.f32 0.0, %v4894
      %v4896 = vpop.f32.mrf.mxu0
      %v4897 = vpop.f32.mrf.mxu0
      %v4898 = vadd.f32 0.0, %v4897
      %v4899 = vpop.f32.mrf.mxu0
      %4900 = vmatprep.mubr.bf16.mxu0 0
      %4901 = vmatmul.mubr.bf16.gmra.mxu0 %v4718
      %v4902 = vpop.f32.mrf.mxu0
      %v4903 = vadd.f32 0.0, %v4902
      %v4904 = vpop.f32.mrf.mxu0
      %v4905 = vpop.f32.mrf.mxu0
      %v4906 = vadd.f32 0.0, %v4905
      %v4907 = vpop.f32.mrf.mxu0
      %4908 = vmatprep.mubr.bf16.mxu0 0
      %4909 = vmatmul.mubr.bf16.gmra.mxu0 %v4719
      %v4910 = vpop.f32.mrf.mxu0
      %v4911 = vadd.f32 0.0, %v4910
      %v4912 = vpop.f32.mrf.mxu0
      %v4913 = vpop.f32.mrf.mxu0
      %v4914 = vadd.f32 0.0, %v4913
      %v4915 = vpop.f32.mrf.mxu0
      %4916 = vmatprep.mubr.bf16.mxu0 0
      %4917 = vmatmul.mubr.bf16.gmra.mxu0 %v4720
      %v4918 = vpop.f32.mrf.mxu0
      %v4919 = vadd.f32 0.0, %v4918
      %v4920 = vpop.f32.mrf.mxu0
      %v4921 = vpop.f32.mrf.mxu0
      %v4922 = vadd.f32 0.0, %v4921
      %v4923 = vpop.f32.mrf.mxu0
      %4924 = vmatprep.mubr.bf16.mxu0 0
      %4925 = vmatmul.mubr.bf16.gmra.mxu0 %v4721
      %v4926 = vpop.f32.mrf.mxu0
      %v4927 = vadd.f32 0.0, %v4926
      %v4928 = vpop.f32.mrf.mxu0
      %v4929 = vpop.f32.mrf.mxu0
      %v4930 = vadd.f32 0.0, %v4929
      %v4931 = vpop.f32.mrf.mxu0
      %4932 = vmatprep.mubr.bf16.mxu0 0
      %4933 = vmatmul.mubr.bf16.gmra.mxu0 %v4722
      %v4934 = vpop.f32.mrf.mxu0
      %v4935 = vadd.f32 0.0, %v4934
      %v4936 = vpop.f32.mrf.mxu0
      %v4937 = vpop.f32.mrf.mxu0
      %v4938 = vadd.f32 0.0, %v4937
      %v4939 = vpop.f32.mrf.mxu0
      %4940 = vmatprep.mubr.bf16.mxu0 0
      %4941 = vmatmul.mubr.bf16.gmra.mxu0 %v4723
      %v4942 = vpop.f32.mrf.mxu0
      %v4943 = vadd.f32 0.0, %v4942
      %v4944 = vpop.f32.mrf.mxu0
      %v4945 = vpop.f32.mrf.mxu0
      %v4946 = vadd.f32 0.0, %v4945
      %v4947 = vpop.f32.mrf.mxu0
      %4948 = vdwg.mxu0
      %v4949 = vadd.f32 %v4451, %v4823
      %v4950 = vadd.f32 %v4452, %v4826
      %v4951 = vadd.f32 %v4453, %v4831
      %v4952 = vadd.f32 %v4454, %v4834
      %v4953 = vadd.f32 %v4455, %v4839
      %v4954 = vadd.f32 %v4456, %v4842
      %v4955 = vadd.f32 %v4457, %v4847
      %v4956 = vadd.f32 %v4458, %v4850
      %v4957 = vadd.f32 %v4459, %v4855
      %v4958 = vadd.f32 %v4460, %v4858
      %v4959 = vadd.f32 %v4461, %v4863
      %v4960 = vadd.f32 %v4462, %v4866
      %v4961 = vadd.f32 %v4463, %v4871
      %v4962 = vadd.f32 %v4464, %v4874
      %v4963 = vadd.f32 %v4465, %v4879
      %v4964 = vadd.f32 %v4466, %v4882
      %v4965 = vadd.f32 %v4467, %v4887
      %v4966 = vadd.f32 %v4468, %v4890
      %v4967 = vadd.f32 %v4469, %v4895
      %v4968 = vadd.f32 %v4470, %v4898
      %v4969 = vadd.f32 %v4471, %v4903
      %v4970 = vadd.f32 %v4472, %v4906
      %v4971 = vadd.f32 %v4473, %v4911
      %v4972 = vadd.f32 %v4474, %v4914
      %v4973 = vadd.f32 %v4475, %v4919
      %v4974 = vadd.f32 %v4476, %v4922
      %v4975 = vadd.f32 %v4477, %v4927
      %v4976 = vadd.f32 %v4478, %v4930
      %v4977 = vadd.f32 %v4479, %v4935
      %v4978 = vadd.f32 %v4480, %v4938
      %v4979 = vadd.f32 %v4481, %v4943
      %v4980 = vadd.f32 %v4482, %v4946
      %v4981 = vld [vmem:[%s2] sm:$0x1]
      %v4983 = vlaneseq
      %v4984 = vshrl.u32 %v4983, 7
      %v4985 = vsub.s32 0, %v4984
      %v4986 = vrot.slane %v4981, %v4985
      %v4988 = vadd.f32 %v4949, %v4986
      %v4989 = vadd.f32 %v4950, %v4986
      %v4990 = vadd.f32 %v4951, %v4986
      %v4991 = vadd.f32 %v4952, %v4986
      %v4992 = vadd.f32 %v4953, %v4986
      %v4993 = vadd.f32 %v4954, %v4986
      %v4994 = vadd.f32 %v4955, %v4986
      %v4995 = vadd.f32 %v4956, %v4986
      %v4996 = vadd.f32 %v4957, %v4986
      %v4997 = vadd.f32 %v4958, %v4986
      %v4998 = vadd.f32 %v4959, %v4986
      %v4999 = vadd.f32 %v4960, %v4986
      %v5000 = vadd.f32 %v4961, %v4986
      %v5001 = vadd.f32 %v4962, %v4986
      %v5002 = vadd.f32 %v4963, %v4986
      %v5003 = vadd.f32 %v4964, %v4986
      %v5004 = vadd.f32 %v4965, %v4986
      %v5005 = vadd.f32 %v4966, %v4986
      %v5006 = vadd.f32 %v4967, %v4986
      %v5007 = vadd.f32 %v4968, %v4986
      %v5008 = vadd.f32 %v4969, %v4986
      %v5009 = vadd.f32 %v4970, %v4986
      %v5010 = vadd.f32 %v4971, %v4986
      %v5011 = vadd.f32 %v4972, %v4986
      %v5012 = vadd.f32 %v4973, %v4986
      %v5013 = vadd.f32 %v4974, %v4986
      %v5014 = vadd.f32 %v4975, %v4986
      %v5015 = vadd.f32 %v4976, %v4986
      %v5016 = vadd.f32 %v4977, %v4986
      %v5017 = vadd.f32 %v4978, %v4986
      %v5018 = vadd.f32 %v4979, %v4986
      %v5019 = vadd.f32 %v4980, %v4986
      %v5020 = vmax.f32 %v4988, 0.0
      %v5021 = vmax.f32 %v4989, 0.0
      %v5022 = vmax.f32 %v4990, 0.0
      %v5023 = vmax.f32 %v4991, 0.0
      %v5024 = vmax.f32 %v4992, 0.0
      %v5025 = vmax.f32 %v4993, 0.0
      %v5026 = vmax.f32 %v4994, 0.0
      %v5027 = vmax.f32 %v4995, 0.0
      %v5028 = vmax.f32 %v4996, 0.0
      %v5029 = vmax.f32 %v4997, 0.0
      %v5030 = vmax.f32 %v4998, 0.0
      %v5031 = vmax.f32 %v4999, 0.0
      %v5032 = vmax.f32 %v5000, 0.0
      %v5033 = vmax.f32 %v5001, 0.0
      %v5034 = vmax.f32 %v5002, 0.0
      %v5035 = vmax.f32 %v5003, 0.0
      %v5036 = vmax.f32 %v5004, 0.0
      %v5037 = vmax.f32 %v5005, 0.0
      %v5038 = vmax.f32 %v5006, 0.0
      %v5039 = vmax.f32 %v5007, 0.0
      %v5040 = vmax.f32 %v5008, 0.0
      %v5041 = vmax.f32 %v5009, 0.0
      %v5042 = vmax.f32 %v5010, 0.0
      %v5043 = vmax.f32 %v5011, 0.0
      %v5044 = vmax.f32 %v5012, 0.0
      %v5045 = vmax.f32 %v5013, 0.0
      %v5046 = vmax.f32 %v5014, 0.0
      %v5047 = vmax.f32 %v5015, 0.0
      %v5048 = vmax.f32 %v5016, 0.0
      %v5049 = vmax.f32 %v5017, 0.0
      %v5050 = vmax.f32 %v5018, 0.0
      %v5051 = vmax.f32 %v5019, 0.0
      %v5052 = vpack.c.bf16 %v5021, %v5020
      %v5053 = vpack.c.bf16 %v5023, %v5022
      %v5054 = vpack.c.bf16 %v5025, %v5024
      %v5055 = vpack.c.bf16 %v5027, %v5026
      %v5056 = vpack.c.bf16 %v5029, %v5028
      %v5057 = vpack.c.bf16 %v5031, %v5030
      %v5058 = vpack.c.bf16 %v5033, %v5032
      %v5059 = vpack.c.bf16 %v5035, %v5034
      %v5060 = vpack.c.bf16 %v5037, %v5036
      %v5061 = vpack.c.bf16 %v5039, %v5038
      %v5062 = vpack.c.bf16 %v5041, %v5040
      %v5063 = vpack.c.bf16 %v5043, %v5042
      %v5064 = vpack.c.bf16 %v5045, %v5044
      %v5065 = vpack.c.bf16 %v5047, %v5046
      %v5066 = vpack.c.bf16 %v5049, %v5048
      %v5067 = vpack.c.bf16 %v5051, %v5050
      %v5084 = vunpack.c.l.b16 %v5052
      %v5085 = vunpack.c.h.b16 %v5052
      %v5086 = vunpack.c.l.b16 %v5053
      %v5087 = vunpack.c.h.b16 %v5053
      %v5088 = vunpack.c.l.b16 %v5054
      %v5089 = vunpack.c.h.b16 %v5054
      %v5090 = vunpack.c.l.b16 %v5055
      %v5091 = vunpack.c.h.b16 %v5055
      %v5092 = vunpack.c.l.b16 %v5056
      %v5093 = vunpack.c.h.b16 %v5056
      %v5094 = vunpack.c.l.b16 %v5057
      %v5095 = vunpack.c.h.b16 %v5057
      %v5096 = vunpack.c.l.b16 %v5058
      %v5097 = vunpack.c.h.b16 %v5058
      %v5098 = vunpack.c.l.b16 %v5059
      %v5099 = vunpack.c.h.b16 %v5059
      %v5100 = vunpack.c.l.b16 %v5060
      %v5101 = vunpack.c.h.b16 %v5060
      %v5102 = vunpack.c.l.b16 %v5061
      %v5103 = vunpack.c.h.b16 %v5061
      %v5104 = vunpack.c.l.b16 %v5062
      %v5105 = vunpack.c.h.b16 %v5062
      %v5106 = vunpack.c.l.b16 %v5063
      %v5107 = vunpack.c.h.b16 %v5063
      %v5108 = vunpack.c.l.b16 %v5064
      %v5109 = vunpack.c.h.b16 %v5064
      %v5110 = vunpack.c.l.b16 %v5065
      %v5111 = vunpack.c.h.b16 %v5065
      %v5112 = vunpack.c.l.b16 %v5066
      %v5113 = vunpack.c.h.b16 %v5066
      %v5114 = vunpack.c.l.b16 %v5067
      %v5115 = vunpack.c.h.b16 %v5067
      %v5116 = vpack.c.b16 %v5084, %v5084
      %v5117 = vpack.c.b16 %v5085, %v5085
      %v5118 = vpack.c.b16 %v5086, %v5086
      %v5119 = vpack.c.b16 %v5087, %v5087
      %v5120 = vpack.c.b16 %v5088, %v5088
      %v5121 = vpack.c.b16 %v5089, %v5089
      %v5122 = vpack.c.b16 %v5090, %v5090
      %v5123 = vpack.c.b16 %v5091, %v5091
      %v5124 = vpack.c.b16 %v5092, %v5092
      %v5125 = vpack.c.b16 %v5093, %v5093
      %v5126 = vpack.c.b16 %v5094, %v5094
      %v5127 = vpack.c.b16 %v5095, %v5095
      %v5128 = vpack.c.b16 %v5096, %v5096
      %v5129 = vpack.c.b16 %v5097, %v5097
      %v5130 = vpack.c.b16 %v5098, %v5098
      %v5131 = vpack.c.b16 %v5099, %v5099
      %v5132 = vpack.c.b16 %v5100, %v5100
      %v5133 = vpack.c.b16 %v5101, %v5101
      %v5134 = vpack.c.b16 %v5102, %v5102
      %v5135 = vpack.c.b16 %v5103, %v5103
      %v5136 = vpack.c.b16 %v5104, %v5104
      %v5137 = vpack.c.b16 %v5105, %v5105
      %v5138 = vpack.c.b16 %v5106, %v5106
      %v5139 = vpack.c.b16 %v5107, %v5107
      %v5140 = vpack.c.b16 %v5108, %v5108
      %v5141 = vpack.c.b16 %v5109, %v5109
      %v5142 = vpack.c.b16 %v5110, %v5110
      %v5143 = vpack.c.b16 %v5111, %v5111
      %v5144 = vpack.c.b16 %v5112, %v5112
      %v5145 = vpack.c.b16 %v5113, %v5113
      %v5146 = vpack.c.b16 %v5114, %v5114
      %v5147 = vpack.c.b16 %v5115, %v5115
      %5180 = vst [vmem:[%s170] sm:$0xf] %v5116
      %5181 = vst [vmem:[%s170 + $0x4] sm:$0xf] %v5117
      %5182 = vst [vmem:[%s170 + $0x8] sm:$0xf] %v5118
      %5183 = vst [vmem:[%s170 + $0xc] sm:$0xf] %v5119
      %5184 = vst [vmem:[%s170 + $0x10] sm:$0xf] %v5120
      %5185 = vst [vmem:[%s170 + $0x14] sm:$0xf] %v5121
      %5186 = vst [vmem:[%s170 + $0x18] sm:$0xf] %v5122
      %5187 = vst [vmem:[%s170 + $0x1c] sm:$0xf] %v5123
      %5188 = vst [vmem:[%s170 + $0x20] sm:$0xf] %v5124
      %5189 = vst [vmem:[%s170 + $0x24] sm:$0xf] %v5125
      %5190 = vst [vmem:[%s170 + $0x28] sm:$0xf] %v5126
      %5191 = vst [vmem:[%s170 + $0x2c] sm:$0xf] %v5127
      %5192 = vst [vmem:[%s170 + $0x30] sm:$0xf] %v5128
      %5193 = vst [vmem:[%s170 + $0x34] sm:$0xf] %v5129
      %5194 = vst [vmem:[%s170 + $0x38] sm:$0xf] %v5130
      %5195 = vst [vmem:[%s170 + $0x3c] sm:$0xf] %v5131
      %5196 = vst [vmem:[%s170 + $0x40] sm:$0xf] %v5132
      %5197 = vst [vmem:[%s170 + $0x44] sm:$0xf] %v5133
      %5198 = vst [vmem:[%s170 + $0x48] sm:$0xf] %v5134
      %5199 = vst [vmem:[%s170 + $0x4c] sm:$0xf] %v5135
      %5200 = vst [vmem:[%s170 + $0x50] sm:$0xf] %v5136
      %5201 = vst [vmem:[%s170 + $0x54] sm:$0xf] %v5137
      %5202 = vst [vmem:[%s170 + $0x58] sm:$0xf] %v5138
      %5203 = vst [vmem:[%s170 + $0x5c] sm:$0xf] %v5139
      %5204 = vst [vmem:[%s170 + $0x60] sm:$0xf] %v5140
      %5205 = vst [vmem:[%s170 + $0x64] sm:$0xf] %v5141
      %5206 = vst [vmem:[%s170 + $0x68] sm:$0xf] %v5142
      %5207 = vst [vmem:[%s170 + $0x6c] sm:$0xf] %v5143
      %5208 = vst [vmem:[%s170 + $0x70] sm:$0xf] %v5144
      %5209 = vst [vmem:[%s170 + $0x74] sm:$0xf] %v5145
      %5210 = vst [vmem:[%s170 + $0x78] sm:$0xf] %v5146
      %5211 = vst [vmem:[%s170 + $0x7c] sm:$0xf] %v5147
      %p5212 = scmp.lt.s32.totalorder %s14, 1
      %s5213 = scalar_select %p5212, %s14, 1
      %s5214 = smul.addr %s5213, 32
      %s5215 = smul.addr %s5214, 4
      %s5216 = scalar_lea.vmem %s3, %s5215
      // Predicated region
      $region33: #{branch.4} parent=31 // pred_check
        %p5217 = pneg %p100
      $region34: #{branch.4} parent=31 // pred_check_branch
        %5219 = sbr.rel (%p5217) target = $region36
      $region35: #{branch.4} parent=31 // pred_region
        _
      $region36: #{branch.4} parent=31 // pred_fallthru
        _
    $region32: #{branch.4} parent=5 // pred_fallthru
      _
    %p5220 = scmp.le.s32.totalorder 2, %s9
    // Predicated region
    $region37: #{branch.4} parent=5 // pred_check
      %p5221 = pneg %p5220
    $region38: #{branch.4} parent=5 // pred_check_branch
      %5223 = sbr.rel (%p5221) target = $region40
    $region39: #{branch.4} parent=5 // pred_region
      %s5224 = ssub.s32 %s9, 2
      // Predicated region
      $region41: #{branch.4} parent=39 // pred_check
        %p5225 = pneg %p106
      $region42: #{branch.4} parent=39 // pred_check_branch
        %5227 = sbr.rel (%p5225) target = $region44
      $region43: #{branch.4} parent=39 // pred_region
        %p5228 = scmp.lt.s32.totalorder %s15, 1
        %s5229 = scalar_select %p5228, %s15, 1
        %s5230 = smul.addr %s5229, 32
        %s5231 = smul.addr %s5230, 4
        %s5232 = scalar_lea.vmem %s3, %s5231
      $region44: #{branch.4} parent=39 // pred_fallthru
        _
    $region40: #{branch.4} parent=5 // pred_fallthru
      _
  $region6: #{branch.4} parent=0 // loop_footer
    %s13 = sadd.s32 1, %s9
  $region7: #{branch.4} parent=0 // loop_footer_branch
    %8 = sbr.rel target = $region3
  $region8: #{branch.4} parent=0 // loop_exit
    _

</llo_original>
